<compile_context>
chip_gen: v5e
topology: v5e:2x2
jax: 0.10.0
libtpu: 0.0.40
codegen_flags: <defaults>
</compile_context>

<pallas_src>
import functools

import jax
import jax.numpy as jnp
from jax.experimental import pallas as pl
from jax.experimental.pallas import tpu as pltpu


# -----------------------------------------------------------------------------
# VMEM budgeting helpers.
# -----------------------------------------------------------------------------
def _round_up(v, m):
    return (v + m - 1) // m * m


def _block_bytes(shape, dtype):
    """Upper-bound VMEM bytes of one buffer (last dim -> 128 lanes, 2nd-last -> 8)."""
    shape = list(shape)
    if len(shape) >= 2:
        shape[-1] = _round_up(shape[-1], 128)
        shape[-2] = _round_up(shape[-2], 8)
    elif len(shape) == 1:
        shape[0] = _round_up(shape[0], 128)
    n = 1
    for d in shape:
        n *= d
    return n * jnp.dtype(dtype).itemsize


def _pick_group(n, per_in, per_out, fixed, *, budget, max_g=8):
    """Largest divisor G of n (<= max_g) whose double-buffered blocks fit budget.

    Keeps the grid extent >= 2 (when n >= 2) so the batch axis can still be
    split across v7x's two TensorCores.
    """
    best = 1
    for g in range(1, min(n, max_g) + 1):
        if n % g:
            continue
        if n >= 2 and n // g < 2:
            continue
        if fixed + 2 * g * (per_in + per_out) <= budget:
            best = g
    return best


# -----------------------------------------------------------------------------
# Pallas kernel: channel-major "same" conv (+bias, +ReLU) for G images per
# grid step.  Stride-s convs arrive as s*s phase planes stacked on the channel
# dim, so every tap slice is a contiguous window and the kernel does exactly
# Ho*Wo work.
# -----------------------------------------------------------------------------
def _conv_relu_kernel(x_ref, w_ref, b_ref, o_ref, patch_ref, *,
                      ks, stride, cin, ho, wo, apply_relu):
    # x_ref     : [G, s*s*cin, Hph, Wph] bf16  (phase planes stacked on channels)
    # w_ref     : [cout, K]              bf16  K = ks*ks*cin, ordered (kh, kw, c)
    # b_ref     : [cout, 1]              f32
    # o_ref     : [G, cout, ho*wo]       bf16/f32  lane-dense output
    # patch_ref : [K, ho*wo]             bf16  channel-major im2col scratch
    s = stride
    hw = ho * wo
    g_blk = x_ref.shape[0]
    for g in range(g_blk):
        # im2col: ks*ks contiguous tap windows, written K-major / hw-lane-dense.
        for kh in range(ks):
            for kw in range(ks):
                phase = (kh % s) * s + (kw % s)
                ch0 = phase * cin          # channel offset of this phase plane
                r0 = kh // s               # row offset inside the phase plane
                c0 = kw // s               # col offset inside the phase plane
                tap = x_ref[g, ch0:ch0 + cin, r0:r0 + ho, c0:c0 + wo]  # [cin,ho,wo]
                col = kh * ks + kw
                patch_ref[col * cin:(col + 1) * cin, :] = tap.reshape(cin, hw)

        # Single MXU matmul per image: [cout,K] x [K,hw] with f32 accumulation.
        acc = jnp.dot(w_ref[...], patch_ref[...],
                      preferred_element_type=jnp.float32)              # [cout,hw]
        acc = acc + b_ref[...]                                         # [cout,1]
        if apply_relu:
            acc = jnp.maximum(acc, 0.0)
        o_ref[g, :, :] = acc.astype(o_ref.dtype)                       # lane-dense


def conv2d_relu_pallas(x_nchw, w_hwio, b, *, stride, ks, apply_relu=True,
                       out_dtype=jnp.bfloat16):
    """Conv2d(kernel=ks, stride=stride, padding=ks//2) + bias (+ ReLU), NCHW in/out."""
    N, cin, H, W = x_nchw.shape
    cout = w_hwio.shape[-1]
    pad = ks // 2
    s = stride
    Ho = (H + 2 * pad - ks) // s + 1
    Wo = (W + 2 * pad - ks) // s + 1
    hw = Ho * Wo
    K = ks * ks * cin

    # 'same' padding; padded extents rounded up to a multiple of s so the s*s
    # phase planes have identical shapes (the extra zeros are never read by a
    # valid output: all tap reads stay within the unrounded padded window).
    Hp, Wp = H + 2 * pad, W + 2 * pad
    Hpr = -(-Hp // s) * s
    Wpr = -(-Wp // s) * s
    Hph, Wph = Hpr // s, Wpr // s
    assert Hph >= Ho + (ks - 1) // s and Wph >= Wo + (ks - 1) // s

    xb = x_nchw.astype(jnp.bfloat16)   # cast before pad (no-op for chained bf16)
    xp = jnp.pad(xb, ((0, 0), (0, 0),
                      (pad, Hpr - H - pad), (pad, Wpr - W - pad)))
    if s == 1:
        xph = xp                                            # [N, cin, Hp, Wp]
    else:
        # phase (ph, pw) plane = xp[:, :, ph::s, pw::s]; stack planes on channels.
        # TODO(synk): in-kernel lane-strided tap reads (pl.ds stride=s) would
        # remove this relayout pass; kept wrapper-side for proven lowering.
        xph = (xp.reshape(N, cin, Hph, s, Wph, s)
                 .transpose(0, 3, 5, 1, 2, 4)
                 .reshape(N, s * s * cin, Hph, Wph))

    # Weights: HWIO -> [cout, (kh, kw, cin)] to match the patch row ordering.
    w_flat = (jnp.transpose(w_hwio, (3, 0, 1, 2))
                 .reshape(cout, K).astype(jnp.bfloat16))
    b2 = b.reshape(cout, 1).astype(jnp.float32)

    # Choose how many images share one grid step under a VMEM budget.
    per_in = _block_bytes((s * s * cin, Hph, Wph), jnp.bfloat16)
    per_out = _block_bytes((cout, hw), out_dtype)
    fixed = (_block_bytes((K, hw), jnp.bfloat16)             # im2col scratch
             + 2 * _block_bytes((cout, K), jnp.bfloat16)     # weights
             + 2 * _block_bytes((cout, 1), jnp.float32))     # bias
    G = _pick_group(N, per_in, per_out, fixed, budget=24 << 20, max_g=8)

    out = pl.pallas_call(
        functools.partial(_conv_relu_kernel, ks=ks, stride=s, cin=cin,
                          ho=Ho, wo=Wo, apply_relu=apply_relu),
        out_shape=jax.ShapeDtypeStruct((N, cout, hw), out_dtype),
        grid=(N // G,),
        in_specs=[
            pl.BlockSpec((G, s * s * cin, Hph, Wph), lambda i: (i, 0, 0, 0)),
            pl.BlockSpec((cout, K), lambda i: (0, 0)),
            pl.BlockSpec((cout, 1), lambda i: (0, 0)),
        ],
        out_specs=pl.BlockSpec((G, cout, hw), lambda i: (i, 0, 0)),
        scratch_shapes=[pltpu.VMEM((K, hw), jnp.bfloat16)],
        compiler_params=pltpu.CompilerParams(
            dimension_semantics=("parallel",),
            vmem_limit_bytes=48 << 20),
    )(xph, w_flat, b2)

    # Free row-major reinterpretation back to NCHW.
    return out.reshape(N, cout, Ho, Wo)


# -----------------------------------------------------------------------------
# Parameter construction (deterministic, PyTorch-Conv2d-like uniform init).
# -----------------------------------------------------------------------------
def _init_conv(key, cin, cout, ks):
    kw_key, kb_key = jax.random.split(key)
    fan_in = cin * ks * ks
    bound = 1.0 / (fan_in ** 0.5)
    w = jax.random.uniform(kw_key, (ks, ks, cin, cout), jnp.float32,
                           -bound, bound)                      # HWIO
    b = jax.random.uniform(kb_key, (cout,), jnp.float32, -bound, bound)
    return {"w": w, "b": b}


def init_org_backward_params(key, num_bins, basechannels, num_encoders, ks):
    keys = jax.random.split(key, num_encoders + 1)
    params = {"head": _init_conv(keys[0], num_bins, basechannels, ks),
              "encoders": []}
    enc_in = [basechannels * 2 ** i for i in range(num_encoders)]
    enc_out = [basechannels * 2 ** (i + 1) for i in range(num_encoders)]
    for i, (ci, co) in enumerate(zip(enc_in, enc_out)):
        params["encoders"].append(_init_conv(keys[i + 1], ci, co, ks))
    return params


# -----------------------------------------------------------------------------
# OrgBackward forward (norm=None, useRC=False -> plain ConvLayer = conv+ReLU).
# Per-timestep layers are stateless, so all T timesteps are folded into the
# batch dimension and each layer runs exactly once for the whole sequence.
# Feature tensors are kept in bf16 (f32 accumulation inside the kernel).
# -----------------------------------------------------------------------------
def org_backward_forward(params, input_seqs, *, ks, direction="bidirection",
                         cpu_cache_length=100, feature_dtype=jnp.bfloat16):
    t = len(input_seqs)
    if t == 0:
        return [], []
    # TODO(synk): cpu_cache (.cpu() offload when t > cpu_cache_length) has no
    # Pallas/TPU equivalent; results stay on device.
    events = jnp.stack([seq["events"] for seq in input_seqs], axis=0)  # [T,B,C,H,W]
    T, B, C, H, W = events.shape
    x = events.reshape(T * B, C, H, W)                                  # NCHW, free

    feat = conv2d_relu_pallas(x, params["head"]["w"], params["head"]["b"],
                              stride=1, ks=ks, apply_relu=True,
                              out_dtype=feature_dtype)                  # [T*B,bc,H,W]
    head_nchw = feat.reshape(T, B, *feat.shape[1:])
    head_seqs = [head_nchw[i] for i in range(t)]

    if direction in ("bidirection", "backward"):
        enc_outs = []
        h = feat
        for enc in params["encoders"]:
            h = conv2d_relu_pallas(h, enc["w"], enc["b"], stride=2, ks=ks,
                                   apply_relu=True, out_dtype=feature_dtype)
            enc_outs.append(h.reshape(T, B, *h.shape[1:]))
        backward_feat_seqs = [[e[i] for e in enc_outs] for i in range(t)]
    elif direction == "forward":
        backward_feat_seqs = [None] * t
    else:
        raise ValueError(f"unknown direction: {direction}")
    return head_seqs, backward_feat_seqs


# -----------------------------------------------------------------------------
# Pure-JAX reference (lax conv, full f32) for correctness check.
# -----------------------------------------------------------------------------
def _conv_ref(x_nhwc, w_hwio, b, stride, ks, apply_relu=True):
    out = jax.lax.conv_general_dilated(
        x_nhwc, w_hwio, (stride, stride),
        padding=[(ks // 2, ks // 2), (ks // 2, ks // 2)],
        dimension_numbers=("NHWC", "HWIO", "NHWC"))
    out = out + b
    return jnp.maximum(out, 0.0) if apply_relu else out


def _forward_ref(params, input_seqs, ks):
    t = len(input_seqs)
    head_seqs, backward_feat_seqs = [None] * t, [None] * t
    for i in range(t - 1, -1, -1):
        x = jnp.transpose(input_seqs[i]["events"], (0, 2, 3, 1))
        feat = _conv_ref(x, params["head"]["w"], params["head"]["b"], 1, ks)
        blocks, h = [], feat
        for enc in params["encoders"]:
            h = _conv_ref(h, enc["w"], enc["b"], 2, ks)
            blocks.append(jnp.transpose(h, (0, 3, 1, 2)))
        head_seqs[i] = jnp.transpose(feat, (0, 3, 1, 2))
        backward_feat_seqs[i] = blocks
    return head_seqs, backward_feat_seqs


if __name__ == "__main__":
    # Small config consistent with the module.
    num_bins, basechannels, num_encoders, ks = 4, 8, 2, 3
    B, H, W, T = 2, 16, 16, 3

    key = jax.random.PRNGKey(0)
    pkey, xkey = jax.random.split(key)
    params = init_org_backward_params(pkey, num_bins, basechannels,
                                      num_encoders, ks)

    xkeys = jax.random.split(xkey, T)
    input_seqs = [
        {"events": jax.random.normal(xkeys[i], (B, num_bins, H, W), jnp.float32)}
        for i in range(T)
    ]

    head_seqs, backward_feat_seqs = org_backward_forward(
        params, input_seqs, ks=ks, direction="bidirection")
    jax.block_until_ready(head_seqs)
    jax.block_until_ready(backward_feat_seqs)

    # Correctness check against the pure-f32 lax.conv reference.  Tolerance is
    # loosened because the Pallas path uses bf16 matmul operands and bf16
    # feature tensors between layers (f32 accumulation inside the kernel).
    ref_head, ref_back = _forward_ref(params, input_seqs, ks)
    atol = rtol = 5e-2
    for i in range(T):
        assert head_seqs[i].shape == (B, basechannels, H, W)
        assert jnp.allclose(head_seqs[i].astype(jnp.float32), ref_head[i],
                            atol=atol, rtol=rtol)
        for k in range(num_encoders):
            exp_c = basechannels * 2 ** (k + 1)
            exp_s = H // 2 ** (k + 1)
            assert backward_feat_seqs[i][k].shape == (B, exp_c, exp_s, exp_s)
            assert jnp.allclose(backward_feat_seqs[i][k].astype(jnp.float32),
                                ref_back[i][k], atol=atol, rtol=rtol)

    print("KERNEL_OK")
</pallas_src>

<mosaic_0001>
module attributes {stable_mosaic.version = 11 : i64} {
  func.func @_conv_relu_kernel(%arg0: i32, %arg1: memref<3x4x18x18xbf16, #tpu.memory_space<vmem>>, %arg2: memref<8x36xbf16, #tpu.memory_space<vmem>>, %arg3: memref<8x1xf32, #tpu.memory_space<vmem>>, %arg4: memref<3x8x256xbf16, #tpu.memory_space<vmem>>, %arg5: memref<36x256xbf16, #tpu.memory_space<vmem>>) attributes {dimension_semantics = [#tpu.dimension_semantics<parallel>], iteration_bounds = array<i64: 2>, scalar_prefetch = 0 : i64, scratch_operands = 1 : i64, tpu.core_type = #tpu.core_type<tc>, window_params = [{transform_indices = @transform_0, window_bounds = array<i64: 3, 4, 18, 18>}, {pipeline_mode = #tpu.pipeline_mode<synchronous>, transform_indices = @transform_1, window_bounds = array<i64: 8, 36>}, {pipeline_mode = #tpu.pipeline_mode<synchronous>, transform_indices = @transform_2, window_bounds = array<i64: 8, 1>}, {transform_indices = @transform_3, window_bounds = array<i64: 3, 8, 256>}]} {
    %c0 = arith.constant 0 : index
    %c0_0 = arith.constant 0 : index
    %c0_1 = arith.constant 0 : index
    %c0_2 = arith.constant 0 : index
    %0 = vector.load %arg1[%c0, %c0_0, %c0_1, %c0_2] : memref<3x4x18x18xbf16, #tpu.memory_space<vmem>>, vector<1x4x16x16xbf16>
    %1 = vector.shape_cast %0 : vector<1x4x16x16xbf16> to vector<4x16x16xbf16>
    %2 = vector.shape_cast %1 : vector<4x16x16xbf16> to vector<4x256xbf16>
    %c0_3 = arith.constant 0 : index
    %c0_4 = arith.constant 0 : index
    %3 = vector.load %arg5[%c0_3, %c0_4] : memref<36x256xbf16, #tpu.memory_space<vmem>>, vector<4x256xbf16>
    tpu.vector_store %arg5[%c0_3, %c0_4], %2 {strides = array<i32>} : memref<36x256xbf16, #tpu.memory_space<vmem>>, vector<4x256xbf16>,
    %c0_5 = arith.constant 0 : index
    %c0_6 = arith.constant 0 : index
    %c0_7 = arith.constant 0 : index
    %c1 = arith.constant 1 : index
    %4 = vector.load %arg1[%c0_5, %c0_6, %c0_7, %c1] : memref<3x4x18x18xbf16, #tpu.memory_space<vmem>>, vector<1x4x16x16xbf16>
    %5 = vector.shape_cast %4 : vector<1x4x16x16xbf16> to vector<4x16x16xbf16>
    %6 = vector.shape_cast %5 : vector<4x16x16xbf16> to vector<4x256xbf16>
    %c4 = arith.constant 4 : index
    %c0_8 = arith.constant 0 : index
    %7 = vector.load %arg5[%c4, %c0_8] : memref<36x256xbf16, #tpu.memory_space<vmem>>, vector<4x256xbf16>
    tpu.vector_store %arg5[%c4, %c0_8], %6 {strides = array<i32>} : memref<36x256xbf16, #tpu.memory_space<vmem>>, vector<4x256xbf16>,
    %c0_9 = arith.constant 0 : index
    %c0_10 = arith.constant 0 : index
    %c0_11 = arith.constant 0 : index
    %c2 = arith.constant 2 : index
    %8 = vector.load %arg1[%c0_9, %c0_10, %c0_11, %c2] : memref<3x4x18x18xbf16, #tpu.memory_space<vmem>>, vector<1x4x16x16xbf16>
    %9 = vector.shape_cast %8 : vector<1x4x16x16xbf16> to vector<4x16x16xbf16>
    %10 = vector.shape_cast %9 : vector<4x16x16xbf16> to vector<4x256xbf16>
    %c8 = arith.constant 8 : index
    %c0_12 = arith.constant 0 : index
    %11 = vector.load %arg5[%c8, %c0_12] : memref<36x256xbf16, #tpu.memory_space<vmem>>, vector<4x256xbf16>
    tpu.vector_store %arg5[%c8, %c0_12], %10 {strides = array<i32>} : memref<36x256xbf16, #tpu.memory_space<vmem>>, vector<4x256xbf16>,
    %c0_13 = arith.constant 0 : index
    %c0_14 = arith.constant 0 : index
    %c1_15 = arith.constant 1 : index
    %c0_16 = arith.constant 0 : index
    %12 = vector.load %arg1[%c0_13, %c0_14, %c1_15, %c0_16] : memref<3x4x18x18xbf16, #tpu.memory_space<vmem>>, vector<1x4x16x16xbf16>
    %13 = vector.shape_cast %12 : vector<1x4x16x16xbf16> to vector<4x16x16xbf16>
    %14 = vector.shape_cast %13 : vector<4x16x16xbf16> to vector<4x256xbf16>
    %c12 = arith.constant 12 : index
    %c0_17 = arith.constant 0 : index
    %15 = vector.load %arg5[%c12, %c0_17] : memref<36x256xbf16, #tpu.memory_space<vmem>>, vector<4x256xbf16>
    tpu.vector_store %arg5[%c12, %c0_17], %14 {strides = array<i32>} : memref<36x256xbf16, #tpu.memory_space<vmem>>, vector<4x256xbf16>,
    %c0_18 = arith.constant 0 : index
    %c0_19 = arith.constant 0 : index
    %c1_20 = arith.constant 1 : index
    %c1_21 = arith.constant 1 : index
    %16 = vector.load %arg1[%c0_18, %c0_19, %c1_20, %c1_21] : memref<3x4x18x18xbf16, #tpu.memory_space<vmem>>, vector<1x4x16x16xbf16>
    %17 = vector.shape_cast %16 : vector<1x4x16x16xbf16> to vector<4x16x16xbf16>
    %18 = vector.shape_cast %17 : vector<4x16x16xbf16> to vector<4x256xbf16>
    %c16 = arith.constant 16 : index
    %c0_22 = arith.constant 0 : index
    %19 = vector.load %arg5[%c16, %c0_22] : memref<36x256xbf16, #tpu.memory_space<vmem>>, vector<4x256xbf16>
    tpu.vector_store %arg5[%c16, %c0_22], %18 {strides = array<i32>} : memref<36x256xbf16, #tpu.memory_space<vmem>>, vector<4x256xbf16>,
    %c0_23 = arith.constant 0 : index
    %c0_24 = arith.constant 0 : index
    %c1_25 = arith.constant 1 : index
    %c2_26 = arith.constant 2 : index
    %20 = vector.load %arg1[%c0_23, %c0_24, %c1_25, %c2_26] : memref<3x4x18x18xbf16, #tpu.memory_space<vmem>>, vector<1x4x16x16xbf16>
    %21 = vector.shape_cast %20 : vector<1x4x16x16xbf16> to vector<4x16x16xbf16>
    %22 = vector.shape_cast %21 : vector<4x16x16xbf16> to vector<4x256xbf16>
    %c20 = arith.constant 20 : index
    %c0_27 = arith.constant 0 : index
    %23 = vector.load %arg5[%c20, %c0_27] : memref<36x256xbf16, #tpu.memory_space<vmem>>, vector<4x256xbf16>
    tpu.vector_store %arg5[%c20, %c0_27], %22 {strides = array<i32>} : memref<36x256xbf16, #tpu.memory_space<vmem>>, vector<4x256xbf16>,
    %c0_28 = arith.constant 0 : index
    %c0_29 = arith.constant 0 : index
    %c2_30 = arith.constant 2 : index
    %c0_31 = arith.constant 0 : index
    %24 = vector.load %arg1[%c0_28, %c0_29, %c2_30, %c0_31] : memref<3x4x18x18xbf16, #tpu.memory_space<vmem>>, vector<1x4x16x16xbf16>
    %25 = vector.shape_cast %24 : vector<1x4x16x16xbf16> to vector<4x16x16xbf16>
    %26 = vector.shape_cast %25 : vector<4x16x16xbf16> to vector<4x256xbf16>
    %c24 = arith.constant 24 : index
    %c0_32 = arith.constant 0 : index
    %27 = vector.load %arg5[%c24, %c0_32] : memref<36x256xbf16, #tpu.memory_space<vmem>>, vector<4x256xbf16>
    tpu.vector_store %arg5[%c24, %c0_32], %26 {strides = array<i32>} : memref<36x256xbf16, #tpu.memory_space<vmem>>, vector<4x256xbf16>,
    %c0_33 = arith.constant 0 : index
    %c0_34 = arith.constant 0 : index
    %c2_35 = arith.constant 2 : index
    %c1_36 = arith.constant 1 : index
    %28 = vector.load %arg1[%c0_33, %c0_34, %c2_35, %c1_36] : memref<3x4x18x18xbf16, #tpu.memory_space<vmem>>, vector<1x4x16x16xbf16>
    %29 = vector.shape_cast %28 : vector<1x4x16x16xbf16> to vector<4x16x16xbf16>
    %30 = vector.shape_cast %29 : vector<4x16x16xbf16> to vector<4x256xbf16>
    %c28 = arith.constant 28 : index
    %c0_37 = arith.constant 0 : index
    %31 = vector.load %arg5[%c28, %c0_37] : memref<36x256xbf16, #tpu.memory_space<vmem>>, vector<4x256xbf16>
    tpu.vector_store %arg5[%c28, %c0_37], %30 {strides = array<i32>} : memref<36x256xbf16, #tpu.memory_space<vmem>>, vector<4x256xbf16>,
    %c0_38 = arith.constant 0 : index
    %c0_39 = arith.constant 0 : index
    %c2_40 = arith.constant 2 : index
    %c2_41 = arith.constant 2 : index
    %32 = vector.load %arg1[%c0_38, %c0_39, %c2_40, %c2_41] : memref<3x4x18x18xbf16, #tpu.memory_space<vmem>>, vector<1x4x16x16xbf16>
    %33 = vector.shape_cast %32 : vector<1x4x16x16xbf16> to vector<4x16x16xbf16>
    %34 = vector.shape_cast %33 : vector<4x16x16xbf16> to vector<4x256xbf16>
    %c32 = arith.constant 32 : index
    %c0_42 = arith.constant 0 : index
    %35 = vector.load %arg5[%c32, %c0_42] : memref<36x256xbf16, #tpu.memory_space<vmem>>, vector<4x256xbf16>
    tpu.vector_store %arg5[%c32, %c0_42], %34 {strides = array<i32>} : memref<36x256xbf16, #tpu.memory_space<vmem>>, vector<4x256xbf16>,
    %c0_43 = arith.constant 0 : index
    %c0_44 = arith.constant 0 : index
    %36 = vector.load %arg2[%c0_43, %c0_44] : memref<8x36xbf16, #tpu.memory_space<vmem>>, vector<8x36xbf16>
    %c0_45 = arith.constant 0 : index
    %c0_46 = arith.constant 0 : index
    %37 = vector.load %arg5[%c0_45, %c0_46] : memref<36x256xbf16, #tpu.memory_space<vmem>>, vector<36x256xbf16>
    %cst = arith.constant dense<0.000000e+00> : vector<8x256xf32>
    %38 = tpu.matmul %36, %37, %cst {dimension_numbers = #tpu.dot_dimension_numbers<[1], [0], [0], [1], [0, 0, 1, 1], [], []>} : vector<8x36xbf16>, vector<36x256xbf16>, vector<8x256xf32> -> vector<8x256xf32>
    %c0_47 = arith.constant 0 : index
    %c0_48 = arith.constant 0 : index
    %39 = vector.load %arg3[%c0_47, %c0_48] : memref<8x1xf32, #tpu.memory_space<vmem>>, vector<8x1xf32>
    %40 = vector.broadcast %39 : vector<8x1xf32> to vector<8x256xf32>
    %41 = arith.addf %38, %40 : vector<8x256xf32>
    %cst_49 = arith.constant 0.000000e+00 : f32
    %42 = vector.broadcast %cst_49 : f32 to vector<8x256xf32>
    %43 = arith.maximumf %41, %42 : vector<8x256xf32>
    %44 = arith.truncf %43 : vector<8x256xf32> to vector<8x256xbf16>
    %c0_50 = arith.constant 0 : index
    %c0_51 = arith.constant 0 : index
    %c0_52 = arith.constant 0 : index
    %45 = vector.load %arg4[%c0_50, %c0_51, %c0_52] : memref<3x8x256xbf16, #tpu.memory_space<vmem>>, vector<1x8x256xbf16>
    %46 = vector.shape_cast %45 : vector<1x8x256xbf16> to vector<8x256xbf16>
    %47 = vector.shape_cast %44 : vector<8x256xbf16> to vector<1x8x256xbf16>
    tpu.vector_store %arg4[%c0_50, %c0_51, %c0_52], %47 {strides = array<i32>} : memref<3x8x256xbf16, #tpu.memory_space<vmem>>, vector<1x8x256xbf16>,
    %c1_53 = arith.constant 1 : index
    %c0_54 = arith.constant 0 : index
    %c0_55 = arith.constant 0 : index
    %c0_56 = arith.constant 0 : index
    %48 = vector.load %arg1[%c1_53, %c0_54, %c0_55, %c0_56] : memref<3x4x18x18xbf16, #tpu.memory_space<vmem>>, vector<1x4x16x16xbf16>
    %49 = vector.shape_cast %48 : vector<1x4x16x16xbf16> to vector<4x16x16xbf16>
    %50 = vector.shape_cast %49 : vector<4x16x16xbf16> to vector<4x256xbf16>
    %c0_57 = arith.constant 0 : index
    %c0_58 = arith.constant 0 : index
    %51 = vector.load %arg5[%c0_57, %c0_58] : memref<36x256xbf16, #tpu.memory_space<vmem>>, vector<4x256xbf16>
    tpu.vector_store %arg5[%c0_57, %c0_58], %50 {strides = array<i32>} : memref<36x256xbf16, #tpu.memory_space<vmem>>, vector<4x256xbf16>,
    %c1_59 = arith.constant 1 : index
    %c0_60 = arith.constant 0 : index
    %c0_61 = arith.constant 0 : index
    %c1_62 = arith.constant 1 : index
    %52 = vector.load %arg1[%c1_59, %c0_60, %c0_61, %c1_62] : memref<3x4x18x18xbf16, #tpu.memory_space<vmem>>, vector<1x4x16x16xbf16>
    %53 = vector.shape_cast %52 : vector<1x4x16x16xbf16> to vector<4x16x16xbf16>
    %54 = vector.shape_cast %53 : vector<4x16x16xbf16> to vector<4x256xbf16>
    %c4_63 = arith.constant 4 : index
    %c0_64 = arith.constant 0 : index
    %55 = vector.load %arg5[%c4_63, %c0_64] : memref<36x256xbf16, #tpu.memory_space<vmem>>, vector<4x256xbf16>
    tpu.vector_store %arg5[%c4_63, %c0_64], %54 {strides = array<i32>} : memref<36x256xbf16, #tpu.memory_space<vmem>>, vector<4x256xbf16>,
    %c1_65 = arith.constant 1 : index
    %c0_66 = arith.constant 0 : index
    %c0_67 = arith.constant 0 : index
    %c2_68 = arith.constant 2 : index
    %56 = vector.load %arg1[%c1_65, %c0_66, %c0_67, %c2_68] : memref<3x4x18x18xbf16, #tpu.memory_space<vmem>>, vector<1x4x16x16xbf16>
    %57 = vector.shape_cast %56 : vector<1x4x16x16xbf16> to vector<4x16x16xbf16>
    %58 = vector.shape_cast %57 : vector<4x16x16xbf16> to vector<4x256xbf16>
    %c8_69 = arith.constant 8 : index
    %c0_70 = arith.constant 0 : index
    %59 = vector.load %arg5[%c8_69, %c0_70] : memref<36x256xbf16, #tpu.memory_space<vmem>>, vector<4x256xbf16>
    tpu.vector_store %arg5[%c8_69, %c0_70], %58 {strides = array<i32>} : memref<36x256xbf16, #tpu.memory_space<vmem>>, vector<4x256xbf16>,
    %c1_71 = arith.constant 1 : index
    %c0_72 = arith.constant 0 : index
    %c1_73 = arith.constant 1 : index
    %c0_74 = arith.constant 0 : index
    %60 = vector.load %arg1[%c1_71, %c0_72, %c1_73, %c0_74] : memref<3x4x18x18xbf16, #tpu.memory_space<vmem>>, vector<1x4x16x16xbf16>
    %61 = vector.shape_cast %60 : vector<1x4x16x16xbf16> to vector<4x16x16xbf16>
    %62 = vector.shape_cast %61 : vector<4x16x16xbf16> to vector<4x256xbf16>
    %c12_75 = arith.constant 12 : index
    %c0_76 = arith.constant 0 : index
    %63 = vector.load %arg5[%c12_75, %c0_76] : memref<36x256xbf16, #tpu.memory_space<vmem>>, vector<4x256xbf16>
    tpu.vector_store %arg5[%c12_75, %c0_76], %62 {strides = array<i32>} : memref<36x256xbf16, #tpu.memory_space<vmem>>, vector<4x256xbf16>,
    %c1_77 = arith.constant 1 : index
    %c0_78 = arith.constant 0 : index
    %c1_79 = arith.constant 1 : index
    %c1_80 = arith.constant 1 : index
    %64 = vector.load %arg1[%c1_77, %c0_78, %c1_79, %c1_80] : memref<3x4x18x18xbf16, #tpu.memory_space<vmem>>, vector<1x4x16x16xbf16>
    %65 = vector.shape_cast %64 : vector<1x4x16x16xbf16> to vector<4x16x16xbf16>
    %66 = vector.shape_cast %65 : vector<4x16x16xbf16> to vector<4x256xbf16>
    %c16_81 = arith.constant 16 : index
    %c0_82 = arith.constant 0 : index
    %67 = vector.load %arg5[%c16_81, %c0_82] : memref<36x256xbf16, #tpu.memory_space<vmem>>, vector<4x256xbf16>
    tpu.vector_store %arg5[%c16_81, %c0_82], %66 {strides = array<i32>} : memref<36x256xbf16, #tpu.memory_space<vmem>>, vector<4x256xbf16>,
    %c1_83 = arith.constant 1 : index
    %c0_84 = arith.constant 0 : index
    %c1_85 = arith.constant 1 : index
    %c2_86 = arith.constant 2 : index
    %68 = vector.load %arg1[%c1_83, %c0_84, %c1_85, %c2_86] : memref<3x4x18x18xbf16, #tpu.memory_space<vmem>>, vector<1x4x16x16xbf16>
    %69 = vector.shape_cast %68 : vector<1x4x16x16xbf16> to vector<4x16x16xbf16>
    %70 = vector.shape_cast %69 : vector<4x16x16xbf16> to vector<4x256xbf16>
    %c20_87 = arith.constant 20 : index
    %c0_88 = arith.constant 0 : index
    %71 = vector.load %arg5[%c20_87, %c0_88] : memref<36x256xbf16, #tpu.memory_space<vmem>>, vector<4x256xbf16>
    tpu.vector_store %arg5[%c20_87, %c0_88], %70 {strides = array<i32>} : memref<36x256xbf16, #tpu.memory_space<vmem>>, vector<4x256xbf16>,
    %c1_89 = arith.constant 1 : index
    %c0_90 = arith.constant 0 : index
    %c2_91 = arith.constant 2 : index
    %c0_92 = arith.constant 0 : index
    %72 = vector.load %arg1[%c1_89, %c0_90, %c2_91, %c0_92] : memref<3x4x18x18xbf16, #tpu.memory_space<vmem>>, vector<1x4x16x16xbf16>
    %73 = vector.shape_cast %72 : vector<1x4x16x16xbf16> to vector<4x16x16xbf16>
    %74 = vector.shape_cast %73 : vector<4x16x16xbf16> to vector<4x256xbf16>
    %c24_93 = arith.constant 24 : index
    %c0_94 = arith.constant 0 : index
    %75 = vector.load %arg5[%c24_93, %c0_94] : memref<36x256xbf16, #tpu.memory_space<vmem>>, vector<4x256xbf16>
    tpu.vector_store %arg5[%c24_93, %c0_94], %74 {strides = array<i32>} : memref<36x256xbf16, #tpu.memory_space<vmem>>, vector<4x256xbf16>,
    %c1_95 = arith.constant 1 : index
    %c0_96 = arith.constant 0 : index
    %c2_97 = arith.constant 2 : index
    %c1_98 = arith.constant 1 : index
    %76 = vector.load %arg1[%c1_95, %c0_96, %c2_97, %c1_98] : memref<3x4x18x18xbf16, #tpu.memory_space<vmem>>, vector<1x4x16x16xbf16>
    %77 = vector.shape_cast %76 : vector<1x4x16x16xbf16> to vector<4x16x16xbf16>
    %78 = vector.shape_cast %77 : vector<4x16x16xbf16> to vector<4x256xbf16>
    %c28_99 = arith.constant 28 : index
    %c0_100 = arith.constant 0 : index
    %79 = vector.load %arg5[%c28_99, %c0_100] : memref<36x256xbf16, #tpu.memory_space<vmem>>, vector<4x256xbf16>
    tpu.vector_store %arg5[%c28_99, %c0_100], %78 {strides = array<i32>} : memref<36x256xbf16, #tpu.memory_space<vmem>>, vector<4x256xbf16>,
    %c1_101 = arith.constant 1 : index
    %c0_102 = arith.constant 0 : index
    %c2_103 = arith.constant 2 : index
    %c2_104 = arith.constant 2 : index
    %80 = vector.load %arg1[%c1_101, %c0_102, %c2_103, %c2_104] : memref<3x4x18x18xbf16, #tpu.memory_space<vmem>>, vector<1x4x16x16xbf16>
    %81 = vector.shape_cast %80 : vector<1x4x16x16xbf16> to vector<4x16x16xbf16>
    %82 = vector.shape_cast %81 : vector<4x16x16xbf16> to vector<4x256xbf16>
    %c32_105 = arith.constant 32 : index
    %c0_106 = arith.constant 0 : index
    %83 = vector.load %arg5[%c32_105, %c0_106] : memref<36x256xbf16, #tpu.memory_space<vmem>>, vector<4x256xbf16>
    tpu.vector_store %arg5[%c32_105, %c0_106], %82 {strides = array<i32>} : memref<36x256xbf16, #tpu.memory_space<vmem>>, vector<4x256xbf16>,
    %c0_107 = arith.constant 0 : index
    %c0_108 = arith.constant 0 : index
    %84 = vector.load %arg2[%c0_107, %c0_108] : memref<8x36xbf16, #tpu.memory_space<vmem>>, vector<8x36xbf16>
    %c0_109 = arith.constant 0 : index
    %c0_110 = arith.constant 0 : index
    %85 = vector.load %arg5[%c0_109, %c0_110] : memref<36x256xbf16, #tpu.memory_space<vmem>>, vector<36x256xbf16>
    %cst_111 = arith.constant dense<0.000000e+00> : vector<8x256xf32>
    %86 = tpu.matmul %84, %85, %cst_111 {dimension_numbers = #tpu.dot_dimension_numbers<[1], [0], [0], [1], [0, 0, 1, 1], [], []>} : vector<8x36xbf16>, vector<36x256xbf16>, vector<8x256xf32> -> vector<8x256xf32>
    %c0_112 = arith.constant 0 : index
    %c0_113 = arith.constant 0 : index
    %87 = vector.load %arg3[%c0_112, %c0_113] : memref<8x1xf32, #tpu.memory_space<vmem>>, vector<8x1xf32>
    %88 = vector.broadcast %87 : vector<8x1xf32> to vector<8x256xf32>
    %89 = arith.addf %86, %88 : vector<8x256xf32>
    %cst_114 = arith.constant 0.000000e+00 : f32
    %90 = vector.broadcast %cst_114 : f32 to vector<8x256xf32>
    %91 = arith.maximumf %89, %90 : vector<8x256xf32>
    %92 = arith.truncf %91 : vector<8x256xf32> to vector<8x256xbf16>
    %c1_115 = arith.constant 1 : index
    %c0_116 = arith.constant 0 : index
    %c0_117 = arith.constant 0 : index
    %93 = vector.load %arg4[%c1_115, %c0_116, %c0_117] : memref<3x8x256xbf16, #tpu.memory_space<vmem>>, vector<1x8x256xbf16>
    %94 = vector.shape_cast %93 : vector<1x8x256xbf16> to vector<8x256xbf16>
    %95 = vector.shape_cast %92 : vector<8x256xbf16> to vector<1x8x256xbf16>
    tpu.vector_store %arg4[%c1_115, %c0_116, %c0_117], %95 {strides = array<i32>} : memref<3x8x256xbf16, #tpu.memory_space<vmem>>, vector<1x8x256xbf16>,
    %c2_118 = arith.constant 2 : index
    %c0_119 = arith.constant 0 : index
    %c0_120 = arith.constant 0 : index
    %c0_121 = arith.constant 0 : index
    %96 = vector.load %arg1[%c2_118, %c0_119, %c0_120, %c0_121] : memref<3x4x18x18xbf16, #tpu.memory_space<vmem>>, vector<1x4x16x16xbf16>
    %97 = vector.shape_cast %96 : vector<1x4x16x16xbf16> to vector<4x16x16xbf16>
    %98 = vector.shape_cast %97 : vector<4x16x16xbf16> to vector<4x256xbf16>
    %c0_122 = arith.constant 0 : index
    %c0_123 = arith.constant 0 : index
    %99 = vector.load %arg5[%c0_122, %c0_123] : memref<36x256xbf16, #tpu.memory_space<vmem>>, vector<4x256xbf16>
    tpu.vector_store %arg5[%c0_122, %c0_123], %98 {strides = array<i32>} : memref<36x256xbf16, #tpu.memory_space<vmem>>, vector<4x256xbf16>,
    %c2_124 = arith.constant 2 : index
    %c0_125 = arith.constant 0 : index
    %c0_126 = arith.constant 0 : index
    %c1_127 = arith.constant 1 : index
    %100 = vector.load %arg1[%c2_124, %c0_125, %c0_126, %c1_127] : memref<3x4x18x18xbf16, #tpu.memory_space<vmem>>, vector<1x4x16x16xbf16>
    %101 = vector.shape_cast %100 : vector<1x4x16x16xbf16> to vector<4x16x16xbf16>
    %102 = vector.shape_cast %101 : vector<4x16x16xbf16> to vector<4x256xbf16>
    %c4_128 = arith.constant 4 : index
    %c0_129 = arith.constant 0 : index
    %103 = vector.load %arg5[%c4_128, %c0_129] : memref<36x256xbf16, #tpu.memory_space<vmem>>, vector<4x256xbf16>
    tpu.vector_store %arg5[%c4_128, %c0_129], %102 {strides = array<i32>} : memref<36x256xbf16, #tpu.memory_space<vmem>>, vector<4x256xbf16>,
    %c2_130 = arith.constant 2 : index
    %c0_131 = arith.constant 0 : index
    %c0_132 = arith.constant 0 : index
    %c2_133 = arith.constant 2 : index
    %104 = vector.load %arg1[%c2_130, %c0_131, %c0_132, %c2_133] : memref<3x4x18x18xbf16, #tpu.memory_space<vmem>>, vector<1x4x16x16xbf16>
    %105 = vector.shape_cast %104 : vector<1x4x16x16xbf16> to vector<4x16x16xbf16>
    %106 = vector.shape_cast %105 : vector<4x16x16xbf16> to vector<4x256xbf16>
    %c8_134 = arith.constant 8 : index
    %c0_135 = arith.constant 0 : index
    %107 = vector.load %arg5[%c8_134, %c0_135] : memref<36x256xbf16, #tpu.memory_space<vmem>>, vector<4x256xbf16>
    tpu.vector_store %arg5[%c8_134, %c0_135], %106 {strides = array<i32>} : memref<36x256xbf16, #tpu.memory_space<vmem>>, vector<4x256xbf16>,
    %c2_136 = arith.constant 2 : index
    %c0_137 = arith.constant 0 : index
    %c1_138 = arith.constant 1 : index
    %c0_139 = arith.constant 0 : index
    %108 = vector.load %arg1[%c2_136, %c0_137, %c1_138, %c0_139] : memref<3x4x18x18xbf16, #tpu.memory_space<vmem>>, vector<1x4x16x16xbf16>
    %109 = vector.shape_cast %108 : vector<1x4x16x16xbf16> to vector<4x16x16xbf16>
    %110 = vector.shape_cast %109 : vector<4x16x16xbf16> to vector<4x256xbf16>
    %c12_140 = arith.constant 12 : index
    %c0_141 = arith.constant 0 : index
    %111 = vector.load %arg5[%c12_140, %c0_141] : memref<36x256xbf16, #tpu.memory_space<vmem>>, vector<4x256xbf16>
    tpu.vector_store %arg5[%c12_140, %c0_141], %110 {strides = array<i32>} : memref<36x256xbf16, #tpu.memory_space<vmem>>, vector<4x256xbf16>,
    %c2_142 = arith.constant 2 : index
    %c0_143 = arith.constant 0 : index
    %c1_144 = arith.constant 1 : index
    %c1_145 = arith.constant 1 : index
    %112 = vector.load %arg1[%c2_142, %c0_143, %c1_144, %c1_145] : memref<3x4x18x18xbf16, #tpu.memory_space<vmem>>, vector<1x4x16x16xbf16>
    %113 = vector.shape_cast %112 : vector<1x4x16x16xbf16> to vector<4x16x16xbf16>
    %114 = vector.shape_cast %113 : vector<4x16x16xbf16> to vector<4x256xbf16>
    %c16_146 = arith.constant 16 : index
    %c0_147 = arith.constant 0 : index
    %115 = vector.load %arg5[%c16_146, %c0_147] : memref<36x256xbf16, #tpu.memory_space<vmem>>, vector<4x256xbf16>
    tpu.vector_store %arg5[%c16_146, %c0_147], %114 {strides = array<i32>} : memref<36x256xbf16, #tpu.memory_space<vmem>>, vector<4x256xbf16>,
    %c2_148 = arith.constant 2 : index
    %c0_149 = arith.constant 0 : index
    %c1_150 = arith.constant 1 : index
    %c2_151 = arith.constant 2 : index
    %116 = vector.load %arg1[%c2_148, %c0_149, %c1_150, %c2_151] : memref<3x4x18x18xbf16, #tpu.memory_space<vmem>>, vector<1x4x16x16xbf16>
    %117 = vector.shape_cast %116 : vector<1x4x16x16xbf16> to vector<4x16x16xbf16>
    %118 = vector.shape_cast %117 : vector<4x16x16xbf16> to vector<4x256xbf16>
    %c20_152 = arith.constant 20 : index
    %c0_153 = arith.constant 0 : index
    %119 = vector.load %arg5[%c20_152, %c0_153] : memref<36x256xbf16, #tpu.memory_space<vmem>>, vector<4x256xbf16>
    tpu.vector_store %arg5[%c20_152, %c0_153], %118 {strides = array<i32>} : memref<36x256xbf16, #tpu.memory_space<vmem>>, vector<4x256xbf16>,
    %c2_154 = arith.constant 2 : index
    %c0_155 = arith.constant 0 : index
    %c2_156 = arith.constant 2 : index
    %c0_157 = arith.constant 0 : index
    %120 = vector.load %arg1[%c2_154, %c0_155, %c2_156, %c0_157] : memref<3x4x18x18xbf16, #tpu.memory_space<vmem>>, vector<1x4x16x16xbf16>
    %121 = vector.shape_cast %120 : vector<1x4x16x16xbf16> to vector<4x16x16xbf16>
    %122 = vector.shape_cast %121 : vector<4x16x16xbf16> to vector<4x256xbf16>
    %c24_158 = arith.constant 24 : index
    %c0_159 = arith.constant 0 : index
    %123 = vector.load %arg5[%c24_158, %c0_159] : memref<36x256xbf16, #tpu.memory_space<vmem>>, vector<4x256xbf16>
    tpu.vector_store %arg5[%c24_158, %c0_159], %122 {strides = array<i32>} : memref<36x256xbf16, #tpu.memory_space<vmem>>, vector<4x256xbf16>,
    %c2_160 = arith.constant 2 : index
    %c0_161 = arith.constant 0 : index
    %c2_162 = arith.constant 2 : index
    %c1_163 = arith.constant 1 : index
    %124 = vector.load %arg1[%c2_160, %c0_161, %c2_162, %c1_163] : memref<3x4x18x18xbf16, #tpu.memory_space<vmem>>, vector<1x4x16x16xbf16>
    %125 = vector.shape_cast %124 : vector<1x4x16x16xbf16> to vector<4x16x16xbf16>
    %126 = vector.shape_cast %125 : vector<4x16x16xbf16> to vector<4x256xbf16>
    %c28_164 = arith.constant 28 : index
    %c0_165 = arith.constant 0 : index
    %127 = vector.load %arg5[%c28_164, %c0_165] : memref<36x256xbf16, #tpu.memory_space<vmem>>, vector<4x256xbf16>
    tpu.vector_store %arg5[%c28_164, %c0_165], %126 {strides = array<i32>} : memref<36x256xbf16, #tpu.memory_space<vmem>>, vector<4x256xbf16>,
    %c2_166 = arith.constant 2 : index
    %c0_167 = arith.constant 0 : index
    %c2_168 = arith.constant 2 : index
    %c2_169 = arith.constant 2 : index
    %128 = vector.load %arg1[%c2_166, %c0_167, %c2_168, %c2_169] : memref<3x4x18x18xbf16, #tpu.memory_space<vmem>>, vector<1x4x16x16xbf16>
    %129 = vector.shape_cast %128 : vector<1x4x16x16xbf16> to vector<4x16x16xbf16>
    %130 = vector.shape_cast %129 : vector<4x16x16xbf16> to vector<4x256xbf16>
    %c32_170 = arith.constant 32 : index
    %c0_171 = arith.constant 0 : index
    %131 = vector.load %arg5[%c32_170, %c0_171] : memref<36x256xbf16, #tpu.memory_space<vmem>>, vector<4x256xbf16>
    tpu.vector_store %arg5[%c32_170, %c0_171], %130 {strides = array<i32>} : memref<36x256xbf16, #tpu.memory_space<vmem>>, vector<4x256xbf16>,
    %c0_172 = arith.constant 0 : index
    %c0_173 = arith.constant 0 : index
    %132 = vector.load %arg2[%c0_172, %c0_173] : memref<8x36xbf16, #tpu.memory_space<vmem>>, vector<8x36xbf16>
    %c0_174 = arith.constant 0 : index
    %c0_175 = arith.constant 0 : index
    %133 = vector.load %arg5[%c0_174, %c0_175] : memref<36x256xbf16, #tpu.memory_space<vmem>>, vector<36x256xbf16>
    %cst_176 = arith.constant dense<0.000000e+00> : vector<8x256xf32>
    %134 = tpu.matmul %132, %133, %cst_176 {dimension_numbers = #tpu.dot_dimension_numbers<[1], [0], [0], [1], [0, 0, 1, 1], [], []>} : vector<8x36xbf16>, vector<36x256xbf16>, vector<8x256xf32> -> vector<8x256xf32>
    %c0_177 = arith.constant 0 : index
    %c0_178 = arith.constant 0 : index
    %135 = vector.load %arg3[%c0_177, %c0_178] : memref<8x1xf32, #tpu.memory_space<vmem>>, vector<8x1xf32>
    %136 = vector.broadcast %135 : vector<8x1xf32> to vector<8x256xf32>
    %137 = arith.addf %134, %136 : vector<8x256xf32>
    %cst_179 = arith.constant 0.000000e+00 : f32
    %138 = vector.broadcast %cst_179 : f32 to vector<8x256xf32>
    %139 = arith.maximumf %137, %138 : vector<8x256xf32>
    %140 = arith.truncf %139 : vector<8x256xf32> to vector<8x256xbf16>
    %c2_180 = arith.constant 2 : index
    %c0_181 = arith.constant 0 : index
    %c0_182 = arith.constant 0 : index
    %141 = vector.load %arg4[%c2_180, %c0_181, %c0_182] : memref<3x8x256xbf16, #tpu.memory_space<vmem>>, vector<1x8x256xbf16>
    %142 = vector.shape_cast %141 : vector<1x8x256xbf16> to vector<8x256xbf16>
    %143 = vector.shape_cast %140 : vector<8x256xbf16> to vector<1x8x256xbf16>
    tpu.vector_store %arg4[%c2_180, %c0_181, %c0_182], %143 {strides = array<i32>} : memref<3x8x256xbf16, #tpu.memory_space<vmem>>, vector<1x8x256xbf16>,
    return
  }
  func.func @transform_0(%arg0: i32) -> (i32, i32, i32, i32) {
    %c0_i32 = arith.constant 0 : i32
    %c0_i32_0 = arith.constant 0 : i32
    %c0_i32_1 = arith.constant 0 : i32
    %c0_i32_2 = arith.constant 0 : i32
    return %arg0, %c0_i32, %c0_i32_0, %c0_i32_1 : i32, i32, i32, i32
  }
  func.func @transform_1(%arg0: i32) -> (i32, i32) {
    %c0_i32 = arith.constant 0 : i32
    %c0_i32_0 = arith.constant 0 : i32
    %c0_i32_1 = arith.constant 0 : i32
    return %c0_i32, %c0_i32_0 : i32, i32
  }
  func.func @transform_2(%arg0: i32) -> (i32, i32) {
    %c0_i32 = arith.constant 0 : i32
    %c0_i32_0 = arith.constant 0 : i32
    %c0_i32_1 = arith.constant 0 : i32
    return %c0_i32, %c0_i32_0 : i32, i32
  }
  func.func @transform_3(%arg0: i32) -> (i32, i32, i32) {
    %c0_i32 = arith.constant 0 : i32
    %c0_i32_0 = arith.constant 0 : i32
    %c0_i32_1 = arith.constant 0 : i32
    return %arg0, %c0_i32, %c0_i32_0 : i32, i32, i32
  }
}

</mosaic_0001>

<llo_original>
// kernel: tpu_custom_call.1
$region0: #{tpu_custom_call.1}
  #allocation0 [shape = 'u32[]', space=smem, size = 0x4, offset = 0x4, fixed_abs, tag = 'smem constant byte address 0x4 - core index']
  #allocation1 [shape = 'u32[72,128]{1,0:T(1,128)}', space=vmem, size = 0x9000, scoped, tag = 'internal scratch']
  #allocation2 [shape = 'bf16[36,256]{1,0:T(8,128)(2,1)}', space=vmem, size = 0x5000, scoped, tag = 'scratch operand']
  %s0 = inlined_call_operand.vmem [shape: bf16[6,4,18,18], index: 0, kind: input, shape index: {}]
  %s1 = inlined_call_operand.vmem [shape: bf16[8,36], index: 1, kind: input, shape index: {}]
  %s2 = inlined_call_operand.vmem [shape: f32[8,1], index: 2, kind: input, shape index: {}]
  %s3 = inlined_call_operand.hbm [shape: bf16[6,8,256], index: 3, kind: output, shape index: {}]
  %s4 = sld [smem:[#allocation0]]
  $region45: #{tpu_custom_call.1} parent=0
    _
  %s6 = ssub.s32 1, %s4
  %s7 = scalar_select 0, %s6, %s4
  $region1: #{tpu_custom_call.1} parent=0
    #allocation3 [shape = 'u8[24576]{0}', space=vmem, size = 0x6000, scoped, tag = 'output window, operand 0']
    #allocation4 [shape = 's32[2]{0}', space=sflag, size = 0x8, scoped, tag = 'scoped memory for tpu_custom_call.1']
    %8 = vsyncpa [#allocation4], 0
    %s9 = scalar_lea.sflag [#allocation4], 1
    %10 = vsyncpa %s9, 0
    loop: start=0, step=1, limit=4
    $region2: #{tpu_custom_call.1} parent=1 // loop_pre_header
      _
    $region3: #{tpu_custom_call.1} parent=1 // loop_header
      %s12 = sphi 0, %s16
      %p13 = scmp.ge.s32.totalorder %s12, 4
      %s22 = sphi 0, %s24
      %s25 = sphi 0, %s22
      %s26 = sphi 0, %s25
      %s42 = sphi 0, %s26
      %s46 = sphi 0, %s46
      %s48 = sphi 0, %s46
      %s49 = sphi 0, %s48
      %s63 = sphi 0, %s49
      %s67 = sphi 0, %s67
      %s69 = sphi 0, %s67
      %s70 = sphi 0, %s69
      %s84 = sphi 0, %s70
      %s90 = sphi 0, %s92
      %s93 = sphi 0, %s90
      %s94 = sphi 0, %s93
      %s110 = sphi 0, %s94
    $region4: #{tpu_custom_call.1} parent=1 // loop_header_branch
      %15 = sbr.rel (%p13) target = $region8
    $region5: #{tpu_custom_call.1} parent=1 // loop_body
      %s17 = ssub.s32 %s12, 1
      %s18 = ssub.s32 %s12, 2
      %s19 = sadd.s32 %s12, 1
      %s20 = ssub.s32 %s12, %s19
      %p21 = scmp.eq.s32.totalorder %s20, 0
      %s23 = sadd.s32 %s22, 1
      %s24 = scalar_select %p21, %s22, %s23
      %p27 = pneg %p21
      %p28 = scmp.eq.s32.totalorder %s12, 1
      %p29 = por %p27, %p28
      %p30 = scmp.ne.s32.totalorder %s22, %s25
      %p31 = scmp.eq.s32.totalorder %s12, 0
      %p32 = por %p30, %p31
      %p33 = scmp.ne.s32.totalorder %s22, %s25
      %p34 = scmp.eq.s32.totalorder %s17, 1
      %p35 = por %p33, %p34
      %p36 = scmp.ne.s32.totalorder %s25, %s26
      %p37 = scmp.eq.s32.totalorder %s17, 0
      %p38 = por %p36, %p37
      %p39 = scmp.ne.s32.totalorder %s25, %s26
      %p40 = scmp.eq.s32.totalorder %s18, 1
      %p41 = por %p39, %p40
      %p43 = scmp.ne.s32.totalorder %s26, %s42
      %p44 = scmp.eq.s32.totalorder %s18, 0
      %p45 = por %p43, %p44
      %s47 = sadd.s32 %s46, 1
      %p50 = scmp.eq.s32.totalorder %s12, 1
      %p51 = scmp.ne.s32.totalorder %s46, %s48
      %p52 = scmp.eq.s32.totalorder %s12, 0
      %p53 = por %p51, %p52
      %p54 = scmp.ne.s32.totalorder %s46, %s48
      %p55 = scmp.eq.s32.totalorder %s17, 1
      %p56 = por %p54, %p55
      %p57 = scmp.ne.s32.totalorder %s48, %s49
      %p58 = scmp.eq.s32.totalorder %s17, 0
      %p59 = por %p57, %p58
      %p60 = scmp.ne.s32.totalorder %s48, %s49
      %p61 = scmp.eq.s32.totalorder %s18, 1
      %p62 = por %p60, %p61
      %p64 = scmp.ne.s32.totalorder %s49, %s63
      %p65 = scmp.eq.s32.totalorder %s18, 0
      %p66 = por %p64, %p65
      %s68 = sadd.s32 %s67, 1
      %p71 = scmp.eq.s32.totalorder %s12, 1
      %p72 = scmp.ne.s32.totalorder %s67, %s69
      %p73 = scmp.eq.s32.totalorder %s12, 0
      %p74 = por %p72, %p73
      %p75 = scmp.ne.s32.totalorder %s67, %s69
      %p76 = scmp.eq.s32.totalorder %s17, 1
      %p77 = por %p75, %p76
      %p78 = scmp.ne.s32.totalorder %s69, %s70
      %p79 = scmp.eq.s32.totalorder %s17, 0
      %p80 = por %p78, %p79
      %p81 = scmp.ne.s32.totalorder %s69, %s70
      %p82 = scmp.eq.s32.totalorder %s18, 1
      %p83 = por %p81, %p82
      %p85 = scmp.ne.s32.totalorder %s70, %s84
      %p86 = scmp.eq.s32.totalorder %s18, 0
      %p87 = por %p85, %p86
      %s88 = ssub.s32 %s12, %s19
      %p89 = scmp.eq.s32.totalorder %s88, 0
      %s91 = sadd.s32 %s90, 1
      %s92 = scalar_select %p89, %s90, %s91
      %p95 = pneg %p89
      %p96 = scmp.eq.s32.totalorder %s12, 1
      %p97 = por %p95, %p96
      %p98 = scmp.ne.s32.totalorder %s90, %s93
      %p99 = scmp.eq.s32.totalorder %s12, 0
      %p100 = por %p98, %p99
      %p101 = scmp.ne.s32.totalorder %s90, %s93
      %p102 = scmp.eq.s32.totalorder %s17, 1
      %p103 = por %p101, %p102
      %p104 = scmp.ne.s32.totalorder %s93, %s94
      %p105 = scmp.eq.s32.totalorder %s17, 0
      %p106 = por %p104, %p105
      %p107 = scmp.ne.s32.totalorder %s93, %s94
      %p108 = scmp.eq.s32.totalorder %s18, 1
      %p109 = por %p107, %p108
      %p111 = scmp.ne.s32.totalorder %s94, %s110
      %p112 = scmp.eq.s32.totalorder %s18, 0
      %p113 = por %p111, %p112
      %p114 = scmp.le.s32.totalorder 1, %s12
      %p115 = scmp.lt.s32.totalorder %s12, 3
      %p116 = pnand %p114, %p115
      %p117 = pneg %p116
      // Predicated region
      $region9: #{tpu_custom_call.1} parent=5 // pred_check
        _
      $region10: #{tpu_custom_call.1} parent=5 // pred_check_branch
        %119 = sbr.rel (%p116) target = $region12
      $region11: #{tpu_custom_call.1} parent=5 // pred_region
        %s120 = ssub.s32 %s12, 1
        // Predicated region
        $region13: #{tpu_custom_call.1} parent=11 // pred_check
          %p121 = pneg %p59
        $region14: #{tpu_custom_call.1} parent=11 // pred_check_branch
          %123 = sbr.rel (%p121) target = $region16
        $region15: #{tpu_custom_call.1} parent=11 // pred_region
          _
        $region16: #{tpu_custom_call.1} parent=11 // pred_fallthru
          _
        // Predicated region
        $region17: #{tpu_custom_call.1} parent=11 // pred_check
          %p124 = pneg %p80
        $region18: #{tpu_custom_call.1} parent=11 // pred_check_branch
          %126 = sbr.rel (%p124) target = $region20
        $region19: #{tpu_custom_call.1} parent=11 // pred_region
          _
        $region20: #{tpu_custom_call.1} parent=11 // pred_fallthru
          _
      $region12: #{tpu_custom_call.1} parent=5 // pred_fallthru
        _
      %p127 = scmp.lt.s32.totalorder %s12, 2
      // Predicated region
      $region21: #{tpu_custom_call.1} parent=5 // pred_check
        %p128 = pneg %p127
      $region22: #{tpu_custom_call.1} parent=5 // pred_check_branch
        %130 = sbr.rel (%p128) target = $region24
      $region23: #{tpu_custom_call.1} parent=5 // pred_region
        // Predicated region
        $region25: #{tpu_custom_call.1} parent=23 // pred_check
          %p131 = pneg %p32
        $region26: #{tpu_custom_call.1} parent=23 // pred_check_branch
          %133 = sbr.rel (%p131) target = $region28
        $region27: #{tpu_custom_call.1} parent=23 // pred_region
          %s134 = smul.u32 3, %s12
          %p135 = scmp.lt.s32.totalorder %s134, 5
          %s136 = scalar_select %p135, %s134, 5
          %s137 = smul.addr %s136, 12
          %s138 = smul.addr %s137, 4
          %s139 = scalar_lea.vmem %s0, %s138
          %s140 = smul.u32 3, %s12
        $region28: #{tpu_custom_call.1} parent=23 // pred_fallthru
          _
      $region24: #{tpu_custom_call.1} parent=5 // pred_fallthru
        _
      %p141 = scmp.le.s32.totalorder 1, %s12
      %p142 = scmp.lt.s32.totalorder %s12, 3
      %p143 = pnand %p141, %p142
      %p144 = pneg %p143
      // Predicated region
      $region29: #{tpu_custom_call.1} parent=5 // pred_check
        _
      $region30: #{tpu_custom_call.1} parent=5 // pred_check_branch
        %146 = sbr.rel (%p143) target = $region32
      $region31: #{tpu_custom_call.1} parent=5 // pred_region
        %s147 = ssub.s32 %s12, 1
        %s148 = smul.u32 3, %s17
        %p149 = scmp.lt.s32.totalorder %s148, 5
        %s150 = scalar_select %p149, %s148, 5
        %s151 = smul.addr %s150, 12
        %s152 = smul.addr %s151, 4
        %s153 = scalar_lea.vmem %s0, %s152
        %p154 = pneg %p38
        %p155 = pneg %p35
        %p156 = pneg %p59
        %p157 = pneg %p56
        %p158 = pneg %p80
        %p159 = pneg %p77
        %p160 = pneg %p106
        %p161 = pneg %p103
        %s162 = sand.u32 %s93, 1
        %s163 = scalar_lea.sflag [#allocation4], %s162
        %s164 = sand.u32 %s93, 1
        %s165 = smul.addr %s164, 24
        %s166 = scalar_lea.vmem [#allocation3], %s165
        %s167 = smul.u32 3, %s17
        %p168 = scmp.lt.s32.totalorder %s167, 5
        %s169 = scalar_select %p168, %s167, 5
        %s170 = smul.addr %s169, 12
        %s171 = smul.addr %s170, 4
        %s172 = scalar_lea.vmem %s0, %s171
        %s173 = smul.u32 3, %s17
        %s174 = smul.u32 3, %s17
        %v176 = vld [vmem:[%s172] sm:$0xf]
        %v177 = vld [vmem:[%s172 + $0x4] sm:$0xf]
        %v178 = vld [vmem:[%s172 + $0xc] sm:$0xf]
        %v179 = vld [vmem:[%s172 + $0x10] sm:$0xf]
        %v180 = vld [vmem:[%s172 + $0x18] sm:$0xf]
        %v181 = vld [vmem:[%s172 + $0x1c] sm:$0xf]
        %v182 = vld [vmem:[%s172 + $0x24] sm:$0xf]
        %v183 = vld [vmem:[%s172 + $0x28] sm:$0xf]
        %v186 = vpack.i.b16 %v178, %v176
        %v187 = vshrl.u32 %v176, 16
        %v188 = vshrl.u32 %v178, 16
        %v189 = vpack.i.b16 %v188, %v187
        %v192 = vpack.i.b16 %v182, %v180
        %v193 = vshrl.u32 %v180, 16
        %v194 = vshrl.u32 %v182, 16
        %v195 = vpack.i.b16 %v194, %v193
        %v198 = vpack.i.b16 %v179, %v177
        %v199 = vshrl.u32 %v177, 16
        %v200 = vshrl.u32 %v179, 16
        %v201 = vpack.i.b16 %v200, %v199
        %v204 = vpack.i.b16 %v183, %v181
        %v205 = vshrl.u32 %v181, 16
        %v206 = vshrl.u32 %v183, 16
        %v207 = vpack.i.b16 %v206, %v205
        %v210 = vunpack.c.l.s4 1983009808
        %v211 = vunpack.c.0.s8 %v210
        %v212 = vperm.slane %v186, %v211
        %v215 = vunpack.c.l.s4 1983009808
        %v216 = vunpack.c.0.s8 %v215
        %v217 = vperm.slane %v192, %v216
        %v218 = vrot.slane %v217, 4
        %vm219 = vcmask 1047556
        %v220 = vsel %vm219, %v218, %v212
        %v221 = vrot.slane %v212, 4
        %v222 = vsel %vm219, %v217, %v221
        %v224 = vunpack.c.l.s4 1934713408
        %v225 = vunpack.c.0.s8 %v224
        %v226 = vperm.slane %v220, %v225
        %v228 = vunpack.c.l.s4 1934713408
        %v229 = vunpack.c.0.s8 %v228
        %v230 = vperm.slane %v222, %v229
        %v231 = vrot.slane %v226, 4
        %v232 = vsel %vm219, 0, %v231
        %v233 = vrot.slane %v230, 4
        %v234 = vsel %vm219, 0, %v233
        %v237 = vunpack.c.l.s4 1983009808
        %v238 = vunpack.c.0.s8 %v237
        %v239 = vperm.slane %v189, %v238
        %v242 = vunpack.c.l.s4 1983009808
        %v243 = vunpack.c.0.s8 %v242
        %v244 = vperm.slane %v195, %v243
        %v245 = vrot.slane %v244, 4
        %v246 = vsel %vm219, %v245, %v239
        %v247 = vrot.slane %v239, 4
        %v248 = vsel %vm219, %v244, %v247
        %v250 = vunpack.c.l.s4 1934713408
        %v251 = vunpack.c.0.s8 %v250
        %v252 = vperm.slane %v246, %v251
        %v254 = vunpack.c.l.s4 1934713408
        %v255 = vunpack.c.0.s8 %v254
        %v256 = vperm.slane %v248, %v255
        %v257 = vrot.slane %v252, 4
        %v258 = vsel %vm219, 0, %v257
        %v259 = vrot.slane %v256, 4
        %v260 = vsel %vm219, 0, %v259
        %v263 = vunpack.c.l.s4 1983009808
        %v264 = vunpack.c.0.s8 %v263
        %v265 = vperm.slane %v198, %v264
        %v268 = vunpack.c.l.s4 1983009808
        %v269 = vunpack.c.0.s8 %v268
        %v270 = vperm.slane %v204, %v269
        %v271 = vrot.slane %v270, 4
        %v272 = vsel %vm219, %v271, %v265
        %v273 = vrot.slane %v265, 4
        %v274 = vsel %vm219, %v270, %v273
        %v276 = vunpack.c.l.s4 1934713408
        %v277 = vunpack.c.0.s8 %v276
        %v278 = vperm.slane %v272, %v277
        %v280 = vunpack.c.l.s4 1934713408
        %v281 = vunpack.c.0.s8 %v280
        %v282 = vperm.slane %v274, %v281
        %v283 = vrot.slane %v278, 4
        %v284 = vsel %vm219, 0, %v283
        %v285 = vrot.slane %v282, 4
        %v286 = vsel %vm219, 0, %v285
        %v289 = vunpack.c.l.s4 1983009808
        %v290 = vunpack.c.0.s8 %v289
        %v291 = vperm.slane %v201, %v290
        %v294 = vunpack.c.l.s4 1983009808
        %v295 = vunpack.c.0.s8 %v294
        %v296 = vperm.slane %v207, %v295
        %v297 = vrot.slane %v296, 4
        %v298 = vsel %vm219, %v297, %v291
        %v299 = vrot.slane %v291, 4
        %v300 = vsel %vm219, %v296, %v299
        %v302 = vunpack.c.l.s4 1934713408
        %v303 = vunpack.c.0.s8 %v302
        %v304 = vperm.slane %v298, %v303
        %v306 = vunpack.c.l.s4 1934713408
        %v307 = vunpack.c.0.s8 %v306
        %v308 = vperm.slane %v300, %v307
        %v309 = vrot.slane %v304, 4
        %v310 = vsel %vm219, 0, %v309
        %v311 = vrot.slane %v308, 4
        %v312 = vsel %vm219, 0, %v311
        %v314 = vunpack.c.l.b16 %v252
        %v315 = vpack.c.b16 %v314, %v314
        %316 = vrot.lane.b32.xlu0 %v315, 16
        %v317 = vpop.permute.xlu0 %316
        %v319 = vunpack.c.l.b16 %v232
        %v320 = vpack.c.b16 %v319, %v319
        %321 = vrot.lane.b32.xlu0 %v320, 32
        %v322 = vpop.permute.xlu0 %321
        %v324 = vunpack.c.l.b16 %v258
        %v325 = vpack.c.b16 %v324, %v324
        %326 = vrot.lane.b32.xlu0 %v325, 48
        %v327 = vpop.permute.xlu0 %326
        %v329 = vunpack.c.l.b16 %v230
        %v330 = vpack.c.b16 %v329, %v329
        %331 = vrot.lane.b32.xlu0 %v330, 64
        %v332 = vpop.permute.xlu0 %331
        %v334 = vunpack.c.l.b16 %v256
        %v335 = vpack.c.b16 %v334, %v334
        %336 = vrot.lane.b32.xlu0 %v335, 80
        %v337 = vpop.permute.xlu0 %336
        %v339 = vunpack.c.l.b16 %v234
        %v340 = vpack.c.b16 %v339, %v339
        %341 = vrot.lane.b32.xlu0 %v340, 96
        %v342 = vpop.permute.xlu0 %341
        %v344 = vunpack.c.l.b16 %v260
        %v345 = vpack.c.b16 %v344, %v344
        %346 = vrot.lane.b32.xlu0 %v345, 112
        %v347 = vpop.permute.xlu0 %346
        %v349 = vunpack.c.l.b16 %v304
        %v350 = vpack.c.b16 %v349, %v349
        %351 = vrot.lane.b32.xlu0 %v350, 16
        %v352 = vpop.permute.xlu0 %351
        %v354 = vunpack.c.l.b16 %v284
        %v355 = vpack.c.b16 %v354, %v354
        %356 = vrot.lane.b32.xlu0 %v355, 32
        %v357 = vpop.permute.xlu0 %356
        %v359 = vunpack.c.l.b16 %v310
        %v360 = vpack.c.b16 %v359, %v359
        %361 = vrot.lane.b32.xlu0 %v360, 48
        %v362 = vpop.permute.xlu0 %361
        %v364 = vunpack.c.l.b16 %v282
        %v365 = vpack.c.b16 %v364, %v364
        %366 = vrot.lane.b32.xlu0 %v365, 64
        %v367 = vpop.permute.xlu0 %366
        %v369 = vunpack.c.l.b16 %v308
        %v370 = vpack.c.b16 %v369, %v369
        %371 = vrot.lane.b32.xlu0 %v370, 80
        %v372 = vpop.permute.xlu0 %371
        %v374 = vunpack.c.l.b16 %v286
        %v375 = vpack.c.b16 %v374, %v374
        %376 = vrot.lane.b32.xlu0 %v375, 96
        %v377 = vpop.permute.xlu0 %376
        %v379 = vunpack.c.l.b16 %v312
        %v380 = vpack.c.b16 %v379, %v379
        %381 = vrot.lane.b32.xlu0 %v380, 112
        %v382 = vpop.permute.xlu0 %381
        %vm383 = vcmask 130048
        %v386 = vsel %vm383, %v226, %v317
        %vm387 = vcmask 261120
        %v389 = vsel %vm387, %v386, %v322
        %vm390 = vcmask 392192
        %v392 = vsel %vm390, %v389, %v327
        %vm393 = vcmask 523264
        %v395 = vsel %vm393, %v392, %v332
        %vm396 = vcmask 654336
        %v398 = vsel %vm396, %v395, %v337
        %vm399 = vcmask 785408
        %v401 = vsel %vm399, %v398, %v342
        %vm402 = vcmask 916480
        %v404 = vsel %vm402, %v401, %v347
        %v407 = vsel %vm383, %v278, %v352
        %v409 = vsel %vm387, %v407, %v357
        %v411 = vsel %vm390, %v409, %v362
        %v413 = vsel %vm393, %v411, %v367
        %v415 = vsel %vm396, %v413, %v372
        %v417 = vsel %vm399, %v415, %v377
        %v419 = vsel %vm402, %v417, %v382
        %v422 = vunpack.c.l.b16 %v404
        %v423 = vunpack.c.l.b16 %v419
        %v424 = vpack.c.b16 %v423, %v422
        %426 = vst [vmem:[#allocation2] sm:$0x33] %v424
        %v427 = vld [vmem:[%s172] sm:$0xf]
        %v428 = vld [vmem:[%s172 + $0x4] sm:$0xf]
        %v429 = vld [vmem:[%s172 + $0xc] sm:$0xf]
        %v430 = vld [vmem:[%s172 + $0x10] sm:$0xf]
        %v431 = vld [vmem:[%s172 + $0x18] sm:$0xf]
        %v432 = vld [vmem:[%s172 + $0x1c] sm:$0xf]
        %v433 = vld [vmem:[%s172 + $0x24] sm:$0xf]
        %v434 = vld [vmem:[%s172 + $0x28] sm:$0xf]
        %443 = vrot.lane.b32.xlu0 %v427, 127
        %v444 = vpop.permute.xlu0 %443
        %445 = vrot.lane.b32.xlu0 %v428, 127
        %v446 = vpop.permute.xlu0 %445
        %447 = vrot.lane.b32.xlu0 %v429, 127
        %v448 = vpop.permute.xlu0 %447
        %449 = vrot.lane.b32.xlu0 %v430, 127
        %v450 = vpop.permute.xlu0 %449
        %451 = vrot.lane.b32.xlu0 %v431, 127
        %v452 = vpop.permute.xlu0 %451
        %453 = vrot.lane.b32.xlu0 %v432, 127
        %v454 = vpop.permute.xlu0 %453
        %455 = vrot.lane.b32.xlu0 %v433, 127
        %v456 = vpop.permute.xlu0 %455
        %457 = vrot.lane.b32.xlu0 %v434, 127
        %v458 = vpop.permute.xlu0 %457
        %v461 = vpack.i.b16 %v448, %v444
        %v462 = vshrl.u32 %v444, 16
        %v463 = vshrl.u32 %v448, 16
        %v464 = vpack.i.b16 %v463, %v462
        %v467 = vpack.i.b16 %v456, %v452
        %v468 = vshrl.u32 %v452, 16
        %v469 = vshrl.u32 %v456, 16
        %v470 = vpack.i.b16 %v469, %v468
        %v473 = vpack.i.b16 %v450, %v446
        %v474 = vshrl.u32 %v446, 16
        %v475 = vshrl.u32 %v450, 16
        %v476 = vpack.i.b16 %v475, %v474
        %v479 = vpack.i.b16 %v458, %v454
        %v480 = vshrl.u32 %v454, 16
        %v481 = vshrl.u32 %v458, 16
        %v482 = vpack.i.b16 %v481, %v480
        %v485 = vunpack.c.l.s4 1983009808
        %v486 = vunpack.c.0.s8 %v485
        %v487 = vperm.slane %v461, %v486
        %v490 = vunpack.c.l.s4 1983009808
        %v491 = vunpack.c.0.s8 %v490
        %v492 = vperm.slane %v467, %v491
        %v493 = vrot.slane %v492, 4
        %v494 = vsel %vm219, %v493, %v487
        %v495 = vrot.slane %v487, 4
        %v496 = vsel %vm219, %v492, %v495
        %v498 = vunpack.c.l.s4 1934713408
        %v499 = vunpack.c.0.s8 %v498
        %v500 = vperm.slane %v494, %v499
        %v502 = vunpack.c.l.s4 1934713408
        %v503 = vunpack.c.0.s8 %v502
        %v504 = vperm.slane %v496, %v503
        %v505 = vrot.slane %v500, 4
        %v506 = vsel %vm219, 0, %v505
        %v507 = vrot.slane %v504, 4
        %v508 = vsel %vm219, 0, %v507
        %v511 = vunpack.c.l.s4 1983009808
        %v512 = vunpack.c.0.s8 %v511
        %v513 = vperm.slane %v464, %v512
        %v516 = vunpack.c.l.s4 1983009808
        %v517 = vunpack.c.0.s8 %v516
        %v518 = vperm.slane %v470, %v517
        %v519 = vrot.slane %v518, 4
        %v520 = vsel %vm219, %v519, %v513
        %v521 = vrot.slane %v513, 4
        %v522 = vsel %vm219, %v518, %v521
        %v524 = vunpack.c.l.s4 1934713408
        %v525 = vunpack.c.0.s8 %v524
        %v526 = vperm.slane %v520, %v525
        %v528 = vunpack.c.l.s4 1934713408
        %v529 = vunpack.c.0.s8 %v528
        %v530 = vperm.slane %v522, %v529
        %v531 = vrot.slane %v526, 4
        %v532 = vsel %vm219, 0, %v531
        %v533 = vrot.slane %v530, 4
        %v534 = vsel %vm219, 0, %v533
        %v537 = vunpack.c.l.s4 1983009808
        %v538 = vunpack.c.0.s8 %v537
        %v539 = vperm.slane %v473, %v538
        %v542 = vunpack.c.l.s4 1983009808
        %v543 = vunpack.c.0.s8 %v542
        %v544 = vperm.slane %v479, %v543
        %v545 = vrot.slane %v544, 4
        %v546 = vsel %vm219, %v545, %v539
        %v547 = vrot.slane %v539, 4
        %v548 = vsel %vm219, %v544, %v547
        %v550 = vunpack.c.l.s4 1934713408
        %v551 = vunpack.c.0.s8 %v550
        %v552 = vperm.slane %v546, %v551
        %v554 = vunpack.c.l.s4 1934713408
        %v555 = vunpack.c.0.s8 %v554
        %v556 = vperm.slane %v548, %v555
        %v557 = vrot.slane %v552, 4
        %v558 = vsel %vm219, 0, %v557
        %v559 = vrot.slane %v556, 4
        %v560 = vsel %vm219, 0, %v559
        %v563 = vunpack.c.l.s4 1983009808
        %v564 = vunpack.c.0.s8 %v563
        %v565 = vperm.slane %v476, %v564
        %v568 = vunpack.c.l.s4 1983009808
        %v569 = vunpack.c.0.s8 %v568
        %v570 = vperm.slane %v482, %v569
        %v571 = vrot.slane %v570, 4
        %v572 = vsel %vm219, %v571, %v565
        %v573 = vrot.slane %v565, 4
        %v574 = vsel %vm219, %v570, %v573
        %v576 = vunpack.c.l.s4 1934713408
        %v577 = vunpack.c.0.s8 %v576
        %v578 = vperm.slane %v572, %v577
        %v580 = vunpack.c.l.s4 1934713408
        %v581 = vunpack.c.0.s8 %v580
        %v582 = vperm.slane %v574, %v581
        %v583 = vrot.slane %v578, 4
        %v584 = vsel %vm219, 0, %v583
        %v585 = vrot.slane %v582, 4
        %v586 = vsel %vm219, 0, %v585
        %v588 = vunpack.c.l.b16 %v526
        %v589 = vpack.c.b16 %v588, %v588
        %590 = vrot.lane.b32.xlu0 %v589, 16
        %v591 = vpop.permute.xlu0 %590
        %v593 = vunpack.c.l.b16 %v506
        %v594 = vpack.c.b16 %v593, %v593
        %595 = vrot.lane.b32.xlu0 %v594, 32
        %v596 = vpop.permute.xlu0 %595
        %v598 = vunpack.c.l.b16 %v532
        %v599 = vpack.c.b16 %v598, %v598
        %600 = vrot.lane.b32.xlu0 %v599, 48
        %v601 = vpop.permute.xlu0 %600
        %v603 = vunpack.c.l.b16 %v504
        %v604 = vpack.c.b16 %v603, %v603
        %605 = vrot.lane.b32.xlu0 %v604, 64
        %v606 = vpop.permute.xlu0 %605
        %v608 = vunpack.c.l.b16 %v530
        %v609 = vpack.c.b16 %v608, %v608
        %610 = vrot.lane.b32.xlu0 %v609, 80
        %v611 = vpop.permute.xlu0 %610
        %v613 = vunpack.c.l.b16 %v508
        %v614 = vpack.c.b16 %v613, %v613
        %615 = vrot.lane.b32.xlu0 %v614, 96
        %v616 = vpop.permute.xlu0 %615
        %v618 = vunpack.c.l.b16 %v534
        %v619 = vpack.c.b16 %v618, %v618
        %620 = vrot.lane.b32.xlu0 %v619, 112
        %v621 = vpop.permute.xlu0 %620
        %v623 = vunpack.c.l.b16 %v578
        %v624 = vpack.c.b16 %v623, %v623
        %625 = vrot.lane.b32.xlu0 %v624, 16
        %v626 = vpop.permute.xlu0 %625
        %v628 = vunpack.c.l.b16 %v558
        %v629 = vpack.c.b16 %v628, %v628
        %630 = vrot.lane.b32.xlu0 %v629, 32
        %v631 = vpop.permute.xlu0 %630
        %v633 = vunpack.c.l.b16 %v584
        %v634 = vpack.c.b16 %v633, %v633
        %635 = vrot.lane.b32.xlu0 %v634, 48
        %v636 = vpop.permute.xlu0 %635
        %v638 = vunpack.c.l.b16 %v556
        %v639 = vpack.c.b16 %v638, %v638
        %640 = vrot.lane.b32.xlu0 %v639, 64
        %v641 = vpop.permute.xlu0 %640
        %v643 = vunpack.c.l.b16 %v582
        %v644 = vpack.c.b16 %v643, %v643
        %645 = vrot.lane.b32.xlu0 %v644, 80
        %v646 = vpop.permute.xlu0 %645
        %v648 = vunpack.c.l.b16 %v560
        %v649 = vpack.c.b16 %v648, %v648
        %650 = vrot.lane.b32.xlu0 %v649, 96
        %v651 = vpop.permute.xlu0 %650
        %v653 = vunpack.c.l.b16 %v586
        %v654 = vpack.c.b16 %v653, %v653
        %655 = vrot.lane.b32.xlu0 %v654, 112
        %v656 = vpop.permute.xlu0 %655
        %v659 = vsel %vm383, %v500, %v591
        %v661 = vsel %vm387, %v659, %v596
        %v663 = vsel %vm390, %v661, %v601
        %v665 = vsel %vm393, %v663, %v606
        %v667 = vsel %vm396, %v665, %v611
        %v669 = vsel %vm399, %v667, %v616
        %v671 = vsel %vm402, %v669, %v621
        %v674 = vsel %vm383, %v552, %v626
        %v676 = vsel %vm387, %v674, %v631
        %v678 = vsel %vm390, %v676, %v636
        %v680 = vsel %vm393, %v678, %v641
        %v682 = vsel %vm396, %v680, %v646
        %v684 = vsel %vm399, %v682, %v651
        %v686 = vsel %vm402, %v684, %v656
        %v689 = vunpack.c.l.b16 %v671
        %v690 = vunpack.c.l.b16 %v686
        %v691 = vpack.c.b16 %v690, %v689
        %v692 = vrot.slane %v691, 6
        %694 = vst [vmem:[#allocation2] sm:$0xcc] %v692
        %v695 = vld [vmem:[%s172] sm:$0xf]
        %v696 = vld [vmem:[%s172 + $0x4] sm:$0xf]
        %v697 = vld [vmem:[%s172 + $0xc] sm:$0xf]
        %v698 = vld [vmem:[%s172 + $0x10] sm:$0xf]
        %v699 = vld [vmem:[%s172 + $0x18] sm:$0xf]
        %v700 = vld [vmem:[%s172 + $0x1c] sm:$0xf]
        %v701 = vld [vmem:[%s172 + $0x24] sm:$0xf]
        %v702 = vld [vmem:[%s172 + $0x28] sm:$0xf]
        %711 = vrot.lane.b32.xlu0 %v695, 126
        %v712 = vpop.permute.xlu0 %711
        %713 = vrot.lane.b32.xlu0 %v696, 126
        %v714 = vpop.permute.xlu0 %713
        %715 = vrot.lane.b32.xlu0 %v697, 126
        %v716 = vpop.permute.xlu0 %715
        %717 = vrot.lane.b32.xlu0 %v698, 126
        %v718 = vpop.permute.xlu0 %717
        %719 = vrot.lane.b32.xlu0 %v699, 126
        %v720 = vpop.permute.xlu0 %719
        %721 = vrot.lane.b32.xlu0 %v700, 126
        %v722 = vpop.permute.xlu0 %721
        %723 = vrot.lane.b32.xlu0 %v701, 126
        %v724 = vpop.permute.xlu0 %723
        %725 = vrot.lane.b32.xlu0 %v702, 126
        %v726 = vpop.permute.xlu0 %725
        %v729 = vpack.i.b16 %v716, %v712
        %v730 = vshrl.u32 %v712, 16
        %v731 = vshrl.u32 %v716, 16
        %v732 = vpack.i.b16 %v731, %v730
        %v735 = vpack.i.b16 %v724, %v720
        %v736 = vshrl.u32 %v720, 16
        %v737 = vshrl.u32 %v724, 16
        %v738 = vpack.i.b16 %v737, %v736
        %v741 = vpack.i.b16 %v718, %v714
        %v742 = vshrl.u32 %v714, 16
        %v743 = vshrl.u32 %v718, 16
        %v744 = vpack.i.b16 %v743, %v742
        %v747 = vpack.i.b16 %v726, %v722
        %v748 = vshrl.u32 %v722, 16
        %v749 = vshrl.u32 %v726, 16
        %v750 = vpack.i.b16 %v749, %v748
        %v753 = vunpack.c.l.s4 1983009808
        %v754 = vunpack.c.0.s8 %v753
        %v755 = vperm.slane %v729, %v754
        %v758 = vunpack.c.l.s4 1983009808
        %v759 = vunpack.c.0.s8 %v758
        %v760 = vperm.slane %v735, %v759
        %v761 = vrot.slane %v760, 4
        %v762 = vsel %vm219, %v761, %v755
        %v763 = vrot.slane %v755, 4
        %v764 = vsel %vm219, %v760, %v763
        %v766 = vunpack.c.l.s4 1934713408
        %v767 = vunpack.c.0.s8 %v766
        %v768 = vperm.slane %v762, %v767
        %v770 = vunpack.c.l.s4 1934713408
        %v771 = vunpack.c.0.s8 %v770
        %v772 = vperm.slane %v764, %v771
        %v773 = vrot.slane %v768, 4
        %v774 = vsel %vm219, 0, %v773
        %v775 = vrot.slane %v772, 4
        %v776 = vsel %vm219, 0, %v775
        %v779 = vunpack.c.l.s4 1983009808
        %v780 = vunpack.c.0.s8 %v779
        %v781 = vperm.slane %v732, %v780
        %v784 = vunpack.c.l.s4 1983009808
        %v785 = vunpack.c.0.s8 %v784
        %v786 = vperm.slane %v738, %v785
        %v787 = vrot.slane %v786, 4
        %v788 = vsel %vm219, %v787, %v781
        %v789 = vrot.slane %v781, 4
        %v790 = vsel %vm219, %v786, %v789
        %v792 = vunpack.c.l.s4 1934713408
        %v793 = vunpack.c.0.s8 %v792
        %v794 = vperm.slane %v788, %v793
        %v796 = vunpack.c.l.s4 1934713408
        %v797 = vunpack.c.0.s8 %v796
        %v798 = vperm.slane %v790, %v797
        %v799 = vrot.slane %v794, 4
        %v800 = vsel %vm219, 0, %v799
        %v801 = vrot.slane %v798, 4
        %v802 = vsel %vm219, 0, %v801
        %v805 = vunpack.c.l.s4 1983009808
        %v806 = vunpack.c.0.s8 %v805
        %v807 = vperm.slane %v741, %v806
        %v810 = vunpack.c.l.s4 1983009808
        %v811 = vunpack.c.0.s8 %v810
        %v812 = vperm.slane %v747, %v811
        %v813 = vrot.slane %v812, 4
        %v814 = vsel %vm219, %v813, %v807
        %v815 = vrot.slane %v807, 4
        %v816 = vsel %vm219, %v812, %v815
        %v818 = vunpack.c.l.s4 1934713408
        %v819 = vunpack.c.0.s8 %v818
        %v820 = vperm.slane %v814, %v819
        %v822 = vunpack.c.l.s4 1934713408
        %v823 = vunpack.c.0.s8 %v822
        %v824 = vperm.slane %v816, %v823
        %v825 = vrot.slane %v820, 4
        %v826 = vsel %vm219, 0, %v825
        %v827 = vrot.slane %v824, 4
        %v828 = vsel %vm219, 0, %v827
        %v831 = vunpack.c.l.s4 1983009808
        %v832 = vunpack.c.0.s8 %v831
        %v833 = vperm.slane %v744, %v832
        %v836 = vunpack.c.l.s4 1983009808
        %v837 = vunpack.c.0.s8 %v836
        %v838 = vperm.slane %v750, %v837
        %v839 = vrot.slane %v838, 4
        %v840 = vsel %vm219, %v839, %v833
        %v841 = vrot.slane %v833, 4
        %v842 = vsel %vm219, %v838, %v841
        %v844 = vunpack.c.l.s4 1934713408
        %v845 = vunpack.c.0.s8 %v844
        %v846 = vperm.slane %v840, %v845
        %v848 = vunpack.c.l.s4 1934713408
        %v849 = vunpack.c.0.s8 %v848
        %v850 = vperm.slane %v842, %v849
        %v851 = vrot.slane %v846, 4
        %v852 = vsel %vm219, 0, %v851
        %v853 = vrot.slane %v850, 4
        %v854 = vsel %vm219, 0, %v853
        %v856 = vunpack.c.l.b16 %v794
        %v857 = vpack.c.b16 %v856, %v856
        %858 = vrot.lane.b32.xlu0 %v857, 16
        %v859 = vpop.permute.xlu0 %858
        %v861 = vunpack.c.l.b16 %v774
        %v862 = vpack.c.b16 %v861, %v861
        %863 = vrot.lane.b32.xlu0 %v862, 32
        %v864 = vpop.permute.xlu0 %863
        %v866 = vunpack.c.l.b16 %v800
        %v867 = vpack.c.b16 %v866, %v866
        %868 = vrot.lane.b32.xlu0 %v867, 48
        %v869 = vpop.permute.xlu0 %868
        %v871 = vunpack.c.l.b16 %v772
        %v872 = vpack.c.b16 %v871, %v871
        %873 = vrot.lane.b32.xlu0 %v872, 64
        %v874 = vpop.permute.xlu0 %873
        %v876 = vunpack.c.l.b16 %v798
        %v877 = vpack.c.b16 %v876, %v876
        %878 = vrot.lane.b32.xlu0 %v877, 80
        %v879 = vpop.permute.xlu0 %878
        %v881 = vunpack.c.l.b16 %v776
        %v882 = vpack.c.b16 %v881, %v881
        %883 = vrot.lane.b32.xlu0 %v882, 96
        %v884 = vpop.permute.xlu0 %883
        %v886 = vunpack.c.l.b16 %v802
        %v887 = vpack.c.b16 %v886, %v886
        %888 = vrot.lane.b32.xlu0 %v887, 112
        %v889 = vpop.permute.xlu0 %888
        %v891 = vunpack.c.l.b16 %v846
        %v892 = vpack.c.b16 %v891, %v891
        %893 = vrot.lane.b32.xlu0 %v892, 16
        %v894 = vpop.permute.xlu0 %893
        %v896 = vunpack.c.l.b16 %v826
        %v897 = vpack.c.b16 %v896, %v896
        %898 = vrot.lane.b32.xlu0 %v897, 32
        %v899 = vpop.permute.xlu0 %898
        %v901 = vunpack.c.l.b16 %v852
        %v902 = vpack.c.b16 %v901, %v901
        %903 = vrot.lane.b32.xlu0 %v902, 48
        %v904 = vpop.permute.xlu0 %903
        %v906 = vunpack.c.l.b16 %v824
        %v907 = vpack.c.b16 %v906, %v906
        %908 = vrot.lane.b32.xlu0 %v907, 64
        %v909 = vpop.permute.xlu0 %908
        %v911 = vunpack.c.l.b16 %v850
        %v912 = vpack.c.b16 %v911, %v911
        %913 = vrot.lane.b32.xlu0 %v912, 80
        %v914 = vpop.permute.xlu0 %913
        %v916 = vunpack.c.l.b16 %v828
        %v917 = vpack.c.b16 %v916, %v916
        %918 = vrot.lane.b32.xlu0 %v917, 96
        %v919 = vpop.permute.xlu0 %918
        %v921 = vunpack.c.l.b16 %v854
        %v922 = vpack.c.b16 %v921, %v921
        %923 = vrot.lane.b32.xlu0 %v922, 112
        %v924 = vpop.permute.xlu0 %923
        %v927 = vsel %vm383, %v768, %v859
        %v929 = vsel %vm387, %v927, %v864
        %v931 = vsel %vm390, %v929, %v869
        %v933 = vsel %vm393, %v931, %v874
        %v935 = vsel %vm396, %v933, %v879
        %v937 = vsel %vm399, %v935, %v884
        %v939 = vsel %vm402, %v937, %v889
        %v942 = vsel %vm383, %v820, %v894
        %v944 = vsel %vm387, %v942, %v899
        %v946 = vsel %vm390, %v944, %v904
        %v948 = vsel %vm393, %v946, %v909
        %v950 = vsel %vm396, %v948, %v914
        %v952 = vsel %vm399, %v950, %v919
        %v954 = vsel %vm402, %v952, %v924
        %v957 = vunpack.c.l.b16 %v939
        %v958 = vunpack.c.l.b16 %v954
        %v959 = vpack.c.b16 %v958, %v957
        %961 = vst [vmem:[#allocation2 + $0x8] sm:$0x33] %v959
        %v962 = vld [vmem:[%s172] sm:$0xf]
        %v963 = vld [vmem:[%s172 + $0x4] sm:$0xf]
        %v964 = vld [vmem:[%s172 + $0x8] sm:$0x1]
        %v965 = vld [vmem:[%s172 + $0xc] sm:$0xf]
        %v966 = vld [vmem:[%s172 + $0x10] sm:$0xf]
        %v967 = vld [vmem:[%s172 + $0x14] sm:$0x1]
        %v968 = vld [vmem:[%s172 + $0x18] sm:$0xf]
        %v969 = vld [vmem:[%s172 + $0x1c] sm:$0xf]
        %v970 = vld [vmem:[%s172 + $0x20] sm:$0x1]
        %v971 = vld [vmem:[%s172 + $0x24] sm:$0xf]
        %v972 = vld [vmem:[%s172 + $0x28] sm:$0xf]
        %v973 = vld [vmem:[%s172 + $0x2c] sm:$0x1]
        %vm974 = vsmask.f32 3328
        %vm975 = vsmask.f32 7440
        %vm976 = vmor %vm974, %vm975
        %v978 = vshrl.u32 %v962, 16
        %v980 = vrot.slane %v978, 4
        %v981 = vshll.u32 %v962, 16
        %v983 = vrot.slane %v981, 5
        %v984 = vor.u32 %v980, %v983
        %v985 = vrot.slane %v984, 4
        %v987 = vshll.u32 %v963, 16
        %v989 = vrot.slane %v987, 5
        %v990 = vsel %vm976, %v985, %v989
        %v991 = vshrl.u32 %v963, 16
        %v993 = vrot.slane %v991, 4
        %v994 = vor.u32 %v993, %v989
        %v995 = vrot.slane %v994, 4
        %v997 = vshll.u32 %v964, 16
        %v999 = vrot.slane %v997, 5
        %v1000 = vsel %vm976, %v995, %v999
        %v1002 = vshrl.u32 %v965, 16
        %v1004 = vrot.slane %v1002, 4
        %v1005 = vshll.u32 %v965, 16
        %v1007 = vrot.slane %v1005, 5
        %v1008 = vor.u32 %v1004, %v1007
        %v1009 = vrot.slane %v1008, 4
        %v1011 = vshll.u32 %v966, 16
        %v1013 = vrot.slane %v1011, 5
        %v1014 = vsel %vm976, %v1009, %v1013
        %v1015 = vshrl.u32 %v966, 16
        %v1017 = vrot.slane %v1015, 4
        %v1018 = vor.u32 %v1017, %v1013
        %v1019 = vrot.slane %v1018, 4
        %v1021 = vshll.u32 %v967, 16
        %v1023 = vrot.slane %v1021, 5
        %v1024 = vsel %vm976, %v1019, %v1023
        %v1026 = vshrl.u32 %v968, 16
        %v1028 = vrot.slane %v1026, 4
        %v1029 = vshll.u32 %v968, 16
        %v1031 = vrot.slane %v1029, 5
        %v1032 = vor.u32 %v1028, %v1031
        %v1033 = vrot.slane %v1032, 4
        %v1035 = vshll.u32 %v969, 16
        %v1037 = vrot.slane %v1035, 5
        %v1038 = vsel %vm976, %v1033, %v1037
        %v1039 = vshrl.u32 %v969, 16
        %v1041 = vrot.slane %v1039, 4
        %v1042 = vor.u32 %v1041, %v1037
        %v1043 = vrot.slane %v1042, 4
        %v1045 = vshll.u32 %v970, 16
        %v1047 = vrot.slane %v1045, 5
        %v1048 = vsel %vm976, %v1043, %v1047
        %v1050 = vshrl.u32 %v971, 16
        %v1052 = vrot.slane %v1050, 4
        %v1053 = vshll.u32 %v971, 16
        %v1055 = vrot.slane %v1053, 5
        %v1056 = vor.u32 %v1052, %v1055
        %v1057 = vrot.slane %v1056, 4
        %v1059 = vshll.u32 %v972, 16
        %v1061 = vrot.slane %v1059, 5
        %v1062 = vsel %vm976, %v1057, %v1061
        %v1063 = vshrl.u32 %v972, 16
        %v1065 = vrot.slane %v1063, 4
        %v1066 = vor.u32 %v1065, %v1061
        %v1067 = vrot.slane %v1066, 4
        %v1069 = vshll.u32 %v973, 16
        %v1071 = vrot.slane %v1069, 5
        %v1072 = vsel %vm976, %v1067, %v1071
        %v1075 = vpack.i.b16 %v1014, %v990
        %v1076 = vshrl.u32 %v990, 16
        %v1077 = vshrl.u32 %v1014, 16
        %v1078 = vpack.i.b16 %v1077, %v1076
        %v1081 = vpack.i.b16 %v1062, %v1038
        %v1082 = vshrl.u32 %v1038, 16
        %v1083 = vshrl.u32 %v1062, 16
        %v1084 = vpack.i.b16 %v1083, %v1082
        %v1087 = vpack.i.b16 %v1024, %v1000
        %v1088 = vshrl.u32 %v1000, 16
        %v1089 = vshrl.u32 %v1024, 16
        %v1090 = vpack.i.b16 %v1089, %v1088
        %v1093 = vpack.i.b16 %v1072, %v1048
        %v1094 = vshrl.u32 %v1048, 16
        %v1095 = vshrl.u32 %v1072, 16
        %v1096 = vpack.i.b16 %v1095, %v1094
        %v1099 = vunpack.c.l.s4 1983009808
        %v1100 = vunpack.c.0.s8 %v1099
        %v1101 = vperm.slane %v1075, %v1100
        %v1104 = vunpack.c.l.s4 1983009808
        %v1105 = vunpack.c.0.s8 %v1104
        %v1106 = vperm.slane %v1081, %v1105
        %v1107 = vrot.slane %v1106, 4
        %v1108 = vsel %vm219, %v1107, %v1101
        %v1109 = vrot.slane %v1101, 4
        %v1110 = vsel %vm219, %v1106, %v1109
        %v1112 = vunpack.c.l.s4 1934713408
        %v1113 = vunpack.c.0.s8 %v1112
        %v1114 = vperm.slane %v1108, %v1113
        %v1116 = vunpack.c.l.s4 1934713408
        %v1117 = vunpack.c.0.s8 %v1116
        %v1118 = vperm.slane %v1110, %v1117
        %v1119 = vrot.slane %v1114, 4
        %v1120 = vsel %vm219, 0, %v1119
        %v1121 = vrot.slane %v1118, 4
        %v1122 = vsel %vm219, 0, %v1121
        %v1125 = vunpack.c.l.s4 1983009808
        %v1126 = vunpack.c.0.s8 %v1125
        %v1127 = vperm.slane %v1078, %v1126
        %v1130 = vunpack.c.l.s4 1983009808
        %v1131 = vunpack.c.0.s8 %v1130
        %v1132 = vperm.slane %v1084, %v1131
        %v1133 = vrot.slane %v1132, 4
        %v1134 = vsel %vm219, %v1133, %v1127
        %v1135 = vrot.slane %v1127, 4
        %v1136 = vsel %vm219, %v1132, %v1135
        %v1138 = vunpack.c.l.s4 1934713408
        %v1139 = vunpack.c.0.s8 %v1138
        %v1140 = vperm.slane %v1134, %v1139
        %v1142 = vunpack.c.l.s4 1934713408
        %v1143 = vunpack.c.0.s8 %v1142
        %v1144 = vperm.slane %v1136, %v1143
        %v1145 = vrot.slane %v1140, 4
        %v1146 = vsel %vm219, 0, %v1145
        %v1147 = vrot.slane %v1144, 4
        %v1148 = vsel %vm219, 0, %v1147
        %v1151 = vunpack.c.l.s4 1983009808
        %v1152 = vunpack.c.0.s8 %v1151
        %v1153 = vperm.slane %v1087, %v1152
        %v1156 = vunpack.c.l.s4 1983009808
        %v1157 = vunpack.c.0.s8 %v1156
        %v1158 = vperm.slane %v1093, %v1157
        %v1159 = vrot.slane %v1158, 4
        %v1160 = vsel %vm219, %v1159, %v1153
        %v1161 = vrot.slane %v1153, 4
        %v1162 = vsel %vm219, %v1158, %v1161
        %v1164 = vunpack.c.l.s4 1934713408
        %v1165 = vunpack.c.0.s8 %v1164
        %v1166 = vperm.slane %v1160, %v1165
        %v1168 = vunpack.c.l.s4 1934713408
        %v1169 = vunpack.c.0.s8 %v1168
        %v1170 = vperm.slane %v1162, %v1169
        %v1171 = vrot.slane %v1166, 4
        %v1172 = vsel %vm219, 0, %v1171
        %v1173 = vrot.slane %v1170, 4
        %v1174 = vsel %vm219, 0, %v1173
        %v1177 = vunpack.c.l.s4 1983009808
        %v1178 = vunpack.c.0.s8 %v1177
        %v1179 = vperm.slane %v1090, %v1178
        %v1182 = vunpack.c.l.s4 1983009808
        %v1183 = vunpack.c.0.s8 %v1182
        %v1184 = vperm.slane %v1096, %v1183
        %v1185 = vrot.slane %v1184, 4
        %v1186 = vsel %vm219, %v1185, %v1179
        %v1187 = vrot.slane %v1179, 4
        %v1188 = vsel %vm219, %v1184, %v1187
        %v1190 = vunpack.c.l.s4 1934713408
        %v1191 = vunpack.c.0.s8 %v1190
        %v1192 = vperm.slane %v1186, %v1191
        %v1194 = vunpack.c.l.s4 1934713408
        %v1195 = vunpack.c.0.s8 %v1194
        %v1196 = vperm.slane %v1188, %v1195
        %v1197 = vrot.slane %v1192, 4
        %v1198 = vsel %vm219, 0, %v1197
        %v1199 = vrot.slane %v1196, 4
        %v1200 = vsel %vm219, 0, %v1199
        %v1202 = vunpack.c.l.b16 %v1140
        %v1203 = vpack.c.b16 %v1202, %v1202
        %1204 = vrot.lane.b32.xlu0 %v1203, 16
        %v1205 = vpop.permute.xlu0 %1204
        %v1207 = vunpack.c.l.b16 %v1120
        %v1208 = vpack.c.b16 %v1207, %v1207
        %1209 = vrot.lane.b32.xlu0 %v1208, 32
        %v1210 = vpop.permute.xlu0 %1209
        %v1212 = vunpack.c.l.b16 %v1146
        %v1213 = vpack.c.b16 %v1212, %v1212
        %1214 = vrot.lane.b32.xlu0 %v1213, 48
        %v1215 = vpop.permute.xlu0 %1214
        %v1217 = vunpack.c.l.b16 %v1118
        %v1218 = vpack.c.b16 %v1217, %v1217
        %1219 = vrot.lane.b32.xlu0 %v1218, 64
        %v1220 = vpop.permute.xlu0 %1219
        %v1222 = vunpack.c.l.b16 %v1144
        %v1223 = vpack.c.b16 %v1222, %v1222
        %1224 = vrot.lane.b32.xlu0 %v1223, 80
        %v1225 = vpop.permute.xlu0 %1224
        %v1227 = vunpack.c.l.b16 %v1122
        %v1228 = vpack.c.b16 %v1227, %v1227
        %1229 = vrot.lane.b32.xlu0 %v1228, 96
        %v1230 = vpop.permute.xlu0 %1229
        %v1232 = vunpack.c.l.b16 %v1148
        %v1233 = vpack.c.b16 %v1232, %v1232
        %1234 = vrot.lane.b32.xlu0 %v1233, 112
        %v1235 = vpop.permute.xlu0 %1234
        %v1237 = vunpack.c.l.b16 %v1192
        %v1238 = vpack.c.b16 %v1237, %v1237
        %1239 = vrot.lane.b32.xlu0 %v1238, 16
        %v1240 = vpop.permute.xlu0 %1239
        %v1242 = vunpack.c.l.b16 %v1172
        %v1243 = vpack.c.b16 %v1242, %v1242
        %1244 = vrot.lane.b32.xlu0 %v1243, 32
        %v1245 = vpop.permute.xlu0 %1244
        %v1247 = vunpack.c.l.b16 %v1198
        %v1248 = vpack.c.b16 %v1247, %v1247
        %1249 = vrot.lane.b32.xlu0 %v1248, 48
        %v1250 = vpop.permute.xlu0 %1249
        %v1252 = vunpack.c.l.b16 %v1170
        %v1253 = vpack.c.b16 %v1252, %v1252
        %1254 = vrot.lane.b32.xlu0 %v1253, 64
        %v1255 = vpop.permute.xlu0 %1254
        %v1257 = vunpack.c.l.b16 %v1196
        %v1258 = vpack.c.b16 %v1257, %v1257
        %1259 = vrot.lane.b32.xlu0 %v1258, 80
        %v1260 = vpop.permute.xlu0 %1259
        %v1262 = vunpack.c.l.b16 %v1174
        %v1263 = vpack.c.b16 %v1262, %v1262
        %1264 = vrot.lane.b32.xlu0 %v1263, 96
        %v1265 = vpop.permute.xlu0 %1264
        %v1267 = vunpack.c.l.b16 %v1200
        %v1268 = vpack.c.b16 %v1267, %v1267
        %1269 = vrot.lane.b32.xlu0 %v1268, 112
        %v1270 = vpop.permute.xlu0 %1269
        %v1273 = vsel %vm383, %v1114, %v1205
        %v1275 = vsel %vm387, %v1273, %v1210
        %v1277 = vsel %vm390, %v1275, %v1215
        %v1279 = vsel %vm393, %v1277, %v1220
        %v1281 = vsel %vm396, %v1279, %v1225
        %v1283 = vsel %vm399, %v1281, %v1230
        %v1285 = vsel %vm402, %v1283, %v1235
        %v1288 = vsel %vm383, %v1166, %v1240
        %v1290 = vsel %vm387, %v1288, %v1245
        %v1292 = vsel %vm390, %v1290, %v1250
        %v1294 = vsel %vm393, %v1292, %v1255
        %v1296 = vsel %vm396, %v1294, %v1260
        %v1298 = vsel %vm399, %v1296, %v1265
        %v1300 = vsel %vm402, %v1298, %v1270
        %v1303 = vunpack.c.l.b16 %v1285
        %v1304 = vunpack.c.l.b16 %v1300
        %v1305 = vpack.c.b16 %v1304, %v1303
        %v1306 = vrot.slane %v1305, 6
        %1308 = vst [vmem:[#allocation2 + $0x8] sm:$0xcc] %v1306
        %v1309 = vld [vmem:[%s172] sm:$0xf]
        %v1310 = vld [vmem:[%s172 + $0x4] sm:$0xf]
        %v1311 = vld [vmem:[%s172 + $0x8] sm:$0x1]
        %v1312 = vld [vmem:[%s172 + $0xc] sm:$0xf]
        %v1313 = vld [vmem:[%s172 + $0x10] sm:$0xf]
        %v1314 = vld [vmem:[%s172 + $0x14] sm:$0x1]
        %v1315 = vld [vmem:[%s172 + $0x18] sm:$0xf]
        %v1316 = vld [vmem:[%s172 + $0x1c] sm:$0xf]
        %v1317 = vld [vmem:[%s172 + $0x20] sm:$0x1]
        %v1318 = vld [vmem:[%s172 + $0x24] sm:$0xf]
        %v1319 = vld [vmem:[%s172 + $0x28] sm:$0xf]
        %v1320 = vld [vmem:[%s172 + $0x2c] sm:$0x1]
        %v1322 = vshrl.u32 %v1309, 16
        %v1324 = vrot.slane %v1322, 4
        %v1325 = vshll.u32 %v1309, 16
        %v1327 = vrot.slane %v1325, 5
        %v1328 = vor.u32 %v1324, %v1327
        %v1329 = vrot.slane %v1328, 4
        %v1331 = vshll.u32 %v1310, 16
        %v1333 = vrot.slane %v1331, 5
        %v1334 = vsel %vm976, %v1329, %v1333
        %v1335 = vshrl.u32 %v1310, 16
        %v1337 = vrot.slane %v1335, 4
        %v1338 = vor.u32 %v1337, %v1333
        %v1339 = vrot.slane %v1338, 4
        %v1341 = vshll.u32 %v1311, 16
        %v1343 = vrot.slane %v1341, 5
        %v1344 = vsel %vm976, %v1339, %v1343
        %v1346 = vshrl.u32 %v1312, 16
        %v1348 = vrot.slane %v1346, 4
        %v1349 = vshll.u32 %v1312, 16
        %v1351 = vrot.slane %v1349, 5
        %v1352 = vor.u32 %v1348, %v1351
        %v1353 = vrot.slane %v1352, 4
        %v1355 = vshll.u32 %v1313, 16
        %v1357 = vrot.slane %v1355, 5
        %v1358 = vsel %vm976, %v1353, %v1357
        %v1359 = vshrl.u32 %v1313, 16
        %v1361 = vrot.slane %v1359, 4
        %v1362 = vor.u32 %v1361, %v1357
        %v1363 = vrot.slane %v1362, 4
        %v1365 = vshll.u32 %v1314, 16
        %v1367 = vrot.slane %v1365, 5
        %v1368 = vsel %vm976, %v1363, %v1367
        %v1370 = vshrl.u32 %v1315, 16
        %v1372 = vrot.slane %v1370, 4
        %v1373 = vshll.u32 %v1315, 16
        %v1375 = vrot.slane %v1373, 5
        %v1376 = vor.u32 %v1372, %v1375
        %v1377 = vrot.slane %v1376, 4
        %v1379 = vshll.u32 %v1316, 16
        %v1381 = vrot.slane %v1379, 5
        %v1382 = vsel %vm976, %v1377, %v1381
        %v1383 = vshrl.u32 %v1316, 16
        %v1385 = vrot.slane %v1383, 4
        %v1386 = vor.u32 %v1385, %v1381
        %v1387 = vrot.slane %v1386, 4
        %v1389 = vshll.u32 %v1317, 16
        %v1391 = vrot.slane %v1389, 5
        %v1392 = vsel %vm976, %v1387, %v1391
        %v1394 = vshrl.u32 %v1318, 16
        %v1396 = vrot.slane %v1394, 4
        %v1397 = vshll.u32 %v1318, 16
        %v1399 = vrot.slane %v1397, 5
        %v1400 = vor.u32 %v1396, %v1399
        %v1401 = vrot.slane %v1400, 4
        %v1403 = vshll.u32 %v1319, 16
        %v1405 = vrot.slane %v1403, 5
        %v1406 = vsel %vm976, %v1401, %v1405
        %v1407 = vshrl.u32 %v1319, 16
        %v1409 = vrot.slane %v1407, 4
        %v1410 = vor.u32 %v1409, %v1405
        %v1411 = vrot.slane %v1410, 4
        %v1413 = vshll.u32 %v1320, 16
        %v1415 = vrot.slane %v1413, 5
        %v1416 = vsel %vm976, %v1411, %v1415
        %1417 = vrot.lane.b32.xlu0 %v1334, 127
        %v1418 = vpop.permute.xlu0 %1417
        %1419 = vrot.lane.b32.xlu0 %v1344, 127
        %v1420 = vpop.permute.xlu0 %1419
        %1421 = vrot.lane.b32.xlu0 %v1358, 127
        %v1422 = vpop.permute.xlu0 %1421
        %1423 = vrot.lane.b32.xlu0 %v1368, 127
        %v1424 = vpop.permute.xlu0 %1423
        %1425 = vrot.lane.b32.xlu0 %v1382, 127
        %v1426 = vpop.permute.xlu0 %1425
        %1427 = vrot.lane.b32.xlu0 %v1392, 127
        %v1428 = vpop.permute.xlu0 %1427
        %1429 = vrot.lane.b32.xlu0 %v1406, 127
        %v1430 = vpop.permute.xlu0 %1429
        %1431 = vrot.lane.b32.xlu0 %v1416, 127
        %v1432 = vpop.permute.xlu0 %1431
        %v1435 = vpack.i.b16 %v1422, %v1418
        %v1436 = vshrl.u32 %v1418, 16
        %v1437 = vshrl.u32 %v1422, 16
        %v1438 = vpack.i.b16 %v1437, %v1436
        %v1441 = vpack.i.b16 %v1430, %v1426
        %v1442 = vshrl.u32 %v1426, 16
        %v1443 = vshrl.u32 %v1430, 16
        %v1444 = vpack.i.b16 %v1443, %v1442
        %v1447 = vpack.i.b16 %v1424, %v1420
        %v1448 = vshrl.u32 %v1420, 16
        %v1449 = vshrl.u32 %v1424, 16
        %v1450 = vpack.i.b16 %v1449, %v1448
        %v1453 = vpack.i.b16 %v1432, %v1428
        %v1454 = vshrl.u32 %v1428, 16
        %v1455 = vshrl.u32 %v1432, 16
        %v1456 = vpack.i.b16 %v1455, %v1454
        %v1459 = vunpack.c.l.s4 1983009808
        %v1460 = vunpack.c.0.s8 %v1459
        %v1461 = vperm.slane %v1435, %v1460
        %v1464 = vunpack.c.l.s4 1983009808
        %v1465 = vunpack.c.0.s8 %v1464
        %v1466 = vperm.slane %v1441, %v1465
        %v1467 = vrot.slane %v1466, 4
        %v1468 = vsel %vm219, %v1467, %v1461
        %v1469 = vrot.slane %v1461, 4
        %v1470 = vsel %vm219, %v1466, %v1469
        %v1472 = vunpack.c.l.s4 1934713408
        %v1473 = vunpack.c.0.s8 %v1472
        %v1474 = vperm.slane %v1468, %v1473
        %v1476 = vunpack.c.l.s4 1934713408
        %v1477 = vunpack.c.0.s8 %v1476
        %v1478 = vperm.slane %v1470, %v1477
        %v1479 = vrot.slane %v1474, 4
        %v1480 = vsel %vm219, 0, %v1479
        %v1481 = vrot.slane %v1478, 4
        %v1482 = vsel %vm219, 0, %v1481
        %v1485 = vunpack.c.l.s4 1983009808
        %v1486 = vunpack.c.0.s8 %v1485
        %v1487 = vperm.slane %v1438, %v1486
        %v1490 = vunpack.c.l.s4 1983009808
        %v1491 = vunpack.c.0.s8 %v1490
        %v1492 = vperm.slane %v1444, %v1491
        %v1493 = vrot.slane %v1492, 4
        %v1494 = vsel %vm219, %v1493, %v1487
        %v1495 = vrot.slane %v1487, 4
        %v1496 = vsel %vm219, %v1492, %v1495
        %v1498 = vunpack.c.l.s4 1934713408
        %v1499 = vunpack.c.0.s8 %v1498
        %v1500 = vperm.slane %v1494, %v1499
        %v1502 = vunpack.c.l.s4 1934713408
        %v1503 = vunpack.c.0.s8 %v1502
        %v1504 = vperm.slane %v1496, %v1503
        %v1505 = vrot.slane %v1500, 4
        %v1506 = vsel %vm219, 0, %v1505
        %v1507 = vrot.slane %v1504, 4
        %v1508 = vsel %vm219, 0, %v1507
        %v1511 = vunpack.c.l.s4 1983009808
        %v1512 = vunpack.c.0.s8 %v1511
        %v1513 = vperm.slane %v1447, %v1512
        %v1516 = vunpack.c.l.s4 1983009808
        %v1517 = vunpack.c.0.s8 %v1516
        %v1518 = vperm.slane %v1453, %v1517
        %v1519 = vrot.slane %v1518, 4
        %v1520 = vsel %vm219, %v1519, %v1513
        %v1521 = vrot.slane %v1513, 4
        %v1522 = vsel %vm219, %v1518, %v1521
        %v1524 = vunpack.c.l.s4 1934713408
        %v1525 = vunpack.c.0.s8 %v1524
        %v1526 = vperm.slane %v1520, %v1525
        %v1528 = vunpack.c.l.s4 1934713408
        %v1529 = vunpack.c.0.s8 %v1528
        %v1530 = vperm.slane %v1522, %v1529
        %v1531 = vrot.slane %v1526, 4
        %v1532 = vsel %vm219, 0, %v1531
        %v1533 = vrot.slane %v1530, 4
        %v1534 = vsel %vm219, 0, %v1533
        %v1537 = vunpack.c.l.s4 1983009808
        %v1538 = vunpack.c.0.s8 %v1537
        %v1539 = vperm.slane %v1450, %v1538
        %v1542 = vunpack.c.l.s4 1983009808
        %v1543 = vunpack.c.0.s8 %v1542
        %v1544 = vperm.slane %v1456, %v1543
        %v1545 = vrot.slane %v1544, 4
        %v1546 = vsel %vm219, %v1545, %v1539
        %v1547 = vrot.slane %v1539, 4
        %v1548 = vsel %vm219, %v1544, %v1547
        %v1550 = vunpack.c.l.s4 1934713408
        %v1551 = vunpack.c.0.s8 %v1550
        %v1552 = vperm.slane %v1546, %v1551
        %v1554 = vunpack.c.l.s4 1934713408
        %v1555 = vunpack.c.0.s8 %v1554
        %v1556 = vperm.slane %v1548, %v1555
        %v1557 = vrot.slane %v1552, 4
        %v1558 = vsel %vm219, 0, %v1557
        %v1559 = vrot.slane %v1556, 4
        %v1560 = vsel %vm219, 0, %v1559
        %v1562 = vunpack.c.l.b16 %v1500
        %v1563 = vpack.c.b16 %v1562, %v1562
        %1564 = vrot.lane.b32.xlu0 %v1563, 16
        %v1565 = vpop.permute.xlu0 %1564
        %v1567 = vunpack.c.l.b16 %v1480
        %v1568 = vpack.c.b16 %v1567, %v1567
        %1569 = vrot.lane.b32.xlu0 %v1568, 32
        %v1570 = vpop.permute.xlu0 %1569
        %v1572 = vunpack.c.l.b16 %v1506
        %v1573 = vpack.c.b16 %v1572, %v1572
        %1574 = vrot.lane.b32.xlu0 %v1573, 48
        %v1575 = vpop.permute.xlu0 %1574
        %v1577 = vunpack.c.l.b16 %v1478
        %v1578 = vpack.c.b16 %v1577, %v1577
        %1579 = vrot.lane.b32.xlu0 %v1578, 64
        %v1580 = vpop.permute.xlu0 %1579
        %v1582 = vunpack.c.l.b16 %v1504
        %v1583 = vpack.c.b16 %v1582, %v1582
        %1584 = vrot.lane.b32.xlu0 %v1583, 80
        %v1585 = vpop.permute.xlu0 %1584
        %v1587 = vunpack.c.l.b16 %v1482
        %v1588 = vpack.c.b16 %v1587, %v1587
        %1589 = vrot.lane.b32.xlu0 %v1588, 96
        %v1590 = vpop.permute.xlu0 %1589
        %v1592 = vunpack.c.l.b16 %v1508
        %v1593 = vpack.c.b16 %v1592, %v1592
        %1594 = vrot.lane.b32.xlu0 %v1593, 112
        %v1595 = vpop.permute.xlu0 %1594
        %v1597 = vunpack.c.l.b16 %v1552
        %v1598 = vpack.c.b16 %v1597, %v1597
        %1599 = vrot.lane.b32.xlu0 %v1598, 16
        %v1600 = vpop.permute.xlu0 %1599
        %v1602 = vunpack.c.l.b16 %v1532
        %v1603 = vpack.c.b16 %v1602, %v1602
        %1604 = vrot.lane.b32.xlu0 %v1603, 32
        %v1605 = vpop.permute.xlu0 %1604
        %v1607 = vunpack.c.l.b16 %v1558
        %v1608 = vpack.c.b16 %v1607, %v1607
        %1609 = vrot.lane.b32.xlu0 %v1608, 48
        %v1610 = vpop.permute.xlu0 %1609
        %v1612 = vunpack.c.l.b16 %v1530
        %v1613 = vpack.c.b16 %v1612, %v1612
        %1614 = vrot.lane.b32.xlu0 %v1613, 64
        %v1615 = vpop.permute.xlu0 %1614
        %v1617 = vunpack.c.l.b16 %v1556
        %v1618 = vpack.c.b16 %v1617, %v1617
        %1619 = vrot.lane.b32.xlu0 %v1618, 80
        %v1620 = vpop.permute.xlu0 %1619
        %v1622 = vunpack.c.l.b16 %v1534
        %v1623 = vpack.c.b16 %v1622, %v1622
        %1624 = vrot.lane.b32.xlu0 %v1623, 96
        %v1625 = vpop.permute.xlu0 %1624
        %v1627 = vunpack.c.l.b16 %v1560
        %v1628 = vpack.c.b16 %v1627, %v1627
        %1629 = vrot.lane.b32.xlu0 %v1628, 112
        %v1630 = vpop.permute.xlu0 %1629
        %v1633 = vsel %vm383, %v1474, %v1565
        %v1635 = vsel %vm387, %v1633, %v1570
        %v1637 = vsel %vm390, %v1635, %v1575
        %v1639 = vsel %vm393, %v1637, %v1580
        %v1641 = vsel %vm396, %v1639, %v1585
        %v1643 = vsel %vm399, %v1641, %v1590
        %v1645 = vsel %vm402, %v1643, %v1595
        %v1648 = vsel %vm383, %v1526, %v1600
        %v1650 = vsel %vm387, %v1648, %v1605
        %v1652 = vsel %vm390, %v1650, %v1610
        %v1654 = vsel %vm393, %v1652, %v1615
        %v1656 = vsel %vm396, %v1654, %v1620
        %v1658 = vsel %vm399, %v1656, %v1625
        %v1660 = vsel %vm402, %v1658, %v1630
        %v1663 = vunpack.c.l.b16 %v1645
        %v1664 = vunpack.c.l.b16 %v1660
        %v1665 = vpack.c.b16 %v1664, %v1663
        %1667 = vst [vmem:[#allocation2 + $0x10] sm:$0x33] %v1665
        %v1668 = vld [vmem:[%s172] sm:$0xf]
        %v1669 = vld [vmem:[%s172 + $0x4] sm:$0xf]
        %v1670 = vld [vmem:[%s172 + $0x8] sm:$0x1]
        %v1671 = vld [vmem:[%s172 + $0xc] sm:$0xf]
        %v1672 = vld [vmem:[%s172 + $0x10] sm:$0xf]
        %v1673 = vld [vmem:[%s172 + $0x14] sm:$0x1]
        %v1674 = vld [vmem:[%s172 + $0x18] sm:$0xf]
        %v1675 = vld [vmem:[%s172 + $0x1c] sm:$0xf]
        %v1676 = vld [vmem:[%s172 + $0x20] sm:$0x1]
        %v1677 = vld [vmem:[%s172 + $0x24] sm:$0xf]
        %v1678 = vld [vmem:[%s172 + $0x28] sm:$0xf]
        %v1679 = vld [vmem:[%s172 + $0x2c] sm:$0x1]
        %v1681 = vshrl.u32 %v1668, 16
        %v1683 = vrot.slane %v1681, 4
        %v1684 = vshll.u32 %v1668, 16
        %v1686 = vrot.slane %v1684, 5
        %v1687 = vor.u32 %v1683, %v1686
        %v1688 = vrot.slane %v1687, 4
        %v1690 = vshll.u32 %v1669, 16
        %v1692 = vrot.slane %v1690, 5
        %v1693 = vsel %vm976, %v1688, %v1692
        %v1694 = vshrl.u32 %v1669, 16
        %v1696 = vrot.slane %v1694, 4
        %v1697 = vor.u32 %v1696, %v1692
        %v1698 = vrot.slane %v1697, 4
        %v1700 = vshll.u32 %v1670, 16
        %v1702 = vrot.slane %v1700, 5
        %v1703 = vsel %vm976, %v1698, %v1702
        %v1705 = vshrl.u32 %v1671, 16
        %v1707 = vrot.slane %v1705, 4
        %v1708 = vshll.u32 %v1671, 16
        %v1710 = vrot.slane %v1708, 5
        %v1711 = vor.u32 %v1707, %v1710
        %v1712 = vrot.slane %v1711, 4
        %v1714 = vshll.u32 %v1672, 16
        %v1716 = vrot.slane %v1714, 5
        %v1717 = vsel %vm976, %v1712, %v1716
        %v1718 = vshrl.u32 %v1672, 16
        %v1720 = vrot.slane %v1718, 4
        %v1721 = vor.u32 %v1720, %v1716
        %v1722 = vrot.slane %v1721, 4
        %v1724 = vshll.u32 %v1673, 16
        %v1726 = vrot.slane %v1724, 5
        %v1727 = vsel %vm976, %v1722, %v1726
        %v1729 = vshrl.u32 %v1674, 16
        %v1731 = vrot.slane %v1729, 4
        %v1732 = vshll.u32 %v1674, 16
        %v1734 = vrot.slane %v1732, 5
        %v1735 = vor.u32 %v1731, %v1734
        %v1736 = vrot.slane %v1735, 4
        %v1738 = vshll.u32 %v1675, 16
        %v1740 = vrot.slane %v1738, 5
        %v1741 = vsel %vm976, %v1736, %v1740
        %v1742 = vshrl.u32 %v1675, 16
        %v1744 = vrot.slane %v1742, 4
        %v1745 = vor.u32 %v1744, %v1740
        %v1746 = vrot.slane %v1745, 4
        %v1748 = vshll.u32 %v1676, 16
        %v1750 = vrot.slane %v1748, 5
        %v1751 = vsel %vm976, %v1746, %v1750
        %v1753 = vshrl.u32 %v1677, 16
        %v1755 = vrot.slane %v1753, 4
        %v1756 = vshll.u32 %v1677, 16
        %v1758 = vrot.slane %v1756, 5
        %v1759 = vor.u32 %v1755, %v1758
        %v1760 = vrot.slane %v1759, 4
        %v1762 = vshll.u32 %v1678, 16
        %v1764 = vrot.slane %v1762, 5
        %v1765 = vsel %vm976, %v1760, %v1764
        %v1766 = vshrl.u32 %v1678, 16
        %v1768 = vrot.slane %v1766, 4
        %v1769 = vor.u32 %v1768, %v1764
        %v1770 = vrot.slane %v1769, 4
        %v1772 = vshll.u32 %v1679, 16
        %v1774 = vrot.slane %v1772, 5
        %v1775 = vsel %vm976, %v1770, %v1774
        %1776 = vrot.lane.b32.xlu0 %v1693, 126
        %v1777 = vpop.permute.xlu0 %1776
        %1778 = vrot.lane.b32.xlu0 %v1703, 126
        %v1779 = vpop.permute.xlu0 %1778
        %1780 = vrot.lane.b32.xlu0 %v1717, 126
        %v1781 = vpop.permute.xlu0 %1780
        %1782 = vrot.lane.b32.xlu0 %v1727, 126
        %v1783 = vpop.permute.xlu0 %1782
        %1784 = vrot.lane.b32.xlu0 %v1741, 126
        %v1785 = vpop.permute.xlu0 %1784
        %1786 = vrot.lane.b32.xlu0 %v1751, 126
        %v1787 = vpop.permute.xlu0 %1786
        %1788 = vrot.lane.b32.xlu0 %v1765, 126
        %v1789 = vpop.permute.xlu0 %1788
        %1790 = vrot.lane.b32.xlu0 %v1775, 126
        %v1791 = vpop.permute.xlu0 %1790
        %v1794 = vpack.i.b16 %v1781, %v1777
        %v1795 = vshrl.u32 %v1777, 16
        %v1796 = vshrl.u32 %v1781, 16
        %v1797 = vpack.i.b16 %v1796, %v1795
        %v1800 = vpack.i.b16 %v1789, %v1785
        %v1801 = vshrl.u32 %v1785, 16
        %v1802 = vshrl.u32 %v1789, 16
        %v1803 = vpack.i.b16 %v1802, %v1801
        %v1806 = vpack.i.b16 %v1783, %v1779
        %v1807 = vshrl.u32 %v1779, 16
        %v1808 = vshrl.u32 %v1783, 16
        %v1809 = vpack.i.b16 %v1808, %v1807
        %v1812 = vpack.i.b16 %v1791, %v1787
        %v1813 = vshrl.u32 %v1787, 16
        %v1814 = vshrl.u32 %v1791, 16
        %v1815 = vpack.i.b16 %v1814, %v1813
        %v1818 = vunpack.c.l.s4 1983009808
        %v1819 = vunpack.c.0.s8 %v1818
        %v1820 = vperm.slane %v1794, %v1819
        %v1823 = vunpack.c.l.s4 1983009808
        %v1824 = vunpack.c.0.s8 %v1823
        %v1825 = vperm.slane %v1800, %v1824
        %v1826 = vrot.slane %v1825, 4
        %v1827 = vsel %vm219, %v1826, %v1820
        %v1828 = vrot.slane %v1820, 4
        %v1829 = vsel %vm219, %v1825, %v1828
        %v1831 = vunpack.c.l.s4 1934713408
        %v1832 = vunpack.c.0.s8 %v1831
        %v1833 = vperm.slane %v1827, %v1832
        %v1835 = vunpack.c.l.s4 1934713408
        %v1836 = vunpack.c.0.s8 %v1835
        %v1837 = vperm.slane %v1829, %v1836
        %v1838 = vrot.slane %v1833, 4
        %v1839 = vsel %vm219, 0, %v1838
        %v1840 = vrot.slane %v1837, 4
        %v1841 = vsel %vm219, 0, %v1840
        %v1844 = vunpack.c.l.s4 1983009808
        %v1845 = vunpack.c.0.s8 %v1844
        %v1846 = vperm.slane %v1797, %v1845
        %v1849 = vunpack.c.l.s4 1983009808
        %v1850 = vunpack.c.0.s8 %v1849
        %v1851 = vperm.slane %v1803, %v1850
        %v1852 = vrot.slane %v1851, 4
        %v1853 = vsel %vm219, %v1852, %v1846
        %v1854 = vrot.slane %v1846, 4
        %v1855 = vsel %vm219, %v1851, %v1854
        %v1857 = vunpack.c.l.s4 1934713408
        %v1858 = vunpack.c.0.s8 %v1857
        %v1859 = vperm.slane %v1853, %v1858
        %v1861 = vunpack.c.l.s4 1934713408
        %v1862 = vunpack.c.0.s8 %v1861
        %v1863 = vperm.slane %v1855, %v1862
        %v1864 = vrot.slane %v1859, 4
        %v1865 = vsel %vm219, 0, %v1864
        %v1866 = vrot.slane %v1863, 4
        %v1867 = vsel %vm219, 0, %v1866
        %v1870 = vunpack.c.l.s4 1983009808
        %v1871 = vunpack.c.0.s8 %v1870
        %v1872 = vperm.slane %v1806, %v1871
        %v1875 = vunpack.c.l.s4 1983009808
        %v1876 = vunpack.c.0.s8 %v1875
        %v1877 = vperm.slane %v1812, %v1876
        %v1878 = vrot.slane %v1877, 4
        %v1879 = vsel %vm219, %v1878, %v1872
        %v1880 = vrot.slane %v1872, 4
        %v1881 = vsel %vm219, %v1877, %v1880
        %v1883 = vunpack.c.l.s4 1934713408
        %v1884 = vunpack.c.0.s8 %v1883
        %v1885 = vperm.slane %v1879, %v1884
        %v1887 = vunpack.c.l.s4 1934713408
        %v1888 = vunpack.c.0.s8 %v1887
        %v1889 = vperm.slane %v1881, %v1888
        %v1890 = vrot.slane %v1885, 4
        %v1891 = vsel %vm219, 0, %v1890
        %v1892 = vrot.slane %v1889, 4
        %v1893 = vsel %vm219, 0, %v1892
        %v1896 = vunpack.c.l.s4 1983009808
        %v1897 = vunpack.c.0.s8 %v1896
        %v1898 = vperm.slane %v1809, %v1897
        %v1901 = vunpack.c.l.s4 1983009808
        %v1902 = vunpack.c.0.s8 %v1901
        %v1903 = vperm.slane %v1815, %v1902
        %v1904 = vrot.slane %v1903, 4
        %v1905 = vsel %vm219, %v1904, %v1898
        %v1906 = vrot.slane %v1898, 4
        %v1907 = vsel %vm219, %v1903, %v1906
        %v1909 = vunpack.c.l.s4 1934713408
        %v1910 = vunpack.c.0.s8 %v1909
        %v1911 = vperm.slane %v1905, %v1910
        %v1913 = vunpack.c.l.s4 1934713408
        %v1914 = vunpack.c.0.s8 %v1913
        %v1915 = vperm.slane %v1907, %v1914
        %v1916 = vrot.slane %v1911, 4
        %v1917 = vsel %vm219, 0, %v1916
        %v1918 = vrot.slane %v1915, 4
        %v1919 = vsel %vm219, 0, %v1918
        %v1921 = vunpack.c.l.b16 %v1859
        %v1922 = vpack.c.b16 %v1921, %v1921
        %1923 = vrot.lane.b32.xlu0 %v1922, 16
        %v1924 = vpop.permute.xlu0 %1923
        %v1926 = vunpack.c.l.b16 %v1839
        %v1927 = vpack.c.b16 %v1926, %v1926
        %1928 = vrot.lane.b32.xlu0 %v1927, 32
        %v1929 = vpop.permute.xlu0 %1928
        %v1931 = vunpack.c.l.b16 %v1865
        %v1932 = vpack.c.b16 %v1931, %v1931
        %1933 = vrot.lane.b32.xlu0 %v1932, 48
        %v1934 = vpop.permute.xlu0 %1933
        %v1936 = vunpack.c.l.b16 %v1837
        %v1937 = vpack.c.b16 %v1936, %v1936
        %1938 = vrot.lane.b32.xlu0 %v1937, 64
        %v1939 = vpop.permute.xlu0 %1938
        %v1941 = vunpack.c.l.b16 %v1863
        %v1942 = vpack.c.b16 %v1941, %v1941
        %1943 = vrot.lane.b32.xlu0 %v1942, 80
        %v1944 = vpop.permute.xlu0 %1943
        %v1946 = vunpack.c.l.b16 %v1841
        %v1947 = vpack.c.b16 %v1946, %v1946
        %1948 = vrot.lane.b32.xlu0 %v1947, 96
        %v1949 = vpop.permute.xlu0 %1948
        %v1951 = vunpack.c.l.b16 %v1867
        %v1952 = vpack.c.b16 %v1951, %v1951
        %1953 = vrot.lane.b32.xlu0 %v1952, 112
        %v1954 = vpop.permute.xlu0 %1953
        %v1956 = vunpack.c.l.b16 %v1911
        %v1957 = vpack.c.b16 %v1956, %v1956
        %1958 = vrot.lane.b32.xlu0 %v1957, 16
        %v1959 = vpop.permute.xlu0 %1958
        %v1961 = vunpack.c.l.b16 %v1891
        %v1962 = vpack.c.b16 %v1961, %v1961
        %1963 = vrot.lane.b32.xlu0 %v1962, 32
        %v1964 = vpop.permute.xlu0 %1963
        %v1966 = vunpack.c.l.b16 %v1917
        %v1967 = vpack.c.b16 %v1966, %v1966
        %1968 = vrot.lane.b32.xlu0 %v1967, 48
        %v1969 = vpop.permute.xlu0 %1968
        %v1971 = vunpack.c.l.b16 %v1889
        %v1972 = vpack.c.b16 %v1971, %v1971
        %1973 = vrot.lane.b32.xlu0 %v1972, 64
        %v1974 = vpop.permute.xlu0 %1973
        %v1976 = vunpack.c.l.b16 %v1915
        %v1977 = vpack.c.b16 %v1976, %v1976
        %1978 = vrot.lane.b32.xlu0 %v1977, 80
        %v1979 = vpop.permute.xlu0 %1978
        %v1981 = vunpack.c.l.b16 %v1893
        %v1982 = vpack.c.b16 %v1981, %v1981
        %1983 = vrot.lane.b32.xlu0 %v1982, 96
        %v1984 = vpop.permute.xlu0 %1983
        %v1986 = vunpack.c.l.b16 %v1919
        %v1987 = vpack.c.b16 %v1986, %v1986
        %1988 = vrot.lane.b32.xlu0 %v1987, 112
        %v1989 = vpop.permute.xlu0 %1988
        %v1992 = vsel %vm383, %v1833, %v1924
        %v1994 = vsel %vm387, %v1992, %v1929
        %v1996 = vsel %vm390, %v1994, %v1934
        %v1998 = vsel %vm393, %v1996, %v1939
        %v2000 = vsel %vm396, %v1998, %v1944
        %v2002 = vsel %vm399, %v2000, %v1949
        %v2004 = vsel %vm402, %v2002, %v1954
        %v2007 = vsel %vm383, %v1885, %v1959
        %v2009 = vsel %vm387, %v2007, %v1964
        %v2011 = vsel %vm390, %v2009, %v1969
        %v2013 = vsel %vm393, %v2011, %v1974
        %v2015 = vsel %vm396, %v2013, %v1979
        %v2017 = vsel %vm399, %v2015, %v1984
        %v2019 = vsel %vm402, %v2017, %v1989
        %v2022 = vunpack.c.l.b16 %v2004
        %v2023 = vunpack.c.l.b16 %v2019
        %v2024 = vpack.c.b16 %v2023, %v2022
        %v2025 = vrot.slane %v2024, 6
        %2027 = vst [vmem:[#allocation2 + $0x10] sm:$0xcc] %v2025
        %v2028 = vld [vmem:[%s172] sm:$0xe]
        %v2029 = vld [vmem:[%s172 + $0x4] sm:$0xf]
        %v2030 = vld [vmem:[%s172 + $0x8] sm:$0x1]
        %v2031 = vld [vmem:[%s172 + $0xc] sm:$0xe]
        %v2032 = vld [vmem:[%s172 + $0x10] sm:$0xf]
        %v2033 = vld [vmem:[%s172 + $0x14] sm:$0x1]
        %v2034 = vld [vmem:[%s172 + $0x18] sm:$0xe]
        %v2035 = vld [vmem:[%s172 + $0x1c] sm:$0xf]
        %v2036 = vld [vmem:[%s172 + $0x20] sm:$0x1]
        %v2037 = vld [vmem:[%s172 + $0x24] sm:$0xe]
        %v2038 = vld [vmem:[%s172 + $0x28] sm:$0xf]
        %v2039 = vld [vmem:[%s172 + $0x2c] sm:$0x1]
        %vm2052 = vcmask 1042432
        %vm2053 = vcmask 1046532
        %vm2054 = vmor %vm2052, %vm2053
        %v2055 = vrot.slane %v2028, 5
        %v2056 = vrot.slane %v2055, 4
        %v2057 = vrot.slane %v2029, 5
        %v2058 = vsel %vm2054, %v2056, %v2057
        %v2059 = vrot.slane %v2057, 4
        %v2060 = vrot.slane %v2030, 5
        %v2061 = vsel %vm2054, %v2059, %v2060
        %v2062 = vrot.slane %v2031, 5
        %v2063 = vrot.slane %v2062, 4
        %v2064 = vrot.slane %v2032, 5
        %v2065 = vsel %vm2054, %v2063, %v2064
        %v2066 = vrot.slane %v2064, 4
        %v2067 = vrot.slane %v2033, 5
        %v2068 = vsel %vm2054, %v2066, %v2067
        %v2069 = vrot.slane %v2034, 5
        %v2070 = vrot.slane %v2069, 4
        %v2071 = vrot.slane %v2035, 5
        %v2072 = vsel %vm2054, %v2070, %v2071
        %v2073 = vrot.slane %v2071, 4
        %v2074 = vrot.slane %v2036, 5
        %v2075 = vsel %vm2054, %v2073, %v2074
        %v2076 = vrot.slane %v2037, 5
        %v2077 = vrot.slane %v2076, 4
        %v2078 = vrot.slane %v2038, 5
        %v2079 = vsel %vm2054, %v2077, %v2078
        %v2080 = vrot.slane %v2078, 4
        %v2081 = vrot.slane %v2039, 5
        %v2082 = vsel %vm2054, %v2080, %v2081
        %v2085 = vpack.i.b16 %v2065, %v2058
        %v2086 = vshrl.u32 %v2058, 16
        %v2087 = vshrl.u32 %v2065, 16
        %v2088 = vpack.i.b16 %v2087, %v2086
        %v2091 = vpack.i.b16 %v2079, %v2072
        %v2092 = vshrl.u32 %v2072, 16
        %v2093 = vshrl.u32 %v2079, 16
        %v2094 = vpack.i.b16 %v2093, %v2092
        %v2097 = vpack.i.b16 %v2068, %v2061
        %v2098 = vshrl.u32 %v2061, 16
        %v2099 = vshrl.u32 %v2068, 16
        %v2100 = vpack.i.b16 %v2099, %v2098
        %v2103 = vpack.i.b16 %v2082, %v2075
        %v2104 = vshrl.u32 %v2075, 16
        %v2105 = vshrl.u32 %v2082, 16
        %v2106 = vpack.i.b16 %v2105, %v2104
        %v2109 = vunpack.c.l.s4 1983009808
        %v2110 = vunpack.c.0.s8 %v2109
        %v2111 = vperm.slane %v2085, %v2110
        %v2114 = vunpack.c.l.s4 1983009808
        %v2115 = vunpack.c.0.s8 %v2114
        %v2116 = vperm.slane %v2091, %v2115
        %v2117 = vrot.slane %v2116, 4
        %v2118 = vsel %vm219, %v2117, %v2111
        %v2119 = vrot.slane %v2111, 4
        %v2120 = vsel %vm219, %v2116, %v2119
        %v2122 = vunpack.c.l.s4 1934713408
        %v2123 = vunpack.c.0.s8 %v2122
        %v2124 = vperm.slane %v2118, %v2123
        %v2126 = vunpack.c.l.s4 1934713408
        %v2127 = vunpack.c.0.s8 %v2126
        %v2128 = vperm.slane %v2120, %v2127
        %v2129 = vrot.slane %v2124, 4
        %v2130 = vsel %vm219, 0, %v2129
        %v2131 = vrot.slane %v2128, 4
        %v2132 = vsel %vm219, 0, %v2131
        %v2135 = vunpack.c.l.s4 1983009808
        %v2136 = vunpack.c.0.s8 %v2135
        %v2137 = vperm.slane %v2088, %v2136
        %v2140 = vunpack.c.l.s4 1983009808
        %v2141 = vunpack.c.0.s8 %v2140
        %v2142 = vperm.slane %v2094, %v2141
        %v2143 = vrot.slane %v2142, 4
        %v2144 = vsel %vm219, %v2143, %v2137
        %v2145 = vrot.slane %v2137, 4
        %v2146 = vsel %vm219, %v2142, %v2145
        %v2148 = vunpack.c.l.s4 1934713408
        %v2149 = vunpack.c.0.s8 %v2148
        %v2150 = vperm.slane %v2144, %v2149
        %v2152 = vunpack.c.l.s4 1934713408
        %v2153 = vunpack.c.0.s8 %v2152
        %v2154 = vperm.slane %v2146, %v2153
        %v2155 = vrot.slane %v2150, 4
        %v2156 = vsel %vm219, 0, %v2155
        %v2157 = vrot.slane %v2154, 4
        %v2158 = vsel %vm219, 0, %v2157
        %v2161 = vunpack.c.l.s4 1983009808
        %v2162 = vunpack.c.0.s8 %v2161
        %v2163 = vperm.slane %v2097, %v2162
        %v2166 = vunpack.c.l.s4 1983009808
        %v2167 = vunpack.c.0.s8 %v2166
        %v2168 = vperm.slane %v2103, %v2167
        %v2169 = vrot.slane %v2168, 4
        %v2170 = vsel %vm219, %v2169, %v2163
        %v2171 = vrot.slane %v2163, 4
        %v2172 = vsel %vm219, %v2168, %v2171
        %v2174 = vunpack.c.l.s4 1934713408
        %v2175 = vunpack.c.0.s8 %v2174
        %v2176 = vperm.slane %v2170, %v2175
        %v2178 = vunpack.c.l.s4 1934713408
        %v2179 = vunpack.c.0.s8 %v2178
        %v2180 = vperm.slane %v2172, %v2179
        %v2181 = vrot.slane %v2176, 4
        %v2182 = vsel %vm219, 0, %v2181
        %v2183 = vrot.slane %v2180, 4
        %v2184 = vsel %vm219, 0, %v2183
        %v2187 = vunpack.c.l.s4 1983009808
        %v2188 = vunpack.c.0.s8 %v2187
        %v2189 = vperm.slane %v2100, %v2188
        %v2192 = vunpack.c.l.s4 1983009808
        %v2193 = vunpack.c.0.s8 %v2192
        %v2194 = vperm.slane %v2106, %v2193
        %v2195 = vrot.slane %v2194, 4
        %v2196 = vsel %vm219, %v2195, %v2189
        %v2197 = vrot.slane %v2189, 4
        %v2198 = vsel %vm219, %v2194, %v2197
        %v2200 = vunpack.c.l.s4 1934713408
        %v2201 = vunpack.c.0.s8 %v2200
        %v2202 = vperm.slane %v2196, %v2201
        %v2204 = vunpack.c.l.s4 1934713408
        %v2205 = vunpack.c.0.s8 %v2204
        %v2206 = vperm.slane %v2198, %v2205
        %v2207 = vrot.slane %v2202, 4
        %v2208 = vsel %vm219, 0, %v2207
        %v2209 = vrot.slane %v2206, 4
        %v2210 = vsel %vm219, 0, %v2209
        %v2212 = vunpack.c.l.b16 %v2150
        %v2213 = vpack.c.b16 %v2212, %v2212
        %2214 = vrot.lane.b32.xlu0 %v2213, 16
        %v2215 = vpop.permute.xlu0 %2214
        %v2217 = vunpack.c.l.b16 %v2130
        %v2218 = vpack.c.b16 %v2217, %v2217
        %2219 = vrot.lane.b32.xlu0 %v2218, 32
        %v2220 = vpop.permute.xlu0 %2219
        %v2222 = vunpack.c.l.b16 %v2156
        %v2223 = vpack.c.b16 %v2222, %v2222
        %2224 = vrot.lane.b32.xlu0 %v2223, 48
        %v2225 = vpop.permute.xlu0 %2224
        %v2227 = vunpack.c.l.b16 %v2128
        %v2228 = vpack.c.b16 %v2227, %v2227
        %2229 = vrot.lane.b32.xlu0 %v2228, 64
        %v2230 = vpop.permute.xlu0 %2229
        %v2232 = vunpack.c.l.b16 %v2154
        %v2233 = vpack.c.b16 %v2232, %v2232
        %2234 = vrot.lane.b32.xlu0 %v2233, 80
        %v2235 = vpop.permute.xlu0 %2234
        %v2237 = vunpack.c.l.b16 %v2132
        %v2238 = vpack.c.b16 %v2237, %v2237
        %2239 = vrot.lane.b32.xlu0 %v2238, 96
        %v2240 = vpop.permute.xlu0 %2239
        %v2242 = vunpack.c.l.b16 %v2158
        %v2243 = vpack.c.b16 %v2242, %v2242
        %2244 = vrot.lane.b32.xlu0 %v2243, 112
        %v2245 = vpop.permute.xlu0 %2244
        %v2247 = vunpack.c.l.b16 %v2202
        %v2248 = vpack.c.b16 %v2247, %v2247
        %2249 = vrot.lane.b32.xlu0 %v2248, 16
        %v2250 = vpop.permute.xlu0 %2249
        %v2252 = vunpack.c.l.b16 %v2182
        %v2253 = vpack.c.b16 %v2252, %v2252
        %2254 = vrot.lane.b32.xlu0 %v2253, 32
        %v2255 = vpop.permute.xlu0 %2254
        %v2257 = vunpack.c.l.b16 %v2208
        %v2258 = vpack.c.b16 %v2257, %v2257
        %2259 = vrot.lane.b32.xlu0 %v2258, 48
        %v2260 = vpop.permute.xlu0 %2259
        %v2262 = vunpack.c.l.b16 %v2180
        %v2263 = vpack.c.b16 %v2262, %v2262
        %2264 = vrot.lane.b32.xlu0 %v2263, 64
        %v2265 = vpop.permute.xlu0 %2264
        %v2267 = vunpack.c.l.b16 %v2206
        %v2268 = vpack.c.b16 %v2267, %v2267
        %2269 = vrot.lane.b32.xlu0 %v2268, 80
        %v2270 = vpop.permute.xlu0 %2269
        %v2272 = vunpack.c.l.b16 %v2184
        %v2273 = vpack.c.b16 %v2272, %v2272
        %2274 = vrot.lane.b32.xlu0 %v2273, 96
        %v2275 = vpop.permute.xlu0 %2274
        %v2277 = vunpack.c.l.b16 %v2210
        %v2278 = vpack.c.b16 %v2277, %v2277
        %2279 = vrot.lane.b32.xlu0 %v2278, 112
        %v2280 = vpop.permute.xlu0 %2279
        %v2283 = vsel %vm383, %v2124, %v2215
        %v2285 = vsel %vm387, %v2283, %v2220
        %v2287 = vsel %vm390, %v2285, %v2225
        %v2289 = vsel %vm393, %v2287, %v2230
        %v2291 = vsel %vm396, %v2289, %v2235
        %v2293 = vsel %vm399, %v2291, %v2240
        %v2295 = vsel %vm402, %v2293, %v2245
        %v2298 = vsel %vm383, %v2176, %v2250
        %v2300 = vsel %vm387, %v2298, %v2255
        %v2302 = vsel %vm390, %v2300, %v2260
        %v2304 = vsel %vm393, %v2302, %v2265
        %v2306 = vsel %vm396, %v2304, %v2270
        %v2308 = vsel %vm399, %v2306, %v2275
        %v2310 = vsel %vm402, %v2308, %v2280
        %v2313 = vunpack.c.l.b16 %v2295
        %v2314 = vunpack.c.l.b16 %v2310
        %v2315 = vpack.c.b16 %v2314, %v2313
        %2317 = vst [vmem:[#allocation2 + $0x18] sm:$0x33] %v2315
        %v2318 = vld [vmem:[%s172] sm:$0xe]
        %v2319 = vld [vmem:[%s172 + $0x4] sm:$0xf]
        %v2320 = vld [vmem:[%s172 + $0x8] sm:$0x1]
        %v2321 = vld [vmem:[%s172 + $0xc] sm:$0xe]
        %v2322 = vld [vmem:[%s172 + $0x10] sm:$0xf]
        %v2323 = vld [vmem:[%s172 + $0x14] sm:$0x1]
        %v2324 = vld [vmem:[%s172 + $0x18] sm:$0xe]
        %v2325 = vld [vmem:[%s172 + $0x1c] sm:$0xf]
        %v2326 = vld [vmem:[%s172 + $0x20] sm:$0x1]
        %v2327 = vld [vmem:[%s172 + $0x24] sm:$0xe]
        %v2328 = vld [vmem:[%s172 + $0x28] sm:$0xf]
        %v2329 = vld [vmem:[%s172 + $0x2c] sm:$0x1]
        %v2342 = vrot.slane %v2318, 5
        %v2343 = vrot.slane %v2342, 4
        %v2344 = vrot.slane %v2319, 5
        %v2345 = vsel %vm2054, %v2343, %v2344
        %v2346 = vrot.slane %v2344, 4
        %v2347 = vrot.slane %v2320, 5
        %v2348 = vsel %vm2054, %v2346, %v2347
        %v2349 = vrot.slane %v2321, 5
        %v2350 = vrot.slane %v2349, 4
        %v2351 = vrot.slane %v2322, 5
        %v2352 = vsel %vm2054, %v2350, %v2351
        %v2353 = vrot.slane %v2351, 4
        %v2354 = vrot.slane %v2323, 5
        %v2355 = vsel %vm2054, %v2353, %v2354
        %v2356 = vrot.slane %v2324, 5
        %v2357 = vrot.slane %v2356, 4
        %v2358 = vrot.slane %v2325, 5
        %v2359 = vsel %vm2054, %v2357, %v2358
        %v2360 = vrot.slane %v2358, 4
        %v2361 = vrot.slane %v2326, 5
        %v2362 = vsel %vm2054, %v2360, %v2361
        %v2363 = vrot.slane %v2327, 5
        %v2364 = vrot.slane %v2363, 4
        %v2365 = vrot.slane %v2328, 5
        %v2366 = vsel %vm2054, %v2364, %v2365
        %v2367 = vrot.slane %v2365, 4
        %v2368 = vrot.slane %v2329, 5
        %v2369 = vsel %vm2054, %v2367, %v2368
        %2370 = vrot.lane.b32.xlu0 %v2345, 127
        %v2371 = vpop.permute.xlu0 %2370
        %2372 = vrot.lane.b32.xlu0 %v2348, 127
        %v2373 = vpop.permute.xlu0 %2372
        %2374 = vrot.lane.b32.xlu0 %v2352, 127
        %v2375 = vpop.permute.xlu0 %2374
        %2376 = vrot.lane.b32.xlu0 %v2355, 127
        %v2377 = vpop.permute.xlu0 %2376
        %2378 = vrot.lane.b32.xlu0 %v2359, 127
        %v2379 = vpop.permute.xlu0 %2378
        %2380 = vrot.lane.b32.xlu0 %v2362, 127
        %v2381 = vpop.permute.xlu0 %2380
        %2382 = vrot.lane.b32.xlu0 %v2366, 127
        %v2383 = vpop.permute.xlu0 %2382
        %2384 = vrot.lane.b32.xlu0 %v2369, 127
        %v2385 = vpop.permute.xlu0 %2384
        %v2388 = vpack.i.b16 %v2375, %v2371
        %v2389 = vshrl.u32 %v2371, 16
        %v2390 = vshrl.u32 %v2375, 16
        %v2391 = vpack.i.b16 %v2390, %v2389
        %v2394 = vpack.i.b16 %v2383, %v2379
        %v2395 = vshrl.u32 %v2379, 16
        %v2396 = vshrl.u32 %v2383, 16
        %v2397 = vpack.i.b16 %v2396, %v2395
        %v2400 = vpack.i.b16 %v2377, %v2373
        %v2401 = vshrl.u32 %v2373, 16
        %v2402 = vshrl.u32 %v2377, 16
        %v2403 = vpack.i.b16 %v2402, %v2401
        %v2406 = vpack.i.b16 %v2385, %v2381
        %v2407 = vshrl.u32 %v2381, 16
        %v2408 = vshrl.u32 %v2385, 16
        %v2409 = vpack.i.b16 %v2408, %v2407
        %v2412 = vunpack.c.l.s4 1983009808
        %v2413 = vunpack.c.0.s8 %v2412
        %v2414 = vperm.slane %v2388, %v2413
        %v2417 = vunpack.c.l.s4 1983009808
        %v2418 = vunpack.c.0.s8 %v2417
        %v2419 = vperm.slane %v2394, %v2418
        %v2420 = vrot.slane %v2419, 4
        %v2421 = vsel %vm219, %v2420, %v2414
        %v2422 = vrot.slane %v2414, 4
        %v2423 = vsel %vm219, %v2419, %v2422
        %v2425 = vunpack.c.l.s4 1934713408
        %v2426 = vunpack.c.0.s8 %v2425
        %v2427 = vperm.slane %v2421, %v2426
        %v2429 = vunpack.c.l.s4 1934713408
        %v2430 = vunpack.c.0.s8 %v2429
        %v2431 = vperm.slane %v2423, %v2430
        %v2432 = vrot.slane %v2427, 4
        %v2433 = vsel %vm219, 0, %v2432
        %v2434 = vrot.slane %v2431, 4
        %v2435 = vsel %vm219, 0, %v2434
        %v2438 = vunpack.c.l.s4 1983009808
        %v2439 = vunpack.c.0.s8 %v2438
        %v2440 = vperm.slane %v2391, %v2439
        %v2443 = vunpack.c.l.s4 1983009808
        %v2444 = vunpack.c.0.s8 %v2443
        %v2445 = vperm.slane %v2397, %v2444
        %v2446 = vrot.slane %v2445, 4
        %v2447 = vsel %vm219, %v2446, %v2440
        %v2448 = vrot.slane %v2440, 4
        %v2449 = vsel %vm219, %v2445, %v2448
        %v2451 = vunpack.c.l.s4 1934713408
        %v2452 = vunpack.c.0.s8 %v2451
        %v2453 = vperm.slane %v2447, %v2452
        %v2455 = vunpack.c.l.s4 1934713408
        %v2456 = vunpack.c.0.s8 %v2455
        %v2457 = vperm.slane %v2449, %v2456
        %v2458 = vrot.slane %v2453, 4
        %v2459 = vsel %vm219, 0, %v2458
        %v2460 = vrot.slane %v2457, 4
        %v2461 = vsel %vm219, 0, %v2460
        %v2464 = vunpack.c.l.s4 1983009808
        %v2465 = vunpack.c.0.s8 %v2464
        %v2466 = vperm.slane %v2400, %v2465
        %v2469 = vunpack.c.l.s4 1983009808
        %v2470 = vunpack.c.0.s8 %v2469
        %v2471 = vperm.slane %v2406, %v2470
        %v2472 = vrot.slane %v2471, 4
        %v2473 = vsel %vm219, %v2472, %v2466
        %v2474 = vrot.slane %v2466, 4
        %v2475 = vsel %vm219, %v2471, %v2474
        %v2477 = vunpack.c.l.s4 1934713408
        %v2478 = vunpack.c.0.s8 %v2477
        %v2479 = vperm.slane %v2473, %v2478
        %v2481 = vunpack.c.l.s4 1934713408
        %v2482 = vunpack.c.0.s8 %v2481
        %v2483 = vperm.slane %v2475, %v2482
        %v2484 = vrot.slane %v2479, 4
        %v2485 = vsel %vm219, 0, %v2484
        %v2486 = vrot.slane %v2483, 4
        %v2487 = vsel %vm219, 0, %v2486
        %v2490 = vunpack.c.l.s4 1983009808
        %v2491 = vunpack.c.0.s8 %v2490
        %v2492 = vperm.slane %v2403, %v2491
        %v2495 = vunpack.c.l.s4 1983009808
        %v2496 = vunpack.c.0.s8 %v2495
        %v2497 = vperm.slane %v2409, %v2496
        %v2498 = vrot.slane %v2497, 4
        %v2499 = vsel %vm219, %v2498, %v2492
        %v2500 = vrot.slane %v2492, 4
        %v2501 = vsel %vm219, %v2497, %v2500
        %v2503 = vunpack.c.l.s4 1934713408
        %v2504 = vunpack.c.0.s8 %v2503
        %v2505 = vperm.slane %v2499, %v2504
        %v2507 = vunpack.c.l.s4 1934713408
        %v2508 = vunpack.c.0.s8 %v2507
        %v2509 = vperm.slane %v2501, %v2508
        %v2510 = vrot.slane %v2505, 4
        %v2511 = vsel %vm219, 0, %v2510
        %v2512 = vrot.slane %v2509, 4
        %v2513 = vsel %vm219, 0, %v2512
        %v2515 = vunpack.c.l.b16 %v2453
        %v2516 = vpack.c.b16 %v2515, %v2515
        %2517 = vrot.lane.b32.xlu0 %v2516, 16
        %v2518 = vpop.permute.xlu0 %2517
        %v2520 = vunpack.c.l.b16 %v2433
        %v2521 = vpack.c.b16 %v2520, %v2520
        %2522 = vrot.lane.b32.xlu0 %v2521, 32
        %v2523 = vpop.permute.xlu0 %2522
        %v2525 = vunpack.c.l.b16 %v2459
        %v2526 = vpack.c.b16 %v2525, %v2525
        %2527 = vrot.lane.b32.xlu0 %v2526, 48
        %v2528 = vpop.permute.xlu0 %2527
        %v2530 = vunpack.c.l.b16 %v2431
        %v2531 = vpack.c.b16 %v2530, %v2530
        %2532 = vrot.lane.b32.xlu0 %v2531, 64
        %v2533 = vpop.permute.xlu0 %2532
        %v2535 = vunpack.c.l.b16 %v2457
        %v2536 = vpack.c.b16 %v2535, %v2535
        %2537 = vrot.lane.b32.xlu0 %v2536, 80
        %v2538 = vpop.permute.xlu0 %2537
        %v2540 = vunpack.c.l.b16 %v2435
        %v2541 = vpack.c.b16 %v2540, %v2540
        %2542 = vrot.lane.b32.xlu0 %v2541, 96
        %v2543 = vpop.permute.xlu0 %2542
        %v2545 = vunpack.c.l.b16 %v2461
        %v2546 = vpack.c.b16 %v2545, %v2545
        %2547 = vrot.lane.b32.xlu0 %v2546, 112
        %v2548 = vpop.permute.xlu0 %2547
        %v2550 = vunpack.c.l.b16 %v2505
        %v2551 = vpack.c.b16 %v2550, %v2550
        %2552 = vrot.lane.b32.xlu0 %v2551, 16
        %v2553 = vpop.permute.xlu0 %2552
        %v2555 = vunpack.c.l.b16 %v2485
        %v2556 = vpack.c.b16 %v2555, %v2555
        %2557 = vrot.lane.b32.xlu0 %v2556, 32
        %v2558 = vpop.permute.xlu0 %2557
        %v2560 = vunpack.c.l.b16 %v2511
        %v2561 = vpack.c.b16 %v2560, %v2560
        %2562 = vrot.lane.b32.xlu0 %v2561, 48
        %v2563 = vpop.permute.xlu0 %2562
        %v2565 = vunpack.c.l.b16 %v2483
        %v2566 = vpack.c.b16 %v2565, %v2565
        %2567 = vrot.lane.b32.xlu0 %v2566, 64
        %v2568 = vpop.permute.xlu0 %2567
        %v2570 = vunpack.c.l.b16 %v2509
        %v2571 = vpack.c.b16 %v2570, %v2570
        %2572 = vrot.lane.b32.xlu0 %v2571, 80
        %v2573 = vpop.permute.xlu0 %2572
        %v2575 = vunpack.c.l.b16 %v2487
        %v2576 = vpack.c.b16 %v2575, %v2575
        %2577 = vrot.lane.b32.xlu0 %v2576, 96
        %v2578 = vpop.permute.xlu0 %2577
        %v2580 = vunpack.c.l.b16 %v2513
        %v2581 = vpack.c.b16 %v2580, %v2580
        %2582 = vrot.lane.b32.xlu0 %v2581, 112
        %v2583 = vpop.permute.xlu0 %2582
        %v2586 = vsel %vm383, %v2427, %v2518
        %v2588 = vsel %vm387, %v2586, %v2523
        %v2590 = vsel %vm390, %v2588, %v2528
        %v2592 = vsel %vm393, %v2590, %v2533
        %v2594 = vsel %vm396, %v2592, %v2538
        %v2596 = vsel %vm399, %v2594, %v2543
        %v2598 = vsel %vm402, %v2596, %v2548
        %v2601 = vsel %vm383, %v2479, %v2553
        %v2603 = vsel %vm387, %v2601, %v2558
        %v2605 = vsel %vm390, %v2603, %v2563
        %v2607 = vsel %vm393, %v2605, %v2568
        %v2609 = vsel %vm396, %v2607, %v2573
        %v2611 = vsel %vm399, %v2609, %v2578
        %v2613 = vsel %vm402, %v2611, %v2583
        %v2616 = vunpack.c.l.b16 %v2598
        %v2617 = vunpack.c.l.b16 %v2613
        %v2618 = vpack.c.b16 %v2617, %v2616
        %v2619 = vrot.slane %v2618, 6
        %2621 = vst [vmem:[#allocation2 + $0x18] sm:$0xcc] %v2619
        %v2622 = vld [vmem:[%s172] sm:$0xe]
        %v2623 = vld [vmem:[%s172 + $0x4] sm:$0xf]
        %v2624 = vld [vmem:[%s172 + $0x8] sm:$0x1]
        %v2625 = vld [vmem:[%s172 + $0xc] sm:$0xe]
        %v2626 = vld [vmem:[%s172 + $0x10] sm:$0xf]
        %v2627 = vld [vmem:[%s172 + $0x14] sm:$0x1]
        %v2628 = vld [vmem:[%s172 + $0x18] sm:$0xe]
        %v2629 = vld [vmem:[%s172 + $0x1c] sm:$0xf]
        %v2630 = vld [vmem:[%s172 + $0x20] sm:$0x1]
        %v2631 = vld [vmem:[%s172 + $0x24] sm:$0xe]
        %v2632 = vld [vmem:[%s172 + $0x28] sm:$0xf]
        %v2633 = vld [vmem:[%s172 + $0x2c] sm:$0x1]
        %v2646 = vrot.slane %v2622, 5
        %v2647 = vrot.slane %v2646, 4
        %v2648 = vrot.slane %v2623, 5
        %v2649 = vsel %vm2054, %v2647, %v2648
        %v2650 = vrot.slane %v2648, 4
        %v2651 = vrot.slane %v2624, 5
        %v2652 = vsel %vm2054, %v2650, %v2651
        %v2653 = vrot.slane %v2625, 5
        %v2654 = vrot.slane %v2653, 4
        %v2655 = vrot.slane %v2626, 5
        %v2656 = vsel %vm2054, %v2654, %v2655
        %v2657 = vrot.slane %v2655, 4
        %v2658 = vrot.slane %v2627, 5
        %v2659 = vsel %vm2054, %v2657, %v2658
        %v2660 = vrot.slane %v2628, 5
        %v2661 = vrot.slane %v2660, 4
        %v2662 = vrot.slane %v2629, 5
        %v2663 = vsel %vm2054, %v2661, %v2662
        %v2664 = vrot.slane %v2662, 4
        %v2665 = vrot.slane %v2630, 5
        %v2666 = vsel %vm2054, %v2664, %v2665
        %v2667 = vrot.slane %v2631, 5
        %v2668 = vrot.slane %v2667, 4
        %v2669 = vrot.slane %v2632, 5
        %v2670 = vsel %vm2054, %v2668, %v2669
        %v2671 = vrot.slane %v2669, 4
        %v2672 = vrot.slane %v2633, 5
        %v2673 = vsel %vm2054, %v2671, %v2672
        %2674 = vrot.lane.b32.xlu0 %v2649, 126
        %v2675 = vpop.permute.xlu0 %2674
        %2676 = vrot.lane.b32.xlu0 %v2652, 126
        %v2677 = vpop.permute.xlu0 %2676
        %2678 = vrot.lane.b32.xlu0 %v2656, 126
        %v2679 = vpop.permute.xlu0 %2678
        %2680 = vrot.lane.b32.xlu0 %v2659, 126
        %v2681 = vpop.permute.xlu0 %2680
        %2682 = vrot.lane.b32.xlu0 %v2663, 126
        %v2683 = vpop.permute.xlu0 %2682
        %2684 = vrot.lane.b32.xlu0 %v2666, 126
        %v2685 = vpop.permute.xlu0 %2684
        %2686 = vrot.lane.b32.xlu0 %v2670, 126
        %v2687 = vpop.permute.xlu0 %2686
        %2688 = vrot.lane.b32.xlu0 %v2673, 126
        %v2689 = vpop.permute.xlu0 %2688
        %v2692 = vpack.i.b16 %v2679, %v2675
        %v2693 = vshrl.u32 %v2675, 16
        %v2694 = vshrl.u32 %v2679, 16
        %v2695 = vpack.i.b16 %v2694, %v2693
        %v2698 = vpack.i.b16 %v2687, %v2683
        %v2699 = vshrl.u32 %v2683, 16
        %v2700 = vshrl.u32 %v2687, 16
        %v2701 = vpack.i.b16 %v2700, %v2699
        %v2704 = vpack.i.b16 %v2681, %v2677
        %v2705 = vshrl.u32 %v2677, 16
        %v2706 = vshrl.u32 %v2681, 16
        %v2707 = vpack.i.b16 %v2706, %v2705
        %v2710 = vpack.i.b16 %v2689, %v2685
        %v2711 = vshrl.u32 %v2685, 16
        %v2712 = vshrl.u32 %v2689, 16
        %v2713 = vpack.i.b16 %v2712, %v2711
        %v2716 = vunpack.c.l.s4 1983009808
        %v2717 = vunpack.c.0.s8 %v2716
        %v2718 = vperm.slane %v2692, %v2717
        %v2721 = vunpack.c.l.s4 1983009808
        %v2722 = vunpack.c.0.s8 %v2721
        %v2723 = vperm.slane %v2698, %v2722
        %v2724 = vrot.slane %v2723, 4
        %v2725 = vsel %vm219, %v2724, %v2718
        %v2726 = vrot.slane %v2718, 4
        %v2727 = vsel %vm219, %v2723, %v2726
        %v2729 = vunpack.c.l.s4 1934713408
        %v2730 = vunpack.c.0.s8 %v2729
        %v2731 = vperm.slane %v2725, %v2730
        %v2733 = vunpack.c.l.s4 1934713408
        %v2734 = vunpack.c.0.s8 %v2733
        %v2735 = vperm.slane %v2727, %v2734
        %v2736 = vrot.slane %v2731, 4
        %v2737 = vsel %vm219, 0, %v2736
        %v2738 = vrot.slane %v2735, 4
        %v2739 = vsel %vm219, 0, %v2738
        %v2742 = vunpack.c.l.s4 1983009808
        %v2743 = vunpack.c.0.s8 %v2742
        %v2744 = vperm.slane %v2695, %v2743
        %v2747 = vunpack.c.l.s4 1983009808
        %v2748 = vunpack.c.0.s8 %v2747
        %v2749 = vperm.slane %v2701, %v2748
        %v2750 = vrot.slane %v2749, 4
        %v2751 = vsel %vm219, %v2750, %v2744
        %v2752 = vrot.slane %v2744, 4
        %v2753 = vsel %vm219, %v2749, %v2752
        %v2755 = vunpack.c.l.s4 1934713408
        %v2756 = vunpack.c.0.s8 %v2755
        %v2757 = vperm.slane %v2751, %v2756
        %v2759 = vunpack.c.l.s4 1934713408
        %v2760 = vunpack.c.0.s8 %v2759
        %v2761 = vperm.slane %v2753, %v2760
        %v2762 = vrot.slane %v2757, 4
        %v2763 = vsel %vm219, 0, %v2762
        %v2764 = vrot.slane %v2761, 4
        %v2765 = vsel %vm219, 0, %v2764
        %v2768 = vunpack.c.l.s4 1983009808
        %v2769 = vunpack.c.0.s8 %v2768
        %v2770 = vperm.slane %v2704, %v2769
        %v2773 = vunpack.c.l.s4 1983009808
        %v2774 = vunpack.c.0.s8 %v2773
        %v2775 = vperm.slane %v2710, %v2774
        %v2776 = vrot.slane %v2775, 4
        %v2777 = vsel %vm219, %v2776, %v2770
        %v2778 = vrot.slane %v2770, 4
        %v2779 = vsel %vm219, %v2775, %v2778
        %v2781 = vunpack.c.l.s4 1934713408
        %v2782 = vunpack.c.0.s8 %v2781
        %v2783 = vperm.slane %v2777, %v2782
        %v2785 = vunpack.c.l.s4 1934713408
        %v2786 = vunpack.c.0.s8 %v2785
        %v2787 = vperm.slane %v2779, %v2786
        %v2788 = vrot.slane %v2783, 4
        %v2789 = vsel %vm219, 0, %v2788
        %v2790 = vrot.slane %v2787, 4
        %v2791 = vsel %vm219, 0, %v2790
        %v2794 = vunpack.c.l.s4 1983009808
        %v2795 = vunpack.c.0.s8 %v2794
        %v2796 = vperm.slane %v2707, %v2795
        %v2799 = vunpack.c.l.s4 1983009808
        %v2800 = vunpack.c.0.s8 %v2799
        %v2801 = vperm.slane %v2713, %v2800
        %v2802 = vrot.slane %v2801, 4
        %v2803 = vsel %vm219, %v2802, %v2796
        %v2804 = vrot.slane %v2796, 4
        %v2805 = vsel %vm219, %v2801, %v2804
        %v2807 = vunpack.c.l.s4 1934713408
        %v2808 = vunpack.c.0.s8 %v2807
        %v2809 = vperm.slane %v2803, %v2808
        %v2811 = vunpack.c.l.s4 1934713408
        %v2812 = vunpack.c.0.s8 %v2811
        %v2813 = vperm.slane %v2805, %v2812
        %v2814 = vrot.slane %v2809, 4
        %v2815 = vsel %vm219, 0, %v2814
        %v2816 = vrot.slane %v2813, 4
        %v2817 = vsel %vm219, 0, %v2816
        %v2819 = vunpack.c.l.b16 %v2757
        %v2820 = vpack.c.b16 %v2819, %v2819
        %2821 = vrot.lane.b32.xlu0 %v2820, 16
        %v2822 = vpop.permute.xlu0 %2821
        %v2824 = vunpack.c.l.b16 %v2737
        %v2825 = vpack.c.b16 %v2824, %v2824
        %2826 = vrot.lane.b32.xlu0 %v2825, 32
        %v2827 = vpop.permute.xlu0 %2826
        %v2829 = vunpack.c.l.b16 %v2763
        %v2830 = vpack.c.b16 %v2829, %v2829
        %2831 = vrot.lane.b32.xlu0 %v2830, 48
        %v2832 = vpop.permute.xlu0 %2831
        %v2834 = vunpack.c.l.b16 %v2735
        %v2835 = vpack.c.b16 %v2834, %v2834
        %2836 = vrot.lane.b32.xlu0 %v2835, 64
        %v2837 = vpop.permute.xlu0 %2836
        %v2839 = vunpack.c.l.b16 %v2761
        %v2840 = vpack.c.b16 %v2839, %v2839
        %2841 = vrot.lane.b32.xlu0 %v2840, 80
        %v2842 = vpop.permute.xlu0 %2841
        %v2844 = vunpack.c.l.b16 %v2739
        %v2845 = vpack.c.b16 %v2844, %v2844
        %2846 = vrot.lane.b32.xlu0 %v2845, 96
        %v2847 = vpop.permute.xlu0 %2846
        %v2849 = vunpack.c.l.b16 %v2765
        %v2850 = vpack.c.b16 %v2849, %v2849
        %2851 = vrot.lane.b32.xlu0 %v2850, 112
        %v2852 = vpop.permute.xlu0 %2851
        %v2854 = vunpack.c.l.b16 %v2809
        %v2855 = vpack.c.b16 %v2854, %v2854
        %2856 = vrot.lane.b32.xlu0 %v2855, 16
        %v2857 = vpop.permute.xlu0 %2856
        %v2859 = vunpack.c.l.b16 %v2789
        %v2860 = vpack.c.b16 %v2859, %v2859
        %2861 = vrot.lane.b32.xlu0 %v2860, 32
        %v2862 = vpop.permute.xlu0 %2861
        %v2864 = vunpack.c.l.b16 %v2815
        %v2865 = vpack.c.b16 %v2864, %v2864
        %2866 = vrot.lane.b32.xlu0 %v2865, 48
        %v2867 = vpop.permute.xlu0 %2866
        %v2869 = vunpack.c.l.b16 %v2787
        %v2870 = vpack.c.b16 %v2869, %v2869
        %2871 = vrot.lane.b32.xlu0 %v2870, 64
        %v2872 = vpop.permute.xlu0 %2871
        %v2874 = vunpack.c.l.b16 %v2813
        %v2875 = vpack.c.b16 %v2874, %v2874
        %2876 = vrot.lane.b32.xlu0 %v2875, 80
        %v2877 = vpop.permute.xlu0 %2876
        %v2879 = vunpack.c.l.b16 %v2791
        %v2880 = vpack.c.b16 %v2879, %v2879
        %2881 = vrot.lane.b32.xlu0 %v2880, 96
        %v2882 = vpop.permute.xlu0 %2881
        %v2884 = vunpack.c.l.b16 %v2817
        %v2885 = vpack.c.b16 %v2884, %v2884
        %2886 = vrot.lane.b32.xlu0 %v2885, 112
        %v2887 = vpop.permute.xlu0 %2886
        %v2890 = vsel %vm383, %v2731, %v2822
        %v2892 = vsel %vm387, %v2890, %v2827
        %v2894 = vsel %vm390, %v2892, %v2832
        %v2896 = vsel %vm393, %v2894, %v2837
        %v2898 = vsel %vm396, %v2896, %v2842
        %v2900 = vsel %vm399, %v2898, %v2847
        %v2902 = vsel %vm402, %v2900, %v2852
        %v2905 = vsel %vm383, %v2783, %v2857
        %v2907 = vsel %vm387, %v2905, %v2862
        %v2909 = vsel %vm390, %v2907, %v2867
        %v2911 = vsel %vm393, %v2909, %v2872
        %v2913 = vsel %vm396, %v2911, %v2877
        %v2915 = vsel %vm399, %v2913, %v2882
        %v2917 = vsel %vm402, %v2915, %v2887
        %v2920 = vunpack.c.l.b16 %v2902
        %v2921 = vunpack.c.l.b16 %v2917
        %v2922 = vpack.c.b16 %v2921, %v2920
        %2924 = vst [vmem:[#allocation2 + $0x20] sm:$0x33] %v2922
        %v2925 = vld [vmem:[%s1] sm:$0xf]
        %v2926 = vld [vmem:[#allocation2] sm:$0xff]
        %v2927 = vld [vmem:[#allocation2 + $0x8] sm:$0xff]
        %v2928 = vld [vmem:[#allocation2 + $0x10] sm:$0xff]
        %v2929 = vld [vmem:[#allocation2 + $0x18] sm:$0xff]
        %v2930 = vld [vmem:[#allocation2 + $0x20] sm:$0x33]
        %v2931 = vld [vmem:[%s2] sm:$0xff]
        %2933 = vset.pattern.permute.xlu0 0
        %2934 = vperm.xlu0 %2933, %v2931
        %v2935 = vpop.permute.xlu0 %2934
        %v2942 = vunpack.c.l.b16 %v2926
        %v2943 = vunpack.c.h.b16 %v2926
        %v2944 = vunpack.c.l.b16 %v2927
        %v2945 = vunpack.c.h.b16 %v2927
        %v2946 = vunpack.c.l.b16 %v2928
        %v2947 = vunpack.c.h.b16 %v2928
        %v2948 = vunpack.c.l.b16 %v2929
        %v2949 = vunpack.c.h.b16 %v2929
        %v2950 = vunpack.c.l.b16 %v2930
        %v2951 = vunpack.c.h.b16 %v2930
        %v2952 = vpack.c.b16 %v2944, %v2942
        %v2953 = vpack.c.b16 %v2945, %v2943
        %v2954 = vpack.c.b16 %v2948, %v2946
        %v2955 = vpack.c.b16 %v2949, %v2947
        %v2956 = vpack.c.b16 %v2950, %v2950
        %v2957 = vpack.c.b16 %v2951, %v2951
        %vm2962 = vcmask 293888
        %v2964 = vsel %vm2962, %v2925, 0
        %vm2966 = vcmask 1041408
        %v2968 = vsel %vm2966, %v2956, 0
        %v2971 = vsel %vm2966, %v2957, 0
        %2973 = vmatpush.bf16.msra.mxu0 0
        %2974 = vmatpush.bf16.msra.mxu0 0
        %2975 = vmatpush.bf16.msra.mxu0 0
        %2976 = vmatpush.bf16.msra.mxu0 0
        %2977 = vmatpush.bf16.msra.mxu0 0
        %2978 = vmatpush.bf16.msra.mxu0 %v2968
        %2979 = vmatpush.bf16.msra.mxu0 %v2954
        %2980 = vmatpush.bf16.msra.mxu0 %v2952
        %2981 = vmatmul.bf16.gmra.mxu0 %v2964
        %v2982 = vpop.f32.mrf.mxu0
        %v2983 = vadd.f32 %v2935, %v2982
        %v2984 = vpop.f32.mrf.mxu0
        %2985 = vdwg.mxu0
        %2986 = vmatpush.bf16.msra.mxu0 0
        %2987 = vmatpush.bf16.msra.mxu0 0
        %2988 = vmatpush.bf16.msra.mxu0 0
        %2989 = vmatpush.bf16.msra.mxu0 0
        %2990 = vmatpush.bf16.msra.mxu0 0
        %2991 = vmatpush.bf16.msra.mxu0 %v2971
        %2992 = vmatpush.bf16.msra.mxu0 %v2955
        %2993 = vmatpush.bf16.msra.mxu0 %v2953
        %2994 = vmatmul.bf16.gmra.mxu0 %v2964
        %v2995 = vpop.f32.mrf.mxu0
        %v2996 = vadd.f32 %v2935, %v2995
        %v2997 = vpop.f32.mrf.mxu0
        %2998 = vdwg.mxu0
        %v2999 = vmax.f32 %v2983, 0.0
        %v3000 = vmax.f32 %v2996, 0.0
        %v3001 = vpack.c.bf16 %v3000, %v2999
        %3002 = vst [vmem:[%s166] sm:$0xff] %v3001
        %s3003 = scalar_lea.vmem %s172, 48
        %v3004 = vld [vmem:[%s3003] sm:$0xf]
        %v3005 = vld [vmem:[%s3003 + $0x4] sm:$0xf]
        %v3006 = vld [vmem:[%s3003 + $0xc] sm:$0xf]
        %v3007 = vld [vmem:[%s3003 + $0x10] sm:$0xf]
        %v3008 = vld [vmem:[%s3003 + $0x18] sm:$0xf]
        %v3009 = vld [vmem:[%s3003 + $0x1c] sm:$0xf]
        %v3010 = vld [vmem:[%s3003 + $0x24] sm:$0xf]
        %v3011 = vld [vmem:[%s3003 + $0x28] sm:$0xf]
        %v3014 = vpack.i.b16 %v3006, %v3004
        %v3015 = vshrl.u32 %v3004, 16
        %v3016 = vshrl.u32 %v3006, 16
        %v3017 = vpack.i.b16 %v3016, %v3015
        %v3020 = vpack.i.b16 %v3010, %v3008
        %v3021 = vshrl.u32 %v3008, 16
        %v3022 = vshrl.u32 %v3010, 16
        %v3023 = vpack.i.b16 %v3022, %v3021
        %v3026 = vpack.i.b16 %v3007, %v3005
        %v3027 = vshrl.u32 %v3005, 16
        %v3028 = vshrl.u32 %v3007, 16
        %v3029 = vpack.i.b16 %v3028, %v3027
        %v3032 = vpack.i.b16 %v3011, %v3009
        %v3033 = vshrl.u32 %v3009, 16
        %v3034 = vshrl.u32 %v3011, 16
        %v3035 = vpack.i.b16 %v3034, %v3033
        %v3038 = vunpack.c.l.s4 1983009808
        %v3039 = vunpack.c.0.s8 %v3038
        %v3040 = vperm.slane %v3014, %v3039
        %v3043 = vunpack.c.l.s4 1983009808
        %v3044 = vunpack.c.0.s8 %v3043
        %v3045 = vperm.slane %v3020, %v3044
        %v3046 = vrot.slane %v3045, 4
        %v3047 = vsel %vm219, %v3046, %v3040
        %v3048 = vrot.slane %v3040, 4
        %v3049 = vsel %vm219, %v3045, %v3048
        %v3051 = vunpack.c.l.s4 1934713408
        %v3052 = vunpack.c.0.s8 %v3051
        %v3053 = vperm.slane %v3047, %v3052
        %v3055 = vunpack.c.l.s4 1934713408
        %v3056 = vunpack.c.0.s8 %v3055
        %v3057 = vperm.slane %v3049, %v3056
        %v3058 = vrot.slane %v3053, 4
        %v3059 = vsel %vm219, 0, %v3058
        %v3060 = vrot.slane %v3057, 4
        %v3061 = vsel %vm219, 0, %v3060
        %v3064 = vunpack.c.l.s4 1983009808
        %v3065 = vunpack.c.0.s8 %v3064
        %v3066 = vperm.slane %v3017, %v3065
        %v3069 = vunpack.c.l.s4 1983009808
        %v3070 = vunpack.c.0.s8 %v3069
        %v3071 = vperm.slane %v3023, %v3070
        %v3072 = vrot.slane %v3071, 4
        %v3073 = vsel %vm219, %v3072, %v3066
        %v3074 = vrot.slane %v3066, 4
        %v3075 = vsel %vm219, %v3071, %v3074
        %v3077 = vunpack.c.l.s4 1934713408
        %v3078 = vunpack.c.0.s8 %v3077
        %v3079 = vperm.slane %v3073, %v3078
        %v3081 = vunpack.c.l.s4 1934713408
        %v3082 = vunpack.c.0.s8 %v3081
        %v3083 = vperm.slane %v3075, %v3082
        %v3084 = vrot.slane %v3079, 4
        %v3085 = vsel %vm219, 0, %v3084
        %v3086 = vrot.slane %v3083, 4
        %v3087 = vsel %vm219, 0, %v3086
        %v3090 = vunpack.c.l.s4 1983009808
        %v3091 = vunpack.c.0.s8 %v3090
        %v3092 = vperm.slane %v3026, %v3091
        %v3095 = vunpack.c.l.s4 1983009808
        %v3096 = vunpack.c.0.s8 %v3095
        %v3097 = vperm.slane %v3032, %v3096
        %v3098 = vrot.slane %v3097, 4
        %v3099 = vsel %vm219, %v3098, %v3092
        %v3100 = vrot.slane %v3092, 4
        %v3101 = vsel %vm219, %v3097, %v3100
        %v3103 = vunpack.c.l.s4 1934713408
        %v3104 = vunpack.c.0.s8 %v3103
        %v3105 = vperm.slane %v3099, %v3104
        %v3107 = vunpack.c.l.s4 1934713408
        %v3108 = vunpack.c.0.s8 %v3107
        %v3109 = vperm.slane %v3101, %v3108
        %v3110 = vrot.slane %v3105, 4
        %v3111 = vsel %vm219, 0, %v3110
        %v3112 = vrot.slane %v3109, 4
        %v3113 = vsel %vm219, 0, %v3112
        %v3116 = vunpack.c.l.s4 1983009808
        %v3117 = vunpack.c.0.s8 %v3116
        %v3118 = vperm.slane %v3029, %v3117
        %v3121 = vunpack.c.l.s4 1983009808
        %v3122 = vunpack.c.0.s8 %v3121
        %v3123 = vperm.slane %v3035, %v3122
        %v3124 = vrot.slane %v3123, 4
        %v3125 = vsel %vm219, %v3124, %v3118
        %v3126 = vrot.slane %v3118, 4
        %v3127 = vsel %vm219, %v3123, %v3126
        %v3129 = vunpack.c.l.s4 1934713408
        %v3130 = vunpack.c.0.s8 %v3129
        %v3131 = vperm.slane %v3125, %v3130
        %v3133 = vunpack.c.l.s4 1934713408
        %v3134 = vunpack.c.0.s8 %v3133
        %v3135 = vperm.slane %v3127, %v3134
        %v3136 = vrot.slane %v3131, 4
        %v3137 = vsel %vm219, 0, %v3136
        %v3138 = vrot.slane %v3135, 4
        %v3139 = vsel %vm219, 0, %v3138
        %v3141 = vunpack.c.l.b16 %v3079
        %v3142 = vpack.c.b16 %v3141, %v3141
        %3143 = vrot.lane.b32.xlu0 %v3142, 16
        %v3144 = vpop.permute.xlu0 %3143
        %v3146 = vunpack.c.l.b16 %v3059
        %v3147 = vpack.c.b16 %v3146, %v3146
        %3148 = vrot.lane.b32.xlu0 %v3147, 32
        %v3149 = vpop.permute.xlu0 %3148
        %v3151 = vunpack.c.l.b16 %v3085
        %v3152 = vpack.c.b16 %v3151, %v3151
        %3153 = vrot.lane.b32.xlu0 %v3152, 48
        %v3154 = vpop.permute.xlu0 %3153
        %v3156 = vunpack.c.l.b16 %v3057
        %v3157 = vpack.c.b16 %v3156, %v3156
        %3158 = vrot.lane.b32.xlu0 %v3157, 64
        %v3159 = vpop.permute.xlu0 %3158
        %v3161 = vunpack.c.l.b16 %v3083
        %v3162 = vpack.c.b16 %v3161, %v3161
        %3163 = vrot.lane.b32.xlu0 %v3162, 80
        %v3164 = vpop.permute.xlu0 %3163
        %v3166 = vunpack.c.l.b16 %v3061
        %v3167 = vpack.c.b16 %v3166, %v3166
        %3168 = vrot.lane.b32.xlu0 %v3167, 96
        %v3169 = vpop.permute.xlu0 %3168
        %v3171 = vunpack.c.l.b16 %v3087
        %v3172 = vpack.c.b16 %v3171, %v3171
        %3173 = vrot.lane.b32.xlu0 %v3172, 112
        %v3174 = vpop.permute.xlu0 %3173
        %v3176 = vunpack.c.l.b16 %v3131
        %v3177 = vpack.c.b16 %v3176, %v3176
        %3178 = vrot.lane.b32.xlu0 %v3177, 16
        %v3179 = vpop.permute.xlu0 %3178
        %v3181 = vunpack.c.l.b16 %v3111
        %v3182 = vpack.c.b16 %v3181, %v3181
        %3183 = vrot.lane.b32.xlu0 %v3182, 32
        %v3184 = vpop.permute.xlu0 %3183
        %v3186 = vunpack.c.l.b16 %v3137
        %v3187 = vpack.c.b16 %v3186, %v3186
        %3188 = vrot.lane.b32.xlu0 %v3187, 48
        %v3189 = vpop.permute.xlu0 %3188
        %v3191 = vunpack.c.l.b16 %v3109
        %v3192 = vpack.c.b16 %v3191, %v3191
        %3193 = vrot.lane.b32.xlu0 %v3192, 64
        %v3194 = vpop.permute.xlu0 %3193
        %v3196 = vunpack.c.l.b16 %v3135
        %v3197 = vpack.c.b16 %v3196, %v3196
        %3198 = vrot.lane.b32.xlu0 %v3197, 80
        %v3199 = vpop.permute.xlu0 %3198
        %v3201 = vunpack.c.l.b16 %v3113
        %v3202 = vpack.c.b16 %v3201, %v3201
        %3203 = vrot.lane.b32.xlu0 %v3202, 96
        %v3204 = vpop.permute.xlu0 %3203
        %v3206 = vunpack.c.l.b16 %v3139
        %v3207 = vpack.c.b16 %v3206, %v3206
        %3208 = vrot.lane.b32.xlu0 %v3207, 112
        %v3209 = vpop.permute.xlu0 %3208
        %v3212 = vsel %vm383, %v3053, %v3144
        %v3214 = vsel %vm387, %v3212, %v3149
        %v3216 = vsel %vm390, %v3214, %v3154
        %v3218 = vsel %vm393, %v3216, %v3159
        %v3220 = vsel %vm396, %v3218, %v3164
        %v3222 = vsel %vm399, %v3220, %v3169
        %v3224 = vsel %vm402, %v3222, %v3174
        %v3227 = vsel %vm383, %v3105, %v3179
        %v3229 = vsel %vm387, %v3227, %v3184
        %v3231 = vsel %vm390, %v3229, %v3189
        %v3233 = vsel %vm393, %v3231, %v3194
        %v3235 = vsel %vm396, %v3233, %v3199
        %v3237 = vsel %vm399, %v3235, %v3204
        %v3239 = vsel %vm402, %v3237, %v3209
        %v3242 = vunpack.c.l.b16 %v3224
        %v3243 = vunpack.c.l.b16 %v3239
        %v3244 = vpack.c.b16 %v3243, %v3242
        %3246 = vst [vmem:[#allocation2] sm:$0x33] %v3244
        %v3247 = vld [vmem:[%s3003] sm:$0xf]
        %v3248 = vld [vmem:[%s3003 + $0x4] sm:$0xf]
        %v3249 = vld [vmem:[%s3003 + $0xc] sm:$0xf]
        %v3250 = vld [vmem:[%s3003 + $0x10] sm:$0xf]
        %v3251 = vld [vmem:[%s3003 + $0x18] sm:$0xf]
        %v3252 = vld [vmem:[%s3003 + $0x1c] sm:$0xf]
        %v3253 = vld [vmem:[%s3003 + $0x24] sm:$0xf]
        %v3254 = vld [vmem:[%s3003 + $0x28] sm:$0xf]
        %3263 = vrot.lane.b32.xlu0 %v3247, 127
        %v3264 = vpop.permute.xlu0 %3263
        %3265 = vrot.lane.b32.xlu0 %v3248, 127
        %v3266 = vpop.permute.xlu0 %3265
        %3267 = vrot.lane.b32.xlu0 %v3249, 127
        %v3268 = vpop.permute.xlu0 %3267
        %3269 = vrot.lane.b32.xlu0 %v3250, 127
        %v3270 = vpop.permute.xlu0 %3269
        %3271 = vrot.lane.b32.xlu0 %v3251, 127
        %v3272 = vpop.permute.xlu0 %3271
        %3273 = vrot.lane.b32.xlu0 %v3252, 127
        %v3274 = vpop.permute.xlu0 %3273
        %3275 = vrot.lane.b32.xlu0 %v3253, 127
        %v3276 = vpop.permute.xlu0 %3275
        %3277 = vrot.lane.b32.xlu0 %v3254, 127
        %v3278 = vpop.permute.xlu0 %3277
        %v3281 = vpack.i.b16 %v3268, %v3264
        %v3282 = vshrl.u32 %v3264, 16
        %v3283 = vshrl.u32 %v3268, 16
        %v3284 = vpack.i.b16 %v3283, %v3282
        %v3287 = vpack.i.b16 %v3276, %v3272
        %v3288 = vshrl.u32 %v3272, 16
        %v3289 = vshrl.u32 %v3276, 16
        %v3290 = vpack.i.b16 %v3289, %v3288
        %v3293 = vpack.i.b16 %v3270, %v3266
        %v3294 = vshrl.u32 %v3266, 16
        %v3295 = vshrl.u32 %v3270, 16
        %v3296 = vpack.i.b16 %v3295, %v3294
        %v3299 = vpack.i.b16 %v3278, %v3274
        %v3300 = vshrl.u32 %v3274, 16
        %v3301 = vshrl.u32 %v3278, 16
        %v3302 = vpack.i.b16 %v3301, %v3300
        %v3305 = vunpack.c.l.s4 1983009808
        %v3306 = vunpack.c.0.s8 %v3305
        %v3307 = vperm.slane %v3281, %v3306
        %v3310 = vunpack.c.l.s4 1983009808
        %v3311 = vunpack.c.0.s8 %v3310
        %v3312 = vperm.slane %v3287, %v3311
        %v3313 = vrot.slane %v3312, 4
        %v3314 = vsel %vm219, %v3313, %v3307
        %v3315 = vrot.slane %v3307, 4
        %v3316 = vsel %vm219, %v3312, %v3315
        %v3318 = vunpack.c.l.s4 1934713408
        %v3319 = vunpack.c.0.s8 %v3318
        %v3320 = vperm.slane %v3314, %v3319
        %v3322 = vunpack.c.l.s4 1934713408
        %v3323 = vunpack.c.0.s8 %v3322
        %v3324 = vperm.slane %v3316, %v3323
        %v3325 = vrot.slane %v3320, 4
        %v3326 = vsel %vm219, 0, %v3325
        %v3327 = vrot.slane %v3324, 4
        %v3328 = vsel %vm219, 0, %v3327
        %v3331 = vunpack.c.l.s4 1983009808
        %v3332 = vunpack.c.0.s8 %v3331
        %v3333 = vperm.slane %v3284, %v3332
        %v3336 = vunpack.c.l.s4 1983009808
        %v3337 = vunpack.c.0.s8 %v3336
        %v3338 = vperm.slane %v3290, %v3337
        %v3339 = vrot.slane %v3338, 4
        %v3340 = vsel %vm219, %v3339, %v3333
        %v3341 = vrot.slane %v3333, 4
        %v3342 = vsel %vm219, %v3338, %v3341
        %v3344 = vunpack.c.l.s4 1934713408
        %v3345 = vunpack.c.0.s8 %v3344
        %v3346 = vperm.slane %v3340, %v3345
        %v3348 = vunpack.c.l.s4 1934713408
        %v3349 = vunpack.c.0.s8 %v3348
        %v3350 = vperm.slane %v3342, %v3349
        %v3351 = vrot.slane %v3346, 4
        %v3352 = vsel %vm219, 0, %v3351
        %v3353 = vrot.slane %v3350, 4
        %v3354 = vsel %vm219, 0, %v3353
        %v3357 = vunpack.c.l.s4 1983009808
        %v3358 = vunpack.c.0.s8 %v3357
        %v3359 = vperm.slane %v3293, %v3358
        %v3362 = vunpack.c.l.s4 1983009808
        %v3363 = vunpack.c.0.s8 %v3362
        %v3364 = vperm.slane %v3299, %v3363
        %v3365 = vrot.slane %v3364, 4
        %v3366 = vsel %vm219, %v3365, %v3359
        %v3367 = vrot.slane %v3359, 4
        %v3368 = vsel %vm219, %v3364, %v3367
        %v3370 = vunpack.c.l.s4 1934713408
        %v3371 = vunpack.c.0.s8 %v3370
        %v3372 = vperm.slane %v3366, %v3371
        %v3374 = vunpack.c.l.s4 1934713408
        %v3375 = vunpack.c.0.s8 %v3374
        %v3376 = vperm.slane %v3368, %v3375
        %v3377 = vrot.slane %v3372, 4
        %v3378 = vsel %vm219, 0, %v3377
        %v3379 = vrot.slane %v3376, 4
        %v3380 = vsel %vm219, 0, %v3379
        %v3383 = vunpack.c.l.s4 1983009808
        %v3384 = vunpack.c.0.s8 %v3383
        %v3385 = vperm.slane %v3296, %v3384
        %v3388 = vunpack.c.l.s4 1983009808
        %v3389 = vunpack.c.0.s8 %v3388
        %v3390 = vperm.slane %v3302, %v3389
        %v3391 = vrot.slane %v3390, 4
        %v3392 = vsel %vm219, %v3391, %v3385
        %v3393 = vrot.slane %v3385, 4
        %v3394 = vsel %vm219, %v3390, %v3393
        %v3396 = vunpack.c.l.s4 1934713408
        %v3397 = vunpack.c.0.s8 %v3396
        %v3398 = vperm.slane %v3392, %v3397
        %v3400 = vunpack.c.l.s4 1934713408
        %v3401 = vunpack.c.0.s8 %v3400
        %v3402 = vperm.slane %v3394, %v3401
        %v3403 = vrot.slane %v3398, 4
        %v3404 = vsel %vm219, 0, %v3403
        %v3405 = vrot.slane %v3402, 4
        %v3406 = vsel %vm219, 0, %v3405
        %v3408 = vunpack.c.l.b16 %v3346
        %v3409 = vpack.c.b16 %v3408, %v3408
        %3410 = vrot.lane.b32.xlu0 %v3409, 16
        %v3411 = vpop.permute.xlu0 %3410
        %v3413 = vunpack.c.l.b16 %v3326
        %v3414 = vpack.c.b16 %v3413, %v3413
        %3415 = vrot.lane.b32.xlu0 %v3414, 32
        %v3416 = vpop.permute.xlu0 %3415
        %v3418 = vunpack.c.l.b16 %v3352
        %v3419 = vpack.c.b16 %v3418, %v3418
        %3420 = vrot.lane.b32.xlu0 %v3419, 48
        %v3421 = vpop.permute.xlu0 %3420
        %v3423 = vunpack.c.l.b16 %v3324
        %v3424 = vpack.c.b16 %v3423, %v3423
        %3425 = vrot.lane.b32.xlu0 %v3424, 64
        %v3426 = vpop.permute.xlu0 %3425
        %v3428 = vunpack.c.l.b16 %v3350
        %v3429 = vpack.c.b16 %v3428, %v3428
        %3430 = vrot.lane.b32.xlu0 %v3429, 80
        %v3431 = vpop.permute.xlu0 %3430
        %v3433 = vunpack.c.l.b16 %v3328
        %v3434 = vpack.c.b16 %v3433, %v3433
        %3435 = vrot.lane.b32.xlu0 %v3434, 96
        %v3436 = vpop.permute.xlu0 %3435
        %v3438 = vunpack.c.l.b16 %v3354
        %v3439 = vpack.c.b16 %v3438, %v3438
        %3440 = vrot.lane.b32.xlu0 %v3439, 112
        %v3441 = vpop.permute.xlu0 %3440
        %v3443 = vunpack.c.l.b16 %v3398
        %v3444 = vpack.c.b16 %v3443, %v3443
        %3445 = vrot.lane.b32.xlu0 %v3444, 16
        %v3446 = vpop.permute.xlu0 %3445
        %v3448 = vunpack.c.l.b16 %v3378
        %v3449 = vpack.c.b16 %v3448, %v3448
        %3450 = vrot.lane.b32.xlu0 %v3449, 32
        %v3451 = vpop.permute.xlu0 %3450
        %v3453 = vunpack.c.l.b16 %v3404
        %v3454 = vpack.c.b16 %v3453, %v3453
        %3455 = vrot.lane.b32.xlu0 %v3454, 48
        %v3456 = vpop.permute.xlu0 %3455
        %v3458 = vunpack.c.l.b16 %v3376
        %v3459 = vpack.c.b16 %v3458, %v3458
        %3460 = vrot.lane.b32.xlu0 %v3459, 64
        %v3461 = vpop.permute.xlu0 %3460
        %v3463 = vunpack.c.l.b16 %v3402
        %v3464 = vpack.c.b16 %v3463, %v3463
        %3465 = vrot.lane.b32.xlu0 %v3464, 80
        %v3466 = vpop.permute.xlu0 %3465
        %v3468 = vunpack.c.l.b16 %v3380
        %v3469 = vpack.c.b16 %v3468, %v3468
        %3470 = vrot.lane.b32.xlu0 %v3469, 96
        %v3471 = vpop.permute.xlu0 %3470
        %v3473 = vunpack.c.l.b16 %v3406
        %v3474 = vpack.c.b16 %v3473, %v3473
        %3475 = vrot.lane.b32.xlu0 %v3474, 112
        %v3476 = vpop.permute.xlu0 %3475
        %v3479 = vsel %vm383, %v3320, %v3411
        %v3481 = vsel %vm387, %v3479, %v3416
        %v3483 = vsel %vm390, %v3481, %v3421
        %v3485 = vsel %vm393, %v3483, %v3426
        %v3487 = vsel %vm396, %v3485, %v3431
        %v3489 = vsel %vm399, %v3487, %v3436
        %v3491 = vsel %vm402, %v3489, %v3441
        %v3494 = vsel %vm383, %v3372, %v3446
        %v3496 = vsel %vm387, %v3494, %v3451
        %v3498 = vsel %vm390, %v3496, %v3456
        %v3500 = vsel %vm393, %v3498, %v3461
        %v3502 = vsel %vm396, %v3500, %v3466
        %v3504 = vsel %vm399, %v3502, %v3471
        %v3506 = vsel %vm402, %v3504, %v3476
        %v3509 = vunpack.c.l.b16 %v3491
        %v3510 = vunpack.c.l.b16 %v3506
        %v3511 = vpack.c.b16 %v3510, %v3509
        %v3512 = vrot.slane %v3511, 6
        %3514 = vst [vmem:[#allocation2] sm:$0xcc] %v3512
        %v3515 = vld [vmem:[%s3003] sm:$0xf]
        %v3516 = vld [vmem:[%s3003 + $0x4] sm:$0xf]
        %v3517 = vld [vmem:[%s3003 + $0xc] sm:$0xf]
        %v3518 = vld [vmem:[%s3003 + $0x10] sm:$0xf]
        %v3519 = vld [vmem:[%s3003 + $0x18] sm:$0xf]
        %v3520 = vld [vmem:[%s3003 + $0x1c] sm:$0xf]
        %v3521 = vld [vmem:[%s3003 + $0x24] sm:$0xf]
        %v3522 = vld [vmem:[%s3003 + $0x28] sm:$0xf]
        %3531 = vrot.lane.b32.xlu0 %v3515, 126
        %v3532 = vpop.permute.xlu0 %3531
        %3533 = vrot.lane.b32.xlu0 %v3516, 126
        %v3534 = vpop.permute.xlu0 %3533
        %3535 = vrot.lane.b32.xlu0 %v3517, 126
        %v3536 = vpop.permute.xlu0 %3535
        %3537 = vrot.lane.b32.xlu0 %v3518, 126
        %v3538 = vpop.permute.xlu0 %3537
        %3539 = vrot.lane.b32.xlu0 %v3519, 126
        %v3540 = vpop.permute.xlu0 %3539
        %3541 = vrot.lane.b32.xlu0 %v3520, 126
        %v3542 = vpop.permute.xlu0 %3541
        %3543 = vrot.lane.b32.xlu0 %v3521, 126
        %v3544 = vpop.permute.xlu0 %3543
        %3545 = vrot.lane.b32.xlu0 %v3522, 126
        %v3546 = vpop.permute.xlu0 %3545
        %v3549 = vpack.i.b16 %v3536, %v3532
        %v3550 = vshrl.u32 %v3532, 16
        %v3551 = vshrl.u32 %v3536, 16
        %v3552 = vpack.i.b16 %v3551, %v3550
        %v3555 = vpack.i.b16 %v3544, %v3540
        %v3556 = vshrl.u32 %v3540, 16
        %v3557 = vshrl.u32 %v3544, 16
        %v3558 = vpack.i.b16 %v3557, %v3556
        %v3561 = vpack.i.b16 %v3538, %v3534
        %v3562 = vshrl.u32 %v3534, 16
        %v3563 = vshrl.u32 %v3538, 16
        %v3564 = vpack.i.b16 %v3563, %v3562
        %v3567 = vpack.i.b16 %v3546, %v3542
        %v3568 = vshrl.u32 %v3542, 16
        %v3569 = vshrl.u32 %v3546, 16
        %v3570 = vpack.i.b16 %v3569, %v3568
        %v3573 = vunpack.c.l.s4 1983009808
        %v3574 = vunpack.c.0.s8 %v3573
        %v3575 = vperm.slane %v3549, %v3574
        %v3578 = vunpack.c.l.s4 1983009808
        %v3579 = vunpack.c.0.s8 %v3578
        %v3580 = vperm.slane %v3555, %v3579
        %v3581 = vrot.slane %v3580, 4
        %v3582 = vsel %vm219, %v3581, %v3575
        %v3583 = vrot.slane %v3575, 4
        %v3584 = vsel %vm219, %v3580, %v3583
        %v3586 = vunpack.c.l.s4 1934713408
        %v3587 = vunpack.c.0.s8 %v3586
        %v3588 = vperm.slane %v3582, %v3587
        %v3590 = vunpack.c.l.s4 1934713408
        %v3591 = vunpack.c.0.s8 %v3590
        %v3592 = vperm.slane %v3584, %v3591
        %v3593 = vrot.slane %v3588, 4
        %v3594 = vsel %vm219, 0, %v3593
        %v3595 = vrot.slane %v3592, 4
        %v3596 = vsel %vm219, 0, %v3595
        %v3599 = vunpack.c.l.s4 1983009808
        %v3600 = vunpack.c.0.s8 %v3599
        %v3601 = vperm.slane %v3552, %v3600
        %v3604 = vunpack.c.l.s4 1983009808
        %v3605 = vunpack.c.0.s8 %v3604
        %v3606 = vperm.slane %v3558, %v3605
        %v3607 = vrot.slane %v3606, 4
        %v3608 = vsel %vm219, %v3607, %v3601
        %v3609 = vrot.slane %v3601, 4
        %v3610 = vsel %vm219, %v3606, %v3609
        %v3612 = vunpack.c.l.s4 1934713408
        %v3613 = vunpack.c.0.s8 %v3612
        %v3614 = vperm.slane %v3608, %v3613
        %v3616 = vunpack.c.l.s4 1934713408
        %v3617 = vunpack.c.0.s8 %v3616
        %v3618 = vperm.slane %v3610, %v3617
        %v3619 = vrot.slane %v3614, 4
        %v3620 = vsel %vm219, 0, %v3619
        %v3621 = vrot.slane %v3618, 4
        %v3622 = vsel %vm219, 0, %v3621
        %v3625 = vunpack.c.l.s4 1983009808
        %v3626 = vunpack.c.0.s8 %v3625
        %v3627 = vperm.slane %v3561, %v3626
        %v3630 = vunpack.c.l.s4 1983009808
        %v3631 = vunpack.c.0.s8 %v3630
        %v3632 = vperm.slane %v3567, %v3631
        %v3633 = vrot.slane %v3632, 4
        %v3634 = vsel %vm219, %v3633, %v3627
        %v3635 = vrot.slane %v3627, 4
        %v3636 = vsel %vm219, %v3632, %v3635
        %v3638 = vunpack.c.l.s4 1934713408
        %v3639 = vunpack.c.0.s8 %v3638
        %v3640 = vperm.slane %v3634, %v3639
        %v3642 = vunpack.c.l.s4 1934713408
        %v3643 = vunpack.c.0.s8 %v3642
        %v3644 = vperm.slane %v3636, %v3643
        %v3645 = vrot.slane %v3640, 4
        %v3646 = vsel %vm219, 0, %v3645
        %v3647 = vrot.slane %v3644, 4
        %v3648 = vsel %vm219, 0, %v3647
        %v3651 = vunpack.c.l.s4 1983009808
        %v3652 = vunpack.c.0.s8 %v3651
        %v3653 = vperm.slane %v3564, %v3652
        %v3656 = vunpack.c.l.s4 1983009808
        %v3657 = vunpack.c.0.s8 %v3656
        %v3658 = vperm.slane %v3570, %v3657
        %v3659 = vrot.slane %v3658, 4
        %v3660 = vsel %vm219, %v3659, %v3653
        %v3661 = vrot.slane %v3653, 4
        %v3662 = vsel %vm219, %v3658, %v3661
        %v3664 = vunpack.c.l.s4 1934713408
        %v3665 = vunpack.c.0.s8 %v3664
        %v3666 = vperm.slane %v3660, %v3665
        %v3668 = vunpack.c.l.s4 1934713408
        %v3669 = vunpack.c.0.s8 %v3668
        %v3670 = vperm.slane %v3662, %v3669
        %v3671 = vrot.slane %v3666, 4
        %v3672 = vsel %vm219, 0, %v3671
        %v3673 = vrot.slane %v3670, 4
        %v3674 = vsel %vm219, 0, %v3673
        %v3676 = vunpack.c.l.b16 %v3614
        %v3677 = vpack.c.b16 %v3676, %v3676
        %3678 = vrot.lane.b32.xlu0 %v3677, 16
        %v3679 = vpop.permute.xlu0 %3678
        %v3681 = vunpack.c.l.b16 %v3594
        %v3682 = vpack.c.b16 %v3681, %v3681
        %3683 = vrot.lane.b32.xlu0 %v3682, 32
        %v3684 = vpop.permute.xlu0 %3683
        %v3686 = vunpack.c.l.b16 %v3620
        %v3687 = vpack.c.b16 %v3686, %v3686
        %3688 = vrot.lane.b32.xlu0 %v3687, 48
        %v3689 = vpop.permute.xlu0 %3688
        %v3691 = vunpack.c.l.b16 %v3592
        %v3692 = vpack.c.b16 %v3691, %v3691
        %3693 = vrot.lane.b32.xlu0 %v3692, 64
        %v3694 = vpop.permute.xlu0 %3693
        %v3696 = vunpack.c.l.b16 %v3618
        %v3697 = vpack.c.b16 %v3696, %v3696
        %3698 = vrot.lane.b32.xlu0 %v3697, 80
        %v3699 = vpop.permute.xlu0 %3698
        %v3701 = vunpack.c.l.b16 %v3596
        %v3702 = vpack.c.b16 %v3701, %v3701
        %3703 = vrot.lane.b32.xlu0 %v3702, 96
        %v3704 = vpop.permute.xlu0 %3703
        %v3706 = vunpack.c.l.b16 %v3622
        %v3707 = vpack.c.b16 %v3706, %v3706
        %3708 = vrot.lane.b32.xlu0 %v3707, 112
        %v3709 = vpop.permute.xlu0 %3708
        %v3711 = vunpack.c.l.b16 %v3666
        %v3712 = vpack.c.b16 %v3711, %v3711
        %3713 = vrot.lane.b32.xlu0 %v3712, 16
        %v3714 = vpop.permute.xlu0 %3713
        %v3716 = vunpack.c.l.b16 %v3646
        %v3717 = vpack.c.b16 %v3716, %v3716
        %3718 = vrot.lane.b32.xlu0 %v3717, 32
        %v3719 = vpop.permute.xlu0 %3718
        %v3721 = vunpack.c.l.b16 %v3672
        %v3722 = vpack.c.b16 %v3721, %v3721
        %3723 = vrot.lane.b32.xlu0 %v3722, 48
        %v3724 = vpop.permute.xlu0 %3723
        %v3726 = vunpack.c.l.b16 %v3644
        %v3727 = vpack.c.b16 %v3726, %v3726
        %3728 = vrot.lane.b32.xlu0 %v3727, 64
        %v3729 = vpop.permute.xlu0 %3728
        %v3731 = vunpack.c.l.b16 %v3670
        %v3732 = vpack.c.b16 %v3731, %v3731
        %3733 = vrot.lane.b32.xlu0 %v3732, 80
        %v3734 = vpop.permute.xlu0 %3733
        %v3736 = vunpack.c.l.b16 %v3648
        %v3737 = vpack.c.b16 %v3736, %v3736
        %3738 = vrot.lane.b32.xlu0 %v3737, 96
        %v3739 = vpop.permute.xlu0 %3738
        %v3741 = vunpack.c.l.b16 %v3674
        %v3742 = vpack.c.b16 %v3741, %v3741
        %3743 = vrot.lane.b32.xlu0 %v3742, 112
        %v3744 = vpop.permute.xlu0 %3743
        %v3747 = vsel %vm383, %v3588, %v3679
        %v3749 = vsel %vm387, %v3747, %v3684
        %v3751 = vsel %vm390, %v3749, %v3689
        %v3753 = vsel %vm393, %v3751, %v3694
        %v3755 = vsel %vm396, %v3753, %v3699
        %v3757 = vsel %vm399, %v3755, %v3704
        %v3759 = vsel %vm402, %v3757, %v3709
        %v3762 = vsel %vm383, %v3640, %v3714
        %v3764 = vsel %vm387, %v3762, %v3719
        %v3766 = vsel %vm390, %v3764, %v3724
        %v3768 = vsel %vm393, %v3766, %v3729
        %v3770 = vsel %vm396, %v3768, %v3734
        %v3772 = vsel %vm399, %v3770, %v3739
        %v3774 = vsel %vm402, %v3772, %v3744
        %v3777 = vunpack.c.l.b16 %v3759
        %v3778 = vunpack.c.l.b16 %v3774
        %v3779 = vpack.c.b16 %v3778, %v3777
        %3781 = vst [vmem:[#allocation2 + $0x8] sm:$0x33] %v3779
        %v3782 = vld [vmem:[%s3003] sm:$0xf]
        %v3783 = vld [vmem:[%s3003 + $0x4] sm:$0xf]
        %v3784 = vld [vmem:[%s3003 + $0x8] sm:$0x1]
        %v3785 = vld [vmem:[%s3003 + $0xc] sm:$0xf]
        %v3786 = vld [vmem:[%s3003 + $0x10] sm:$0xf]
        %v3787 = vld [vmem:[%s3003 + $0x14] sm:$0x1]
        %v3788 = vld [vmem:[%s3003 + $0x18] sm:$0xf]
        %v3789 = vld [vmem:[%s3003 + $0x1c] sm:$0xf]
        %v3790 = vld [vmem:[%s3003 + $0x20] sm:$0x1]
        %v3791 = vld [vmem:[%s3003 + $0x24] sm:$0xf]
        %v3792 = vld [vmem:[%s3003 + $0x28] sm:$0xf]
        %v3793 = vld [vmem:[%s3003 + $0x2c] sm:$0x1]
        %v3795 = vshrl.u32 %v3782, 16
        %v3797 = vrot.slane %v3795, 4
        %v3798 = vshll.u32 %v3782, 16
        %v3800 = vrot.slane %v3798, 5
        %v3801 = vor.u32 %v3797, %v3800
        %v3802 = vrot.slane %v3801, 4
        %v3804 = vshll.u32 %v3783, 16
        %v3806 = vrot.slane %v3804, 5
        %v3807 = vsel %vm976, %v3802, %v3806
        %v3808 = vshrl.u32 %v3783, 16
        %v3810 = vrot.slane %v3808, 4
        %v3811 = vor.u32 %v3810, %v3806
        %v3812 = vrot.slane %v3811, 4
        %v3814 = vshll.u32 %v3784, 16
        %v3816 = vrot.slane %v3814, 5
        %v3817 = vsel %vm976, %v3812, %v3816
        %v3819 = vshrl.u32 %v3785, 16
        %v3821 = vrot.slane %v3819, 4
        %v3822 = vshll.u32 %v3785, 16
        %v3824 = vrot.slane %v3822, 5
        %v3825 = vor.u32 %v3821, %v3824
        %v3826 = vrot.slane %v3825, 4
        %v3828 = vshll.u32 %v3786, 16
        %v3830 = vrot.slane %v3828, 5
        %v3831 = vsel %vm976, %v3826, %v3830
        %v3832 = vshrl.u32 %v3786, 16
        %v3834 = vrot.slane %v3832, 4
        %v3835 = vor.u32 %v3834, %v3830
        %v3836 = vrot.slane %v3835, 4
        %v3838 = vshll.u32 %v3787, 16
        %v3840 = vrot.slane %v3838, 5
        %v3841 = vsel %vm976, %v3836, %v3840
        %v3843 = vshrl.u32 %v3788, 16
        %v3845 = vrot.slane %v3843, 4
        %v3846 = vshll.u32 %v3788, 16
        %v3848 = vrot.slane %v3846, 5
        %v3849 = vor.u32 %v3845, %v3848
        %v3850 = vrot.slane %v3849, 4
        %v3852 = vshll.u32 %v3789, 16
        %v3854 = vrot.slane %v3852, 5
        %v3855 = vsel %vm976, %v3850, %v3854
        %v3856 = vshrl.u32 %v3789, 16
        %v3858 = vrot.slane %v3856, 4
        %v3859 = vor.u32 %v3858, %v3854
        %v3860 = vrot.slane %v3859, 4
        %v3862 = vshll.u32 %v3790, 16
        %v3864 = vrot.slane %v3862, 5
        %v3865 = vsel %vm976, %v3860, %v3864
        %v3867 = vshrl.u32 %v3791, 16
        %v3869 = vrot.slane %v3867, 4
        %v3870 = vshll.u32 %v3791, 16
        %v3872 = vrot.slane %v3870, 5
        %v3873 = vor.u32 %v3869, %v3872
        %v3874 = vrot.slane %v3873, 4
        %v3876 = vshll.u32 %v3792, 16
        %v3878 = vrot.slane %v3876, 5
        %v3879 = vsel %vm976, %v3874, %v3878
        %v3880 = vshrl.u32 %v3792, 16
        %v3882 = vrot.slane %v3880, 4
        %v3883 = vor.u32 %v3882, %v3878
        %v3884 = vrot.slane %v3883, 4
        %v3886 = vshll.u32 %v3793, 16
        %v3888 = vrot.slane %v3886, 5
        %v3889 = vsel %vm976, %v3884, %v3888
        %v3892 = vpack.i.b16 %v3831, %v3807
        %v3893 = vshrl.u32 %v3807, 16
        %v3894 = vshrl.u32 %v3831, 16
        %v3895 = vpack.i.b16 %v3894, %v3893
        %v3898 = vpack.i.b16 %v3879, %v3855
        %v3899 = vshrl.u32 %v3855, 16
        %v3900 = vshrl.u32 %v3879, 16
        %v3901 = vpack.i.b16 %v3900, %v3899
        %v3904 = vpack.i.b16 %v3841, %v3817
        %v3905 = vshrl.u32 %v3817, 16
        %v3906 = vshrl.u32 %v3841, 16
        %v3907 = vpack.i.b16 %v3906, %v3905
        %v3910 = vpack.i.b16 %v3889, %v3865
        %v3911 = vshrl.u32 %v3865, 16
        %v3912 = vshrl.u32 %v3889, 16
        %v3913 = vpack.i.b16 %v3912, %v3911
        %v3916 = vunpack.c.l.s4 1983009808
        %v3917 = vunpack.c.0.s8 %v3916
        %v3918 = vperm.slane %v3892, %v3917
        %v3921 = vunpack.c.l.s4 1983009808
        %v3922 = vunpack.c.0.s8 %v3921
        %v3923 = vperm.slane %v3898, %v3922
        %v3924 = vrot.slane %v3923, 4
        %v3925 = vsel %vm219, %v3924, %v3918
        %v3926 = vrot.slane %v3918, 4
        %v3927 = vsel %vm219, %v3923, %v3926
        %v3929 = vunpack.c.l.s4 1934713408
        %v3930 = vunpack.c.0.s8 %v3929
        %v3931 = vperm.slane %v3925, %v3930
        %v3933 = vunpack.c.l.s4 1934713408
        %v3934 = vunpack.c.0.s8 %v3933
        %v3935 = vperm.slane %v3927, %v3934
        %v3936 = vrot.slane %v3931, 4
        %v3937 = vsel %vm219, 0, %v3936
        %v3938 = vrot.slane %v3935, 4
        %v3939 = vsel %vm219, 0, %v3938
        %v3942 = vunpack.c.l.s4 1983009808
        %v3943 = vunpack.c.0.s8 %v3942
        %v3944 = vperm.slane %v3895, %v3943
        %v3947 = vunpack.c.l.s4 1983009808
        %v3948 = vunpack.c.0.s8 %v3947
        %v3949 = vperm.slane %v3901, %v3948
        %v3950 = vrot.slane %v3949, 4
        %v3951 = vsel %vm219, %v3950, %v3944
        %v3952 = vrot.slane %v3944, 4
        %v3953 = vsel %vm219, %v3949, %v3952
        %v3955 = vunpack.c.l.s4 1934713408
        %v3956 = vunpack.c.0.s8 %v3955
        %v3957 = vperm.slane %v3951, %v3956
        %v3959 = vunpack.c.l.s4 1934713408
        %v3960 = vunpack.c.0.s8 %v3959
        %v3961 = vperm.slane %v3953, %v3960
        %v3962 = vrot.slane %v3957, 4
        %v3963 = vsel %vm219, 0, %v3962
        %v3964 = vrot.slane %v3961, 4
        %v3965 = vsel %vm219, 0, %v3964
        %v3968 = vunpack.c.l.s4 1983009808
        %v3969 = vunpack.c.0.s8 %v3968
        %v3970 = vperm.slane %v3904, %v3969
        %v3973 = vunpack.c.l.s4 1983009808
        %v3974 = vunpack.c.0.s8 %v3973
        %v3975 = vperm.slane %v3910, %v3974
        %v3976 = vrot.slane %v3975, 4
        %v3977 = vsel %vm219, %v3976, %v3970
        %v3978 = vrot.slane %v3970, 4
        %v3979 = vsel %vm219, %v3975, %v3978
        %v3981 = vunpack.c.l.s4 1934713408
        %v3982 = vunpack.c.0.s8 %v3981
        %v3983 = vperm.slane %v3977, %v3982
        %v3985 = vunpack.c.l.s4 1934713408
        %v3986 = vunpack.c.0.s8 %v3985
        %v3987 = vperm.slane %v3979, %v3986
        %v3988 = vrot.slane %v3983, 4
        %v3989 = vsel %vm219, 0, %v3988
        %v3990 = vrot.slane %v3987, 4
        %v3991 = vsel %vm219, 0, %v3990
        %v3994 = vunpack.c.l.s4 1983009808
        %v3995 = vunpack.c.0.s8 %v3994
        %v3996 = vperm.slane %v3907, %v3995
        %v3999 = vunpack.c.l.s4 1983009808
        %v4000 = vunpack.c.0.s8 %v3999
        %v4001 = vperm.slane %v3913, %v4000
        %v4002 = vrot.slane %v4001, 4
        %v4003 = vsel %vm219, %v4002, %v3996
        %v4004 = vrot.slane %v3996, 4
        %v4005 = vsel %vm219, %v4001, %v4004
        %v4007 = vunpack.c.l.s4 1934713408
        %v4008 = vunpack.c.0.s8 %v4007
        %v4009 = vperm.slane %v4003, %v4008
        %v4011 = vunpack.c.l.s4 1934713408
        %v4012 = vunpack.c.0.s8 %v4011
        %v4013 = vperm.slane %v4005, %v4012
        %v4014 = vrot.slane %v4009, 4
        %v4015 = vsel %vm219, 0, %v4014
        %v4016 = vrot.slane %v4013, 4
        %v4017 = vsel %vm219, 0, %v4016
        %v4019 = vunpack.c.l.b16 %v3957
        %v4020 = vpack.c.b16 %v4019, %v4019
        %4021 = vrot.lane.b32.xlu0 %v4020, 16
        %v4022 = vpop.permute.xlu0 %4021
        %v4024 = vunpack.c.l.b16 %v3937
        %v4025 = vpack.c.b16 %v4024, %v4024
        %4026 = vrot.lane.b32.xlu0 %v4025, 32
        %v4027 = vpop.permute.xlu0 %4026
        %v4029 = vunpack.c.l.b16 %v3963
        %v4030 = vpack.c.b16 %v4029, %v4029
        %4031 = vrot.lane.b32.xlu0 %v4030, 48
        %v4032 = vpop.permute.xlu0 %4031
        %v4034 = vunpack.c.l.b16 %v3935
        %v4035 = vpack.c.b16 %v4034, %v4034
        %4036 = vrot.lane.b32.xlu0 %v4035, 64
        %v4037 = vpop.permute.xlu0 %4036
        %v4039 = vunpack.c.l.b16 %v3961
        %v4040 = vpack.c.b16 %v4039, %v4039
        %4041 = vrot.lane.b32.xlu0 %v4040, 80
        %v4042 = vpop.permute.xlu0 %4041
        %v4044 = vunpack.c.l.b16 %v3939
        %v4045 = vpack.c.b16 %v4044, %v4044
        %4046 = vrot.lane.b32.xlu0 %v4045, 96
        %v4047 = vpop.permute.xlu0 %4046
        %v4049 = vunpack.c.l.b16 %v3965
        %v4050 = vpack.c.b16 %v4049, %v4049
        %4051 = vrot.lane.b32.xlu0 %v4050, 112
        %v4052 = vpop.permute.xlu0 %4051
        %v4054 = vunpack.c.l.b16 %v4009
        %v4055 = vpack.c.b16 %v4054, %v4054
        %4056 = vrot.lane.b32.xlu0 %v4055, 16
        %v4057 = vpop.permute.xlu0 %4056
        %v4059 = vunpack.c.l.b16 %v3989
        %v4060 = vpack.c.b16 %v4059, %v4059
        %4061 = vrot.lane.b32.xlu0 %v4060, 32
        %v4062 = vpop.permute.xlu0 %4061
        %v4064 = vunpack.c.l.b16 %v4015
        %v4065 = vpack.c.b16 %v4064, %v4064
        %4066 = vrot.lane.b32.xlu0 %v4065, 48
        %v4067 = vpop.permute.xlu0 %4066
        %v4069 = vunpack.c.l.b16 %v3987
        %v4070 = vpack.c.b16 %v4069, %v4069
        %4071 = vrot.lane.b32.xlu0 %v4070, 64
        %v4072 = vpop.permute.xlu0 %4071
        %v4074 = vunpack.c.l.b16 %v4013
        %v4075 = vpack.c.b16 %v4074, %v4074
        %4076 = vrot.lane.b32.xlu0 %v4075, 80
        %v4077 = vpop.permute.xlu0 %4076
        %v4079 = vunpack.c.l.b16 %v3991
        %v4080 = vpack.c.b16 %v4079, %v4079
        %4081 = vrot.lane.b32.xlu0 %v4080, 96
        %v4082 = vpop.permute.xlu0 %4081
        %v4084 = vunpack.c.l.b16 %v4017
        %v4085 = vpack.c.b16 %v4084, %v4084
        %4086 = vrot.lane.b32.xlu0 %v4085, 112
        %v4087 = vpop.permute.xlu0 %4086
        %v4090 = vsel %vm383, %v3931, %v4022
        %v4092 = vsel %vm387, %v4090, %v4027
        %v4094 = vsel %vm390, %v4092, %v4032
        %v4096 = vsel %vm393, %v4094, %v4037
        %v4098 = vsel %vm396, %v4096, %v4042
        %v4100 = vsel %vm399, %v4098, %v4047
        %v4102 = vsel %vm402, %v4100, %v4052
        %v4105 = vsel %vm383, %v3983, %v4057
        %v4107 = vsel %vm387, %v4105, %v4062
        %v4109 = vsel %vm390, %v4107, %v4067
        %v4111 = vsel %vm393, %v4109, %v4072
        %v4113 = vsel %vm396, %v4111, %v4077
        %v4115 = vsel %vm399, %v4113, %v4082
        %v4117 = vsel %vm402, %v4115, %v4087
        %v4120 = vunpack.c.l.b16 %v4102
        %v4121 = vunpack.c.l.b16 %v4117
        %v4122 = vpack.c.b16 %v4121, %v4120
        %v4123 = vrot.slane %v4122, 6
        %4125 = vst [vmem:[#allocation2 + $0x8] sm:$0xcc] %v4123
        %v4126 = vld [vmem:[%s3003] sm:$0xf]
        %v4127 = vld [vmem:[%s3003 + $0x4] sm:$0xf]
        %v4128 = vld [vmem:[%s3003 + $0x8] sm:$0x1]
        %v4129 = vld [vmem:[%s3003 + $0xc] sm:$0xf]
        %v4130 = vld [vmem:[%s3003 + $0x10] sm:$0xf]
        %v4131 = vld [vmem:[%s3003 + $0x14] sm:$0x1]
        %v4132 = vld [vmem:[%s3003 + $0x18] sm:$0xf]
        %v4133 = vld [vmem:[%s3003 + $0x1c] sm:$0xf]
        %v4134 = vld [vmem:[%s3003 + $0x20] sm:$0x1]
        %v4135 = vld [vmem:[%s3003 + $0x24] sm:$0xf]
        %v4136 = vld [vmem:[%s3003 + $0x28] sm:$0xf]
        %v4137 = vld [vmem:[%s3003 + $0x2c] sm:$0x1]
        %v4139 = vshrl.u32 %v4126, 16
        %v4141 = vrot.slane %v4139, 4
        %v4142 = vshll.u32 %v4126, 16
        %v4144 = vrot.slane %v4142, 5
        %v4145 = vor.u32 %v4141, %v4144
        %v4146 = vrot.slane %v4145, 4
        %v4148 = vshll.u32 %v4127, 16
        %v4150 = vrot.slane %v4148, 5
        %v4151 = vsel %vm976, %v4146, %v4150
        %v4152 = vshrl.u32 %v4127, 16
        %v4154 = vrot.slane %v4152, 4
        %v4155 = vor.u32 %v4154, %v4150
        %v4156 = vrot.slane %v4155, 4
        %v4158 = vshll.u32 %v4128, 16
        %v4160 = vrot.slane %v4158, 5
        %v4161 = vsel %vm976, %v4156, %v4160
        %v4163 = vshrl.u32 %v4129, 16
        %v4165 = vrot.slane %v4163, 4
        %v4166 = vshll.u32 %v4129, 16
        %v4168 = vrot.slane %v4166, 5
        %v4169 = vor.u32 %v4165, %v4168
        %v4170 = vrot.slane %v4169, 4
        %v4172 = vshll.u32 %v4130, 16
        %v4174 = vrot.slane %v4172, 5
        %v4175 = vsel %vm976, %v4170, %v4174
        %v4176 = vshrl.u32 %v4130, 16
        %v4178 = vrot.slane %v4176, 4
        %v4179 = vor.u32 %v4178, %v4174
        %v4180 = vrot.slane %v4179, 4
        %v4182 = vshll.u32 %v4131, 16
        %v4184 = vrot.slane %v4182, 5
        %v4185 = vsel %vm976, %v4180, %v4184
        %v4187 = vshrl.u32 %v4132, 16
        %v4189 = vrot.slane %v4187, 4
        %v4190 = vshll.u32 %v4132, 16
        %v4192 = vrot.slane %v4190, 5
        %v4193 = vor.u32 %v4189, %v4192
        %v4194 = vrot.slane %v4193, 4
        %v4196 = vshll.u32 %v4133, 16
        %v4198 = vrot.slane %v4196, 5
        %v4199 = vsel %vm976, %v4194, %v4198
        %v4200 = vshrl.u32 %v4133, 16
        %v4202 = vrot.slane %v4200, 4
        %v4203 = vor.u32 %v4202, %v4198
        %v4204 = vrot.slane %v4203, 4
        %v4206 = vshll.u32 %v4134, 16
        %v4208 = vrot.slane %v4206, 5
        %v4209 = vsel %vm976, %v4204, %v4208
        %v4211 = vshrl.u32 %v4135, 16
        %v4213 = vrot.slane %v4211, 4
        %v4214 = vshll.u32 %v4135, 16
        %v4216 = vrot.slane %v4214, 5
        %v4217 = vor.u32 %v4213, %v4216
        %v4218 = vrot.slane %v4217, 4
        %v4220 = vshll.u32 %v4136, 16
        %v4222 = vrot.slane %v4220, 5
        %v4223 = vsel %vm976, %v4218, %v4222
        %v4224 = vshrl.u32 %v4136, 16
        %v4226 = vrot.slane %v4224, 4
        %v4227 = vor.u32 %v4226, %v4222
        %v4228 = vrot.slane %v4227, 4
        %v4230 = vshll.u32 %v4137, 16
        %v4232 = vrot.slane %v4230, 5
        %v4233 = vsel %vm976, %v4228, %v4232
        %4234 = vrot.lane.b32.xlu0 %v4151, 127
        %v4235 = vpop.permute.xlu0 %4234
        %4236 = vrot.lane.b32.xlu0 %v4161, 127
        %v4237 = vpop.permute.xlu0 %4236
        %4238 = vrot.lane.b32.xlu0 %v4175, 127
        %v4239 = vpop.permute.xlu0 %4238
        %4240 = vrot.lane.b32.xlu0 %v4185, 127
        %v4241 = vpop.permute.xlu0 %4240
        %4242 = vrot.lane.b32.xlu0 %v4199, 127
        %v4243 = vpop.permute.xlu0 %4242
        %4244 = vrot.lane.b32.xlu0 %v4209, 127
        %v4245 = vpop.permute.xlu0 %4244
        %4246 = vrot.lane.b32.xlu0 %v4223, 127
        %v4247 = vpop.permute.xlu0 %4246
        %4248 = vrot.lane.b32.xlu0 %v4233, 127
        %v4249 = vpop.permute.xlu0 %4248
        %v4252 = vpack.i.b16 %v4239, %v4235
        %v4253 = vshrl.u32 %v4235, 16
        %v4254 = vshrl.u32 %v4239, 16
        %v4255 = vpack.i.b16 %v4254, %v4253
        %v4258 = vpack.i.b16 %v4247, %v4243
        %v4259 = vshrl.u32 %v4243, 16
        %v4260 = vshrl.u32 %v4247, 16
        %v4261 = vpack.i.b16 %v4260, %v4259
        %v4264 = vpack.i.b16 %v4241, %v4237
        %v4265 = vshrl.u32 %v4237, 16
        %v4266 = vshrl.u32 %v4241, 16
        %v4267 = vpack.i.b16 %v4266, %v4265
        %v4270 = vpack.i.b16 %v4249, %v4245
        %v4271 = vshrl.u32 %v4245, 16
        %v4272 = vshrl.u32 %v4249, 16
        %v4273 = vpack.i.b16 %v4272, %v4271
        %v4276 = vunpack.c.l.s4 1983009808
        %v4277 = vunpack.c.0.s8 %v4276
        %v4278 = vperm.slane %v4252, %v4277
        %v4281 = vunpack.c.l.s4 1983009808
        %v4282 = vunpack.c.0.s8 %v4281
        %v4283 = vperm.slane %v4258, %v4282
        %v4284 = vrot.slane %v4283, 4
        %v4285 = vsel %vm219, %v4284, %v4278
        %v4286 = vrot.slane %v4278, 4
        %v4287 = vsel %vm219, %v4283, %v4286
        %v4289 = vunpack.c.l.s4 1934713408
        %v4290 = vunpack.c.0.s8 %v4289
        %v4291 = vperm.slane %v4285, %v4290
        %v4293 = vunpack.c.l.s4 1934713408
        %v4294 = vunpack.c.0.s8 %v4293
        %v4295 = vperm.slane %v4287, %v4294
        %v4296 = vrot.slane %v4291, 4
        %v4297 = vsel %vm219, 0, %v4296
        %v4298 = vrot.slane %v4295, 4
        %v4299 = vsel %vm219, 0, %v4298
        %v4302 = vunpack.c.l.s4 1983009808
        %v4303 = vunpack.c.0.s8 %v4302
        %v4304 = vperm.slane %v4255, %v4303
        %v4307 = vunpack.c.l.s4 1983009808
        %v4308 = vunpack.c.0.s8 %v4307
        %v4309 = vperm.slane %v4261, %v4308
        %v4310 = vrot.slane %v4309, 4
        %v4311 = vsel %vm219, %v4310, %v4304
        %v4312 = vrot.slane %v4304, 4
        %v4313 = vsel %vm219, %v4309, %v4312
        %v4315 = vunpack.c.l.s4 1934713408
        %v4316 = vunpack.c.0.s8 %v4315
        %v4317 = vperm.slane %v4311, %v4316
        %v4319 = vunpack.c.l.s4 1934713408
        %v4320 = vunpack.c.0.s8 %v4319
        %v4321 = vperm.slane %v4313, %v4320
        %v4322 = vrot.slane %v4317, 4
        %v4323 = vsel %vm219, 0, %v4322
        %v4324 = vrot.slane %v4321, 4
        %v4325 = vsel %vm219, 0, %v4324
        %v4328 = vunpack.c.l.s4 1983009808
        %v4329 = vunpack.c.0.s8 %v4328
        %v4330 = vperm.slane %v4264, %v4329
        %v4333 = vunpack.c.l.s4 1983009808
        %v4334 = vunpack.c.0.s8 %v4333
        %v4335 = vperm.slane %v4270, %v4334
        %v4336 = vrot.slane %v4335, 4
        %v4337 = vsel %vm219, %v4336, %v4330
        %v4338 = vrot.slane %v4330, 4
        %v4339 = vsel %vm219, %v4335, %v4338
        %v4341 = vunpack.c.l.s4 1934713408
        %v4342 = vunpack.c.0.s8 %v4341
        %v4343 = vperm.slane %v4337, %v4342
        %v4345 = vunpack.c.l.s4 1934713408
        %v4346 = vunpack.c.0.s8 %v4345
        %v4347 = vperm.slane %v4339, %v4346
        %v4348 = vrot.slane %v4343, 4
        %v4349 = vsel %vm219, 0, %v4348
        %v4350 = vrot.slane %v4347, 4
        %v4351 = vsel %vm219, 0, %v4350
        %v4354 = vunpack.c.l.s4 1983009808
        %v4355 = vunpack.c.0.s8 %v4354
        %v4356 = vperm.slane %v4267, %v4355
        %v4359 = vunpack.c.l.s4 1983009808
        %v4360 = vunpack.c.0.s8 %v4359
        %v4361 = vperm.slane %v4273, %v4360
        %v4362 = vrot.slane %v4361, 4
        %v4363 = vsel %vm219, %v4362, %v4356
        %v4364 = vrot.slane %v4356, 4
        %v4365 = vsel %vm219, %v4361, %v4364
        %v4367 = vunpack.c.l.s4 1934713408
        %v4368 = vunpack.c.0.s8 %v4367
        %v4369 = vperm.slane %v4363, %v4368
        %v4371 = vunpack.c.l.s4 1934713408
        %v4372 = vunpack.c.0.s8 %v4371
        %v4373 = vperm.slane %v4365, %v4372
        %v4374 = vrot.slane %v4369, 4
        %v4375 = vsel %vm219, 0, %v4374
        %v4376 = vrot.slane %v4373, 4
        %v4377 = vsel %vm219, 0, %v4376
        %v4379 = vunpack.c.l.b16 %v4317
        %v4380 = vpack.c.b16 %v4379, %v4379
        %4381 = vrot.lane.b32.xlu0 %v4380, 16
        %v4382 = vpop.permute.xlu0 %4381
        %v4384 = vunpack.c.l.b16 %v4297
        %v4385 = vpack.c.b16 %v4384, %v4384
        %4386 = vrot.lane.b32.xlu0 %v4385, 32
        %v4387 = vpop.permute.xlu0 %4386
        %v4389 = vunpack.c.l.b16 %v4323
        %v4390 = vpack.c.b16 %v4389, %v4389
        %4391 = vrot.lane.b32.xlu0 %v4390, 48
        %v4392 = vpop.permute.xlu0 %4391
        %v4394 = vunpack.c.l.b16 %v4295
        %v4395 = vpack.c.b16 %v4394, %v4394
        %4396 = vrot.lane.b32.xlu0 %v4395, 64
        %v4397 = vpop.permute.xlu0 %4396
        %v4399 = vunpack.c.l.b16 %v4321
        %v4400 = vpack.c.b16 %v4399, %v4399
        %4401 = vrot.lane.b32.xlu0 %v4400, 80
        %v4402 = vpop.permute.xlu0 %4401
        %v4404 = vunpack.c.l.b16 %v4299
        %v4405 = vpack.c.b16 %v4404, %v4404
        %4406 = vrot.lane.b32.xlu0 %v4405, 96
        %v4407 = vpop.permute.xlu0 %4406
        %v4409 = vunpack.c.l.b16 %v4325
        %v4410 = vpack.c.b16 %v4409, %v4409
        %4411 = vrot.lane.b32.xlu0 %v4410, 112
        %v4412 = vpop.permute.xlu0 %4411
        %v4414 = vunpack.c.l.b16 %v4369
        %v4415 = vpack.c.b16 %v4414, %v4414
        %4416 = vrot.lane.b32.xlu0 %v4415, 16
        %v4417 = vpop.permute.xlu0 %4416
        %v4419 = vunpack.c.l.b16 %v4349
        %v4420 = vpack.c.b16 %v4419, %v4419
        %4421 = vrot.lane.b32.xlu0 %v4420, 32
        %v4422 = vpop.permute.xlu0 %4421
        %v4424 = vunpack.c.l.b16 %v4375
        %v4425 = vpack.c.b16 %v4424, %v4424
        %4426 = vrot.lane.b32.xlu0 %v4425, 48
        %v4427 = vpop.permute.xlu0 %4426
        %v4429 = vunpack.c.l.b16 %v4347
        %v4430 = vpack.c.b16 %v4429, %v4429
        %4431 = vrot.lane.b32.xlu0 %v4430, 64
        %v4432 = vpop.permute.xlu0 %4431
        %v4434 = vunpack.c.l.b16 %v4373
        %v4435 = vpack.c.b16 %v4434, %v4434
        %4436 = vrot.lane.b32.xlu0 %v4435, 80
        %v4437 = vpop.permute.xlu0 %4436
        %v4439 = vunpack.c.l.b16 %v4351
        %v4440 = vpack.c.b16 %v4439, %v4439
        %4441 = vrot.lane.b32.xlu0 %v4440, 96
        %v4442 = vpop.permute.xlu0 %4441
        %v4444 = vunpack.c.l.b16 %v4377
        %v4445 = vpack.c.b16 %v4444, %v4444
        %4446 = vrot.lane.b32.xlu0 %v4445, 112
        %v4447 = vpop.permute.xlu0 %4446
        %v4450 = vsel %vm383, %v4291, %v4382
        %v4452 = vsel %vm387, %v4450, %v4387
        %v4454 = vsel %vm390, %v4452, %v4392
        %v4456 = vsel %vm393, %v4454, %v4397
        %v4458 = vsel %vm396, %v4456, %v4402
        %v4460 = vsel %vm399, %v4458, %v4407
        %v4462 = vsel %vm402, %v4460, %v4412
        %v4465 = vsel %vm383, %v4343, %v4417
        %v4467 = vsel %vm387, %v4465, %v4422
        %v4469 = vsel %vm390, %v4467, %v4427
        %v4471 = vsel %vm393, %v4469, %v4432
        %v4473 = vsel %vm396, %v4471, %v4437
        %v4475 = vsel %vm399, %v4473, %v4442
        %v4477 = vsel %vm402, %v4475, %v4447
        %v4480 = vunpack.c.l.b16 %v4462
        %v4481 = vunpack.c.l.b16 %v4477
        %v4482 = vpack.c.b16 %v4481, %v4480
        %4484 = vst [vmem:[#allocation2 + $0x10] sm:$0x33] %v4482
        %v4485 = vld [vmem:[%s3003] sm:$0xf]
        %v4486 = vld [vmem:[%s3003 + $0x4] sm:$0xf]
        %v4487 = vld [vmem:[%s3003 + $0x8] sm:$0x1]
        %v4488 = vld [vmem:[%s3003 + $0xc] sm:$0xf]
        %v4489 = vld [vmem:[%s3003 + $0x10] sm:$0xf]
        %v4490 = vld [vmem:[%s3003 + $0x14] sm:$0x1]
        %v4491 = vld [vmem:[%s3003 + $0x18] sm:$0xf]
        %v4492 = vld [vmem:[%s3003 + $0x1c] sm:$0xf]
        %v4493 = vld [vmem:[%s3003 + $0x20] sm:$0x1]
        %v4494 = vld [vmem:[%s3003 + $0x24] sm:$0xf]
        %v4495 = vld [vmem:[%s3003 + $0x28] sm:$0xf]
        %v4496 = vld [vmem:[%s3003 + $0x2c] sm:$0x1]
        %v4498 = vshrl.u32 %v4485, 16
        %v4500 = vrot.slane %v4498, 4
        %v4501 = vshll.u32 %v4485, 16
        %v4503 = vrot.slane %v4501, 5
        %v4504 = vor.u32 %v4500, %v4503
        %v4505 = vrot.slane %v4504, 4
        %v4507 = vshll.u32 %v4486, 16
        %v4509 = vrot.slane %v4507, 5
        %v4510 = vsel %vm976, %v4505, %v4509
        %v4511 = vshrl.u32 %v4486, 16
        %v4513 = vrot.slane %v4511, 4
        %v4514 = vor.u32 %v4513, %v4509
        %v4515 = vrot.slane %v4514, 4
        %v4517 = vshll.u32 %v4487, 16
        %v4519 = vrot.slane %v4517, 5
        %v4520 = vsel %vm976, %v4515, %v4519
        %v4522 = vshrl.u32 %v4488, 16
        %v4524 = vrot.slane %v4522, 4
        %v4525 = vshll.u32 %v4488, 16
        %v4527 = vrot.slane %v4525, 5
        %v4528 = vor.u32 %v4524, %v4527
        %v4529 = vrot.slane %v4528, 4
        %v4531 = vshll.u32 %v4489, 16
        %v4533 = vrot.slane %v4531, 5
        %v4534 = vsel %vm976, %v4529, %v4533
        %v4535 = vshrl.u32 %v4489, 16
        %v4537 = vrot.slane %v4535, 4
        %v4538 = vor.u32 %v4537, %v4533
        %v4539 = vrot.slane %v4538, 4
        %v4541 = vshll.u32 %v4490, 16
        %v4543 = vrot.slane %v4541, 5
        %v4544 = vsel %vm976, %v4539, %v4543
        %v4546 = vshrl.u32 %v4491, 16
        %v4548 = vrot.slane %v4546, 4
        %v4549 = vshll.u32 %v4491, 16
        %v4551 = vrot.slane %v4549, 5
        %v4552 = vor.u32 %v4548, %v4551
        %v4553 = vrot.slane %v4552, 4
        %v4555 = vshll.u32 %v4492, 16
        %v4557 = vrot.slane %v4555, 5
        %v4558 = vsel %vm976, %v4553, %v4557
        %v4559 = vshrl.u32 %v4492, 16
        %v4561 = vrot.slane %v4559, 4
        %v4562 = vor.u32 %v4561, %v4557
        %v4563 = vrot.slane %v4562, 4
        %v4565 = vshll.u32 %v4493, 16
        %v4567 = vrot.slane %v4565, 5
        %v4568 = vsel %vm976, %v4563, %v4567
        %v4570 = vshrl.u32 %v4494, 16
        %v4572 = vrot.slane %v4570, 4
        %v4573 = vshll.u32 %v4494, 16
        %v4575 = vrot.slane %v4573, 5
        %v4576 = vor.u32 %v4572, %v4575
        %v4577 = vrot.slane %v4576, 4
        %v4579 = vshll.u32 %v4495, 16
        %v4581 = vrot.slane %v4579, 5
        %v4582 = vsel %vm976, %v4577, %v4581
        %v4583 = vshrl.u32 %v4495, 16
        %v4585 = vrot.slane %v4583, 4
        %v4586 = vor.u32 %v4585, %v4581
        %v4587 = vrot.slane %v4586, 4
        %v4589 = vshll.u32 %v4496, 16
        %v4591 = vrot.slane %v4589, 5
        %v4592 = vsel %vm976, %v4587, %v4591
        %4593 = vrot.lane.b32.xlu0 %v4510, 126
        %v4594 = vpop.permute.xlu0 %4593
        %4595 = vrot.lane.b32.xlu0 %v4520, 126
        %v4596 = vpop.permute.xlu0 %4595
        %4597 = vrot.lane.b32.xlu0 %v4534, 126
        %v4598 = vpop.permute.xlu0 %4597
        %4599 = vrot.lane.b32.xlu0 %v4544, 126
        %v4600 = vpop.permute.xlu0 %4599
        %4601 = vrot.lane.b32.xlu0 %v4558, 126
        %v4602 = vpop.permute.xlu0 %4601
        %4603 = vrot.lane.b32.xlu0 %v4568, 126
        %v4604 = vpop.permute.xlu0 %4603
        %4605 = vrot.lane.b32.xlu0 %v4582, 126
        %v4606 = vpop.permute.xlu0 %4605
        %4607 = vrot.lane.b32.xlu0 %v4592, 126
        %v4608 = vpop.permute.xlu0 %4607
        %v4611 = vpack.i.b16 %v4598, %v4594
        %v4612 = vshrl.u32 %v4594, 16
        %v4613 = vshrl.u32 %v4598, 16
        %v4614 = vpack.i.b16 %v4613, %v4612
        %v4617 = vpack.i.b16 %v4606, %v4602
        %v4618 = vshrl.u32 %v4602, 16
        %v4619 = vshrl.u32 %v4606, 16
        %v4620 = vpack.i.b16 %v4619, %v4618
        %v4623 = vpack.i.b16 %v4600, %v4596
        %v4624 = vshrl.u32 %v4596, 16
        %v4625 = vshrl.u32 %v4600, 16
        %v4626 = vpack.i.b16 %v4625, %v4624
        %v4629 = vpack.i.b16 %v4608, %v4604
        %v4630 = vshrl.u32 %v4604, 16
        %v4631 = vshrl.u32 %v4608, 16
        %v4632 = vpack.i.b16 %v4631, %v4630
        %v4635 = vunpack.c.l.s4 1983009808
        %v4636 = vunpack.c.0.s8 %v4635
        %v4637 = vperm.slane %v4611, %v4636
        %v4640 = vunpack.c.l.s4 1983009808
        %v4641 = vunpack.c.0.s8 %v4640
        %v4642 = vperm.slane %v4617, %v4641
        %v4643 = vrot.slane %v4642, 4
        %v4644 = vsel %vm219, %v4643, %v4637
        %v4645 = vrot.slane %v4637, 4
        %v4646 = vsel %vm219, %v4642, %v4645
        %v4648 = vunpack.c.l.s4 1934713408
        %v4649 = vunpack.c.0.s8 %v4648
        %v4650 = vperm.slane %v4644, %v4649
        %v4652 = vunpack.c.l.s4 1934713408
        %v4653 = vunpack.c.0.s8 %v4652
        %v4654 = vperm.slane %v4646, %v4653
        %v4655 = vrot.slane %v4650, 4
        %v4656 = vsel %vm219, 0, %v4655
        %v4657 = vrot.slane %v4654, 4
        %v4658 = vsel %vm219, 0, %v4657
        %v4661 = vunpack.c.l.s4 1983009808
        %v4662 = vunpack.c.0.s8 %v4661
        %v4663 = vperm.slane %v4614, %v4662
        %v4666 = vunpack.c.l.s4 1983009808
        %v4667 = vunpack.c.0.s8 %v4666
        %v4668 = vperm.slane %v4620, %v4667
        %v4669 = vrot.slane %v4668, 4
        %v4670 = vsel %vm219, %v4669, %v4663
        %v4671 = vrot.slane %v4663, 4
        %v4672 = vsel %vm219, %v4668, %v4671
        %v4674 = vunpack.c.l.s4 1934713408
        %v4675 = vunpack.c.0.s8 %v4674
        %v4676 = vperm.slane %v4670, %v4675
        %v4678 = vunpack.c.l.s4 1934713408
        %v4679 = vunpack.c.0.s8 %v4678
        %v4680 = vperm.slane %v4672, %v4679
        %v4681 = vrot.slane %v4676, 4
        %v4682 = vsel %vm219, 0, %v4681
        %v4683 = vrot.slane %v4680, 4
        %v4684 = vsel %vm219, 0, %v4683
        %v4687 = vunpack.c.l.s4 1983009808
        %v4688 = vunpack.c.0.s8 %v4687
        %v4689 = vperm.slane %v4623, %v4688
        %v4692 = vunpack.c.l.s4 1983009808
        %v4693 = vunpack.c.0.s8 %v4692
        %v4694 = vperm.slane %v4629, %v4693
        %v4695 = vrot.slane %v4694, 4
        %v4696 = vsel %vm219, %v4695, %v4689
        %v4697 = vrot.slane %v4689, 4
        %v4698 = vsel %vm219, %v4694, %v4697
        %v4700 = vunpack.c.l.s4 1934713408
        %v4701 = vunpack.c.0.s8 %v4700
        %v4702 = vperm.slane %v4696, %v4701
        %v4704 = vunpack.c.l.s4 1934713408
        %v4705 = vunpack.c.0.s8 %v4704
        %v4706 = vperm.slane %v4698, %v4705
        %v4707 = vrot.slane %v4702, 4
        %v4708 = vsel %vm219, 0, %v4707
        %v4709 = vrot.slane %v4706, 4
        %v4710 = vsel %vm219, 0, %v4709
        %v4713 = vunpack.c.l.s4 1983009808
        %v4714 = vunpack.c.0.s8 %v4713
        %v4715 = vperm.slane %v4626, %v4714
        %v4718 = vunpack.c.l.s4 1983009808
        %v4719 = vunpack.c.0.s8 %v4718
        %v4720 = vperm.slane %v4632, %v4719
        %v4721 = vrot.slane %v4720, 4
        %v4722 = vsel %vm219, %v4721, %v4715
        %v4723 = vrot.slane %v4715, 4
        %v4724 = vsel %vm219, %v4720, %v4723
        %v4726 = vunpack.c.l.s4 1934713408
        %v4727 = vunpack.c.0.s8 %v4726
        %v4728 = vperm.slane %v4722, %v4727
        %v4730 = vunpack.c.l.s4 1934713408
        %v4731 = vunpack.c.0.s8 %v4730
        %v4732 = vperm.slane %v4724, %v4731
        %v4733 = vrot.slane %v4728, 4
        %v4734 = vsel %vm219, 0, %v4733
        %v4735 = vrot.slane %v4732, 4
        %v4736 = vsel %vm219, 0, %v4735
        %v4738 = vunpack.c.l.b16 %v4676
        %v4739 = vpack.c.b16 %v4738, %v4738
        %4740 = vrot.lane.b32.xlu0 %v4739, 16
        %v4741 = vpop.permute.xlu0 %4740
        %v4743 = vunpack.c.l.b16 %v4656
        %v4744 = vpack.c.b16 %v4743, %v4743
        %4745 = vrot.lane.b32.xlu0 %v4744, 32
        %v4746 = vpop.permute.xlu0 %4745
        %v4748 = vunpack.c.l.b16 %v4682
        %v4749 = vpack.c.b16 %v4748, %v4748
        %4750 = vrot.lane.b32.xlu0 %v4749, 48
        %v4751 = vpop.permute.xlu0 %4750
        %v4753 = vunpack.c.l.b16 %v4654
        %v4754 = vpack.c.b16 %v4753, %v4753
        %4755 = vrot.lane.b32.xlu0 %v4754, 64
        %v4756 = vpop.permute.xlu0 %4755
        %v4758 = vunpack.c.l.b16 %v4680
        %v4759 = vpack.c.b16 %v4758, %v4758
        %4760 = vrot.lane.b32.xlu0 %v4759, 80
        %v4761 = vpop.permute.xlu0 %4760
        %v4763 = vunpack.c.l.b16 %v4658
        %v4764 = vpack.c.b16 %v4763, %v4763
        %4765 = vrot.lane.b32.xlu0 %v4764, 96
        %v4766 = vpop.permute.xlu0 %4765
        %v4768 = vunpack.c.l.b16 %v4684
        %v4769 = vpack.c.b16 %v4768, %v4768
        %4770 = vrot.lane.b32.xlu0 %v4769, 112
        %v4771 = vpop.permute.xlu0 %4770
        %v4773 = vunpack.c.l.b16 %v4728
        %v4774 = vpack.c.b16 %v4773, %v4773
        %4775 = vrot.lane.b32.xlu0 %v4774, 16
        %v4776 = vpop.permute.xlu0 %4775
        %v4778 = vunpack.c.l.b16 %v4708
        %v4779 = vpack.c.b16 %v4778, %v4778
        %4780 = vrot.lane.b32.xlu0 %v4779, 32
        %v4781 = vpop.permute.xlu0 %4780
        %v4783 = vunpack.c.l.b16 %v4734
        %v4784 = vpack.c.b16 %v4783, %v4783
        %4785 = vrot.lane.b32.xlu0 %v4784, 48
        %v4786 = vpop.permute.xlu0 %4785
        %v4788 = vunpack.c.l.b16 %v4706
        %v4789 = vpack.c.b16 %v4788, %v4788
        %4790 = vrot.lane.b32.xlu0 %v4789, 64
        %v4791 = vpop.permute.xlu0 %4790
        %v4793 = vunpack.c.l.b16 %v4732
        %v4794 = vpack.c.b16 %v4793, %v4793
        %4795 = vrot.lane.b32.xlu0 %v4794, 80
        %v4796 = vpop.permute.xlu0 %4795
        %v4798 = vunpack.c.l.b16 %v4710
        %v4799 = vpack.c.b16 %v4798, %v4798
        %4800 = vrot.lane.b32.xlu0 %v4799, 96
        %v4801 = vpop.permute.xlu0 %4800
        %v4803 = vunpack.c.l.b16 %v4736
        %v4804 = vpack.c.b16 %v4803, %v4803
        %4805 = vrot.lane.b32.xlu0 %v4804, 112
        %v4806 = vpop.permute.xlu0 %4805
        %v4809 = vsel %vm383, %v4650, %v4741
        %v4811 = vsel %vm387, %v4809, %v4746
        %v4813 = vsel %vm390, %v4811, %v4751
        %v4815 = vsel %vm393, %v4813, %v4756
        %v4817 = vsel %vm396, %v4815, %v4761
        %v4819 = vsel %vm399, %v4817, %v4766
        %v4821 = vsel %vm402, %v4819, %v4771
        %v4824 = vsel %vm383, %v4702, %v4776
        %v4826 = vsel %vm387, %v4824, %v4781
        %v4828 = vsel %vm390, %v4826, %v4786
        %v4830 = vsel %vm393, %v4828, %v4791
        %v4832 = vsel %vm396, %v4830, %v4796
        %v4834 = vsel %vm399, %v4832, %v4801
        %v4836 = vsel %vm402, %v4834, %v4806
        %v4839 = vunpack.c.l.b16 %v4821
        %v4840 = vunpack.c.l.b16 %v4836
        %v4841 = vpack.c.b16 %v4840, %v4839
        %v4842 = vrot.slane %v4841, 6
        %4844 = vst [vmem:[#allocation2 + $0x10] sm:$0xcc] %v4842
        %v4845 = vld [vmem:[%s3003] sm:$0xe]
        %v4846 = vld [vmem:[%s3003 + $0x4] sm:$0xf]
        %v4847 = vld [vmem:[%s3003 + $0x8] sm:$0x1]
        %v4848 = vld [vmem:[%s3003 + $0xc] sm:$0xe]
        %v4849 = vld [vmem:[%s3003 + $0x10] sm:$0xf]
        %v4850 = vld [vmem:[%s3003 + $0x14] sm:$0x1]
        %v4851 = vld [vmem:[%s3003 + $0x18] sm:$0xe]
        %v4852 = vld [vmem:[%s3003 + $0x1c] sm:$0xf]
        %v4853 = vld [vmem:[%s3003 + $0x20] sm:$0x1]
        %v4854 = vld [vmem:[%s3003 + $0x24] sm:$0xe]
        %v4855 = vld [vmem:[%s3003 + $0x28] sm:$0xf]
        %v4856 = vld [vmem:[%s3003 + $0x2c] sm:$0x1]
        %v4869 = vrot.slane %v4845, 5
        %v4870 = vrot.slane %v4869, 4
        %v4871 = vrot.slane %v4846, 5
        %v4872 = vsel %vm2054, %v4870, %v4871
        %v4873 = vrot.slane %v4871, 4
        %v4874 = vrot.slane %v4847, 5
        %v4875 = vsel %vm2054, %v4873, %v4874
        %v4876 = vrot.slane %v4848, 5
        %v4877 = vrot.slane %v4876, 4
        %v4878 = vrot.slane %v4849, 5
        %v4879 = vsel %vm2054, %v4877, %v4878
        %v4880 = vrot.slane %v4878, 4
        %v4881 = vrot.slane %v4850, 5
        %v4882 = vsel %vm2054, %v4880, %v4881
        %v4883 = vrot.slane %v4851, 5
        %v4884 = vrot.slane %v4883, 4
        %v4885 = vrot.slane %v4852, 5
        %v4886 = vsel %vm2054, %v4884, %v4885
        %v4887 = vrot.slane %v4885, 4
        %v4888 = vrot.slane %v4853, 5
        %v4889 = vsel %vm2054, %v4887, %v4888
        %v4890 = vrot.slane %v4854, 5
        %v4891 = vrot.slane %v4890, 4
        %v4892 = vrot.slane %v4855, 5
        %v4893 = vsel %vm2054, %v4891, %v4892
        %v4894 = vrot.slane %v4892, 4
        %v4895 = vrot.slane %v4856, 5
        %v4896 = vsel %vm2054, %v4894, %v4895
        %v4899 = vpack.i.b16 %v4879, %v4872
        %v4900 = vshrl.u32 %v4872, 16
        %v4901 = vshrl.u32 %v4879, 16
        %v4902 = vpack.i.b16 %v4901, %v4900
        %v4905 = vpack.i.b16 %v4893, %v4886
        %v4906 = vshrl.u32 %v4886, 16
        %v4907 = vshrl.u32 %v4893, 16
        %v4908 = vpack.i.b16 %v4907, %v4906
        %v4911 = vpack.i.b16 %v4882, %v4875
        %v4912 = vshrl.u32 %v4875, 16
        %v4913 = vshrl.u32 %v4882, 16
        %v4914 = vpack.i.b16 %v4913, %v4912
        %v4917 = vpack.i.b16 %v4896, %v4889
        %v4918 = vshrl.u32 %v4889, 16
        %v4919 = vshrl.u32 %v4896, 16
        %v4920 = vpack.i.b16 %v4919, %v4918
        %v4923 = vunpack.c.l.s4 1983009808
        %v4924 = vunpack.c.0.s8 %v4923
        %v4925 = vperm.slane %v4899, %v4924
        %v4928 = vunpack.c.l.s4 1983009808
        %v4929 = vunpack.c.0.s8 %v4928
        %v4930 = vperm.slane %v4905, %v4929
        %v4931 = vrot.slane %v4930, 4
        %v4932 = vsel %vm219, %v4931, %v4925
        %v4933 = vrot.slane %v4925, 4
        %v4934 = vsel %vm219, %v4930, %v4933
        %v4936 = vunpack.c.l.s4 1934713408
        %v4937 = vunpack.c.0.s8 %v4936
        %v4938 = vperm.slane %v4932, %v4937
        %v4940 = vunpack.c.l.s4 1934713408
        %v4941 = vunpack.c.0.s8 %v4940
        %v4942 = vperm.slane %v4934, %v4941
        %v4943 = vrot.slane %v4938, 4
        %v4944 = vsel %vm219, 0, %v4943
        %v4945 = vrot.slane %v4942, 4
        %v4946 = vsel %vm219, 0, %v4945
        %v4949 = vunpack.c.l.s4 1983009808
        %v4950 = vunpack.c.0.s8 %v4949
        %v4951 = vperm.slane %v4902, %v4950
        %v4954 = vunpack.c.l.s4 1983009808
        %v4955 = vunpack.c.0.s8 %v4954
        %v4956 = vperm.slane %v4908, %v4955
        %v4957 = vrot.slane %v4956, 4
        %v4958 = vsel %vm219, %v4957, %v4951
        %v4959 = vrot.slane %v4951, 4
        %v4960 = vsel %vm219, %v4956, %v4959
        %v4962 = vunpack.c.l.s4 1934713408
        %v4963 = vunpack.c.0.s8 %v4962
        %v4964 = vperm.slane %v4958, %v4963
        %v4966 = vunpack.c.l.s4 1934713408
        %v4967 = vunpack.c.0.s8 %v4966
        %v4968 = vperm.slane %v4960, %v4967
        %v4969 = vrot.slane %v4964, 4
        %v4970 = vsel %vm219, 0, %v4969
        %v4971 = vrot.slane %v4968, 4
        %v4972 = vsel %vm219, 0, %v4971
        %v4975 = vunpack.c.l.s4 1983009808
        %v4976 = vunpack.c.0.s8 %v4975
        %v4977 = vperm.slane %v4911, %v4976
        %v4980 = vunpack.c.l.s4 1983009808
        %v4981 = vunpack.c.0.s8 %v4980
        %v4982 = vperm.slane %v4917, %v4981
        %v4983 = vrot.slane %v4982, 4
        %v4984 = vsel %vm219, %v4983, %v4977
        %v4985 = vrot.slane %v4977, 4
        %v4986 = vsel %vm219, %v4982, %v4985
        %v4988 = vunpack.c.l.s4 1934713408
        %v4989 = vunpack.c.0.s8 %v4988
        %v4990 = vperm.slane %v4984, %v4989
        %v4992 = vunpack.c.l.s4 1934713408
        %v4993 = vunpack.c.0.s8 %v4992
        %v4994 = vperm.slane %v4986, %v4993
        %v4995 = vrot.slane %v4990, 4
        %v4996 = vsel %vm219, 0, %v4995
        %v4997 = vrot.slane %v4994, 4
        %v4998 = vsel %vm219, 0, %v4997
        %v5001 = vunpack.c.l.s4 1983009808
        %v5002 = vunpack.c.0.s8 %v5001
        %v5003 = vperm.slane %v4914, %v5002
        %v5006 = vunpack.c.l.s4 1983009808
        %v5007 = vunpack.c.0.s8 %v5006
        %v5008 = vperm.slane %v4920, %v5007
        %v5009 = vrot.slane %v5008, 4
        %v5010 = vsel %vm219, %v5009, %v5003
        %v5011 = vrot.slane %v5003, 4
        %v5012 = vsel %vm219, %v5008, %v5011
        %v5014 = vunpack.c.l.s4 1934713408
        %v5015 = vunpack.c.0.s8 %v5014
        %v5016 = vperm.slane %v5010, %v5015
        %v5018 = vunpack.c.l.s4 1934713408
        %v5019 = vunpack.c.0.s8 %v5018
        %v5020 = vperm.slane %v5012, %v5019
        %v5021 = vrot.slane %v5016, 4
        %v5022 = vsel %vm219, 0, %v5021
        %v5023 = vrot.slane %v5020, 4
        %v5024 = vsel %vm219, 0, %v5023
        %v5026 = vunpack.c.l.b16 %v4964
        %v5027 = vpack.c.b16 %v5026, %v5026
        %5028 = vrot.lane.b32.xlu0 %v5027, 16
        %v5029 = vpop.permute.xlu0 %5028
        %v5031 = vunpack.c.l.b16 %v4944
        %v5032 = vpack.c.b16 %v5031, %v5031
        %5033 = vrot.lane.b32.xlu0 %v5032, 32
        %v5034 = vpop.permute.xlu0 %5033
        %v5036 = vunpack.c.l.b16 %v4970
        %v5037 = vpack.c.b16 %v5036, %v5036
        %5038 = vrot.lane.b32.xlu0 %v5037, 48
        %v5039 = vpop.permute.xlu0 %5038
        %v5041 = vunpack.c.l.b16 %v4942
        %v5042 = vpack.c.b16 %v5041, %v5041
        %5043 = vrot.lane.b32.xlu0 %v5042, 64
        %v5044 = vpop.permute.xlu0 %5043
        %v5046 = vunpack.c.l.b16 %v4968
        %v5047 = vpack.c.b16 %v5046, %v5046
        %5048 = vrot.lane.b32.xlu0 %v5047, 80
        %v5049 = vpop.permute.xlu0 %5048
        %v5051 = vunpack.c.l.b16 %v4946
        %v5052 = vpack.c.b16 %v5051, %v5051
        %5053 = vrot.lane.b32.xlu0 %v5052, 96
        %v5054 = vpop.permute.xlu0 %5053
        %v5056 = vunpack.c.l.b16 %v4972
        %v5057 = vpack.c.b16 %v5056, %v5056
        %5058 = vrot.lane.b32.xlu0 %v5057, 112
        %v5059 = vpop.permute.xlu0 %5058
        %v5061 = vunpack.c.l.b16 %v5016
        %v5062 = vpack.c.b16 %v5061, %v5061
        %5063 = vrot.lane.b32.xlu0 %v5062, 16
        %v5064 = vpop.permute.xlu0 %5063
        %v5066 = vunpack.c.l.b16 %v4996
        %v5067 = vpack.c.b16 %v5066, %v5066
        %5068 = vrot.lane.b32.xlu0 %v5067, 32
        %v5069 = vpop.permute.xlu0 %5068
        %v5071 = vunpack.c.l.b16 %v5022
        %v5072 = vpack.c.b16 %v5071, %v5071
        %5073 = vrot.lane.b32.xlu0 %v5072, 48
        %v5074 = vpop.permute.xlu0 %5073
        %v5076 = vunpack.c.l.b16 %v4994
        %v5077 = vpack.c.b16 %v5076, %v5076
        %5078 = vrot.lane.b32.xlu0 %v5077, 64
        %v5079 = vpop.permute.xlu0 %5078
        %v5081 = vunpack.c.l.b16 %v5020
        %v5082 = vpack.c.b16 %v5081, %v5081
        %5083 = vrot.lane.b32.xlu0 %v5082, 80
        %v5084 = vpop.permute.xlu0 %5083
        %v5086 = vunpack.c.l.b16 %v4998
        %v5087 = vpack.c.b16 %v5086, %v5086
        %5088 = vrot.lane.b32.xlu0 %v5087, 96
        %v5089 = vpop.permute.xlu0 %5088
        %v5091 = vunpack.c.l.b16 %v5024
        %v5092 = vpack.c.b16 %v5091, %v5091
        %5093 = vrot.lane.b32.xlu0 %v5092, 112
        %v5094 = vpop.permute.xlu0 %5093
        %v5097 = vsel %vm383, %v4938, %v5029
        %v5099 = vsel %vm387, %v5097, %v5034
        %v5101 = vsel %vm390, %v5099, %v5039
        %v5103 = vsel %vm393, %v5101, %v5044
        %v5105 = vsel %vm396, %v5103, %v5049
        %v5107 = vsel %vm399, %v5105, %v5054
        %v5109 = vsel %vm402, %v5107, %v5059
        %v5112 = vsel %vm383, %v4990, %v5064
        %v5114 = vsel %vm387, %v5112, %v5069
        %v5116 = vsel %vm390, %v5114, %v5074
        %v5118 = vsel %vm393, %v5116, %v5079
        %v5120 = vsel %vm396, %v5118, %v5084
        %v5122 = vsel %vm399, %v5120, %v5089
        %v5124 = vsel %vm402, %v5122, %v5094
        %v5127 = vunpack.c.l.b16 %v5109
        %v5128 = vunpack.c.l.b16 %v5124
        %v5129 = vpack.c.b16 %v5128, %v5127
        %5131 = vst [vmem:[#allocation2 + $0x18] sm:$0x33] %v5129
        %v5132 = vld [vmem:[%s3003] sm:$0xe]
        %v5133 = vld [vmem:[%s3003 + $0x4] sm:$0xf]
        %v5134 = vld [vmem:[%s3003 + $0x8] sm:$0x1]
        %v5135 = vld [vmem:[%s3003 + $0xc] sm:$0xe]
        %v5136 = vld [vmem:[%s3003 + $0x10] sm:$0xf]
        %v5137 = vld [vmem:[%s3003 + $0x14] sm:$0x1]
        %v5138 = vld [vmem:[%s3003 + $0x18] sm:$0xe]
        %v5139 = vld [vmem:[%s3003 + $0x1c] sm:$0xf]
        %v5140 = vld [vmem:[%s3003 + $0x20] sm:$0x1]
        %v5141 = vld [vmem:[%s3003 + $0x24] sm:$0xe]
        %v5142 = vld [vmem:[%s3003 + $0x28] sm:$0xf]
        %v5143 = vld [vmem:[%s3003 + $0x2c] sm:$0x1]
        %v5156 = vrot.slane %v5132, 5
        %v5157 = vrot.slane %v5156, 4
        %v5158 = vrot.slane %v5133, 5
        %v5159 = vsel %vm2054, %v5157, %v5158
        %v5160 = vrot.slane %v5158, 4
        %v5161 = vrot.slane %v5134, 5
        %v5162 = vsel %vm2054, %v5160, %v5161
        %v5163 = vrot.slane %v5135, 5
        %v5164 = vrot.slane %v5163, 4
        %v5165 = vrot.slane %v5136, 5
        %v5166 = vsel %vm2054, %v5164, %v5165
        %v5167 = vrot.slane %v5165, 4
        %v5168 = vrot.slane %v5137, 5
        %v5169 = vsel %vm2054, %v5167, %v5168
        %v5170 = vrot.slane %v5138, 5
        %v5171 = vrot.slane %v5170, 4
        %v5172 = vrot.slane %v5139, 5
        %v5173 = vsel %vm2054, %v5171, %v5172
        %v5174 = vrot.slane %v5172, 4
        %v5175 = vrot.slane %v5140, 5
        %v5176 = vsel %vm2054, %v5174, %v5175
        %v5177 = vrot.slane %v5141, 5
        %v5178 = vrot.slane %v5177, 4
        %v5179 = vrot.slane %v5142, 5
        %v5180 = vsel %vm2054, %v5178, %v5179
        %v5181 = vrot.slane %v5179, 4
        %v5182 = vrot.slane %v5143, 5
        %v5183 = vsel %vm2054, %v5181, %v5182
        %5184 = vrot.lane.b32.xlu0 %v5159, 127
        %v5185 = vpop.permute.xlu0 %5184
        %5186 = vrot.lane.b32.xlu0 %v5162, 127
        %v5187 = vpop.permute.xlu0 %5186
        %5188 = vrot.lane.b32.xlu0 %v5166, 127
        %v5189 = vpop.permute.xlu0 %5188
        %5190 = vrot.lane.b32.xlu0 %v5169, 127
        %v5191 = vpop.permute.xlu0 %5190
        %5192 = vrot.lane.b32.xlu0 %v5173, 127
        %v5193 = vpop.permute.xlu0 %5192
        %5194 = vrot.lane.b32.xlu0 %v5176, 127
        %v5195 = vpop.permute.xlu0 %5194
        %5196 = vrot.lane.b32.xlu0 %v5180, 127
        %v5197 = vpop.permute.xlu0 %5196
        %5198 = vrot.lane.b32.xlu0 %v5183, 127
        %v5199 = vpop.permute.xlu0 %5198
        %v5202 = vpack.i.b16 %v5189, %v5185
        %v5203 = vshrl.u32 %v5185, 16
        %v5204 = vshrl.u32 %v5189, 16
        %v5205 = vpack.i.b16 %v5204, %v5203
        %v5208 = vpack.i.b16 %v5197, %v5193
        %v5209 = vshrl.u32 %v5193, 16
        %v5210 = vshrl.u32 %v5197, 16
        %v5211 = vpack.i.b16 %v5210, %v5209
        %v5214 = vpack.i.b16 %v5191, %v5187
        %v5215 = vshrl.u32 %v5187, 16
        %v5216 = vshrl.u32 %v5191, 16
        %v5217 = vpack.i.b16 %v5216, %v5215
        %v5220 = vpack.i.b16 %v5199, %v5195
        %v5221 = vshrl.u32 %v5195, 16
        %v5222 = vshrl.u32 %v5199, 16
        %v5223 = vpack.i.b16 %v5222, %v5221
        %v5226 = vunpack.c.l.s4 1983009808
        %v5227 = vunpack.c.0.s8 %v5226
        %v5228 = vperm.slane %v5202, %v5227
        %v5231 = vunpack.c.l.s4 1983009808
        %v5232 = vunpack.c.0.s8 %v5231
        %v5233 = vperm.slane %v5208, %v5232
        %v5234 = vrot.slane %v5233, 4
        %v5235 = vsel %vm219, %v5234, %v5228
        %v5236 = vrot.slane %v5228, 4
        %v5237 = vsel %vm219, %v5233, %v5236
        %v5239 = vunpack.c.l.s4 1934713408
        %v5240 = vunpack.c.0.s8 %v5239
        %v5241 = vperm.slane %v5235, %v5240
        %v5243 = vunpack.c.l.s4 1934713408
        %v5244 = vunpack.c.0.s8 %v5243
        %v5245 = vperm.slane %v5237, %v5244
        %v5246 = vrot.slane %v5241, 4
        %v5247 = vsel %vm219, 0, %v5246
        %v5248 = vrot.slane %v5245, 4
        %v5249 = vsel %vm219, 0, %v5248
        %v5252 = vunpack.c.l.s4 1983009808
        %v5253 = vunpack.c.0.s8 %v5252
        %v5254 = vperm.slane %v5205, %v5253
        %v5257 = vunpack.c.l.s4 1983009808
        %v5258 = vunpack.c.0.s8 %v5257
        %v5259 = vperm.slane %v5211, %v5258
        %v5260 = vrot.slane %v5259, 4
        %v5261 = vsel %vm219, %v5260, %v5254
        %v5262 = vrot.slane %v5254, 4
        %v5263 = vsel %vm219, %v5259, %v5262
        %v5265 = vunpack.c.l.s4 1934713408
        %v5266 = vunpack.c.0.s8 %v5265
        %v5267 = vperm.slane %v5261, %v5266
        %v5269 = vunpack.c.l.s4 1934713408
        %v5270 = vunpack.c.0.s8 %v5269
        %v5271 = vperm.slane %v5263, %v5270
        %v5272 = vrot.slane %v5267, 4
        %v5273 = vsel %vm219, 0, %v5272
        %v5274 = vrot.slane %v5271, 4
        %v5275 = vsel %vm219, 0, %v5274
        %v5278 = vunpack.c.l.s4 1983009808
        %v5279 = vunpack.c.0.s8 %v5278
        %v5280 = vperm.slane %v5214, %v5279
        %v5283 = vunpack.c.l.s4 1983009808
        %v5284 = vunpack.c.0.s8 %v5283
        %v5285 = vperm.slane %v5220, %v5284
        %v5286 = vrot.slane %v5285, 4
        %v5287 = vsel %vm219, %v5286, %v5280
        %v5288 = vrot.slane %v5280, 4
        %v5289 = vsel %vm219, %v5285, %v5288
        %v5291 = vunpack.c.l.s4 1934713408
        %v5292 = vunpack.c.0.s8 %v5291
        %v5293 = vperm.slane %v5287, %v5292
        %v5295 = vunpack.c.l.s4 1934713408
        %v5296 = vunpack.c.0.s8 %v5295
        %v5297 = vperm.slane %v5289, %v5296
        %v5298 = vrot.slane %v5293, 4
        %v5299 = vsel %vm219, 0, %v5298
        %v5300 = vrot.slane %v5297, 4
        %v5301 = vsel %vm219, 0, %v5300
        %v5304 = vunpack.c.l.s4 1983009808
        %v5305 = vunpack.c.0.s8 %v5304
        %v5306 = vperm.slane %v5217, %v5305
        %v5309 = vunpack.c.l.s4 1983009808
        %v5310 = vunpack.c.0.s8 %v5309
        %v5311 = vperm.slane %v5223, %v5310
        %v5312 = vrot.slane %v5311, 4
        %v5313 = vsel %vm219, %v5312, %v5306
        %v5314 = vrot.slane %v5306, 4
        %v5315 = vsel %vm219, %v5311, %v5314
        %v5317 = vunpack.c.l.s4 1934713408
        %v5318 = vunpack.c.0.s8 %v5317
        %v5319 = vperm.slane %v5313, %v5318
        %v5321 = vunpack.c.l.s4 1934713408
        %v5322 = vunpack.c.0.s8 %v5321
        %v5323 = vperm.slane %v5315, %v5322
        %v5324 = vrot.slane %v5319, 4
        %v5325 = vsel %vm219, 0, %v5324
        %v5326 = vrot.slane %v5323, 4
        %v5327 = vsel %vm219, 0, %v5326
        %v5329 = vunpack.c.l.b16 %v5267
        %v5330 = vpack.c.b16 %v5329, %v5329
        %5331 = vrot.lane.b32.xlu0 %v5330, 16
        %v5332 = vpop.permute.xlu0 %5331
        %v5334 = vunpack.c.l.b16 %v5247
        %v5335 = vpack.c.b16 %v5334, %v5334
        %5336 = vrot.lane.b32.xlu0 %v5335, 32
        %v5337 = vpop.permute.xlu0 %5336
        %v5339 = vunpack.c.l.b16 %v5273
        %v5340 = vpack.c.b16 %v5339, %v5339
        %5341 = vrot.lane.b32.xlu0 %v5340, 48
        %v5342 = vpop.permute.xlu0 %5341
        %v5344 = vunpack.c.l.b16 %v5245
        %v5345 = vpack.c.b16 %v5344, %v5344
        %5346 = vrot.lane.b32.xlu0 %v5345, 64
        %v5347 = vpop.permute.xlu0 %5346
        %v5349 = vunpack.c.l.b16 %v5271
        %v5350 = vpack.c.b16 %v5349, %v5349
        %5351 = vrot.lane.b32.xlu0 %v5350, 80
        %v5352 = vpop.permute.xlu0 %5351
        %v5354 = vunpack.c.l.b16 %v5249
        %v5355 = vpack.c.b16 %v5354, %v5354
        %5356 = vrot.lane.b32.xlu0 %v5355, 96
        %v5357 = vpop.permute.xlu0 %5356
        %v5359 = vunpack.c.l.b16 %v5275
        %v5360 = vpack.c.b16 %v5359, %v5359
        %5361 = vrot.lane.b32.xlu0 %v5360, 112
        %v5362 = vpop.permute.xlu0 %5361
        %v5364 = vunpack.c.l.b16 %v5319
        %v5365 = vpack.c.b16 %v5364, %v5364
        %5366 = vrot.lane.b32.xlu0 %v5365, 16
        %v5367 = vpop.permute.xlu0 %5366
        %v5369 = vunpack.c.l.b16 %v5299
        %v5370 = vpack.c.b16 %v5369, %v5369
        %5371 = vrot.lane.b32.xlu0 %v5370, 32
        %v5372 = vpop.permute.xlu0 %5371
        %v5374 = vunpack.c.l.b16 %v5325
        %v5375 = vpack.c.b16 %v5374, %v5374
        %5376 = vrot.lane.b32.xlu0 %v5375, 48
        %v5377 = vpop.permute.xlu0 %5376
        %v5379 = vunpack.c.l.b16 %v5297
        %v5380 = vpack.c.b16 %v5379, %v5379
        %5381 = vrot.lane.b32.xlu0 %v5380, 64
        %v5382 = vpop.permute.xlu0 %5381
        %v5384 = vunpack.c.l.b16 %v5323
        %v5385 = vpack.c.b16 %v5384, %v5384
        %5386 = vrot.lane.b32.xlu0 %v5385, 80
        %v5387 = vpop.permute.xlu0 %5386
        %v5389 = vunpack.c.l.b16 %v5301
        %v5390 = vpack.c.b16 %v5389, %v5389
        %5391 = vrot.lane.b32.xlu0 %v5390, 96
        %v5392 = vpop.permute.xlu0 %5391
        %v5394 = vunpack.c.l.b16 %v5327
        %v5395 = vpack.c.b16 %v5394, %v5394
        %5396 = vrot.lane.b32.xlu0 %v5395, 112
        %v5397 = vpop.permute.xlu0 %5396
        %v5400 = vsel %vm383, %v5241, %v5332
        %v5402 = vsel %vm387, %v5400, %v5337
        %v5404 = vsel %vm390, %v5402, %v5342
        %v5406 = vsel %vm393, %v5404, %v5347
        %v5408 = vsel %vm396, %v5406, %v5352
        %v5410 = vsel %vm399, %v5408, %v5357
        %v5412 = vsel %vm402, %v5410, %v5362
        %v5415 = vsel %vm383, %v5293, %v5367
        %v5417 = vsel %vm387, %v5415, %v5372
        %v5419 = vsel %vm390, %v5417, %v5377
        %v5421 = vsel %vm393, %v5419, %v5382
        %v5423 = vsel %vm396, %v5421, %v5387
        %v5425 = vsel %vm399, %v5423, %v5392
        %v5427 = vsel %vm402, %v5425, %v5397
        %v5430 = vunpack.c.l.b16 %v5412
        %v5431 = vunpack.c.l.b16 %v5427
        %v5432 = vpack.c.b16 %v5431, %v5430
        %v5433 = vrot.slane %v5432, 6
        %5435 = vst [vmem:[#allocation2 + $0x18] sm:$0xcc] %v5433
        %v5436 = vld [vmem:[%s3003] sm:$0xe]
        %v5437 = vld [vmem:[%s3003 + $0x4] sm:$0xf]
        %v5438 = vld [vmem:[%s3003 + $0x8] sm:$0x1]
        %v5439 = vld [vmem:[%s3003 + $0xc] sm:$0xe]
        %v5440 = vld [vmem:[%s3003 + $0x10] sm:$0xf]
        %v5441 = vld [vmem:[%s3003 + $0x14] sm:$0x1]
        %v5442 = vld [vmem:[%s3003 + $0x18] sm:$0xe]
        %v5443 = vld [vmem:[%s3003 + $0x1c] sm:$0xf]
        %v5444 = vld [vmem:[%s3003 + $0x20] sm:$0x1]
        %v5445 = vld [vmem:[%s3003 + $0x24] sm:$0xe]
        %v5446 = vld [vmem:[%s3003 + $0x28] sm:$0xf]
        %v5447 = vld [vmem:[%s3003 + $0x2c] sm:$0x1]
        %v5460 = vrot.slane %v5436, 5
        %v5461 = vrot.slane %v5460, 4
        %v5462 = vrot.slane %v5437, 5
        %v5463 = vsel %vm2054, %v5461, %v5462
        %v5464 = vrot.slane %v5462, 4
        %v5465 = vrot.slane %v5438, 5
        %v5466 = vsel %vm2054, %v5464, %v5465
        %v5467 = vrot.slane %v5439, 5
        %v5468 = vrot.slane %v5467, 4
        %v5469 = vrot.slane %v5440, 5
        %v5470 = vsel %vm2054, %v5468, %v5469
        %v5471 = vrot.slane %v5469, 4
        %v5472 = vrot.slane %v5441, 5
        %v5473 = vsel %vm2054, %v5471, %v5472
        %v5474 = vrot.slane %v5442, 5
        %v5475 = vrot.slane %v5474, 4
        %v5476 = vrot.slane %v5443, 5
        %v5477 = vsel %vm2054, %v5475, %v5476
        %v5478 = vrot.slane %v5476, 4
        %v5479 = vrot.slane %v5444, 5
        %v5480 = vsel %vm2054, %v5478, %v5479
        %v5481 = vrot.slane %v5445, 5
        %v5482 = vrot.slane %v5481, 4
        %v5483 = vrot.slane %v5446, 5
        %v5484 = vsel %vm2054, %v5482, %v5483
        %v5485 = vrot.slane %v5483, 4
        %v5486 = vrot.slane %v5447, 5
        %v5487 = vsel %vm2054, %v5485, %v5486
        %5488 = vrot.lane.b32.xlu0 %v5463, 126
        %v5489 = vpop.permute.xlu0 %5488
        %5490 = vrot.lane.b32.xlu0 %v5466, 126
        %v5491 = vpop.permute.xlu0 %5490
        %5492 = vrot.lane.b32.xlu0 %v5470, 126
        %v5493 = vpop.permute.xlu0 %5492
        %5494 = vrot.lane.b32.xlu0 %v5473, 126
        %v5495 = vpop.permute.xlu0 %5494
        %5496 = vrot.lane.b32.xlu0 %v5477, 126
        %v5497 = vpop.permute.xlu0 %5496
        %5498 = vrot.lane.b32.xlu0 %v5480, 126
        %v5499 = vpop.permute.xlu0 %5498
        %5500 = vrot.lane.b32.xlu0 %v5484, 126
        %v5501 = vpop.permute.xlu0 %5500
        %5502 = vrot.lane.b32.xlu0 %v5487, 126
        %v5503 = vpop.permute.xlu0 %5502
        %v5506 = vpack.i.b16 %v5493, %v5489
        %v5507 = vshrl.u32 %v5489, 16
        %v5508 = vshrl.u32 %v5493, 16
        %v5509 = vpack.i.b16 %v5508, %v5507
        %v5512 = vpack.i.b16 %v5501, %v5497
        %v5513 = vshrl.u32 %v5497, 16
        %v5514 = vshrl.u32 %v5501, 16
        %v5515 = vpack.i.b16 %v5514, %v5513
        %v5518 = vpack.i.b16 %v5495, %v5491
        %v5519 = vshrl.u32 %v5491, 16
        %v5520 = vshrl.u32 %v5495, 16
        %v5521 = vpack.i.b16 %v5520, %v5519
        %v5524 = vpack.i.b16 %v5503, %v5499
        %v5525 = vshrl.u32 %v5499, 16
        %v5526 = vshrl.u32 %v5503, 16
        %v5527 = vpack.i.b16 %v5526, %v5525
        %v5530 = vunpack.c.l.s4 1983009808
        %v5531 = vunpack.c.0.s8 %v5530
        %v5532 = vperm.slane %v5506, %v5531
        %v5535 = vunpack.c.l.s4 1983009808
        %v5536 = vunpack.c.0.s8 %v5535
        %v5537 = vperm.slane %v5512, %v5536
        %v5538 = vrot.slane %v5537, 4
        %v5539 = vsel %vm219, %v5538, %v5532
        %v5540 = vrot.slane %v5532, 4
        %v5541 = vsel %vm219, %v5537, %v5540
        %v5543 = vunpack.c.l.s4 1934713408
        %v5544 = vunpack.c.0.s8 %v5543
        %v5545 = vperm.slane %v5539, %v5544
        %v5547 = vunpack.c.l.s4 1934713408
        %v5548 = vunpack.c.0.s8 %v5547
        %v5549 = vperm.slane %v5541, %v5548
        %v5550 = vrot.slane %v5545, 4
        %v5551 = vsel %vm219, 0, %v5550
        %v5552 = vrot.slane %v5549, 4
        %v5553 = vsel %vm219, 0, %v5552
        %v5556 = vunpack.c.l.s4 1983009808
        %v5557 = vunpack.c.0.s8 %v5556
        %v5558 = vperm.slane %v5509, %v5557
        %v5561 = vunpack.c.l.s4 1983009808
        %v5562 = vunpack.c.0.s8 %v5561
        %v5563 = vperm.slane %v5515, %v5562
        %v5564 = vrot.slane %v5563, 4
        %v5565 = vsel %vm219, %v5564, %v5558
        %v5566 = vrot.slane %v5558, 4
        %v5567 = vsel %vm219, %v5563, %v5566
        %v5569 = vunpack.c.l.s4 1934713408
        %v5570 = vunpack.c.0.s8 %v5569
        %v5571 = vperm.slane %v5565, %v5570
        %v5573 = vunpack.c.l.s4 1934713408
        %v5574 = vunpack.c.0.s8 %v5573
        %v5575 = vperm.slane %v5567, %v5574
        %v5576 = vrot.slane %v5571, 4
        %v5577 = vsel %vm219, 0, %v5576
        %v5578 = vrot.slane %v5575, 4
        %v5579 = vsel %vm219, 0, %v5578
        %v5582 = vunpack.c.l.s4 1983009808
        %v5583 = vunpack.c.0.s8 %v5582
        %v5584 = vperm.slane %v5518, %v5583
        %v5587 = vunpack.c.l.s4 1983009808
        %v5588 = vunpack.c.0.s8 %v5587
        %v5589 = vperm.slane %v5524, %v5588
        %v5590 = vrot.slane %v5589, 4
        %v5591 = vsel %vm219, %v5590, %v5584
        %v5592 = vrot.slane %v5584, 4
        %v5593 = vsel %vm219, %v5589, %v5592
        %v5595 = vunpack.c.l.s4 1934713408
        %v5596 = vunpack.c.0.s8 %v5595
        %v5597 = vperm.slane %v5591, %v5596
        %v5599 = vunpack.c.l.s4 1934713408
        %v5600 = vunpack.c.0.s8 %v5599
        %v5601 = vperm.slane %v5593, %v5600
        %v5602 = vrot.slane %v5597, 4
        %v5603 = vsel %vm219, 0, %v5602
        %v5604 = vrot.slane %v5601, 4
        %v5605 = vsel %vm219, 0, %v5604
        %v5608 = vunpack.c.l.s4 1983009808
        %v5609 = vunpack.c.0.s8 %v5608
        %v5610 = vperm.slane %v5521, %v5609
        %v5613 = vunpack.c.l.s4 1983009808
        %v5614 = vunpack.c.0.s8 %v5613
        %v5615 = vperm.slane %v5527, %v5614
        %v5616 = vrot.slane %v5615, 4
        %v5617 = vsel %vm219, %v5616, %v5610
        %v5618 = vrot.slane %v5610, 4
        %v5619 = vsel %vm219, %v5615, %v5618
        %v5621 = vunpack.c.l.s4 1934713408
        %v5622 = vunpack.c.0.s8 %v5621
        %v5623 = vperm.slane %v5617, %v5622
        %v5625 = vunpack.c.l.s4 1934713408
        %v5626 = vunpack.c.0.s8 %v5625
        %v5627 = vperm.slane %v5619, %v5626
        %v5628 = vrot.slane %v5623, 4
        %v5629 = vsel %vm219, 0, %v5628
        %v5630 = vrot.slane %v5627, 4
        %v5631 = vsel %vm219, 0, %v5630
        %v5633 = vunpack.c.l.b16 %v5571
        %v5634 = vpack.c.b16 %v5633, %v5633
        %5635 = vrot.lane.b32.xlu0 %v5634, 16
        %v5636 = vpop.permute.xlu0 %5635
        %v5638 = vunpack.c.l.b16 %v5551
        %v5639 = vpack.c.b16 %v5638, %v5638
        %5640 = vrot.lane.b32.xlu0 %v5639, 32
        %v5641 = vpop.permute.xlu0 %5640
        %v5643 = vunpack.c.l.b16 %v5577
        %v5644 = vpack.c.b16 %v5643, %v5643
        %5645 = vrot.lane.b32.xlu0 %v5644, 48
        %v5646 = vpop.permute.xlu0 %5645
        %v5648 = vunpack.c.l.b16 %v5549
        %v5649 = vpack.c.b16 %v5648, %v5648
        %5650 = vrot.lane.b32.xlu0 %v5649, 64
        %v5651 = vpop.permute.xlu0 %5650
        %v5653 = vunpack.c.l.b16 %v5575
        %v5654 = vpack.c.b16 %v5653, %v5653
        %5655 = vrot.lane.b32.xlu0 %v5654, 80
        %v5656 = vpop.permute.xlu0 %5655
        %v5658 = vunpack.c.l.b16 %v5553
        %v5659 = vpack.c.b16 %v5658, %v5658
        %5660 = vrot.lane.b32.xlu0 %v5659, 96
        %v5661 = vpop.permute.xlu0 %5660
        %v5663 = vunpack.c.l.b16 %v5579
        %v5664 = vpack.c.b16 %v5663, %v5663
        %5665 = vrot.lane.b32.xlu0 %v5664, 112
        %v5666 = vpop.permute.xlu0 %5665
        %v5668 = vunpack.c.l.b16 %v5623
        %v5669 = vpack.c.b16 %v5668, %v5668
        %5670 = vrot.lane.b32.xlu0 %v5669, 16
        %v5671 = vpop.permute.xlu0 %5670
        %v5673 = vunpack.c.l.b16 %v5603
        %v5674 = vpack.c.b16 %v5673, %v5673
        %5675 = vrot.lane.b32.xlu0 %v5674, 32
        %v5676 = vpop.permute.xlu0 %5675
        %v5678 = vunpack.c.l.b16 %v5629
        %v5679 = vpack.c.b16 %v5678, %v5678
        %5680 = vrot.lane.b32.xlu0 %v5679, 48
        %v5681 = vpop.permute.xlu0 %5680
        %v5683 = vunpack.c.l.b16 %v5601
        %v5684 = vpack.c.b16 %v5683, %v5683
        %5685 = vrot.lane.b32.xlu0 %v5684, 64
        %v5686 = vpop.permute.xlu0 %5685
        %v5688 = vunpack.c.l.b16 %v5627
        %v5689 = vpack.c.b16 %v5688, %v5688
        %5690 = vrot.lane.b32.xlu0 %v5689, 80
        %v5691 = vpop.permute.xlu0 %5690
        %v5693 = vunpack.c.l.b16 %v5605
        %v5694 = vpack.c.b16 %v5693, %v5693
        %5695 = vrot.lane.b32.xlu0 %v5694, 96
        %v5696 = vpop.permute.xlu0 %5695
        %v5698 = vunpack.c.l.b16 %v5631
        %v5699 = vpack.c.b16 %v5698, %v5698
        %5700 = vrot.lane.b32.xlu0 %v5699, 112
        %v5701 = vpop.permute.xlu0 %5700
        %v5704 = vsel %vm383, %v5545, %v5636
        %v5706 = vsel %vm387, %v5704, %v5641
        %v5708 = vsel %vm390, %v5706, %v5646
        %v5710 = vsel %vm393, %v5708, %v5651
        %v5712 = vsel %vm396, %v5710, %v5656
        %v5714 = vsel %vm399, %v5712, %v5661
        %v5716 = vsel %vm402, %v5714, %v5666
        %v5719 = vsel %vm383, %v5597, %v5671
        %v5721 = vsel %vm387, %v5719, %v5676
        %v5723 = vsel %vm390, %v5721, %v5681
        %v5725 = vsel %vm393, %v5723, %v5686
        %v5727 = vsel %vm396, %v5725, %v5691
        %v5729 = vsel %vm399, %v5727, %v5696
        %v5731 = vsel %vm402, %v5729, %v5701
        %v5734 = vunpack.c.l.b16 %v5716
        %v5735 = vunpack.c.l.b16 %v5731
        %v5736 = vpack.c.b16 %v5735, %v5734
        %5738 = vst [vmem:[#allocation2 + $0x20] sm:$0x33] %v5736
        %v5739 = vld [vmem:[%s1] sm:$0xf]
        %v5740 = vld [vmem:[#allocation2] sm:$0xff]
        %v5741 = vld [vmem:[#allocation2 + $0x8] sm:$0xff]
        %v5742 = vld [vmem:[#allocation2 + $0x10] sm:$0xff]
        %v5743 = vld [vmem:[#allocation2 + $0x18] sm:$0xff]
        %v5744 = vld [vmem:[#allocation2 + $0x20] sm:$0x33]
        %v5745 = vld [vmem:[%s2] sm:$0xff]
        %5747 = vset.pattern.permute.xlu0 0
        %5748 = vperm.xlu0 %5747, %v5745
        %v5749 = vpop.permute.xlu0 %5748
        %v5756 = vunpack.c.l.b16 %v5740
        %v5757 = vunpack.c.h.b16 %v5740
        %v5758 = vunpack.c.l.b16 %v5741
        %v5759 = vunpack.c.h.b16 %v5741
        %v5760 = vunpack.c.l.b16 %v5742
        %v5761 = vunpack.c.h.b16 %v5742
        %v5762 = vunpack.c.l.b16 %v5743
        %v5763 = vunpack.c.h.b16 %v5743
        %v5764 = vunpack.c.l.b16 %v5744
        %v5765 = vunpack.c.h.b16 %v5744
        %v5766 = vpack.c.b16 %v5758, %v5756
        %v5767 = vpack.c.b16 %v5759, %v5757
        %v5768 = vpack.c.b16 %v5762, %v5760
        %v5769 = vpack.c.b16 %v5763, %v5761
        %v5770 = vpack.c.b16 %v5764, %v5764
        %v5771 = vpack.c.b16 %v5765, %v5765
        %v5777 = vsel %vm2962, %v5739, 0
        %v5780 = vsel %vm2966, %v5770, 0
        %v5783 = vsel %vm2966, %v5771, 0
        %5785 = vmatpush.bf16.msra.mxu0 0
        %5786 = vmatpush.bf16.msra.mxu0 0
        %5787 = vmatpush.bf16.msra.mxu0 0
        %5788 = vmatpush.bf16.msra.mxu0 0
        %5789 = vmatpush.bf16.msra.mxu0 0
        %5790 = vmatpush.bf16.msra.mxu0 %v5780
        %5791 = vmatpush.bf16.msra.mxu0 %v5768
        %5792 = vmatpush.bf16.msra.mxu0 %v5766
        %5793 = vmatmul.bf16.gmra.mxu0 %v5777
        %v5794 = vpop.f32.mrf.mxu0
        %v5795 = vadd.f32 %v5749, %v5794
        %v5796 = vpop.f32.mrf.mxu0
        %5797 = vdwg.mxu0
        %5798 = vmatpush.bf16.msra.mxu0 0
        %5799 = vmatpush.bf16.msra.mxu0 0
        %5800 = vmatpush.bf16.msra.mxu0 0
        %5801 = vmatpush.bf16.msra.mxu0 0
        %5802 = vmatpush.bf16.msra.mxu0 0
        %5803 = vmatpush.bf16.msra.mxu0 %v5783
        %5804 = vmatpush.bf16.msra.mxu0 %v5769
        %5805 = vmatpush.bf16.msra.mxu0 %v5767
        %5806 = vmatmul.bf16.gmra.mxu0 %v5777
        %v5807 = vpop.f32.mrf.mxu0
        %v5808 = vadd.f32 %v5749, %v5807
        %v5809 = vpop.f32.mrf.mxu0
        %5810 = vdwg.mxu0
        %v5811 = vmax.f32 %v5795, 0.0
        %v5812 = vmax.f32 %v5808, 0.0
        %v5813 = vpack.c.bf16 %v5812, %v5811
        %s5814 = scalar_lea.vmem %s166, 8 [#allocation3]
        %5815 = vst [vmem:[%s5814] sm:$0xff] %v5813
        %s5816 = scalar_lea.vmem %s172, 96
        %v5817 = vld [vmem:[%s5816] sm:$0xf]
        %v5818 = vld [vmem:[%s5816 + $0x4] sm:$0xf]
        %v5819 = vld [vmem:[%s5816 + $0xc] sm:$0xf]
        %v5820 = vld [vmem:[%s5816 + $0x10] sm:$0xf]
        %v5821 = vld [vmem:[%s5816 + $0x18] sm:$0xf]
        %v5822 = vld [vmem:[%s5816 + $0x1c] sm:$0xf]
        %v5823 = vld [vmem:[%s5816 + $0x24] sm:$0xf]
        %v5824 = vld [vmem:[%s5816 + $0x28] sm:$0xf]
        %v5827 = vpack.i.b16 %v5819, %v5817
        %v5828 = vshrl.u32 %v5817, 16
        %v5829 = vshrl.u32 %v5819, 16
        %v5830 = vpack.i.b16 %v5829, %v5828
        %v5833 = vpack.i.b16 %v5823, %v5821
        %v5834 = vshrl.u32 %v5821, 16
        %v5835 = vshrl.u32 %v5823, 16
        %v5836 = vpack.i.b16 %v5835, %v5834
        %v5839 = vpack.i.b16 %v5820, %v5818
        %v5840 = vshrl.u32 %v5818, 16
        %v5841 = vshrl.u32 %v5820, 16
        %v5842 = vpack.i.b16 %v5841, %v5840
        %v5845 = vpack.i.b16 %v5824, %v5822
        %v5846 = vshrl.u32 %v5822, 16
        %v5847 = vshrl.u32 %v5824, 16
        %v5848 = vpack.i.b16 %v5847, %v5846
        %v5851 = vunpack.c.l.s4 1983009808
        %v5852 = vunpack.c.0.s8 %v5851
        %v5853 = vperm.slane %v5827, %v5852
        %v5856 = vunpack.c.l.s4 1983009808
        %v5857 = vunpack.c.0.s8 %v5856
        %v5858 = vperm.slane %v5833, %v5857
        %v5859 = vrot.slane %v5858, 4
        %v5860 = vsel %vm219, %v5859, %v5853
        %v5861 = vrot.slane %v5853, 4
        %v5862 = vsel %vm219, %v5858, %v5861
        %v5864 = vunpack.c.l.s4 1934713408
        %v5865 = vunpack.c.0.s8 %v5864
        %v5866 = vperm.slane %v5860, %v5865
        %v5868 = vunpack.c.l.s4 1934713408
        %v5869 = vunpack.c.0.s8 %v5868
        %v5870 = vperm.slane %v5862, %v5869
        %v5871 = vrot.slane %v5866, 4
        %v5872 = vsel %vm219, 0, %v5871
        %v5873 = vrot.slane %v5870, 4
        %v5874 = vsel %vm219, 0, %v5873
        %v5877 = vunpack.c.l.s4 1983009808
        %v5878 = vunpack.c.0.s8 %v5877
        %v5879 = vperm.slane %v5830, %v5878
        %v5882 = vunpack.c.l.s4 1983009808
        %v5883 = vunpack.c.0.s8 %v5882
        %v5884 = vperm.slane %v5836, %v5883
        %v5885 = vrot.slane %v5884, 4
        %v5886 = vsel %vm219, %v5885, %v5879
        %v5887 = vrot.slane %v5879, 4
        %v5888 = vsel %vm219, %v5884, %v5887
        %v5890 = vunpack.c.l.s4 1934713408
        %v5891 = vunpack.c.0.s8 %v5890
        %v5892 = vperm.slane %v5886, %v5891
        %v5894 = vunpack.c.l.s4 1934713408
        %v5895 = vunpack.c.0.s8 %v5894
        %v5896 = vperm.slane %v5888, %v5895
        %v5897 = vrot.slane %v5892, 4
        %v5898 = vsel %vm219, 0, %v5897
        %v5899 = vrot.slane %v5896, 4
        %v5900 = vsel %vm219, 0, %v5899
        %v5903 = vunpack.c.l.s4 1983009808
        %v5904 = vunpack.c.0.s8 %v5903
        %v5905 = vperm.slane %v5839, %v5904
        %v5908 = vunpack.c.l.s4 1983009808
        %v5909 = vunpack.c.0.s8 %v5908
        %v5910 = vperm.slane %v5845, %v5909
        %v5911 = vrot.slane %v5910, 4
        %v5912 = vsel %vm219, %v5911, %v5905
        %v5913 = vrot.slane %v5905, 4
        %v5914 = vsel %vm219, %v5910, %v5913
        %v5916 = vunpack.c.l.s4 1934713408
        %v5917 = vunpack.c.0.s8 %v5916
        %v5918 = vperm.slane %v5912, %v5917
        %v5920 = vunpack.c.l.s4 1934713408
        %v5921 = vunpack.c.0.s8 %v5920
        %v5922 = vperm.slane %v5914, %v5921
        %v5923 = vrot.slane %v5918, 4
        %v5924 = vsel %vm219, 0, %v5923
        %v5925 = vrot.slane %v5922, 4
        %v5926 = vsel %vm219, 0, %v5925
        %v5929 = vunpack.c.l.s4 1983009808
        %v5930 = vunpack.c.0.s8 %v5929
        %v5931 = vperm.slane %v5842, %v5930
        %v5934 = vunpack.c.l.s4 1983009808
        %v5935 = vunpack.c.0.s8 %v5934
        %v5936 = vperm.slane %v5848, %v5935
        %v5937 = vrot.slane %v5936, 4
        %v5938 = vsel %vm219, %v5937, %v5931
        %v5939 = vrot.slane %v5931, 4
        %v5940 = vsel %vm219, %v5936, %v5939
        %v5942 = vunpack.c.l.s4 1934713408
        %v5943 = vunpack.c.0.s8 %v5942
        %v5944 = vperm.slane %v5938, %v5943
        %v5946 = vunpack.c.l.s4 1934713408
        %v5947 = vunpack.c.0.s8 %v5946
        %v5948 = vperm.slane %v5940, %v5947
        %v5949 = vrot.slane %v5944, 4
        %v5950 = vsel %vm219, 0, %v5949
        %v5951 = vrot.slane %v5948, 4
        %v5952 = vsel %vm219, 0, %v5951
        %v5954 = vunpack.c.l.b16 %v5892
        %v5955 = vpack.c.b16 %v5954, %v5954
        %5956 = vrot.lane.b32.xlu0 %v5955, 16
        %v5957 = vpop.permute.xlu0 %5956
        %v5959 = vunpack.c.l.b16 %v5872
        %v5960 = vpack.c.b16 %v5959, %v5959
        %5961 = vrot.lane.b32.xlu0 %v5960, 32
        %v5962 = vpop.permute.xlu0 %5961
        %v5964 = vunpack.c.l.b16 %v5898
        %v5965 = vpack.c.b16 %v5964, %v5964
        %5966 = vrot.lane.b32.xlu0 %v5965, 48
        %v5967 = vpop.permute.xlu0 %5966
        %v5969 = vunpack.c.l.b16 %v5870
        %v5970 = vpack.c.b16 %v5969, %v5969
        %5971 = vrot.lane.b32.xlu0 %v5970, 64
        %v5972 = vpop.permute.xlu0 %5971
        %v5974 = vunpack.c.l.b16 %v5896
        %v5975 = vpack.c.b16 %v5974, %v5974
        %5976 = vrot.lane.b32.xlu0 %v5975, 80
        %v5977 = vpop.permute.xlu0 %5976
        %v5979 = vunpack.c.l.b16 %v5874
        %v5980 = vpack.c.b16 %v5979, %v5979
        %5981 = vrot.lane.b32.xlu0 %v5980, 96
        %v5982 = vpop.permute.xlu0 %5981
        %v5984 = vunpack.c.l.b16 %v5900
        %v5985 = vpack.c.b16 %v5984, %v5984
        %5986 = vrot.lane.b32.xlu0 %v5985, 112
        %v5987 = vpop.permute.xlu0 %5986
        %v5989 = vunpack.c.l.b16 %v5944
        %v5990 = vpack.c.b16 %v5989, %v5989
        %5991 = vrot.lane.b32.xlu0 %v5990, 16
        %v5992 = vpop.permute.xlu0 %5991
        %v5994 = vunpack.c.l.b16 %v5924
        %v5995 = vpack.c.b16 %v5994, %v5994
        %5996 = vrot.lane.b32.xlu0 %v5995, 32
        %v5997 = vpop.permute.xlu0 %5996
        %v5999 = vunpack.c.l.b16 %v5950
        %v6000 = vpack.c.b16 %v5999, %v5999
        %6001 = vrot.lane.b32.xlu0 %v6000, 48
        %v6002 = vpop.permute.xlu0 %6001
        %v6004 = vunpack.c.l.b16 %v5922
        %v6005 = vpack.c.b16 %v6004, %v6004
        %6006 = vrot.lane.b32.xlu0 %v6005, 64
        %v6007 = vpop.permute.xlu0 %6006
        %v6009 = vunpack.c.l.b16 %v5948
        %v6010 = vpack.c.b16 %v6009, %v6009
        %6011 = vrot.lane.b32.xlu0 %v6010, 80
        %v6012 = vpop.permute.xlu0 %6011
        %v6014 = vunpack.c.l.b16 %v5926
        %v6015 = vpack.c.b16 %v6014, %v6014
        %6016 = vrot.lane.b32.xlu0 %v6015, 96
        %v6017 = vpop.permute.xlu0 %6016
        %v6019 = vunpack.c.l.b16 %v5952
        %v6020 = vpack.c.b16 %v6019, %v6019
        %6021 = vrot.lane.b32.xlu0 %v6020, 112
        %v6022 = vpop.permute.xlu0 %6021
        %v6025 = vsel %vm383, %v5866, %v5957
        %v6027 = vsel %vm387, %v6025, %v5962
        %v6029 = vsel %vm390, %v6027, %v5967
        %v6031 = vsel %vm393, %v6029, %v5972
        %v6033 = vsel %vm396, %v6031, %v5977
        %v6035 = vsel %vm399, %v6033, %v5982
        %v6037 = vsel %vm402, %v6035, %v5987
        %v6040 = vsel %vm383, %v5918, %v5992
        %v6042 = vsel %vm387, %v6040, %v5997
        %v6044 = vsel %vm390, %v6042, %v6002
        %v6046 = vsel %vm393, %v6044, %v6007
        %v6048 = vsel %vm396, %v6046, %v6012
        %v6050 = vsel %vm399, %v6048, %v6017
        %v6052 = vsel %vm402, %v6050, %v6022
        %v6055 = vunpack.c.l.b16 %v6037
        %v6056 = vunpack.c.l.b16 %v6052
        %v6057 = vpack.c.b16 %v6056, %v6055
        %6059 = vst [vmem:[#allocation2] sm:$0x33] %v6057
        %v6060 = vld [vmem:[%s5816] sm:$0xf]
        %v6061 = vld [vmem:[%s5816 + $0x4] sm:$0xf]
        %v6062 = vld [vmem:[%s5816 + $0xc] sm:$0xf]
        %v6063 = vld [vmem:[%s5816 + $0x10] sm:$0xf]
        %v6064 = vld [vmem:[%s5816 + $0x18] sm:$0xf]
        %v6065 = vld [vmem:[%s5816 + $0x1c] sm:$0xf]
        %v6066 = vld [vmem:[%s5816 + $0x24] sm:$0xf]
        %v6067 = vld [vmem:[%s5816 + $0x28] sm:$0xf]
        %6076 = vrot.lane.b32.xlu0 %v6060, 127
        %v6077 = vpop.permute.xlu0 %6076
        %6078 = vrot.lane.b32.xlu0 %v6061, 127
        %v6079 = vpop.permute.xlu0 %6078
        %6080 = vrot.lane.b32.xlu0 %v6062, 127
        %v6081 = vpop.permute.xlu0 %6080
        %6082 = vrot.lane.b32.xlu0 %v6063, 127
        %v6083 = vpop.permute.xlu0 %6082
        %6084 = vrot.lane.b32.xlu0 %v6064, 127
        %v6085 = vpop.permute.xlu0 %6084
        %6086 = vrot.lane.b32.xlu0 %v6065, 127
        %v6087 = vpop.permute.xlu0 %6086
        %6088 = vrot.lane.b32.xlu0 %v6066, 127
        %v6089 = vpop.permute.xlu0 %6088
        %6090 = vrot.lane.b32.xlu0 %v6067, 127
        %v6091 = vpop.permute.xlu0 %6090
        %v6094 = vpack.i.b16 %v6081, %v6077
        %v6095 = vshrl.u32 %v6077, 16
        %v6096 = vshrl.u32 %v6081, 16
        %v6097 = vpack.i.b16 %v6096, %v6095
        %v6100 = vpack.i.b16 %v6089, %v6085
        %v6101 = vshrl.u32 %v6085, 16
        %v6102 = vshrl.u32 %v6089, 16
        %v6103 = vpack.i.b16 %v6102, %v6101
        %v6106 = vpack.i.b16 %v6083, %v6079
        %v6107 = vshrl.u32 %v6079, 16
        %v6108 = vshrl.u32 %v6083, 16
        %v6109 = vpack.i.b16 %v6108, %v6107
        %v6112 = vpack.i.b16 %v6091, %v6087
        %v6113 = vshrl.u32 %v6087, 16
        %v6114 = vshrl.u32 %v6091, 16
        %v6115 = vpack.i.b16 %v6114, %v6113
        %v6118 = vunpack.c.l.s4 1983009808
        %v6119 = vunpack.c.0.s8 %v6118
        %v6120 = vperm.slane %v6094, %v6119
        %v6123 = vunpack.c.l.s4 1983009808
        %v6124 = vunpack.c.0.s8 %v6123
        %v6125 = vperm.slane %v6100, %v6124
        %v6126 = vrot.slane %v6125, 4
        %v6127 = vsel %vm219, %v6126, %v6120
        %v6128 = vrot.slane %v6120, 4
        %v6129 = vsel %vm219, %v6125, %v6128
        %v6131 = vunpack.c.l.s4 1934713408
        %v6132 = vunpack.c.0.s8 %v6131
        %v6133 = vperm.slane %v6127, %v6132
        %v6135 = vunpack.c.l.s4 1934713408
        %v6136 = vunpack.c.0.s8 %v6135
        %v6137 = vperm.slane %v6129, %v6136
        %v6138 = vrot.slane %v6133, 4
        %v6139 = vsel %vm219, 0, %v6138
        %v6140 = vrot.slane %v6137, 4
        %v6141 = vsel %vm219, 0, %v6140
        %v6144 = vunpack.c.l.s4 1983009808
        %v6145 = vunpack.c.0.s8 %v6144
        %v6146 = vperm.slane %v6097, %v6145
        %v6149 = vunpack.c.l.s4 1983009808
        %v6150 = vunpack.c.0.s8 %v6149
        %v6151 = vperm.slane %v6103, %v6150
        %v6152 = vrot.slane %v6151, 4
        %v6153 = vsel %vm219, %v6152, %v6146
        %v6154 = vrot.slane %v6146, 4
        %v6155 = vsel %vm219, %v6151, %v6154
        %v6157 = vunpack.c.l.s4 1934713408
        %v6158 = vunpack.c.0.s8 %v6157
        %v6159 = vperm.slane %v6153, %v6158
        %v6161 = vunpack.c.l.s4 1934713408
        %v6162 = vunpack.c.0.s8 %v6161
        %v6163 = vperm.slane %v6155, %v6162
        %v6164 = vrot.slane %v6159, 4
        %v6165 = vsel %vm219, 0, %v6164
        %v6166 = vrot.slane %v6163, 4
        %v6167 = vsel %vm219, 0, %v6166
        %v6170 = vunpack.c.l.s4 1983009808
        %v6171 = vunpack.c.0.s8 %v6170
        %v6172 = vperm.slane %v6106, %v6171
        %v6175 = vunpack.c.l.s4 1983009808
        %v6176 = vunpack.c.0.s8 %v6175
        %v6177 = vperm.slane %v6112, %v6176
        %v6178 = vrot.slane %v6177, 4
        %v6179 = vsel %vm219, %v6178, %v6172
        %v6180 = vrot.slane %v6172, 4
        %v6181 = vsel %vm219, %v6177, %v6180
        %v6183 = vunpack.c.l.s4 1934713408
        %v6184 = vunpack.c.0.s8 %v6183
        %v6185 = vperm.slane %v6179, %v6184
        %v6187 = vunpack.c.l.s4 1934713408
        %v6188 = vunpack.c.0.s8 %v6187
        %v6189 = vperm.slane %v6181, %v6188
        %v6190 = vrot.slane %v6185, 4
        %v6191 = vsel %vm219, 0, %v6190
        %v6192 = vrot.slane %v6189, 4
        %v6193 = vsel %vm219, 0, %v6192
        %v6196 = vunpack.c.l.s4 1983009808
        %v6197 = vunpack.c.0.s8 %v6196
        %v6198 = vperm.slane %v6109, %v6197
        %v6201 = vunpack.c.l.s4 1983009808
        %v6202 = vunpack.c.0.s8 %v6201
        %v6203 = vperm.slane %v6115, %v6202
        %v6204 = vrot.slane %v6203, 4
        %v6205 = vsel %vm219, %v6204, %v6198
        %v6206 = vrot.slane %v6198, 4
        %v6207 = vsel %vm219, %v6203, %v6206
        %v6209 = vunpack.c.l.s4 1934713408
        %v6210 = vunpack.c.0.s8 %v6209
        %v6211 = vperm.slane %v6205, %v6210
        %v6213 = vunpack.c.l.s4 1934713408
        %v6214 = vunpack.c.0.s8 %v6213
        %v6215 = vperm.slane %v6207, %v6214
        %v6216 = vrot.slane %v6211, 4
        %v6217 = vsel %vm219, 0, %v6216
        %v6218 = vrot.slane %v6215, 4
        %v6219 = vsel %vm219, 0, %v6218
        %v6221 = vunpack.c.l.b16 %v6159
        %v6222 = vpack.c.b16 %v6221, %v6221
        %6223 = vrot.lane.b32.xlu0 %v6222, 16
        %v6224 = vpop.permute.xlu0 %6223
        %v6226 = vunpack.c.l.b16 %v6139
        %v6227 = vpack.c.b16 %v6226, %v6226
        %6228 = vrot.lane.b32.xlu0 %v6227, 32
        %v6229 = vpop.permute.xlu0 %6228
        %v6231 = vunpack.c.l.b16 %v6165
        %v6232 = vpack.c.b16 %v6231, %v6231
        %6233 = vrot.lane.b32.xlu0 %v6232, 48
        %v6234 = vpop.permute.xlu0 %6233
        %v6236 = vunpack.c.l.b16 %v6137
        %v6237 = vpack.c.b16 %v6236, %v6236
        %6238 = vrot.lane.b32.xlu0 %v6237, 64
        %v6239 = vpop.permute.xlu0 %6238
        %v6241 = vunpack.c.l.b16 %v6163
        %v6242 = vpack.c.b16 %v6241, %v6241
        %6243 = vrot.lane.b32.xlu0 %v6242, 80
        %v6244 = vpop.permute.xlu0 %6243
        %v6246 = vunpack.c.l.b16 %v6141
        %v6247 = vpack.c.b16 %v6246, %v6246
        %6248 = vrot.lane.b32.xlu0 %v6247, 96
        %v6249 = vpop.permute.xlu0 %6248
        %v6251 = vunpack.c.l.b16 %v6167
        %v6252 = vpack.c.b16 %v6251, %v6251
        %6253 = vrot.lane.b32.xlu0 %v6252, 112
        %v6254 = vpop.permute.xlu0 %6253
        %v6256 = vunpack.c.l.b16 %v6211
        %v6257 = vpack.c.b16 %v6256, %v6256
        %6258 = vrot.lane.b32.xlu0 %v6257, 16
        %v6259 = vpop.permute.xlu0 %6258
        %v6261 = vunpack.c.l.b16 %v6191
        %v6262 = vpack.c.b16 %v6261, %v6261
        %6263 = vrot.lane.b32.xlu0 %v6262, 32
        %v6264 = vpop.permute.xlu0 %6263
        %v6266 = vunpack.c.l.b16 %v6217
        %v6267 = vpack.c.b16 %v6266, %v6266
        %6268 = vrot.lane.b32.xlu0 %v6267, 48
        %v6269 = vpop.permute.xlu0 %6268
        %v6271 = vunpack.c.l.b16 %v6189
        %v6272 = vpack.c.b16 %v6271, %v6271
        %6273 = vrot.lane.b32.xlu0 %v6272, 64
        %v6274 = vpop.permute.xlu0 %6273
        %v6276 = vunpack.c.l.b16 %v6215
        %v6277 = vpack.c.b16 %v6276, %v6276
        %6278 = vrot.lane.b32.xlu0 %v6277, 80
        %v6279 = vpop.permute.xlu0 %6278
        %v6281 = vunpack.c.l.b16 %v6193
        %v6282 = vpack.c.b16 %v6281, %v6281
        %6283 = vrot.lane.b32.xlu0 %v6282, 96
        %v6284 = vpop.permute.xlu0 %6283
        %v6286 = vunpack.c.l.b16 %v6219
        %v6287 = vpack.c.b16 %v6286, %v6286
        %6288 = vrot.lane.b32.xlu0 %v6287, 112
        %v6289 = vpop.permute.xlu0 %6288
        %v6292 = vsel %vm383, %v6133, %v6224
        %v6294 = vsel %vm387, %v6292, %v6229
        %v6296 = vsel %vm390, %v6294, %v6234
        %v6298 = vsel %vm393, %v6296, %v6239
        %v6300 = vsel %vm396, %v6298, %v6244
        %v6302 = vsel %vm399, %v6300, %v6249
        %v6304 = vsel %vm402, %v6302, %v6254
        %v6307 = vsel %vm383, %v6185, %v6259
        %v6309 = vsel %vm387, %v6307, %v6264
        %v6311 = vsel %vm390, %v6309, %v6269
        %v6313 = vsel %vm393, %v6311, %v6274
        %v6315 = vsel %vm396, %v6313, %v6279
        %v6317 = vsel %vm399, %v6315, %v6284
        %v6319 = vsel %vm402, %v6317, %v6289
        %v6322 = vunpack.c.l.b16 %v6304
        %v6323 = vunpack.c.l.b16 %v6319
        %v6324 = vpack.c.b16 %v6323, %v6322
        %v6325 = vrot.slane %v6324, 6
        %6327 = vst [vmem:[#allocation2] sm:$0xcc] %v6325
        %v6328 = vld [vmem:[%s5816] sm:$0xf]
        %v6329 = vld [vmem:[%s5816 + $0x4] sm:$0xf]
        %v6330 = vld [vmem:[%s5816 + $0xc] sm:$0xf]
        %v6331 = vld [vmem:[%s5816 + $0x10] sm:$0xf]
        %v6332 = vld [vmem:[%s5816 + $0x18] sm:$0xf]
        %v6333 = vld [vmem:[%s5816 + $0x1c] sm:$0xf]
        %v6334 = vld [vmem:[%s5816 + $0x24] sm:$0xf]
        %v6335 = vld [vmem:[%s5816 + $0x28] sm:$0xf]
        %6344 = vrot.lane.b32.xlu0 %v6328, 126
        %v6345 = vpop.permute.xlu0 %6344
        %6346 = vrot.lane.b32.xlu0 %v6329, 126
        %v6347 = vpop.permute.xlu0 %6346
        %6348 = vrot.lane.b32.xlu0 %v6330, 126
        %v6349 = vpop.permute.xlu0 %6348
        %6350 = vrot.lane.b32.xlu0 %v6331, 126
        %v6351 = vpop.permute.xlu0 %6350
        %6352 = vrot.lane.b32.xlu0 %v6332, 126
        %v6353 = vpop.permute.xlu0 %6352
        %6354 = vrot.lane.b32.xlu0 %v6333, 126
        %v6355 = vpop.permute.xlu0 %6354
        %6356 = vrot.lane.b32.xlu0 %v6334, 126
        %v6357 = vpop.permute.xlu0 %6356
        %6358 = vrot.lane.b32.xlu0 %v6335, 126
        %v6359 = vpop.permute.xlu0 %6358
        %v6362 = vpack.i.b16 %v6349, %v6345
        %v6363 = vshrl.u32 %v6345, 16
        %v6364 = vshrl.u32 %v6349, 16
        %v6365 = vpack.i.b16 %v6364, %v6363
        %v6368 = vpack.i.b16 %v6357, %v6353
        %v6369 = vshrl.u32 %v6353, 16
        %v6370 = vshrl.u32 %v6357, 16
        %v6371 = vpack.i.b16 %v6370, %v6369
        %v6374 = vpack.i.b16 %v6351, %v6347
        %v6375 = vshrl.u32 %v6347, 16
        %v6376 = vshrl.u32 %v6351, 16
        %v6377 = vpack.i.b16 %v6376, %v6375
        %v6380 = vpack.i.b16 %v6359, %v6355
        %v6381 = vshrl.u32 %v6355, 16
        %v6382 = vshrl.u32 %v6359, 16
        %v6383 = vpack.i.b16 %v6382, %v6381
        %v6386 = vunpack.c.l.s4 1983009808
        %v6387 = vunpack.c.0.s8 %v6386
        %v6388 = vperm.slane %v6362, %v6387
        %v6391 = vunpack.c.l.s4 1983009808
        %v6392 = vunpack.c.0.s8 %v6391
        %v6393 = vperm.slane %v6368, %v6392
        %v6394 = vrot.slane %v6393, 4
        %v6395 = vsel %vm219, %v6394, %v6388
        %v6396 = vrot.slane %v6388, 4
        %v6397 = vsel %vm219, %v6393, %v6396
        %v6399 = vunpack.c.l.s4 1934713408
        %v6400 = vunpack.c.0.s8 %v6399
        %v6401 = vperm.slane %v6395, %v6400
        %v6403 = vunpack.c.l.s4 1934713408
        %v6404 = vunpack.c.0.s8 %v6403
        %v6405 = vperm.slane %v6397, %v6404
        %v6406 = vrot.slane %v6401, 4
        %v6407 = vsel %vm219, 0, %v6406
        %v6408 = vrot.slane %v6405, 4
        %v6409 = vsel %vm219, 0, %v6408
        %v6412 = vunpack.c.l.s4 1983009808
        %v6413 = vunpack.c.0.s8 %v6412
        %v6414 = vperm.slane %v6365, %v6413
        %v6417 = vunpack.c.l.s4 1983009808
        %v6418 = vunpack.c.0.s8 %v6417
        %v6419 = vperm.slane %v6371, %v6418
        %v6420 = vrot.slane %v6419, 4
        %v6421 = vsel %vm219, %v6420, %v6414
        %v6422 = vrot.slane %v6414, 4
        %v6423 = vsel %vm219, %v6419, %v6422
        %v6425 = vunpack.c.l.s4 1934713408
        %v6426 = vunpack.c.0.s8 %v6425
        %v6427 = vperm.slane %v6421, %v6426
        %v6429 = vunpack.c.l.s4 1934713408
        %v6430 = vunpack.c.0.s8 %v6429
        %v6431 = vperm.slane %v6423, %v6430
        %v6432 = vrot.slane %v6427, 4
        %v6433 = vsel %vm219, 0, %v6432
        %v6434 = vrot.slane %v6431, 4
        %v6435 = vsel %vm219, 0, %v6434
        %v6438 = vunpack.c.l.s4 1983009808
        %v6439 = vunpack.c.0.s8 %v6438
        %v6440 = vperm.slane %v6374, %v6439
        %v6443 = vunpack.c.l.s4 1983009808
        %v6444 = vunpack.c.0.s8 %v6443
        %v6445 = vperm.slane %v6380, %v6444
        %v6446 = vrot.slane %v6445, 4
        %v6447 = vsel %vm219, %v6446, %v6440
        %v6448 = vrot.slane %v6440, 4
        %v6449 = vsel %vm219, %v6445, %v6448
        %v6451 = vunpack.c.l.s4 1934713408
        %v6452 = vunpack.c.0.s8 %v6451
        %v6453 = vperm.slane %v6447, %v6452
        %v6455 = vunpack.c.l.s4 1934713408
        %v6456 = vunpack.c.0.s8 %v6455
        %v6457 = vperm.slane %v6449, %v6456
        %v6458 = vrot.slane %v6453, 4
        %v6459 = vsel %vm219, 0, %v6458
        %v6460 = vrot.slane %v6457, 4
        %v6461 = vsel %vm219, 0, %v6460
        %v6464 = vunpack.c.l.s4 1983009808
        %v6465 = vunpack.c.0.s8 %v6464
        %v6466 = vperm.slane %v6377, %v6465
        %v6469 = vunpack.c.l.s4 1983009808
        %v6470 = vunpack.c.0.s8 %v6469
        %v6471 = vperm.slane %v6383, %v6470
        %v6472 = vrot.slane %v6471, 4
        %v6473 = vsel %vm219, %v6472, %v6466
        %v6474 = vrot.slane %v6466, 4
        %v6475 = vsel %vm219, %v6471, %v6474
        %v6477 = vunpack.c.l.s4 1934713408
        %v6478 = vunpack.c.0.s8 %v6477
        %v6479 = vperm.slane %v6473, %v6478
        %v6481 = vunpack.c.l.s4 1934713408
        %v6482 = vunpack.c.0.s8 %v6481
        %v6483 = vperm.slane %v6475, %v6482
        %v6484 = vrot.slane %v6479, 4
        %v6485 = vsel %vm219, 0, %v6484
        %v6486 = vrot.slane %v6483, 4
        %v6487 = vsel %vm219, 0, %v6486
        %v6489 = vunpack.c.l.b16 %v6427
        %v6490 = vpack.c.b16 %v6489, %v6489
        %6491 = vrot.lane.b32.xlu0 %v6490, 16
        %v6492 = vpop.permute.xlu0 %6491
        %v6494 = vunpack.c.l.b16 %v6407
        %v6495 = vpack.c.b16 %v6494, %v6494
        %6496 = vrot.lane.b32.xlu0 %v6495, 32
        %v6497 = vpop.permute.xlu0 %6496
        %v6499 = vunpack.c.l.b16 %v6433
        %v6500 = vpack.c.b16 %v6499, %v6499
        %6501 = vrot.lane.b32.xlu0 %v6500, 48
        %v6502 = vpop.permute.xlu0 %6501
        %v6504 = vunpack.c.l.b16 %v6405
        %v6505 = vpack.c.b16 %v6504, %v6504
        %6506 = vrot.lane.b32.xlu0 %v6505, 64
        %v6507 = vpop.permute.xlu0 %6506
        %v6509 = vunpack.c.l.b16 %v6431
        %v6510 = vpack.c.b16 %v6509, %v6509
        %6511 = vrot.lane.b32.xlu0 %v6510, 80
        %v6512 = vpop.permute.xlu0 %6511
        %v6514 = vunpack.c.l.b16 %v6409
        %v6515 = vpack.c.b16 %v6514, %v6514
        %6516 = vrot.lane.b32.xlu0 %v6515, 96
        %v6517 = vpop.permute.xlu0 %6516
        %v6519 = vunpack.c.l.b16 %v6435
        %v6520 = vpack.c.b16 %v6519, %v6519
        %6521 = vrot.lane.b32.xlu0 %v6520, 112
        %v6522 = vpop.permute.xlu0 %6521
        %v6524 = vunpack.c.l.b16 %v6479
        %v6525 = vpack.c.b16 %v6524, %v6524
        %6526 = vrot.lane.b32.xlu0 %v6525, 16
        %v6527 = vpop.permute.xlu0 %6526
        %v6529 = vunpack.c.l.b16 %v6459
        %v6530 = vpack.c.b16 %v6529, %v6529
        %6531 = vrot.lane.b32.xlu0 %v6530, 32
        %v6532 = vpop.permute.xlu0 %6531
        %v6534 = vunpack.c.l.b16 %v6485
        %v6535 = vpack.c.b16 %v6534, %v6534
        %6536 = vrot.lane.b32.xlu0 %v6535, 48
        %v6537 = vpop.permute.xlu0 %6536
        %v6539 = vunpack.c.l.b16 %v6457
        %v6540 = vpack.c.b16 %v6539, %v6539
        %6541 = vrot.lane.b32.xlu0 %v6540, 64
        %v6542 = vpop.permute.xlu0 %6541
        %v6544 = vunpack.c.l.b16 %v6483
        %v6545 = vpack.c.b16 %v6544, %v6544
        %6546 = vrot.lane.b32.xlu0 %v6545, 80
        %v6547 = vpop.permute.xlu0 %6546
        %v6549 = vunpack.c.l.b16 %v6461
        %v6550 = vpack.c.b16 %v6549, %v6549
        %6551 = vrot.lane.b32.xlu0 %v6550, 96
        %v6552 = vpop.permute.xlu0 %6551
        %v6554 = vunpack.c.l.b16 %v6487
        %v6555 = vpack.c.b16 %v6554, %v6554
        %6556 = vrot.lane.b32.xlu0 %v6555, 112
        %v6557 = vpop.permute.xlu0 %6556
        %v6560 = vsel %vm383, %v6401, %v6492
        %v6562 = vsel %vm387, %v6560, %v6497
        %v6564 = vsel %vm390, %v6562, %v6502
        %v6566 = vsel %vm393, %v6564, %v6507
        %v6568 = vsel %vm396, %v6566, %v6512
        %v6570 = vsel %vm399, %v6568, %v6517
        %v6572 = vsel %vm402, %v6570, %v6522
        %v6575 = vsel %vm383, %v6453, %v6527
        %v6577 = vsel %vm387, %v6575, %v6532
        %v6579 = vsel %vm390, %v6577, %v6537
        %v6581 = vsel %vm393, %v6579, %v6542
        %v6583 = vsel %vm396, %v6581, %v6547
        %v6585 = vsel %vm399, %v6583, %v6552
        %v6587 = vsel %vm402, %v6585, %v6557
        %v6590 = vunpack.c.l.b16 %v6572
        %v6591 = vunpack.c.l.b16 %v6587
        %v6592 = vpack.c.b16 %v6591, %v6590
        %6594 = vst [vmem:[#allocation2 + $0x8] sm:$0x33] %v6592
        %v6595 = vld [vmem:[%s5816] sm:$0xf]
        %v6596 = vld [vmem:[%s5816 + $0x4] sm:$0xf]
        %v6597 = vld [vmem:[%s5816 + $0x8] sm:$0x1]
        %v6598 = vld [vmem:[%s5816 + $0xc] sm:$0xf]
        %v6599 = vld [vmem:[%s5816 + $0x10] sm:$0xf]
        %v6600 = vld [vmem:[%s5816 + $0x14] sm:$0x1]
        %v6601 = vld [vmem:[%s5816 + $0x18] sm:$0xf]
        %v6602 = vld [vmem:[%s5816 + $0x1c] sm:$0xf]
        %v6603 = vld [vmem:[%s5816 + $0x20] sm:$0x1]
        %v6604 = vld [vmem:[%s5816 + $0x24] sm:$0xf]
        %v6605 = vld [vmem:[%s5816 + $0x28] sm:$0xf]
        %v6606 = vld [vmem:[%s5816 + $0x2c] sm:$0x1]
        %v6608 = vshrl.u32 %v6595, 16
        %v6610 = vrot.slane %v6608, 4
        %v6611 = vshll.u32 %v6595, 16
        %v6613 = vrot.slane %v6611, 5
        %v6614 = vor.u32 %v6610, %v6613
        %v6615 = vrot.slane %v6614, 4
        %v6617 = vshll.u32 %v6596, 16
        %v6619 = vrot.slane %v6617, 5
        %v6620 = vsel %vm976, %v6615, %v6619
        %v6621 = vshrl.u32 %v6596, 16
        %v6623 = vrot.slane %v6621, 4
        %v6624 = vor.u32 %v6623, %v6619
        %v6625 = vrot.slane %v6624, 4
        %v6627 = vshll.u32 %v6597, 16
        %v6629 = vrot.slane %v6627, 5
        %v6630 = vsel %vm976, %v6625, %v6629
        %v6632 = vshrl.u32 %v6598, 16
        %v6634 = vrot.slane %v6632, 4
        %v6635 = vshll.u32 %v6598, 16
        %v6637 = vrot.slane %v6635, 5
        %v6638 = vor.u32 %v6634, %v6637
        %v6639 = vrot.slane %v6638, 4
        %v6641 = vshll.u32 %v6599, 16
        %v6643 = vrot.slane %v6641, 5
        %v6644 = vsel %vm976, %v6639, %v6643
        %v6645 = vshrl.u32 %v6599, 16
        %v6647 = vrot.slane %v6645, 4
        %v6648 = vor.u32 %v6647, %v6643
        %v6649 = vrot.slane %v6648, 4
        %v6651 = vshll.u32 %v6600, 16
        %v6653 = vrot.slane %v6651, 5
        %v6654 = vsel %vm976, %v6649, %v6653
        %v6656 = vshrl.u32 %v6601, 16
        %v6658 = vrot.slane %v6656, 4
        %v6659 = vshll.u32 %v6601, 16
        %v6661 = vrot.slane %v6659, 5
        %v6662 = vor.u32 %v6658, %v6661
        %v6663 = vrot.slane %v6662, 4
        %v6665 = vshll.u32 %v6602, 16
        %v6667 = vrot.slane %v6665, 5
        %v6668 = vsel %vm976, %v6663, %v6667
        %v6669 = vshrl.u32 %v6602, 16
        %v6671 = vrot.slane %v6669, 4
        %v6672 = vor.u32 %v6671, %v6667
        %v6673 = vrot.slane %v6672, 4
        %v6675 = vshll.u32 %v6603, 16
        %v6677 = vrot.slane %v6675, 5
        %v6678 = vsel %vm976, %v6673, %v6677
        %v6680 = vshrl.u32 %v6604, 16
        %v6682 = vrot.slane %v6680, 4
        %v6683 = vshll.u32 %v6604, 16
        %v6685 = vrot.slane %v6683, 5
        %v6686 = vor.u32 %v6682, %v6685
        %v6687 = vrot.slane %v6686, 4
        %v6689 = vshll.u32 %v6605, 16
        %v6691 = vrot.slane %v6689, 5
        %v6692 = vsel %vm976, %v6687, %v6691
        %v6693 = vshrl.u32 %v6605, 16
        %v6695 = vrot.slane %v6693, 4
        %v6696 = vor.u32 %v6695, %v6691
        %v6697 = vrot.slane %v6696, 4
        %v6699 = vshll.u32 %v6606, 16
        %v6701 = vrot.slane %v6699, 5
        %v6702 = vsel %vm976, %v6697, %v6701
        %v6705 = vpack.i.b16 %v6644, %v6620
        %v6706 = vshrl.u32 %v6620, 16
        %v6707 = vshrl.u32 %v6644, 16
        %v6708 = vpack.i.b16 %v6707, %v6706
        %v6711 = vpack.i.b16 %v6692, %v6668
        %v6712 = vshrl.u32 %v6668, 16
        %v6713 = vshrl.u32 %v6692, 16
        %v6714 = vpack.i.b16 %v6713, %v6712
        %v6717 = vpack.i.b16 %v6654, %v6630
        %v6718 = vshrl.u32 %v6630, 16
        %v6719 = vshrl.u32 %v6654, 16
        %v6720 = vpack.i.b16 %v6719, %v6718
        %v6723 = vpack.i.b16 %v6702, %v6678
        %v6724 = vshrl.u32 %v6678, 16
        %v6725 = vshrl.u32 %v6702, 16
        %v6726 = vpack.i.b16 %v6725, %v6724
        %v6729 = vunpack.c.l.s4 1983009808
        %v6730 = vunpack.c.0.s8 %v6729
        %v6731 = vperm.slane %v6705, %v6730
        %v6734 = vunpack.c.l.s4 1983009808
        %v6735 = vunpack.c.0.s8 %v6734
        %v6736 = vperm.slane %v6711, %v6735
        %v6737 = vrot.slane %v6736, 4
        %v6738 = vsel %vm219, %v6737, %v6731
        %v6739 = vrot.slane %v6731, 4
        %v6740 = vsel %vm219, %v6736, %v6739
        %v6742 = vunpack.c.l.s4 1934713408
        %v6743 = vunpack.c.0.s8 %v6742
        %v6744 = vperm.slane %v6738, %v6743
        %v6746 = vunpack.c.l.s4 1934713408
        %v6747 = vunpack.c.0.s8 %v6746
        %v6748 = vperm.slane %v6740, %v6747
        %v6749 = vrot.slane %v6744, 4
        %v6750 = vsel %vm219, 0, %v6749
        %v6751 = vrot.slane %v6748, 4
        %v6752 = vsel %vm219, 0, %v6751
        %v6755 = vunpack.c.l.s4 1983009808
        %v6756 = vunpack.c.0.s8 %v6755
        %v6757 = vperm.slane %v6708, %v6756
        %v6760 = vunpack.c.l.s4 1983009808
        %v6761 = vunpack.c.0.s8 %v6760
        %v6762 = vperm.slane %v6714, %v6761
        %v6763 = vrot.slane %v6762, 4
        %v6764 = vsel %vm219, %v6763, %v6757
        %v6765 = vrot.slane %v6757, 4
        %v6766 = vsel %vm219, %v6762, %v6765
        %v6768 = vunpack.c.l.s4 1934713408
        %v6769 = vunpack.c.0.s8 %v6768
        %v6770 = vperm.slane %v6764, %v6769
        %v6772 = vunpack.c.l.s4 1934713408
        %v6773 = vunpack.c.0.s8 %v6772
        %v6774 = vperm.slane %v6766, %v6773
        %v6775 = vrot.slane %v6770, 4
        %v6776 = vsel %vm219, 0, %v6775
        %v6777 = vrot.slane %v6774, 4
        %v6778 = vsel %vm219, 0, %v6777
        %v6781 = vunpack.c.l.s4 1983009808
        %v6782 = vunpack.c.0.s8 %v6781
        %v6783 = vperm.slane %v6717, %v6782
        %v6786 = vunpack.c.l.s4 1983009808
        %v6787 = vunpack.c.0.s8 %v6786
        %v6788 = vperm.slane %v6723, %v6787
        %v6789 = vrot.slane %v6788, 4
        %v6790 = vsel %vm219, %v6789, %v6783
        %v6791 = vrot.slane %v6783, 4
        %v6792 = vsel %vm219, %v6788, %v6791
        %v6794 = vunpack.c.l.s4 1934713408
        %v6795 = vunpack.c.0.s8 %v6794
        %v6796 = vperm.slane %v6790, %v6795
        %v6798 = vunpack.c.l.s4 1934713408
        %v6799 = vunpack.c.0.s8 %v6798
        %v6800 = vperm.slane %v6792, %v6799
        %v6801 = vrot.slane %v6796, 4
        %v6802 = vsel %vm219, 0, %v6801
        %v6803 = vrot.slane %v6800, 4
        %v6804 = vsel %vm219, 0, %v6803
        %v6807 = vunpack.c.l.s4 1983009808
        %v6808 = vunpack.c.0.s8 %v6807
        %v6809 = vperm.slane %v6720, %v6808
        %v6812 = vunpack.c.l.s4 1983009808
        %v6813 = vunpack.c.0.s8 %v6812
        %v6814 = vperm.slane %v6726, %v6813
        %v6815 = vrot.slane %v6814, 4
        %v6816 = vsel %vm219, %v6815, %v6809
        %v6817 = vrot.slane %v6809, 4
        %v6818 = vsel %vm219, %v6814, %v6817
        %v6820 = vunpack.c.l.s4 1934713408
        %v6821 = vunpack.c.0.s8 %v6820
        %v6822 = vperm.slane %v6816, %v6821
        %v6824 = vunpack.c.l.s4 1934713408
        %v6825 = vunpack.c.0.s8 %v6824
        %v6826 = vperm.slane %v6818, %v6825
        %v6827 = vrot.slane %v6822, 4
        %v6828 = vsel %vm219, 0, %v6827
        %v6829 = vrot.slane %v6826, 4
        %v6830 = vsel %vm219, 0, %v6829
        %v6832 = vunpack.c.l.b16 %v6770
        %v6833 = vpack.c.b16 %v6832, %v6832
        %6834 = vrot.lane.b32.xlu0 %v6833, 16
        %v6835 = vpop.permute.xlu0 %6834
        %v6837 = vunpack.c.l.b16 %v6750
        %v6838 = vpack.c.b16 %v6837, %v6837
        %6839 = vrot.lane.b32.xlu0 %v6838, 32
        %v6840 = vpop.permute.xlu0 %6839
        %v6842 = vunpack.c.l.b16 %v6776
        %v6843 = vpack.c.b16 %v6842, %v6842
        %6844 = vrot.lane.b32.xlu0 %v6843, 48
        %v6845 = vpop.permute.xlu0 %6844
        %v6847 = vunpack.c.l.b16 %v6748
        %v6848 = vpack.c.b16 %v6847, %v6847
        %6849 = vrot.lane.b32.xlu0 %v6848, 64
        %v6850 = vpop.permute.xlu0 %6849
        %v6852 = vunpack.c.l.b16 %v6774
        %v6853 = vpack.c.b16 %v6852, %v6852
        %6854 = vrot.lane.b32.xlu0 %v6853, 80
        %v6855 = vpop.permute.xlu0 %6854
        %v6857 = vunpack.c.l.b16 %v6752
        %v6858 = vpack.c.b16 %v6857, %v6857
        %6859 = vrot.lane.b32.xlu0 %v6858, 96
        %v6860 = vpop.permute.xlu0 %6859
        %v6862 = vunpack.c.l.b16 %v6778
        %v6863 = vpack.c.b16 %v6862, %v6862
        %6864 = vrot.lane.b32.xlu0 %v6863, 112
        %v6865 = vpop.permute.xlu0 %6864
        %v6867 = vunpack.c.l.b16 %v6822
        %v6868 = vpack.c.b16 %v6867, %v6867
        %6869 = vrot.lane.b32.xlu0 %v6868, 16
        %v6870 = vpop.permute.xlu0 %6869
        %v6872 = vunpack.c.l.b16 %v6802
        %v6873 = vpack.c.b16 %v6872, %v6872
        %6874 = vrot.lane.b32.xlu0 %v6873, 32
        %v6875 = vpop.permute.xlu0 %6874
        %v6877 = vunpack.c.l.b16 %v6828
        %v6878 = vpack.c.b16 %v6877, %v6877
        %6879 = vrot.lane.b32.xlu0 %v6878, 48
        %v6880 = vpop.permute.xlu0 %6879
        %v6882 = vunpack.c.l.b16 %v6800
        %v6883 = vpack.c.b16 %v6882, %v6882
        %6884 = vrot.lane.b32.xlu0 %v6883, 64
        %v6885 = vpop.permute.xlu0 %6884
        %v6887 = vunpack.c.l.b16 %v6826
        %v6888 = vpack.c.b16 %v6887, %v6887
        %6889 = vrot.lane.b32.xlu0 %v6888, 80
        %v6890 = vpop.permute.xlu0 %6889
        %v6892 = vunpack.c.l.b16 %v6804
        %v6893 = vpack.c.b16 %v6892, %v6892
        %6894 = vrot.lane.b32.xlu0 %v6893, 96
        %v6895 = vpop.permute.xlu0 %6894
        %v6897 = vunpack.c.l.b16 %v6830
        %v6898 = vpack.c.b16 %v6897, %v6897
        %6899 = vrot.lane.b32.xlu0 %v6898, 112
        %v6900 = vpop.permute.xlu0 %6899
        %v6903 = vsel %vm383, %v6744, %v6835
        %v6905 = vsel %vm387, %v6903, %v6840
        %v6907 = vsel %vm390, %v6905, %v6845
        %v6909 = vsel %vm393, %v6907, %v6850
        %v6911 = vsel %vm396, %v6909, %v6855
        %v6913 = vsel %vm399, %v6911, %v6860
        %v6915 = vsel %vm402, %v6913, %v6865
        %v6918 = vsel %vm383, %v6796, %v6870
        %v6920 = vsel %vm387, %v6918, %v6875
        %v6922 = vsel %vm390, %v6920, %v6880
        %v6924 = vsel %vm393, %v6922, %v6885
        %v6926 = vsel %vm396, %v6924, %v6890
        %v6928 = vsel %vm399, %v6926, %v6895
        %v6930 = vsel %vm402, %v6928, %v6900
        %v6933 = vunpack.c.l.b16 %v6915
        %v6934 = vunpack.c.l.b16 %v6930
        %v6935 = vpack.c.b16 %v6934, %v6933
        %v6936 = vrot.slane %v6935, 6
        %6938 = vst [vmem:[#allocation2 + $0x8] sm:$0xcc] %v6936
        %v6939 = vld [vmem:[%s5816] sm:$0xf]
        %v6940 = vld [vmem:[%s5816 + $0x4] sm:$0xf]
        %v6941 = vld [vmem:[%s5816 + $0x8] sm:$0x1]
        %v6942 = vld [vmem:[%s5816 + $0xc] sm:$0xf]
        %v6943 = vld [vmem:[%s5816 + $0x10] sm:$0xf]
        %v6944 = vld [vmem:[%s5816 + $0x14] sm:$0x1]
        %v6945 = vld [vmem:[%s5816 + $0x18] sm:$0xf]
        %v6946 = vld [vmem:[%s5816 + $0x1c] sm:$0xf]
        %v6947 = vld [vmem:[%s5816 + $0x20] sm:$0x1]
        %v6948 = vld [vmem:[%s5816 + $0x24] sm:$0xf]
        %v6949 = vld [vmem:[%s5816 + $0x28] sm:$0xf]
        %v6950 = vld [vmem:[%s5816 + $0x2c] sm:$0x1]
        %v6952 = vshrl.u32 %v6939, 16
        %v6954 = vrot.slane %v6952, 4
        %v6955 = vshll.u32 %v6939, 16
        %v6957 = vrot.slane %v6955, 5
        %v6958 = vor.u32 %v6954, %v6957
        %v6959 = vrot.slane %v6958, 4
        %v6961 = vshll.u32 %v6940, 16
        %v6963 = vrot.slane %v6961, 5
        %v6964 = vsel %vm976, %v6959, %v6963
        %v6965 = vshrl.u32 %v6940, 16
        %v6967 = vrot.slane %v6965, 4
        %v6968 = vor.u32 %v6967, %v6963
        %v6969 = vrot.slane %v6968, 4
        %v6971 = vshll.u32 %v6941, 16
        %v6973 = vrot.slane %v6971, 5
        %v6974 = vsel %vm976, %v6969, %v6973
        %v6976 = vshrl.u32 %v6942, 16
        %v6978 = vrot.slane %v6976, 4
        %v6979 = vshll.u32 %v6942, 16
        %v6981 = vrot.slane %v6979, 5
        %v6982 = vor.u32 %v6978, %v6981
        %v6983 = vrot.slane %v6982, 4
        %v6985 = vshll.u32 %v6943, 16
        %v6987 = vrot.slane %v6985, 5
        %v6988 = vsel %vm976, %v6983, %v6987
        %v6989 = vshrl.u32 %v6943, 16
        %v6991 = vrot.slane %v6989, 4
        %v6992 = vor.u32 %v6991, %v6987
        %v6993 = vrot.slane %v6992, 4
        %v6995 = vshll.u32 %v6944, 16
        %v6997 = vrot.slane %v6995, 5
        %v6998 = vsel %vm976, %v6993, %v6997
        %v7000 = vshrl.u32 %v6945, 16
        %v7002 = vrot.slane %v7000, 4
        %v7003 = vshll.u32 %v6945, 16
        %v7005 = vrot.slane %v7003, 5
        %v7006 = vor.u32 %v7002, %v7005
        %v7007 = vrot.slane %v7006, 4
        %v7009 = vshll.u32 %v6946, 16
        %v7011 = vrot.slane %v7009, 5
        %v7012 = vsel %vm976, %v7007, %v7011
        %v7013 = vshrl.u32 %v6946, 16
        %v7015 = vrot.slane %v7013, 4
        %v7016 = vor.u32 %v7015, %v7011
        %v7017 = vrot.slane %v7016, 4
        %v7019 = vshll.u32 %v6947, 16
        %v7021 = vrot.slane %v7019, 5
        %v7022 = vsel %vm976, %v7017, %v7021
        %v7024 = vshrl.u32 %v6948, 16
        %v7026 = vrot.slane %v7024, 4
        %v7027 = vshll.u32 %v6948, 16
        %v7029 = vrot.slane %v7027, 5
        %v7030 = vor.u32 %v7026, %v7029
        %v7031 = vrot.slane %v7030, 4
        %v7033 = vshll.u32 %v6949, 16
        %v7035 = vrot.slane %v7033, 5
        %v7036 = vsel %vm976, %v7031, %v7035
        %v7037 = vshrl.u32 %v6949, 16
        %v7039 = vrot.slane %v7037, 4
        %v7040 = vor.u32 %v7039, %v7035
        %v7041 = vrot.slane %v7040, 4
        %v7043 = vshll.u32 %v6950, 16
        %v7045 = vrot.slane %v7043, 5
        %v7046 = vsel %vm976, %v7041, %v7045
        %7047 = vrot.lane.b32.xlu0 %v6964, 127
        %v7048 = vpop.permute.xlu0 %7047
        %7049 = vrot.lane.b32.xlu0 %v6974, 127
        %v7050 = vpop.permute.xlu0 %7049
        %7051 = vrot.lane.b32.xlu0 %v6988, 127
        %v7052 = vpop.permute.xlu0 %7051
        %7053 = vrot.lane.b32.xlu0 %v6998, 127
        %v7054 = vpop.permute.xlu0 %7053
        %7055 = vrot.lane.b32.xlu0 %v7012, 127
        %v7056 = vpop.permute.xlu0 %7055
        %7057 = vrot.lane.b32.xlu0 %v7022, 127
        %v7058 = vpop.permute.xlu0 %7057
        %7059 = vrot.lane.b32.xlu0 %v7036, 127
        %v7060 = vpop.permute.xlu0 %7059
        %7061 = vrot.lane.b32.xlu0 %v7046, 127
        %v7062 = vpop.permute.xlu0 %7061
        %v7065 = vpack.i.b16 %v7052, %v7048
        %v7066 = vshrl.u32 %v7048, 16
        %v7067 = vshrl.u32 %v7052, 16
        %v7068 = vpack.i.b16 %v7067, %v7066
        %v7071 = vpack.i.b16 %v7060, %v7056
        %v7072 = vshrl.u32 %v7056, 16
        %v7073 = vshrl.u32 %v7060, 16
        %v7074 = vpack.i.b16 %v7073, %v7072
        %v7077 = vpack.i.b16 %v7054, %v7050
        %v7078 = vshrl.u32 %v7050, 16
        %v7079 = vshrl.u32 %v7054, 16
        %v7080 = vpack.i.b16 %v7079, %v7078
        %v7083 = vpack.i.b16 %v7062, %v7058
        %v7084 = vshrl.u32 %v7058, 16
        %v7085 = vshrl.u32 %v7062, 16
        %v7086 = vpack.i.b16 %v7085, %v7084
        %v7089 = vunpack.c.l.s4 1983009808
        %v7090 = vunpack.c.0.s8 %v7089
        %v7091 = vperm.slane %v7065, %v7090
        %v7094 = vunpack.c.l.s4 1983009808
        %v7095 = vunpack.c.0.s8 %v7094
        %v7096 = vperm.slane %v7071, %v7095
        %v7097 = vrot.slane %v7096, 4
        %v7098 = vsel %vm219, %v7097, %v7091
        %v7099 = vrot.slane %v7091, 4
        %v7100 = vsel %vm219, %v7096, %v7099
        %v7102 = vunpack.c.l.s4 1934713408
        %v7103 = vunpack.c.0.s8 %v7102
        %v7104 = vperm.slane %v7098, %v7103
        %v7106 = vunpack.c.l.s4 1934713408
        %v7107 = vunpack.c.0.s8 %v7106
        %v7108 = vperm.slane %v7100, %v7107
        %v7109 = vrot.slane %v7104, 4
        %v7110 = vsel %vm219, 0, %v7109
        %v7111 = vrot.slane %v7108, 4
        %v7112 = vsel %vm219, 0, %v7111
        %v7115 = vunpack.c.l.s4 1983009808
        %v7116 = vunpack.c.0.s8 %v7115
        %v7117 = vperm.slane %v7068, %v7116
        %v7120 = vunpack.c.l.s4 1983009808
        %v7121 = vunpack.c.0.s8 %v7120
        %v7122 = vperm.slane %v7074, %v7121
        %v7123 = vrot.slane %v7122, 4
        %v7124 = vsel %vm219, %v7123, %v7117
        %v7125 = vrot.slane %v7117, 4
        %v7126 = vsel %vm219, %v7122, %v7125
        %v7128 = vunpack.c.l.s4 1934713408
        %v7129 = vunpack.c.0.s8 %v7128
        %v7130 = vperm.slane %v7124, %v7129
        %v7132 = vunpack.c.l.s4 1934713408
        %v7133 = vunpack.c.0.s8 %v7132
        %v7134 = vperm.slane %v7126, %v7133
        %v7135 = vrot.slane %v7130, 4
        %v7136 = vsel %vm219, 0, %v7135
        %v7137 = vrot.slane %v7134, 4
        %v7138 = vsel %vm219, 0, %v7137
        %v7141 = vunpack.c.l.s4 1983009808
        %v7142 = vunpack.c.0.s8 %v7141
        %v7143 = vperm.slane %v7077, %v7142
        %v7146 = vunpack.c.l.s4 1983009808
        %v7147 = vunpack.c.0.s8 %v7146
        %v7148 = vperm.slane %v7083, %v7147
        %v7149 = vrot.slane %v7148, 4
        %v7150 = vsel %vm219, %v7149, %v7143
        %v7151 = vrot.slane %v7143, 4
        %v7152 = vsel %vm219, %v7148, %v7151
        %v7154 = vunpack.c.l.s4 1934713408
        %v7155 = vunpack.c.0.s8 %v7154
        %v7156 = vperm.slane %v7150, %v7155
        %v7158 = vunpack.c.l.s4 1934713408
        %v7159 = vunpack.c.0.s8 %v7158
        %v7160 = vperm.slane %v7152, %v7159
        %v7161 = vrot.slane %v7156, 4
        %v7162 = vsel %vm219, 0, %v7161
        %v7163 = vrot.slane %v7160, 4
        %v7164 = vsel %vm219, 0, %v7163
        %v7167 = vunpack.c.l.s4 1983009808
        %v7168 = vunpack.c.0.s8 %v7167
        %v7169 = vperm.slane %v7080, %v7168
        %v7172 = vunpack.c.l.s4 1983009808
        %v7173 = vunpack.c.0.s8 %v7172
        %v7174 = vperm.slane %v7086, %v7173
        %v7175 = vrot.slane %v7174, 4
        %v7176 = vsel %vm219, %v7175, %v7169
        %v7177 = vrot.slane %v7169, 4
        %v7178 = vsel %vm219, %v7174, %v7177
        %v7180 = vunpack.c.l.s4 1934713408
        %v7181 = vunpack.c.0.s8 %v7180
        %v7182 = vperm.slane %v7176, %v7181
        %v7184 = vunpack.c.l.s4 1934713408
        %v7185 = vunpack.c.0.s8 %v7184
        %v7186 = vperm.slane %v7178, %v7185
        %v7187 = vrot.slane %v7182, 4
        %v7188 = vsel %vm219, 0, %v7187
        %v7189 = vrot.slane %v7186, 4
        %v7190 = vsel %vm219, 0, %v7189
        %v7192 = vunpack.c.l.b16 %v7130
        %v7193 = vpack.c.b16 %v7192, %v7192
        %7194 = vrot.lane.b32.xlu0 %v7193, 16
        %v7195 = vpop.permute.xlu0 %7194
        %v7197 = vunpack.c.l.b16 %v7110
        %v7198 = vpack.c.b16 %v7197, %v7197
        %7199 = vrot.lane.b32.xlu0 %v7198, 32
        %v7200 = vpop.permute.xlu0 %7199
        %v7202 = vunpack.c.l.b16 %v7136
        %v7203 = vpack.c.b16 %v7202, %v7202
        %7204 = vrot.lane.b32.xlu0 %v7203, 48
        %v7205 = vpop.permute.xlu0 %7204
        %v7207 = vunpack.c.l.b16 %v7108
        %v7208 = vpack.c.b16 %v7207, %v7207
        %7209 = vrot.lane.b32.xlu0 %v7208, 64
        %v7210 = vpop.permute.xlu0 %7209
        %v7212 = vunpack.c.l.b16 %v7134
        %v7213 = vpack.c.b16 %v7212, %v7212
        %7214 = vrot.lane.b32.xlu0 %v7213, 80
        %v7215 = vpop.permute.xlu0 %7214
        %v7217 = vunpack.c.l.b16 %v7112
        %v7218 = vpack.c.b16 %v7217, %v7217
        %7219 = vrot.lane.b32.xlu0 %v7218, 96
        %v7220 = vpop.permute.xlu0 %7219
        %v7222 = vunpack.c.l.b16 %v7138
        %v7223 = vpack.c.b16 %v7222, %v7222
        %7224 = vrot.lane.b32.xlu0 %v7223, 112
        %v7225 = vpop.permute.xlu0 %7224
        %v7227 = vunpack.c.l.b16 %v7182
        %v7228 = vpack.c.b16 %v7227, %v7227
        %7229 = vrot.lane.b32.xlu0 %v7228, 16
        %v7230 = vpop.permute.xlu0 %7229
        %v7232 = vunpack.c.l.b16 %v7162
        %v7233 = vpack.c.b16 %v7232, %v7232
        %7234 = vrot.lane.b32.xlu0 %v7233, 32
        %v7235 = vpop.permute.xlu0 %7234
        %v7237 = vunpack.c.l.b16 %v7188
        %v7238 = vpack.c.b16 %v7237, %v7237
        %7239 = vrot.lane.b32.xlu0 %v7238, 48
        %v7240 = vpop.permute.xlu0 %7239
        %v7242 = vunpack.c.l.b16 %v7160
        %v7243 = vpack.c.b16 %v7242, %v7242
        %7244 = vrot.lane.b32.xlu0 %v7243, 64
        %v7245 = vpop.permute.xlu0 %7244
        %v7247 = vunpack.c.l.b16 %v7186
        %v7248 = vpack.c.b16 %v7247, %v7247
        %7249 = vrot.lane.b32.xlu0 %v7248, 80
        %v7250 = vpop.permute.xlu0 %7249
        %v7252 = vunpack.c.l.b16 %v7164
        %v7253 = vpack.c.b16 %v7252, %v7252
        %7254 = vrot.lane.b32.xlu0 %v7253, 96
        %v7255 = vpop.permute.xlu0 %7254
        %v7257 = vunpack.c.l.b16 %v7190
        %v7258 = vpack.c.b16 %v7257, %v7257
        %7259 = vrot.lane.b32.xlu0 %v7258, 112
        %v7260 = vpop.permute.xlu0 %7259
        %v7263 = vsel %vm383, %v7104, %v7195
        %v7265 = vsel %vm387, %v7263, %v7200
        %v7267 = vsel %vm390, %v7265, %v7205
        %v7269 = vsel %vm393, %v7267, %v7210
        %v7271 = vsel %vm396, %v7269, %v7215
        %v7273 = vsel %vm399, %v7271, %v7220
        %v7275 = vsel %vm402, %v7273, %v7225
        %v7278 = vsel %vm383, %v7156, %v7230
        %v7280 = vsel %vm387, %v7278, %v7235
        %v7282 = vsel %vm390, %v7280, %v7240
        %v7284 = vsel %vm393, %v7282, %v7245
        %v7286 = vsel %vm396, %v7284, %v7250
        %v7288 = vsel %vm399, %v7286, %v7255
        %v7290 = vsel %vm402, %v7288, %v7260
        %v7293 = vunpack.c.l.b16 %v7275
        %v7294 = vunpack.c.l.b16 %v7290
        %v7295 = vpack.c.b16 %v7294, %v7293
        %7297 = vst [vmem:[#allocation2 + $0x10] sm:$0x33] %v7295
        %v7298 = vld [vmem:[%s5816] sm:$0xf]
        %v7299 = vld [vmem:[%s5816 + $0x4] sm:$0xf]
        %v7300 = vld [vmem:[%s5816 + $0x8] sm:$0x1]
        %v7301 = vld [vmem:[%s5816 + $0xc] sm:$0xf]
        %v7302 = vld [vmem:[%s5816 + $0x10] sm:$0xf]
        %v7303 = vld [vmem:[%s5816 + $0x14] sm:$0x1]
        %v7304 = vld [vmem:[%s5816 + $0x18] sm:$0xf]
        %v7305 = vld [vmem:[%s5816 + $0x1c] sm:$0xf]
        %v7306 = vld [vmem:[%s5816 + $0x20] sm:$0x1]
        %v7307 = vld [vmem:[%s5816 + $0x24] sm:$0xf]
        %v7308 = vld [vmem:[%s5816 + $0x28] sm:$0xf]
        %v7309 = vld [vmem:[%s5816 + $0x2c] sm:$0x1]
        %v7311 = vshrl.u32 %v7298, 16
        %v7313 = vrot.slane %v7311, 4
        %v7314 = vshll.u32 %v7298, 16
        %v7316 = vrot.slane %v7314, 5
        %v7317 = vor.u32 %v7313, %v7316
        %v7318 = vrot.slane %v7317, 4
        %v7320 = vshll.u32 %v7299, 16
        %v7322 = vrot.slane %v7320, 5
        %v7323 = vsel %vm976, %v7318, %v7322
        %v7324 = vshrl.u32 %v7299, 16
        %v7326 = vrot.slane %v7324, 4
        %v7327 = vor.u32 %v7326, %v7322
        %v7328 = vrot.slane %v7327, 4
        %v7330 = vshll.u32 %v7300, 16
        %v7332 = vrot.slane %v7330, 5
        %v7333 = vsel %vm976, %v7328, %v7332
        %v7335 = vshrl.u32 %v7301, 16
        %v7337 = vrot.slane %v7335, 4
        %v7338 = vshll.u32 %v7301, 16
        %v7340 = vrot.slane %v7338, 5
        %v7341 = vor.u32 %v7337, %v7340
        %v7342 = vrot.slane %v7341, 4
        %v7344 = vshll.u32 %v7302, 16
        %v7346 = vrot.slane %v7344, 5
        %v7347 = vsel %vm976, %v7342, %v7346
        %v7348 = vshrl.u32 %v7302, 16
        %v7350 = vrot.slane %v7348, 4
        %v7351 = vor.u32 %v7350, %v7346
        %v7352 = vrot.slane %v7351, 4
        %v7354 = vshll.u32 %v7303, 16
        %v7356 = vrot.slane %v7354, 5
        %v7357 = vsel %vm976, %v7352, %v7356
        %v7359 = vshrl.u32 %v7304, 16
        %v7361 = vrot.slane %v7359, 4
        %v7362 = vshll.u32 %v7304, 16
        %v7364 = vrot.slane %v7362, 5
        %v7365 = vor.u32 %v7361, %v7364
        %v7366 = vrot.slane %v7365, 4
        %v7368 = vshll.u32 %v7305, 16
        %v7370 = vrot.slane %v7368, 5
        %v7371 = vsel %vm976, %v7366, %v7370
        %v7372 = vshrl.u32 %v7305, 16
        %v7374 = vrot.slane %v7372, 4
        %v7375 = vor.u32 %v7374, %v7370
        %v7376 = vrot.slane %v7375, 4
        %v7378 = vshll.u32 %v7306, 16
        %v7380 = vrot.slane %v7378, 5
        %v7381 = vsel %vm976, %v7376, %v7380
        %v7383 = vshrl.u32 %v7307, 16
        %v7385 = vrot.slane %v7383, 4
        %v7386 = vshll.u32 %v7307, 16
        %v7388 = vrot.slane %v7386, 5
        %v7389 = vor.u32 %v7385, %v7388
        %v7390 = vrot.slane %v7389, 4
        %v7392 = vshll.u32 %v7308, 16
        %v7394 = vrot.slane %v7392, 5
        %v7395 = vsel %vm976, %v7390, %v7394
        %v7396 = vshrl.u32 %v7308, 16
        %v7398 = vrot.slane %v7396, 4
        %v7399 = vor.u32 %v7398, %v7394
        %v7400 = vrot.slane %v7399, 4
        %v7402 = vshll.u32 %v7309, 16
        %v7404 = vrot.slane %v7402, 5
        %v7405 = vsel %vm976, %v7400, %v7404
        %7406 = vrot.lane.b32.xlu0 %v7323, 126
        %v7407 = vpop.permute.xlu0 %7406
        %7408 = vrot.lane.b32.xlu0 %v7333, 126
        %v7409 = vpop.permute.xlu0 %7408
        %7410 = vrot.lane.b32.xlu0 %v7347, 126
        %v7411 = vpop.permute.xlu0 %7410
        %7412 = vrot.lane.b32.xlu0 %v7357, 126
        %v7413 = vpop.permute.xlu0 %7412
        %7414 = vrot.lane.b32.xlu0 %v7371, 126
        %v7415 = vpop.permute.xlu0 %7414
        %7416 = vrot.lane.b32.xlu0 %v7381, 126
        %v7417 = vpop.permute.xlu0 %7416
        %7418 = vrot.lane.b32.xlu0 %v7395, 126
        %v7419 = vpop.permute.xlu0 %7418
        %7420 = vrot.lane.b32.xlu0 %v7405, 126
        %v7421 = vpop.permute.xlu0 %7420
        %v7424 = vpack.i.b16 %v7411, %v7407
        %v7425 = vshrl.u32 %v7407, 16
        %v7426 = vshrl.u32 %v7411, 16
        %v7427 = vpack.i.b16 %v7426, %v7425
        %v7430 = vpack.i.b16 %v7419, %v7415
        %v7431 = vshrl.u32 %v7415, 16
        %v7432 = vshrl.u32 %v7419, 16
        %v7433 = vpack.i.b16 %v7432, %v7431
        %v7436 = vpack.i.b16 %v7413, %v7409
        %v7437 = vshrl.u32 %v7409, 16
        %v7438 = vshrl.u32 %v7413, 16
        %v7439 = vpack.i.b16 %v7438, %v7437
        %v7442 = vpack.i.b16 %v7421, %v7417
        %v7443 = vshrl.u32 %v7417, 16
        %v7444 = vshrl.u32 %v7421, 16
        %v7445 = vpack.i.b16 %v7444, %v7443
        %v7448 = vunpack.c.l.s4 1983009808
        %v7449 = vunpack.c.0.s8 %v7448
        %v7450 = vperm.slane %v7424, %v7449
        %v7453 = vunpack.c.l.s4 1983009808
        %v7454 = vunpack.c.0.s8 %v7453
        %v7455 = vperm.slane %v7430, %v7454
        %v7456 = vrot.slane %v7455, 4
        %v7457 = vsel %vm219, %v7456, %v7450
        %v7458 = vrot.slane %v7450, 4
        %v7459 = vsel %vm219, %v7455, %v7458
        %v7461 = vunpack.c.l.s4 1934713408
        %v7462 = vunpack.c.0.s8 %v7461
        %v7463 = vperm.slane %v7457, %v7462
        %v7465 = vunpack.c.l.s4 1934713408
        %v7466 = vunpack.c.0.s8 %v7465
        %v7467 = vperm.slane %v7459, %v7466
        %v7468 = vrot.slane %v7463, 4
        %v7469 = vsel %vm219, 0, %v7468
        %v7470 = vrot.slane %v7467, 4
        %v7471 = vsel %vm219, 0, %v7470
        %v7474 = vunpack.c.l.s4 1983009808
        %v7475 = vunpack.c.0.s8 %v7474
        %v7476 = vperm.slane %v7427, %v7475
        %v7479 = vunpack.c.l.s4 1983009808
        %v7480 = vunpack.c.0.s8 %v7479
        %v7481 = vperm.slane %v7433, %v7480
        %v7482 = vrot.slane %v7481, 4
        %v7483 = vsel %vm219, %v7482, %v7476
        %v7484 = vrot.slane %v7476, 4
        %v7485 = vsel %vm219, %v7481, %v7484
        %v7487 = vunpack.c.l.s4 1934713408
        %v7488 = vunpack.c.0.s8 %v7487
        %v7489 = vperm.slane %v7483, %v7488
        %v7491 = vunpack.c.l.s4 1934713408
        %v7492 = vunpack.c.0.s8 %v7491
        %v7493 = vperm.slane %v7485, %v7492
        %v7494 = vrot.slane %v7489, 4
        %v7495 = vsel %vm219, 0, %v7494
        %v7496 = vrot.slane %v7493, 4
        %v7497 = vsel %vm219, 0, %v7496
        %v7500 = vunpack.c.l.s4 1983009808
        %v7501 = vunpack.c.0.s8 %v7500
        %v7502 = vperm.slane %v7436, %v7501
        %v7505 = vunpack.c.l.s4 1983009808
        %v7506 = vunpack.c.0.s8 %v7505
        %v7507 = vperm.slane %v7442, %v7506
        %v7508 = vrot.slane %v7507, 4
        %v7509 = vsel %vm219, %v7508, %v7502
        %v7510 = vrot.slane %v7502, 4
        %v7511 = vsel %vm219, %v7507, %v7510
        %v7513 = vunpack.c.l.s4 1934713408
        %v7514 = vunpack.c.0.s8 %v7513
        %v7515 = vperm.slane %v7509, %v7514
        %v7517 = vunpack.c.l.s4 1934713408
        %v7518 = vunpack.c.0.s8 %v7517
        %v7519 = vperm.slane %v7511, %v7518
        %v7520 = vrot.slane %v7515, 4
        %v7521 = vsel %vm219, 0, %v7520
        %v7522 = vrot.slane %v7519, 4
        %v7523 = vsel %vm219, 0, %v7522
        %v7526 = vunpack.c.l.s4 1983009808
        %v7527 = vunpack.c.0.s8 %v7526
        %v7528 = vperm.slane %v7439, %v7527
        %v7531 = vunpack.c.l.s4 1983009808
        %v7532 = vunpack.c.0.s8 %v7531
        %v7533 = vperm.slane %v7445, %v7532
        %v7534 = vrot.slane %v7533, 4
        %v7535 = vsel %vm219, %v7534, %v7528
        %v7536 = vrot.slane %v7528, 4
        %v7537 = vsel %vm219, %v7533, %v7536
        %v7539 = vunpack.c.l.s4 1934713408
        %v7540 = vunpack.c.0.s8 %v7539
        %v7541 = vperm.slane %v7535, %v7540
        %v7543 = vunpack.c.l.s4 1934713408
        %v7544 = vunpack.c.0.s8 %v7543
        %v7545 = vperm.slane %v7537, %v7544
        %v7546 = vrot.slane %v7541, 4
        %v7547 = vsel %vm219, 0, %v7546
        %v7548 = vrot.slane %v7545, 4
        %v7549 = vsel %vm219, 0, %v7548
        %v7551 = vunpack.c.l.b16 %v7489
        %v7552 = vpack.c.b16 %v7551, %v7551
        %7553 = vrot.lane.b32.xlu0 %v7552, 16
        %v7554 = vpop.permute.xlu0 %7553
        %v7556 = vunpack.c.l.b16 %v7469
        %v7557 = vpack.c.b16 %v7556, %v7556
        %7558 = vrot.lane.b32.xlu0 %v7557, 32
        %v7559 = vpop.permute.xlu0 %7558
        %v7561 = vunpack.c.l.b16 %v7495
        %v7562 = vpack.c.b16 %v7561, %v7561
        %7563 = vrot.lane.b32.xlu0 %v7562, 48
        %v7564 = vpop.permute.xlu0 %7563
        %v7566 = vunpack.c.l.b16 %v7467
        %v7567 = vpack.c.b16 %v7566, %v7566
        %7568 = vrot.lane.b32.xlu0 %v7567, 64
        %v7569 = vpop.permute.xlu0 %7568
        %v7571 = vunpack.c.l.b16 %v7493
        %v7572 = vpack.c.b16 %v7571, %v7571
        %7573 = vrot.lane.b32.xlu0 %v7572, 80
        %v7574 = vpop.permute.xlu0 %7573
        %v7576 = vunpack.c.l.b16 %v7471
        %v7577 = vpack.c.b16 %v7576, %v7576
        %7578 = vrot.lane.b32.xlu0 %v7577, 96
        %v7579 = vpop.permute.xlu0 %7578
        %v7581 = vunpack.c.l.b16 %v7497
        %v7582 = vpack.c.b16 %v7581, %v7581
        %7583 = vrot.lane.b32.xlu0 %v7582, 112
        %v7584 = vpop.permute.xlu0 %7583
        %v7586 = vunpack.c.l.b16 %v7541
        %v7587 = vpack.c.b16 %v7586, %v7586
        %7588 = vrot.lane.b32.xlu0 %v7587, 16
        %v7589 = vpop.permute.xlu0 %7588
        %v7591 = vunpack.c.l.b16 %v7521
        %v7592 = vpack.c.b16 %v7591, %v7591
        %7593 = vrot.lane.b32.xlu0 %v7592, 32
        %v7594 = vpop.permute.xlu0 %7593
        %v7596 = vunpack.c.l.b16 %v7547
        %v7597 = vpack.c.b16 %v7596, %v7596
        %7598 = vrot.lane.b32.xlu0 %v7597, 48
        %v7599 = vpop.permute.xlu0 %7598
        %v7601 = vunpack.c.l.b16 %v7519
        %v7602 = vpack.c.b16 %v7601, %v7601
        %7603 = vrot.lane.b32.xlu0 %v7602, 64
        %v7604 = vpop.permute.xlu0 %7603
        %v7606 = vunpack.c.l.b16 %v7545
        %v7607 = vpack.c.b16 %v7606, %v7606
        %7608 = vrot.lane.b32.xlu0 %v7607, 80
        %v7609 = vpop.permute.xlu0 %7608
        %v7611 = vunpack.c.l.b16 %v7523
        %v7612 = vpack.c.b16 %v7611, %v7611
        %7613 = vrot.lane.b32.xlu0 %v7612, 96
        %v7614 = vpop.permute.xlu0 %7613
        %v7616 = vunpack.c.l.b16 %v7549
        %v7617 = vpack.c.b16 %v7616, %v7616
        %7618 = vrot.lane.b32.xlu0 %v7617, 112
        %v7619 = vpop.permute.xlu0 %7618
        %v7622 = vsel %vm383, %v7463, %v7554
        %v7624 = vsel %vm387, %v7622, %v7559
        %v7626 = vsel %vm390, %v7624, %v7564
        %v7628 = vsel %vm393, %v7626, %v7569
        %v7630 = vsel %vm396, %v7628, %v7574
        %v7632 = vsel %vm399, %v7630, %v7579
        %v7634 = vsel %vm402, %v7632, %v7584
        %v7637 = vsel %vm383, %v7515, %v7589
        %v7639 = vsel %vm387, %v7637, %v7594
        %v7641 = vsel %vm390, %v7639, %v7599
        %v7643 = vsel %vm393, %v7641, %v7604
        %v7645 = vsel %vm396, %v7643, %v7609
        %v7647 = vsel %vm399, %v7645, %v7614
        %v7649 = vsel %vm402, %v7647, %v7619
        %v7652 = vunpack.c.l.b16 %v7634
        %v7653 = vunpack.c.l.b16 %v7649
        %v7654 = vpack.c.b16 %v7653, %v7652
        %v7655 = vrot.slane %v7654, 6
        %7657 = vst [vmem:[#allocation2 + $0x10] sm:$0xcc] %v7655
        %v7658 = vld [vmem:[%s5816] sm:$0xe]
        %v7659 = vld [vmem:[%s5816 + $0x4] sm:$0xf]
        %v7660 = vld [vmem:[%s5816 + $0x8] sm:$0x1]
        %v7661 = vld [vmem:[%s5816 + $0xc] sm:$0xe]
        %v7662 = vld [vmem:[%s5816 + $0x10] sm:$0xf]
        %v7663 = vld [vmem:[%s5816 + $0x14] sm:$0x1]
        %v7664 = vld [vmem:[%s5816 + $0x18] sm:$0xe]
        %v7665 = vld [vmem:[%s5816 + $0x1c] sm:$0xf]
        %v7666 = vld [vmem:[%s5816 + $0x20] sm:$0x1]
        %v7667 = vld [vmem:[%s5816 + $0x24] sm:$0xe]
        %v7668 = vld [vmem:[%s5816 + $0x28] sm:$0xf]
        %v7669 = vld [vmem:[%s5816 + $0x2c] sm:$0x1]
        %v7682 = vrot.slane %v7658, 5
        %v7683 = vrot.slane %v7682, 4
        %v7684 = vrot.slane %v7659, 5
        %v7685 = vsel %vm2054, %v7683, %v7684
        %v7686 = vrot.slane %v7684, 4
        %v7687 = vrot.slane %v7660, 5
        %v7688 = vsel %vm2054, %v7686, %v7687
        %v7689 = vrot.slane %v7661, 5
        %v7690 = vrot.slane %v7689, 4
        %v7691 = vrot.slane %v7662, 5
        %v7692 = vsel %vm2054, %v7690, %v7691
        %v7693 = vrot.slane %v7691, 4
        %v7694 = vrot.slane %v7663, 5
        %v7695 = vsel %vm2054, %v7693, %v7694
        %v7696 = vrot.slane %v7664, 5
        %v7697 = vrot.slane %v7696, 4
        %v7698 = vrot.slane %v7665, 5
        %v7699 = vsel %vm2054, %v7697, %v7698
        %v7700 = vrot.slane %v7698, 4
        %v7701 = vrot.slane %v7666, 5
        %v7702 = vsel %vm2054, %v7700, %v7701
        %v7703 = vrot.slane %v7667, 5
        %v7704 = vrot.slane %v7703, 4
        %v7705 = vrot.slane %v7668, 5
        %v7706 = vsel %vm2054, %v7704, %v7705
        %v7707 = vrot.slane %v7705, 4
        %v7708 = vrot.slane %v7669, 5
        %v7709 = vsel %vm2054, %v7707, %v7708
        %v7712 = vpack.i.b16 %v7692, %v7685
        %v7713 = vshrl.u32 %v7685, 16
        %v7714 = vshrl.u32 %v7692, 16
        %v7715 = vpack.i.b16 %v7714, %v7713
        %v7718 = vpack.i.b16 %v7706, %v7699
        %v7719 = vshrl.u32 %v7699, 16
        %v7720 = vshrl.u32 %v7706, 16
        %v7721 = vpack.i.b16 %v7720, %v7719
        %v7724 = vpack.i.b16 %v7695, %v7688
        %v7725 = vshrl.u32 %v7688, 16
        %v7726 = vshrl.u32 %v7695, 16
        %v7727 = vpack.i.b16 %v7726, %v7725
        %v7730 = vpack.i.b16 %v7709, %v7702
        %v7731 = vshrl.u32 %v7702, 16
        %v7732 = vshrl.u32 %v7709, 16
        %v7733 = vpack.i.b16 %v7732, %v7731
        %v7736 = vunpack.c.l.s4 1983009808
        %v7737 = vunpack.c.0.s8 %v7736
        %v7738 = vperm.slane %v7712, %v7737
        %v7741 = vunpack.c.l.s4 1983009808
        %v7742 = vunpack.c.0.s8 %v7741
        %v7743 = vperm.slane %v7718, %v7742
        %v7744 = vrot.slane %v7743, 4
        %v7745 = vsel %vm219, %v7744, %v7738
        %v7746 = vrot.slane %v7738, 4
        %v7747 = vsel %vm219, %v7743, %v7746
        %v7749 = vunpack.c.l.s4 1934713408
        %v7750 = vunpack.c.0.s8 %v7749
        %v7751 = vperm.slane %v7745, %v7750
        %v7753 = vunpack.c.l.s4 1934713408
        %v7754 = vunpack.c.0.s8 %v7753
        %v7755 = vperm.slane %v7747, %v7754
        %v7756 = vrot.slane %v7751, 4
        %v7757 = vsel %vm219, 0, %v7756
        %v7758 = vrot.slane %v7755, 4
        %v7759 = vsel %vm219, 0, %v7758
        %v7762 = vunpack.c.l.s4 1983009808
        %v7763 = vunpack.c.0.s8 %v7762
        %v7764 = vperm.slane %v7715, %v7763
        %v7767 = vunpack.c.l.s4 1983009808
        %v7768 = vunpack.c.0.s8 %v7767
        %v7769 = vperm.slane %v7721, %v7768
        %v7770 = vrot.slane %v7769, 4
        %v7771 = vsel %vm219, %v7770, %v7764
        %v7772 = vrot.slane %v7764, 4
        %v7773 = vsel %vm219, %v7769, %v7772
        %v7775 = vunpack.c.l.s4 1934713408
        %v7776 = vunpack.c.0.s8 %v7775
        %v7777 = vperm.slane %v7771, %v7776
        %v7779 = vunpack.c.l.s4 1934713408
        %v7780 = vunpack.c.0.s8 %v7779
        %v7781 = vperm.slane %v7773, %v7780
        %v7782 = vrot.slane %v7777, 4
        %v7783 = vsel %vm219, 0, %v7782
        %v7784 = vrot.slane %v7781, 4
        %v7785 = vsel %vm219, 0, %v7784
        %v7788 = vunpack.c.l.s4 1983009808
        %v7789 = vunpack.c.0.s8 %v7788
        %v7790 = vperm.slane %v7724, %v7789
        %v7793 = vunpack.c.l.s4 1983009808
        %v7794 = vunpack.c.0.s8 %v7793
        %v7795 = vperm.slane %v7730, %v7794
        %v7796 = vrot.slane %v7795, 4
        %v7797 = vsel %vm219, %v7796, %v7790
        %v7798 = vrot.slane %v7790, 4
        %v7799 = vsel %vm219, %v7795, %v7798
        %v7801 = vunpack.c.l.s4 1934713408
        %v7802 = vunpack.c.0.s8 %v7801
        %v7803 = vperm.slane %v7797, %v7802
        %v7805 = vunpack.c.l.s4 1934713408
        %v7806 = vunpack.c.0.s8 %v7805
        %v7807 = vperm.slane %v7799, %v7806
        %v7808 = vrot.slane %v7803, 4
        %v7809 = vsel %vm219, 0, %v7808
        %v7810 = vrot.slane %v7807, 4
        %v7811 = vsel %vm219, 0, %v7810
        %v7814 = vunpack.c.l.s4 1983009808
        %v7815 = vunpack.c.0.s8 %v7814
        %v7816 = vperm.slane %v7727, %v7815
        %v7819 = vunpack.c.l.s4 1983009808
        %v7820 = vunpack.c.0.s8 %v7819
        %v7821 = vperm.slane %v7733, %v7820
        %v7822 = vrot.slane %v7821, 4
        %v7823 = vsel %vm219, %v7822, %v7816
        %v7824 = vrot.slane %v7816, 4
        %v7825 = vsel %vm219, %v7821, %v7824
        %v7827 = vunpack.c.l.s4 1934713408
        %v7828 = vunpack.c.0.s8 %v7827
        %v7829 = vperm.slane %v7823, %v7828
        %v7831 = vunpack.c.l.s4 1934713408
        %v7832 = vunpack.c.0.s8 %v7831
        %v7833 = vperm.slane %v7825, %v7832
        %v7834 = vrot.slane %v7829, 4
        %v7835 = vsel %vm219, 0, %v7834
        %v7836 = vrot.slane %v7833, 4
        %v7837 = vsel %vm219, 0, %v7836
        %v7839 = vunpack.c.l.b16 %v7777
        %v7840 = vpack.c.b16 %v7839, %v7839
        %7841 = vrot.lane.b32.xlu0 %v7840, 16
        %v7842 = vpop.permute.xlu0 %7841
        %v7844 = vunpack.c.l.b16 %v7757
        %v7845 = vpack.c.b16 %v7844, %v7844
        %7846 = vrot.lane.b32.xlu0 %v7845, 32
        %v7847 = vpop.permute.xlu0 %7846
        %v7849 = vunpack.c.l.b16 %v7783
        %v7850 = vpack.c.b16 %v7849, %v7849
        %7851 = vrot.lane.b32.xlu0 %v7850, 48
        %v7852 = vpop.permute.xlu0 %7851
        %v7854 = vunpack.c.l.b16 %v7755
        %v7855 = vpack.c.b16 %v7854, %v7854
        %7856 = vrot.lane.b32.xlu0 %v7855, 64
        %v7857 = vpop.permute.xlu0 %7856
        %v7859 = vunpack.c.l.b16 %v7781
        %v7860 = vpack.c.b16 %v7859, %v7859
        %7861 = vrot.lane.b32.xlu0 %v7860, 80
        %v7862 = vpop.permute.xlu0 %7861
        %v7864 = vunpack.c.l.b16 %v7759
        %v7865 = vpack.c.b16 %v7864, %v7864
        %7866 = vrot.lane.b32.xlu0 %v7865, 96
        %v7867 = vpop.permute.xlu0 %7866
        %v7869 = vunpack.c.l.b16 %v7785
        %v7870 = vpack.c.b16 %v7869, %v7869
        %7871 = vrot.lane.b32.xlu0 %v7870, 112
        %v7872 = vpop.permute.xlu0 %7871
        %v7874 = vunpack.c.l.b16 %v7829
        %v7875 = vpack.c.b16 %v7874, %v7874
        %7876 = vrot.lane.b32.xlu0 %v7875, 16
        %v7877 = vpop.permute.xlu0 %7876
        %v7879 = vunpack.c.l.b16 %v7809
        %v7880 = vpack.c.b16 %v7879, %v7879
        %7881 = vrot.lane.b32.xlu0 %v7880, 32
        %v7882 = vpop.permute.xlu0 %7881
        %v7884 = vunpack.c.l.b16 %v7835
        %v7885 = vpack.c.b16 %v7884, %v7884
        %7886 = vrot.lane.b32.xlu0 %v7885, 48
        %v7887 = vpop.permute.xlu0 %7886
        %v7889 = vunpack.c.l.b16 %v7807
        %v7890 = vpack.c.b16 %v7889, %v7889
        %7891 = vrot.lane.b32.xlu0 %v7890, 64
        %v7892 = vpop.permute.xlu0 %7891
        %v7894 = vunpack.c.l.b16 %v7833
        %v7895 = vpack.c.b16 %v7894, %v7894
        %7896 = vrot.lane.b32.xlu0 %v7895, 80
        %v7897 = vpop.permute.xlu0 %7896
        %v7899 = vunpack.c.l.b16 %v7811
        %v7900 = vpack.c.b16 %v7899, %v7899
        %7901 = vrot.lane.b32.xlu0 %v7900, 96
        %v7902 = vpop.permute.xlu0 %7901
        %v7904 = vunpack.c.l.b16 %v7837
        %v7905 = vpack.c.b16 %v7904, %v7904
        %7906 = vrot.lane.b32.xlu0 %v7905, 112
        %v7907 = vpop.permute.xlu0 %7906
        %v7910 = vsel %vm383, %v7751, %v7842
        %v7912 = vsel %vm387, %v7910, %v7847
        %v7914 = vsel %vm390, %v7912, %v7852
        %v7916 = vsel %vm393, %v7914, %v7857
        %v7918 = vsel %vm396, %v7916, %v7862
        %v7920 = vsel %vm399, %v7918, %v7867
        %v7922 = vsel %vm402, %v7920, %v7872
        %v7925 = vsel %vm383, %v7803, %v7877
        %v7927 = vsel %vm387, %v7925, %v7882
        %v7929 = vsel %vm390, %v7927, %v7887
        %v7931 = vsel %vm393, %v7929, %v7892
        %v7933 = vsel %vm396, %v7931, %v7897
        %v7935 = vsel %vm399, %v7933, %v7902
        %v7937 = vsel %vm402, %v7935, %v7907
        %v7940 = vunpack.c.l.b16 %v7922
        %v7941 = vunpack.c.l.b16 %v7937
        %v7942 = vpack.c.b16 %v7941, %v7940
        %7944 = vst [vmem:[#allocation2 + $0x18] sm:$0x33] %v7942
        %v7945 = vld [vmem:[%s5816] sm:$0xe]
        %v7946 = vld [vmem:[%s5816 + $0x4] sm:$0xf]
        %v7947 = vld [vmem:[%s5816 + $0x8] sm:$0x1]
        %v7948 = vld [vmem:[%s5816 + $0xc] sm:$0xe]
        %v7949 = vld [vmem:[%s5816 + $0x10] sm:$0xf]
        %v7950 = vld [vmem:[%s5816 + $0x14] sm:$0x1]
        %v7951 = vld [vmem:[%s5816 + $0x18] sm:$0xe]
        %v7952 = vld [vmem:[%s5816 + $0x1c] sm:$0xf]
        %v7953 = vld [vmem:[%s5816 + $0x20] sm:$0x1]
        %v7954 = vld [vmem:[%s5816 + $0x24] sm:$0xe]
        %v7955 = vld [vmem:[%s5816 + $0x28] sm:$0xf]
        %v7956 = vld [vmem:[%s5816 + $0x2c] sm:$0x1]
        %v7969 = vrot.slane %v7945, 5
        %v7970 = vrot.slane %v7969, 4
        %v7971 = vrot.slane %v7946, 5
        %v7972 = vsel %vm2054, %v7970, %v7971
        %v7973 = vrot.slane %v7971, 4
        %v7974 = vrot.slane %v7947, 5
        %v7975 = vsel %vm2054, %v7973, %v7974
        %v7976 = vrot.slane %v7948, 5
        %v7977 = vrot.slane %v7976, 4
        %v7978 = vrot.slane %v7949, 5
        %v7979 = vsel %vm2054, %v7977, %v7978
        %v7980 = vrot.slane %v7978, 4
        %v7981 = vrot.slane %v7950, 5
        %v7982 = vsel %vm2054, %v7980, %v7981
        %v7983 = vrot.slane %v7951, 5
        %v7984 = vrot.slane %v7983, 4
        %v7985 = vrot.slane %v7952, 5
        %v7986 = vsel %vm2054, %v7984, %v7985
        %v7987 = vrot.slane %v7985, 4
        %v7988 = vrot.slane %v7953, 5
        %v7989 = vsel %vm2054, %v7987, %v7988
        %v7990 = vrot.slane %v7954, 5
        %v7991 = vrot.slane %v7990, 4
        %v7992 = vrot.slane %v7955, 5
        %v7993 = vsel %vm2054, %v7991, %v7992
        %v7994 = vrot.slane %v7992, 4
        %v7995 = vrot.slane %v7956, 5
        %v7996 = vsel %vm2054, %v7994, %v7995
        %7997 = vrot.lane.b32.xlu0 %v7972, 127
        %v7998 = vpop.permute.xlu0 %7997
        %7999 = vrot.lane.b32.xlu0 %v7975, 127
        %v8000 = vpop.permute.xlu0 %7999
        %8001 = vrot.lane.b32.xlu0 %v7979, 127
        %v8002 = vpop.permute.xlu0 %8001
        %8003 = vrot.lane.b32.xlu0 %v7982, 127
        %v8004 = vpop.permute.xlu0 %8003
        %8005 = vrot.lane.b32.xlu0 %v7986, 127
        %v8006 = vpop.permute.xlu0 %8005
        %8007 = vrot.lane.b32.xlu0 %v7989, 127
        %v8008 = vpop.permute.xlu0 %8007
        %8009 = vrot.lane.b32.xlu0 %v7993, 127
        %v8010 = vpop.permute.xlu0 %8009
        %8011 = vrot.lane.b32.xlu0 %v7996, 127
        %v8012 = vpop.permute.xlu0 %8011
        %v8015 = vpack.i.b16 %v8002, %v7998
        %v8016 = vshrl.u32 %v7998, 16
        %v8017 = vshrl.u32 %v8002, 16
        %v8018 = vpack.i.b16 %v8017, %v8016
        %v8021 = vpack.i.b16 %v8010, %v8006
        %v8022 = vshrl.u32 %v8006, 16
        %v8023 = vshrl.u32 %v8010, 16
        %v8024 = vpack.i.b16 %v8023, %v8022
        %v8027 = vpack.i.b16 %v8004, %v8000
        %v8028 = vshrl.u32 %v8000, 16
        %v8029 = vshrl.u32 %v8004, 16
        %v8030 = vpack.i.b16 %v8029, %v8028
        %v8033 = vpack.i.b16 %v8012, %v8008
        %v8034 = vshrl.u32 %v8008, 16
        %v8035 = vshrl.u32 %v8012, 16
        %v8036 = vpack.i.b16 %v8035, %v8034
        %v8039 = vunpack.c.l.s4 1983009808
        %v8040 = vunpack.c.0.s8 %v8039
        %v8041 = vperm.slane %v8015, %v8040
        %v8044 = vunpack.c.l.s4 1983009808
        %v8045 = vunpack.c.0.s8 %v8044
        %v8046 = vperm.slane %v8021, %v8045
        %v8047 = vrot.slane %v8046, 4
        %v8048 = vsel %vm219, %v8047, %v8041
        %v8049 = vrot.slane %v8041, 4
        %v8050 = vsel %vm219, %v8046, %v8049
        %v8052 = vunpack.c.l.s4 1934713408
        %v8053 = vunpack.c.0.s8 %v8052
        %v8054 = vperm.slane %v8048, %v8053
        %v8056 = vunpack.c.l.s4 1934713408
        %v8057 = vunpack.c.0.s8 %v8056
        %v8058 = vperm.slane %v8050, %v8057
        %v8059 = vrot.slane %v8054, 4
        %v8060 = vsel %vm219, 0, %v8059
        %v8061 = vrot.slane %v8058, 4
        %v8062 = vsel %vm219, 0, %v8061
        %v8065 = vunpack.c.l.s4 1983009808
        %v8066 = vunpack.c.0.s8 %v8065
        %v8067 = vperm.slane %v8018, %v8066
        %v8070 = vunpack.c.l.s4 1983009808
        %v8071 = vunpack.c.0.s8 %v8070
        %v8072 = vperm.slane %v8024, %v8071
        %v8073 = vrot.slane %v8072, 4
        %v8074 = vsel %vm219, %v8073, %v8067
        %v8075 = vrot.slane %v8067, 4
        %v8076 = vsel %vm219, %v8072, %v8075
        %v8078 = vunpack.c.l.s4 1934713408
        %v8079 = vunpack.c.0.s8 %v8078
        %v8080 = vperm.slane %v8074, %v8079
        %v8082 = vunpack.c.l.s4 1934713408
        %v8083 = vunpack.c.0.s8 %v8082
        %v8084 = vperm.slane %v8076, %v8083
        %v8085 = vrot.slane %v8080, 4
        %v8086 = vsel %vm219, 0, %v8085
        %v8087 = vrot.slane %v8084, 4
        %v8088 = vsel %vm219, 0, %v8087
        %v8091 = vunpack.c.l.s4 1983009808
        %v8092 = vunpack.c.0.s8 %v8091
        %v8093 = vperm.slane %v8027, %v8092
        %v8096 = vunpack.c.l.s4 1983009808
        %v8097 = vunpack.c.0.s8 %v8096
        %v8098 = vperm.slane %v8033, %v8097
        %v8099 = vrot.slane %v8098, 4
        %v8100 = vsel %vm219, %v8099, %v8093
        %v8101 = vrot.slane %v8093, 4
        %v8102 = vsel %vm219, %v8098, %v8101
        %v8104 = vunpack.c.l.s4 1934713408
        %v8105 = vunpack.c.0.s8 %v8104
        %v8106 = vperm.slane %v8100, %v8105
        %v8108 = vunpack.c.l.s4 1934713408
        %v8109 = vunpack.c.0.s8 %v8108
        %v8110 = vperm.slane %v8102, %v8109
        %v8111 = vrot.slane %v8106, 4
        %v8112 = vsel %vm219, 0, %v8111
        %v8113 = vrot.slane %v8110, 4
        %v8114 = vsel %vm219, 0, %v8113
        %v8117 = vunpack.c.l.s4 1983009808
        %v8118 = vunpack.c.0.s8 %v8117
        %v8119 = vperm.slane %v8030, %v8118
        %v8122 = vunpack.c.l.s4 1983009808
        %v8123 = vunpack.c.0.s8 %v8122
        %v8124 = vperm.slane %v8036, %v8123
        %v8125 = vrot.slane %v8124, 4
        %v8126 = vsel %vm219, %v8125, %v8119
        %v8127 = vrot.slane %v8119, 4
        %v8128 = vsel %vm219, %v8124, %v8127
        %v8130 = vunpack.c.l.s4 1934713408
        %v8131 = vunpack.c.0.s8 %v8130
        %v8132 = vperm.slane %v8126, %v8131
        %v8134 = vunpack.c.l.s4 1934713408
        %v8135 = vunpack.c.0.s8 %v8134
        %v8136 = vperm.slane %v8128, %v8135
        %v8137 = vrot.slane %v8132, 4
        %v8138 = vsel %vm219, 0, %v8137
        %v8139 = vrot.slane %v8136, 4
        %v8140 = vsel %vm219, 0, %v8139
        %v8142 = vunpack.c.l.b16 %v8080
        %v8143 = vpack.c.b16 %v8142, %v8142
        %8144 = vrot.lane.b32.xlu0 %v8143, 16
        %v8145 = vpop.permute.xlu0 %8144
        %v8147 = vunpack.c.l.b16 %v8060
        %v8148 = vpack.c.b16 %v8147, %v8147
        %8149 = vrot.lane.b32.xlu0 %v8148, 32
        %v8150 = vpop.permute.xlu0 %8149
        %v8152 = vunpack.c.l.b16 %v8086
        %v8153 = vpack.c.b16 %v8152, %v8152
        %8154 = vrot.lane.b32.xlu0 %v8153, 48
        %v8155 = vpop.permute.xlu0 %8154
        %v8157 = vunpack.c.l.b16 %v8058
        %v8158 = vpack.c.b16 %v8157, %v8157
        %8159 = vrot.lane.b32.xlu0 %v8158, 64
        %v8160 = vpop.permute.xlu0 %8159
        %v8162 = vunpack.c.l.b16 %v8084
        %v8163 = vpack.c.b16 %v8162, %v8162
        %8164 = vrot.lane.b32.xlu0 %v8163, 80
        %v8165 = vpop.permute.xlu0 %8164
        %v8167 = vunpack.c.l.b16 %v8062
        %v8168 = vpack.c.b16 %v8167, %v8167
        %8169 = vrot.lane.b32.xlu0 %v8168, 96
        %v8170 = vpop.permute.xlu0 %8169
        %v8172 = vunpack.c.l.b16 %v8088
        %v8173 = vpack.c.b16 %v8172, %v8172
        %8174 = vrot.lane.b32.xlu0 %v8173, 112
        %v8175 = vpop.permute.xlu0 %8174
        %v8177 = vunpack.c.l.b16 %v8132
        %v8178 = vpack.c.b16 %v8177, %v8177
        %8179 = vrot.lane.b32.xlu0 %v8178, 16
        %v8180 = vpop.permute.xlu0 %8179
        %v8182 = vunpack.c.l.b16 %v8112
        %v8183 = vpack.c.b16 %v8182, %v8182
        %8184 = vrot.lane.b32.xlu0 %v8183, 32
        %v8185 = vpop.permute.xlu0 %8184
        %v8187 = vunpack.c.l.b16 %v8138
        %v8188 = vpack.c.b16 %v8187, %v8187
        %8189 = vrot.lane.b32.xlu0 %v8188, 48
        %v8190 = vpop.permute.xlu0 %8189
        %v8192 = vunpack.c.l.b16 %v8110
        %v8193 = vpack.c.b16 %v8192, %v8192
        %8194 = vrot.lane.b32.xlu0 %v8193, 64
        %v8195 = vpop.permute.xlu0 %8194
        %v8197 = vunpack.c.l.b16 %v8136
        %v8198 = vpack.c.b16 %v8197, %v8197
        %8199 = vrot.lane.b32.xlu0 %v8198, 80
        %v8200 = vpop.permute.xlu0 %8199
        %v8202 = vunpack.c.l.b16 %v8114
        %v8203 = vpack.c.b16 %v8202, %v8202
        %8204 = vrot.lane.b32.xlu0 %v8203, 96
        %v8205 = vpop.permute.xlu0 %8204
        %v8207 = vunpack.c.l.b16 %v8140
        %v8208 = vpack.c.b16 %v8207, %v8207
        %8209 = vrot.lane.b32.xlu0 %v8208, 112
        %v8210 = vpop.permute.xlu0 %8209
        %v8213 = vsel %vm383, %v8054, %v8145
        %v8215 = vsel %vm387, %v8213, %v8150
        %v8217 = vsel %vm390, %v8215, %v8155
        %v8219 = vsel %vm393, %v8217, %v8160
        %v8221 = vsel %vm396, %v8219, %v8165
        %v8223 = vsel %vm399, %v8221, %v8170
        %v8225 = vsel %vm402, %v8223, %v8175
        %v8228 = vsel %vm383, %v8106, %v8180
        %v8230 = vsel %vm387, %v8228, %v8185
        %v8232 = vsel %vm390, %v8230, %v8190
        %v8234 = vsel %vm393, %v8232, %v8195
        %v8236 = vsel %vm396, %v8234, %v8200
        %v8238 = vsel %vm399, %v8236, %v8205
        %v8240 = vsel %vm402, %v8238, %v8210
        %v8243 = vunpack.c.l.b16 %v8225
        %v8244 = vunpack.c.l.b16 %v8240
        %v8245 = vpack.c.b16 %v8244, %v8243
        %v8246 = vrot.slane %v8245, 6
        %8248 = vst [vmem:[#allocation2 + $0x18] sm:$0xcc] %v8246
        %v8249 = vld [vmem:[%s5816] sm:$0xe]
        %v8250 = vld [vmem:[%s5816 + $0x4] sm:$0xf]
        %v8251 = vld [vmem:[%s5816 + $0x8] sm:$0x1]
        %v8252 = vld [vmem:[%s5816 + $0xc] sm:$0xe]
        %v8253 = vld [vmem:[%s5816 + $0x10] sm:$0xf]
        %v8254 = vld [vmem:[%s5816 + $0x14] sm:$0x1]
        %v8255 = vld [vmem:[%s5816 + $0x18] sm:$0xe]
        %v8256 = vld [vmem:[%s5816 + $0x1c] sm:$0xf]
        %v8257 = vld [vmem:[%s5816 + $0x20] sm:$0x1]
        %v8258 = vld [vmem:[%s5816 + $0x24] sm:$0xe]
        %v8259 = vld [vmem:[%s5816 + $0x28] sm:$0xf]
        %v8260 = vld [vmem:[%s5816 + $0x2c] sm:$0x1]
        %v8273 = vrot.slane %v8249, 5
        %v8274 = vrot.slane %v8273, 4
        %v8275 = vrot.slane %v8250, 5
        %v8276 = vsel %vm2054, %v8274, %v8275
        %v8277 = vrot.slane %v8275, 4
        %v8278 = vrot.slane %v8251, 5
        %v8279 = vsel %vm2054, %v8277, %v8278
        %v8280 = vrot.slane %v8252, 5
        %v8281 = vrot.slane %v8280, 4
        %v8282 = vrot.slane %v8253, 5
        %v8283 = vsel %vm2054, %v8281, %v8282
        %v8284 = vrot.slane %v8282, 4
        %v8285 = vrot.slane %v8254, 5
        %v8286 = vsel %vm2054, %v8284, %v8285
        %v8287 = vrot.slane %v8255, 5
        %v8288 = vrot.slane %v8287, 4
        %v8289 = vrot.slane %v8256, 5
        %v8290 = vsel %vm2054, %v8288, %v8289
        %v8291 = vrot.slane %v8289, 4
        %v8292 = vrot.slane %v8257, 5
        %v8293 = vsel %vm2054, %v8291, %v8292
        %v8294 = vrot.slane %v8258, 5
        %v8295 = vrot.slane %v8294, 4
        %v8296 = vrot.slane %v8259, 5
        %v8297 = vsel %vm2054, %v8295, %v8296
        %v8298 = vrot.slane %v8296, 4
        %v8299 = vrot.slane %v8260, 5
        %v8300 = vsel %vm2054, %v8298, %v8299
        %8301 = vrot.lane.b32.xlu0 %v8276, 126
        %v8302 = vpop.permute.xlu0 %8301
        %8303 = vrot.lane.b32.xlu0 %v8279, 126
        %v8304 = vpop.permute.xlu0 %8303
        %8305 = vrot.lane.b32.xlu0 %v8283, 126
        %v8306 = vpop.permute.xlu0 %8305
        %8307 = vrot.lane.b32.xlu0 %v8286, 126
        %v8308 = vpop.permute.xlu0 %8307
        %8309 = vrot.lane.b32.xlu0 %v8290, 126
        %v8310 = vpop.permute.xlu0 %8309
        %8311 = vrot.lane.b32.xlu0 %v8293, 126
        %v8312 = vpop.permute.xlu0 %8311
        %8313 = vrot.lane.b32.xlu0 %v8297, 126
        %v8314 = vpop.permute.xlu0 %8313
        %8315 = vrot.lane.b32.xlu0 %v8300, 126
        %v8316 = vpop.permute.xlu0 %8315
        %v8319 = vpack.i.b16 %v8306, %v8302
        %v8320 = vshrl.u32 %v8302, 16
        %v8321 = vshrl.u32 %v8306, 16
        %v8322 = vpack.i.b16 %v8321, %v8320
        %v8325 = vpack.i.b16 %v8314, %v8310
        %v8326 = vshrl.u32 %v8310, 16
        %v8327 = vshrl.u32 %v8314, 16
        %v8328 = vpack.i.b16 %v8327, %v8326
        %v8331 = vpack.i.b16 %v8308, %v8304
        %v8332 = vshrl.u32 %v8304, 16
        %v8333 = vshrl.u32 %v8308, 16
        %v8334 = vpack.i.b16 %v8333, %v8332
        %v8337 = vpack.i.b16 %v8316, %v8312
        %v8338 = vshrl.u32 %v8312, 16
        %v8339 = vshrl.u32 %v8316, 16
        %v8340 = vpack.i.b16 %v8339, %v8338
        %v8343 = vunpack.c.l.s4 1983009808
        %v8344 = vunpack.c.0.s8 %v8343
        %v8345 = vperm.slane %v8319, %v8344
        %v8348 = vunpack.c.l.s4 1983009808
        %v8349 = vunpack.c.0.s8 %v8348
        %v8350 = vperm.slane %v8325, %v8349
        %v8351 = vrot.slane %v8350, 4
        %v8352 = vsel %vm219, %v8351, %v8345
        %v8353 = vrot.slane %v8345, 4
        %v8354 = vsel %vm219, %v8350, %v8353
        %v8356 = vunpack.c.l.s4 1934713408
        %v8357 = vunpack.c.0.s8 %v8356
        %v8358 = vperm.slane %v8352, %v8357
        %v8360 = vunpack.c.l.s4 1934713408
        %v8361 = vunpack.c.0.s8 %v8360
        %v8362 = vperm.slane %v8354, %v8361
        %v8363 = vrot.slane %v8358, 4
        %v8364 = vsel %vm219, 0, %v8363
        %v8365 = vrot.slane %v8362, 4
        %v8366 = vsel %vm219, 0, %v8365
        %v8369 = vunpack.c.l.s4 1983009808
        %v8370 = vunpack.c.0.s8 %v8369
        %v8371 = vperm.slane %v8322, %v8370
        %v8374 = vunpack.c.l.s4 1983009808
        %v8375 = vunpack.c.0.s8 %v8374
        %v8376 = vperm.slane %v8328, %v8375
        %v8377 = vrot.slane %v8376, 4
        %v8378 = vsel %vm219, %v8377, %v8371
        %v8379 = vrot.slane %v8371, 4
        %v8380 = vsel %vm219, %v8376, %v8379
        %v8382 = vunpack.c.l.s4 1934713408
        %v8383 = vunpack.c.0.s8 %v8382
        %v8384 = vperm.slane %v8378, %v8383
        %v8386 = vunpack.c.l.s4 1934713408
        %v8387 = vunpack.c.0.s8 %v8386
        %v8388 = vperm.slane %v8380, %v8387
        %v8389 = vrot.slane %v8384, 4
        %v8390 = vsel %vm219, 0, %v8389
        %v8391 = vrot.slane %v8388, 4
        %v8392 = vsel %vm219, 0, %v8391
        %v8395 = vunpack.c.l.s4 1983009808
        %v8396 = vunpack.c.0.s8 %v8395
        %v8397 = vperm.slane %v8331, %v8396
        %v8400 = vunpack.c.l.s4 1983009808
        %v8401 = vunpack.c.0.s8 %v8400
        %v8402 = vperm.slane %v8337, %v8401
        %v8403 = vrot.slane %v8402, 4
        %v8404 = vsel %vm219, %v8403, %v8397
        %v8405 = vrot.slane %v8397, 4
        %v8406 = vsel %vm219, %v8402, %v8405
        %v8408 = vunpack.c.l.s4 1934713408
        %v8409 = vunpack.c.0.s8 %v8408
        %v8410 = vperm.slane %v8404, %v8409
        %v8412 = vunpack.c.l.s4 1934713408
        %v8413 = vunpack.c.0.s8 %v8412
        %v8414 = vperm.slane %v8406, %v8413
        %v8415 = vrot.slane %v8410, 4
        %v8416 = vsel %vm219, 0, %v8415
        %v8417 = vrot.slane %v8414, 4
        %v8418 = vsel %vm219, 0, %v8417
        %v8421 = vunpack.c.l.s4 1983009808
        %v8422 = vunpack.c.0.s8 %v8421
        %v8423 = vperm.slane %v8334, %v8422
        %v8426 = vunpack.c.l.s4 1983009808
        %v8427 = vunpack.c.0.s8 %v8426
        %v8428 = vperm.slane %v8340, %v8427
        %v8429 = vrot.slane %v8428, 4
        %v8430 = vsel %vm219, %v8429, %v8423
        %v8431 = vrot.slane %v8423, 4
        %v8432 = vsel %vm219, %v8428, %v8431
        %v8434 = vunpack.c.l.s4 1934713408
        %v8435 = vunpack.c.0.s8 %v8434
        %v8436 = vperm.slane %v8430, %v8435
        %v8438 = vunpack.c.l.s4 1934713408
        %v8439 = vunpack.c.0.s8 %v8438
        %v8440 = vperm.slane %v8432, %v8439
        %v8441 = vrot.slane %v8436, 4
        %v8442 = vsel %vm219, 0, %v8441
        %v8443 = vrot.slane %v8440, 4
        %v8444 = vsel %vm219, 0, %v8443
        %v8446 = vunpack.c.l.b16 %v8384
        %v8447 = vpack.c.b16 %v8446, %v8446
        %8448 = vrot.lane.b32.xlu0 %v8447, 16
        %v8449 = vpop.permute.xlu0 %8448
        %v8451 = vunpack.c.l.b16 %v8364
        %v8452 = vpack.c.b16 %v8451, %v8451
        %8453 = vrot.lane.b32.xlu0 %v8452, 32
        %v8454 = vpop.permute.xlu0 %8453
        %v8456 = vunpack.c.l.b16 %v8390
        %v8457 = vpack.c.b16 %v8456, %v8456
        %8458 = vrot.lane.b32.xlu0 %v8457, 48
        %v8459 = vpop.permute.xlu0 %8458
        %v8461 = vunpack.c.l.b16 %v8362
        %v8462 = vpack.c.b16 %v8461, %v8461
        %8463 = vrot.lane.b32.xlu0 %v8462, 64
        %v8464 = vpop.permute.xlu0 %8463
        %v8466 = vunpack.c.l.b16 %v8388
        %v8467 = vpack.c.b16 %v8466, %v8466
        %8468 = vrot.lane.b32.xlu0 %v8467, 80
        %v8469 = vpop.permute.xlu0 %8468
        %v8471 = vunpack.c.l.b16 %v8366
        %v8472 = vpack.c.b16 %v8471, %v8471
        %8473 = vrot.lane.b32.xlu0 %v8472, 96
        %v8474 = vpop.permute.xlu0 %8473
        %v8476 = vunpack.c.l.b16 %v8392
        %v8477 = vpack.c.b16 %v8476, %v8476
        %8478 = vrot.lane.b32.xlu0 %v8477, 112
        %v8479 = vpop.permute.xlu0 %8478
        %v8481 = vunpack.c.l.b16 %v8436
        %v8482 = vpack.c.b16 %v8481, %v8481
        %8483 = vrot.lane.b32.xlu0 %v8482, 16
        %v8484 = vpop.permute.xlu0 %8483
        %v8486 = vunpack.c.l.b16 %v8416
        %v8487 = vpack.c.b16 %v8486, %v8486
        %8488 = vrot.lane.b32.xlu0 %v8487, 32
        %v8489 = vpop.permute.xlu0 %8488
        %v8491 = vunpack.c.l.b16 %v8442
        %v8492 = vpack.c.b16 %v8491, %v8491
        %8493 = vrot.lane.b32.xlu0 %v8492, 48
        %v8494 = vpop.permute.xlu0 %8493
        %v8496 = vunpack.c.l.b16 %v8414
        %v8497 = vpack.c.b16 %v8496, %v8496
        %8498 = vrot.lane.b32.xlu0 %v8497, 64
        %v8499 = vpop.permute.xlu0 %8498
        %v8501 = vunpack.c.l.b16 %v8440
        %v8502 = vpack.c.b16 %v8501, %v8501
        %8503 = vrot.lane.b32.xlu0 %v8502, 80
        %v8504 = vpop.permute.xlu0 %8503
        %v8506 = vunpack.c.l.b16 %v8418
        %v8507 = vpack.c.b16 %v8506, %v8506
        %8508 = vrot.lane.b32.xlu0 %v8507, 96
        %v8509 = vpop.permute.xlu0 %8508
        %v8511 = vunpack.c.l.b16 %v8444
        %v8512 = vpack.c.b16 %v8511, %v8511
        %8513 = vrot.lane.b32.xlu0 %v8512, 112
        %v8514 = vpop.permute.xlu0 %8513
        %v8517 = vsel %vm383, %v8358, %v8449
        %v8519 = vsel %vm387, %v8517, %v8454
        %v8521 = vsel %vm390, %v8519, %v8459
        %v8523 = vsel %vm393, %v8521, %v8464
        %v8525 = vsel %vm396, %v8523, %v8469
        %v8527 = vsel %vm399, %v8525, %v8474
        %v8529 = vsel %vm402, %v8527, %v8479
        %v8532 = vsel %vm383, %v8410, %v8484
        %v8534 = vsel %vm387, %v8532, %v8489
        %v8536 = vsel %vm390, %v8534, %v8494
        %v8538 = vsel %vm393, %v8536, %v8499
        %v8540 = vsel %vm396, %v8538, %v8504
        %v8542 = vsel %vm399, %v8540, %v8509
        %v8544 = vsel %vm402, %v8542, %v8514
        %v8547 = vunpack.c.l.b16 %v8529
        %v8548 = vunpack.c.l.b16 %v8544
        %v8549 = vpack.c.b16 %v8548, %v8547
        %8551 = vst [vmem:[#allocation2 + $0x20] sm:$0x33] %v8549
        %v8552 = vld [vmem:[%s1] sm:$0xf]
        %v8553 = vld [vmem:[#allocation2] sm:$0xff]
        %v8554 = vld [vmem:[#allocation2 + $0x8] sm:$0xff]
        %v8555 = vld [vmem:[#allocation2 + $0x10] sm:$0xff]
        %v8556 = vld [vmem:[#allocation2 + $0x18] sm:$0xff]
        %v8557 = vld [vmem:[#allocation2 + $0x20] sm:$0x33]
        %v8558 = vld [vmem:[%s2] sm:$0xff]
        %8560 = vset.pattern.permute.xlu0 0
        %8561 = vperm.xlu0 %8560, %v8558
        %v8562 = vpop.permute.xlu0 %8561
        %v8569 = vunpack.c.l.b16 %v8553
        %v8570 = vunpack.c.h.b16 %v8553
        %v8571 = vunpack.c.l.b16 %v8554
        %v8572 = vunpack.c.h.b16 %v8554
        %v8573 = vunpack.c.l.b16 %v8555
        %v8574 = vunpack.c.h.b16 %v8555
        %v8575 = vunpack.c.l.b16 %v8556
        %v8576 = vunpack.c.h.b16 %v8556
        %v8577 = vunpack.c.l.b16 %v8557
        %v8578 = vunpack.c.h.b16 %v8557
        %v8579 = vpack.c.b16 %v8571, %v8569
        %v8580 = vpack.c.b16 %v8572, %v8570
        %v8581 = vpack.c.b16 %v8575, %v8573
        %v8582 = vpack.c.b16 %v8576, %v8574
        %v8583 = vpack.c.b16 %v8577, %v8577
        %v8584 = vpack.c.b16 %v8578, %v8578
        %v8590 = vsel %vm2962, %v8552, 0
        %v8593 = vsel %vm2966, %v8583, 0
        %v8596 = vsel %vm2966, %v8584, 0
        %8598 = vmatpush.bf16.msra.mxu0 0
        %8599 = vmatpush.bf16.msra.mxu0 0
        %8600 = vmatpush.bf16.msra.mxu0 0
        %8601 = vmatpush.bf16.msra.mxu0 0
        %8602 = vmatpush.bf16.msra.mxu0 0
        %8603 = vmatpush.bf16.msra.mxu0 %v8593
        %8604 = vmatpush.bf16.msra.mxu0 %v8581
        %8605 = vmatpush.bf16.msra.mxu0 %v8579
        %8606 = vmatmul.bf16.gmra.mxu0 %v8590
        %v8607 = vpop.f32.mrf.mxu0
        %v8608 = vadd.f32 %v8562, %v8607
        %v8609 = vpop.f32.mrf.mxu0
        %8610 = vdwg.mxu0
        %8611 = vmatpush.bf16.msra.mxu0 0
        %8612 = vmatpush.bf16.msra.mxu0 0
        %8613 = vmatpush.bf16.msra.mxu0 0
        %8614 = vmatpush.bf16.msra.mxu0 0
        %8615 = vmatpush.bf16.msra.mxu0 0
        %8616 = vmatpush.bf16.msra.mxu0 %v8596
        %8617 = vmatpush.bf16.msra.mxu0 %v8582
        %8618 = vmatpush.bf16.msra.mxu0 %v8580
        %8619 = vmatmul.bf16.gmra.mxu0 %v8590
        %v8620 = vpop.f32.mrf.mxu0
        %v8621 = vadd.f32 %v8562, %v8620
        %v8622 = vpop.f32.mrf.mxu0
        %8623 = vdwg.mxu0
        %v8624 = vmax.f32 %v8608, 0.0
        %v8625 = vmax.f32 %v8621, 0.0
        %v8626 = vpack.c.bf16 %v8625, %v8624
        %s8627 = scalar_lea.vmem %s166, 16 [#allocation3]
        %8628 = vst [vmem:[%s8627] sm:$0xff] %v8626
        %s8629 = sand.u32 %s93, 1
        %s8630 = scalar_lea.sflag [#allocation4], %s8629
        %s8631 = sand.u32 %s93, 1
        %s8632 = smul.addr %s8631, 24
        %s8633 = scalar_lea.vmem [#allocation3], %s8632
        // Predicated region
        $region33: #{tpu_custom_call.1} parent=31 // pred_check
          %p8634 = pneg %p103
        $region34: #{tpu_custom_call.1} parent=31 // pred_check_branch
          %8636 = sbr.rel (%p8634) target = $region36
        $region35: #{tpu_custom_call.1} parent=31 // pred_region
          %s8637 = smul.u32 3, %s17
          %8639 = vsyncadd %s8630, 0
          %s8640 = smul.addr %s8637, 2
          %s8641 = smul.addr %s8640, 4
          %s8642 = scalar_lea.hbm %s3, %s8641
          %s8643 = sshll.u32 %s8633, 4
          %s8644 = int_to_ptr.vmem [resolvable:$true] %s8643
          %s8645 = sshll.u32 %s8642, 4
          %s8646 = int_to_ptr.hbm [resolvable:$true] %s8645
          %8651 = dma.vmem_to_hbm [thread:$0]  %s8644, 384, %s8646, %s8630, 128, 128, 8
        $region36: #{tpu_custom_call.1} parent=31 // pred_fallthru
          _
      $region32: #{tpu_custom_call.1} parent=5 // pred_fallthru
        _
      %p8652 = scmp.le.s32.totalorder 2, %s12
      // Predicated region
      $region37: #{tpu_custom_call.1} parent=5 // pred_check
        %p8653 = pneg %p8652
      $region38: #{tpu_custom_call.1} parent=5 // pred_check_branch
        %8655 = sbr.rel (%p8653) target = $region40
      $region39: #{tpu_custom_call.1} parent=5 // pred_region
        %s8656 = ssub.s32 %s12, 2
        // Predicated region
        $region41: #{tpu_custom_call.1} parent=39 // pred_check
          %p8657 = pneg %p109
        $region42: #{tpu_custom_call.1} parent=39 // pred_check_branch
          %8659 = sbr.rel (%p8657) target = $region44
        $region43: #{tpu_custom_call.1} parent=39 // pred_region
          %s8660 = sand.u32 %s94, 1
          %s8661 = scalar_lea.sflag [#allocation4], %s8660
          %s8662 = sand.u32 %s94, 1
          %s8663 = smul.addr %s8662, 24
          %s8664 = scalar_lea.vmem [#allocation3], %s8663
          %8666 = dma.done %s8661, 384
        $region44: #{tpu_custom_call.1} parent=39 // pred_fallthru
          _
      $region40: #{tpu_custom_call.1} parent=5 // pred_fallthru
        _
    $region6: #{tpu_custom_call.1} parent=1 // loop_footer
      %s16 = sadd.s32 1, %s12
    $region7: #{tpu_custom_call.1} parent=1 // loop_footer_branch
      %11 = sbr.rel target = $region3
    $region8: #{tpu_custom_call.1} parent=1 // loop_exit
      _
    %8667 = vsyncpa [#allocation4], 1
    %s8668 = scalar_lea.sflag [#allocation4], 1
    %8669 = vsyncpa %s8668, 1

</llo_original>
